<compile_context>
chip_gen: v6e
topology: v6e:2x2x1
jax: 0.10.0
libtpu: 0.0.40
codegen_flags: <defaults>
</compile_context>

<pallas_src>
import functools

import jax
import jax.numpy as jnp
from jax.experimental import pallas as pl
from jax.experimental.pallas import tpu as pltpu

IN_FEATURES = 1024
OUT_FEATURES = 1024


def _linear_kernel(x_ref, w_ref, b_ref, o_ref, *, precision):
    # x_ref: (TB, K) f32, w_ref: (K, TN) f32, b_ref: (1, TN) f32, o_ref: (TB, TN) f32
    acc = jnp.dot(
        x_ref[...],
        w_ref[...],
        preferred_element_type=jnp.float32,
        precision=precision,
    )
    o_ref[...] = acc + b_ref[...]  # broadcast bias over batch rows


def _round_up(x, m):
    return ((x + m - 1) // m) * m


def linear_pallas(x, w_t, b, *, precision=jax.lax.Precision.HIGHEST):
    """y = x @ w_t + b, fp32.

    x:   [B, K]  float32
    w_t: [K, N]  float32 (transposed PyTorch weight)
    b:   [N]     float32
    precision: HIGHEST (default, fp32 / autocast(False) parity) or HIGH
               (bf16_3x, ~2x MXU throughput when compute-bound).
    """
    B, K = x.shape
    Kw, N = w_t.shape
    assert K == Kw
    assert b.shape == (N,)

    # ---- Adaptive batch tiling ------------------------------------------
    # Fewest batch tiles of size <= 512; each tile only sublane(8)-aligned,
    # so padding waste is at most 7 rows per tile.
    n_bt = pl.cdiv(_round_up(B, 8), 512)          # number of batch tiles
    tb = _round_up(pl.cdiv(B, n_bt), 8)           # rows per tile
    b_pad = n_bt * tb
    if b_pad != B:
        x = jnp.pad(x, ((0, b_pad - B), (0, 0)))  # padded rows -> y = bias, sliced off

    # ---- Adaptive N tiling ----------------------------------------------
    # >=2 batch tiles: full-N output tile -> x and weight read from HBM once.
    # 1 batch tile:    split N in 512-wide tiles -> 2 parallel grid steps so
    #                  both v7x TensorCores share the weight DMA.
    tile_n = N if n_bt >= 2 else min(512, N)
    assert N % tile_n == 0
    n_nt = N // tile_n

    b2d = b.reshape(1, N)

    # Grid: N tiles outer, batch tiles inner — the weight block index is
    # constant across consecutive steps, so the weight is DMA'd once per
    # N tile (4 MiB total traffic), not once per batch tile.
    grid = (n_nt, n_bt)

    cost = pl.CostEstimate(
        flops=2 * b_pad * K * N,
        # x is read once per N tile; weight and bias once; output written once.
        bytes_accessed=4 * (b_pad * K * n_nt + K * N + b_pad * N + N),
        transcendentals=0,
    )

    kernel = functools.partial(_linear_kernel, precision=precision)

    y = pl.pallas_call(
        kernel,
        out_shape=jax.ShapeDtypeStruct((b_pad, N), jnp.float32),
        grid_spec=pltpu.PrefetchScalarGridSpec(
            num_scalar_prefetch=0,
            grid=grid,
            in_specs=[
                pl.BlockSpec((tb, K), lambda j, i: (i, 0)),        # x batch tile
                pl.BlockSpec((K, tile_n), lambda j, i: (0, j)),    # weight column tile
                pl.BlockSpec((1, tile_n), lambda j, i: (0, j)),    # bias column tile
            ],
            out_specs=pl.BlockSpec((tb, tile_n), lambda j, i: (i, j)),
        ),
        compiler_params=pltpu.CompilerParams(
            dimension_semantics=("parallel", "parallel"),
            # Largest config (tb=512, tile_n=1024, double-buffered) is ~16 MiB;
            # raise v5e's 16 MiB scoped default. 32 MiB is within physical
            # VMEM on v5e/v6e (128 MiB) and v7x (64 MiB).
            vmem_limit_bytes=32 << 20,
        ),
        cost_estimate=cost,
    )(x, w_t, b2d)

    return y[:B] if b_pad != B else y


def init_params(key):
    """Deterministic init matching nn.Linear(1024, 1024) shapes."""
    kw, kb = jax.random.split(key)
    bound = 1.0 / (IN_FEATURES ** 0.5)  # PyTorch default uniform bound
    # PyTorch weight is [out, in]; keep its transpose [in, out] for the kernel.
    w = jax.random.uniform(
        kw, (OUT_FEATURES, IN_FEATURES), jnp.float32, minval=-bound, maxval=bound
    )
    b = jax.random.uniform(
        kb, (OUT_FEATURES,), jnp.float32, minval=-bound, maxval=bound
    )
    return w.T, b


if __name__ == "__main__":
    key = jax.random.PRNGKey(0)
    k_x, k_p = jax.random.split(key)

    B = 8  # small demo batch: single batch tile, N split in two (grid = (2, 1))
    x = jax.random.normal(k_x, (B, IN_FEATURES), dtype=jnp.float32)
    w_t, b = init_params(k_p)

    y = linear_pallas(x, w_t, b)
    y = jax.block_until_ready(y)

    # Sanity check against plain JAX reference (fp32, highest precision).
    y_ref = jnp.dot(x, w_t, precision=jax.lax.Precision.HIGHEST) + b
    assert y.shape == (B, OUT_FEATURES)
    assert jnp.allclose(y, y_ref, atol=1e-4, rtol=1e-4)

    print("KERNEL_OK")
</pallas_src>

<mosaic_0001>
module attributes {stable_mosaic.version = 11 : i64} {
  func.func @_linear_kernel(%arg0: i32, %arg1: i32, %arg2: memref<8x1024xf32, #tpu.memory_space<vmem>>, %arg3: memref<1024x512xf32, #tpu.memory_space<vmem>>, %arg4: memref<1x512xf32, #tpu.memory_space<vmem>>, %arg5: memref<8x512xf32, #tpu.memory_space<vmem>>) attributes {dimension_semantics = [#tpu.dimension_semantics<parallel>, #tpu.dimension_semantics<parallel>], iteration_bounds = array<i64: 2, 1>, scalar_prefetch = 0 : i64, scratch_operands = 0 : i64, tpu.core_type = #tpu.core_type<tc>, window_params = [{transform_indices = @transform_0, window_bounds = array<i64: 8, 1024>}, {transform_indices = @transform_1, window_bounds = array<i64: 1024, 512>}, {transform_indices = @transform_2, window_bounds = array<i64: 1, 512>}, {transform_indices = @transform_3, window_bounds = array<i64: 8, 512>}]} {
    %c0 = arith.constant 0 : index
    %c0_0 = arith.constant 0 : index
    %0 = vector.load %arg2[%c0, %c0_0] : memref<8x1024xf32, #tpu.memory_space<vmem>>, vector<8x1024xf32>
    %c0_1 = arith.constant 0 : index
    %c0_2 = arith.constant 0 : index
    %1 = vector.load %arg3[%c0_1, %c0_2] : memref<1024x512xf32, #tpu.memory_space<vmem>>, vector<1024x512xf32>
    %cst = arith.constant dense<0.000000e+00> : vector<8x512xf32>
    %2 = tpu.matmul %0, %1, %cst {dimension_numbers = #tpu.dot_dimension_numbers<[1], [0], [0], [1], [0, 0, 1, 1], [], []>, precision = #tpu.contract_precision<fp32>} : vector<8x1024xf32>, vector<1024x512xf32>, vector<8x512xf32> -> vector<8x512xf32>
    %c0_3 = arith.constant 0 : index
    %c0_4 = arith.constant 0 : index
    %3 = vector.load %arg4[%c0_3, %c0_4] : memref<1x512xf32, #tpu.memory_space<vmem>>, vector<1x512xf32>
    %4 = vector.broadcast %3 : vector<1x512xf32> to vector<8x512xf32>
    %5 = arith.addf %2, %4 : vector<8x512xf32>
    %c0_5 = arith.constant 0 : index
    %c0_6 = arith.constant 0 : index
    %6 = vector.load %arg5[%c0_5, %c0_6] : memref<8x512xf32, #tpu.memory_space<vmem>>, vector<8x512xf32>
    tpu.vector_store %arg5[%c0_5, %c0_6], %5 {strides = array<i32>} : memref<8x512xf32, #tpu.memory_space<vmem>>, vector<8x512xf32>,
    return
  }
  func.func @transform_0(%arg0: i32, %arg1: i32) -> (i32, i32) {
    %c0_i32 = arith.constant 0 : i32
    %c0_i32_0 = arith.constant 0 : i32
    return %arg1, %c0_i32 : i32, i32
  }
  func.func @transform_1(%arg0: i32, %arg1: i32) -> (i32, i32) {
    %c0_i32 = arith.constant 0 : i32
    %c0_i32_0 = arith.constant 0 : i32
    return %c0_i32, %arg0 : i32, i32
  }
  func.func @transform_2(%arg0: i32, %arg1: i32) -> (i32, i32) {
    %c0_i32 = arith.constant 0 : i32
    %c0_i32_0 = arith.constant 0 : i32
    return %c0_i32, %arg0 : i32, i32
  }
  func.func @transform_3(%arg0: i32, %arg1: i32) -> (i32, i32) {
    %c0_i32 = arith.constant 0 : i32
    return %arg1, %arg0 : i32, i32
  }
}

</mosaic_0001>

<llo_original>
// kernel: tpu_custom_call.1
$region0: #{tpu_custom_call.1}
  #allocation0 [shape = 'u32[]', space=smem, size = 0x4, offset = 0x4, fixed_abs, tag = 'smem constant byte address 0x4 - core index']
  #allocation1 [shape = 'u32[144,128]{1,0:T(1,128)}', space=vmem, size = 0x12000, scoped, tag = 'internal scratch']
  %s0 = inlined_call_operand.hbm [shape: f32[8,1024], index: 0, kind: input, shape index: {}]
  %s1 = inlined_call_operand.hbm [shape: f32[1024,1024], index: 1, kind: input, shape index: {}]
  %s2 = inlined_call_operand.hbm [shape: f32[1,1024], index: 2, kind: input, shape index: {}]
  %s3 = inlined_call_operand.hbm [shape: f32[8,1024], index: 3, kind: output, shape index: {}]
  %s4 = sld [smem:[#allocation0]]
  $region57: #{tpu_custom_call.1} parent=0
    _
  %s6 = ssub.s32 1, %s4
  %s7 = scalar_select 0, %s6, %s4
  $region1: #{tpu_custom_call.1} parent=0
    #allocation2 [shape = 'u8[32768]{0}', space=vmem, size = 0x8000, scoped, tag = 'input window, operand 0, single buffered']
    #allocation3 [shape = 's32[2]{0}', space=sflag, size = 0x8, scoped, tag = 'scoped memory for tpu_custom_call.1']
    #allocation4 [shape = 's32[2]{0}', space=sflag, size = 0x8, scoped, tag = 'scoped memory for tpu_custom_call.1']
    #allocation5 [shape = 'u8[4194304]{0}', space=vmem, size = 0x400000, scoped, tag = 'input window, operand 1']
    #allocation6 [shape = 's32[2]{0}', space=sflag, size = 0x8, scoped, tag = 'scoped memory for tpu_custom_call.1']
    #allocation7 [shape = 'u8[4096]{0}', space=vmem, size = 0x1000, scoped, tag = 'input window, operand 2']
    #allocation8 [shape = 'u8[32768]{0}', space=vmem, size = 0x8000, scoped, tag = 'output window, operand 0']
    %8 = vsyncpa [#allocation3], 0
    %9 = vsyncpa [#allocation6], 0
    %s10 = scalar_lea.sflag [#allocation6], 1
    %11 = vsyncpa %s10, 0
    %12 = vsyncpa [#allocation4], 0
    %s13 = scalar_lea.sflag [#allocation4], 1
    %14 = vsyncpa %s13, 0
    loop: start=0, step=1, limit=4
    $region2: #{tpu_custom_call.1} parent=1 // loop_pre_header
      _
    $region3: #{tpu_custom_call.1} parent=1 // loop_header
      %s16 = sphi 0, %s20
      %p17 = scmp.ge.s32.totalorder %s16, 4
      %s23 = sphi 0, %s35
      %s24 = sphi 0, %s31
      %s25 = sphi 0, %s23
      %s26 = sphi 0, %s24
      %s27 = sphi 0, %s25
      %s28 = sphi 0, %s26
      %s38 = sphi 0, %s40
      %s41 = sphi 0, %s38
      %s42 = sphi 0, %s41
      %s58 = sphi 0, %s42
      %s64 = sphi 0, %s66
      %s67 = sphi 0, %s64
      %s68 = sphi 0, %s67
      %s84 = sphi 0, %s68
      %s90 = sphi 0, %s92
      %s93 = sphi 0, %s90
      %s94 = sphi 0, %s93
      %s110 = sphi 0, %s94
      %s118 = sphi 0, %s120
      %s121 = sphi 0, %s118
      %s122 = sphi 0, %s121
      %s138 = sphi 0, %s122
    $region4: #{tpu_custom_call.1} parent=1 // loop_header_branch
      %19 = sbr.rel (%p17) target = $region8
    $region5: #{tpu_custom_call.1} parent=1 // loop_body
      %s21 = ssub.s32 %s16, 1
      %s22 = ssub.s32 %s16, 2
      %s29 = sadd.s32 1, %s24
      %p30 = scmp.ge.s32.totalorder %s29, 1
      %s31 = scalar_select %p30, 0, %s29
      %s32 = sadd.s32 1, %s23
      %s33 = scalar_select %p30, %s32, %s23
      %p34 = scmp.ge.s32.totalorder %s33, 2
      %s35 = scalar_select %p34, 0, %s33
      %s36 = ssub.s32 %s24, %s31
      %p37 = scmp.eq.s32.totalorder %s36, 0
      %s39 = sadd.s32 %s38, 1
      %s40 = scalar_select %p37, %s38, %s39
      %p43 = pneg %p37
      %p44 = scmp.eq.s32.totalorder %s16, 1
      %p45 = por %p43, %p44
      %p46 = scmp.ne.s32.totalorder %s38, %s41
      %p47 = scmp.eq.s32.totalorder %s16, 0
      %p48 = por %p46, %p47
      %p49 = scmp.ne.s32.totalorder %s38, %s41
      %p50 = scmp.eq.s32.totalorder %s21, 1
      %p51 = por %p49, %p50
      %p52 = scmp.ne.s32.totalorder %s41, %s42
      %p53 = scmp.eq.s32.totalorder %s21, 0
      %p54 = por %p52, %p53
      %p55 = scmp.ne.s32.totalorder %s41, %s42
      %p56 = scmp.eq.s32.totalorder %s22, 1
      %p57 = por %p55, %p56
      %p59 = scmp.ne.s32.totalorder %s42, %s58
      %p60 = scmp.eq.s32.totalorder %s22, 0
      %p61 = por %p59, %p60
      %s62 = ssub.s32 %s23, %s35
      %p63 = scmp.eq.s32.totalorder %s62, 0
      %s65 = sadd.s32 %s64, 1
      %s66 = scalar_select %p63, %s64, %s65
      %p69 = pneg %p63
      %p70 = scmp.eq.s32.totalorder %s16, 1
      %p71 = por %p69, %p70
      %p72 = scmp.ne.s32.totalorder %s64, %s67
      %p73 = scmp.eq.s32.totalorder %s16, 0
      %p74 = por %p72, %p73
      %p75 = scmp.ne.s32.totalorder %s64, %s67
      %p76 = scmp.eq.s32.totalorder %s21, 1
      %p77 = por %p75, %p76
      %p78 = scmp.ne.s32.totalorder %s67, %s68
      %p79 = scmp.eq.s32.totalorder %s21, 0
      %p80 = por %p78, %p79
      %p81 = scmp.ne.s32.totalorder %s67, %s68
      %p82 = scmp.eq.s32.totalorder %s22, 1
      %p83 = por %p81, %p82
      %p85 = scmp.ne.s32.totalorder %s68, %s84
      %p86 = scmp.eq.s32.totalorder %s22, 0
      %p87 = por %p85, %p86
      %s88 = ssub.s32 %s23, %s35
      %p89 = scmp.eq.s32.totalorder %s88, 0
      %s91 = sadd.s32 %s90, 1
      %s92 = scalar_select %p89, %s90, %s91
      %p95 = pneg %p89
      %p96 = scmp.eq.s32.totalorder %s16, 1
      %p97 = por %p95, %p96
      %p98 = scmp.ne.s32.totalorder %s90, %s93
      %p99 = scmp.eq.s32.totalorder %s16, 0
      %p100 = por %p98, %p99
      %p101 = scmp.ne.s32.totalorder %s90, %s93
      %p102 = scmp.eq.s32.totalorder %s21, 1
      %p103 = por %p101, %p102
      %p104 = scmp.ne.s32.totalorder %s93, %s94
      %p105 = scmp.eq.s32.totalorder %s21, 0
      %p106 = por %p104, %p105
      %p107 = scmp.ne.s32.totalorder %s93, %s94
      %p108 = scmp.eq.s32.totalorder %s22, 1
      %p109 = por %p107, %p108
      %p111 = scmp.ne.s32.totalorder %s94, %s110
      %p112 = scmp.eq.s32.totalorder %s22, 0
      %p113 = por %p111, %p112
      %s114 = ssub.s32 %s24, %s31
      %s115 = ssub.s32 %s23, %s35
      %s116 = sor.u32 %s114, %s115
      %p117 = scmp.eq.s32.totalorder %s116, 0
      %s119 = sadd.s32 %s118, 1
      %s120 = scalar_select %p117, %s118, %s119
      %p123 = pneg %p117
      %p124 = scmp.eq.s32.totalorder %s16, 1
      %p125 = por %p123, %p124
      %p126 = scmp.ne.s32.totalorder %s118, %s121
      %p127 = scmp.eq.s32.totalorder %s16, 0
      %p128 = por %p126, %p127
      %p129 = scmp.ne.s32.totalorder %s118, %s121
      %p130 = scmp.eq.s32.totalorder %s21, 1
      %p131 = por %p129, %p130
      %p132 = scmp.ne.s32.totalorder %s121, %s122
      %p133 = scmp.eq.s32.totalorder %s21, 0
      %p134 = por %p132, %p133
      %p135 = scmp.ne.s32.totalorder %s121, %s122
      %p136 = scmp.eq.s32.totalorder %s22, 1
      %p137 = por %p135, %p136
      %p139 = scmp.ne.s32.totalorder %s122, %s138
      %p140 = scmp.eq.s32.totalorder %s22, 0
      %p141 = por %p139, %p140
      %p142 = scmp.le.s32.totalorder 1, %s16
      %p143 = scmp.lt.s32.totalorder %s16, 3
      %p144 = pnand %p142, %p143
      %p145 = pneg %p144
      // Predicated region
      $region9: #{tpu_custom_call.1} parent=5 // pred_check
        _
      $region10: #{tpu_custom_call.1} parent=5 // pred_check_branch
        %147 = sbr.rel (%p144) target = $region12
      $region11: #{tpu_custom_call.1} parent=5 // pred_region
        %s148 = ssub.s32 %s16, 1
        // Predicated region
        $region13: #{tpu_custom_call.1} parent=11 // pred_check
          %p149 = pneg %p54
        $region14: #{tpu_custom_call.1} parent=11 // pred_check_branch
          %151 = sbr.rel (%p149) target = $region16
        $region15: #{tpu_custom_call.1} parent=11 // pred_region
          %s153 = ssub.s32 1024, 1024
          %154 = vsyncadd [#allocation3], %s153
          %s155 = smul.addr %s26, 8
          %s156 = smul.addr %s155, 128
          %s157 = scalar_lea.hbm %s0, %s156
          %s159 = sshll.u32 [#allocation2], 4
          %s160 = int_to_ptr.vmem [resolvable:$true] %s159
          %162 = dma.hbm_to_vmem [thread:$0]  %s157, 1024, %s160, [#allocation3]
        $region16: #{tpu_custom_call.1} parent=11 // pred_fallthru
          _
      $region12: #{tpu_custom_call.1} parent=5 // pred_fallthru
        _
      %p163 = scmp.lt.s32.totalorder %s16, 2
      // Predicated region
      $region17: #{tpu_custom_call.1} parent=5 // pred_check
        %p164 = pneg %p163
      $region18: #{tpu_custom_call.1} parent=5 // pred_check_branch
        %166 = sbr.rel (%p164) target = $region20
      $region19: #{tpu_custom_call.1} parent=5 // pred_region
        // Predicated region
        $region21: #{tpu_custom_call.1} parent=19 // pred_check
          %p167 = pneg %p74
        $region22: #{tpu_custom_call.1} parent=19 // pred_check_branch
          %169 = sbr.rel (%p167) target = $region24
        $region23: #{tpu_custom_call.1} parent=19 // pred_region
          %s170 = sand.u32 %s16, 1
          %s171 = scalar_lea.sflag [#allocation6], %s170
          %s172 = sand.u32 %s64, 1
          %s173 = smul.addr %s172, 4096
          %s174 = scalar_lea.vmem [#allocation5], %s173
          %s175 = smul.u32 4, %s23
          %s177 = ssub.s32 65536, 65536
          %178 = vsyncadd %s171, %s177
          %s179 = smul.addr %s175, 128
          %s180 = scalar_lea.hbm %s1, %s179
          %s181 = sshll.u32 %s174, 4
          %s182 = int_to_ptr.vmem [resolvable:$true] %s181
          %187 = dma.hbm_to_vmem [thread:$0]  %s180, 65536, %s182, %s171, 1024, 512, 32
        $region24: #{tpu_custom_call.1} parent=19 // pred_fallthru
          _
        // Predicated region
        $region25: #{tpu_custom_call.1} parent=19 // pred_check
          %p188 = pneg %p100
        $region26: #{tpu_custom_call.1} parent=19 // pred_check_branch
          %190 = sbr.rel (%p188) target = $region28
        $region27: #{tpu_custom_call.1} parent=19 // pred_region
          %s191 = sand.u32 %s16, 1
          %s192 = scalar_lea.sflag [#allocation6], %s191
          %s193 = sand.u32 %s90, 1
          %s194 = smul.addr %s193, 4
          %s195 = scalar_lea.vmem [#allocation7], %s194
          %s196 = smul.u32 4, %s23
          %s198 = ssub.s32 64, 64
          %199 = vsyncadd %s192, %s198
          %s200 = smul.addr %s196, 16
          %s201 = scalar_lea.hbm %s2, %s200
          %s203 = sshll.u32 %s195, 4
          %s204 = int_to_ptr.vmem [resolvable:$true] %s203
          %206 = dma.hbm_to_vmem [thread:$0]  %s201, 64, %s204, %s192
        $region28: #{tpu_custom_call.1} parent=19 // pred_fallthru
          _
      $region20: #{tpu_custom_call.1} parent=5 // pred_fallthru
        _
      %p207 = scmp.le.s32.totalorder 1, %s16
      %p208 = scmp.lt.s32.totalorder %s16, 3
      %p209 = pnand %p207, %p208
      %p210 = pneg %p209
      // Predicated region
      $region29: #{tpu_custom_call.1} parent=5 // pred_check
        _
      $region30: #{tpu_custom_call.1} parent=5 // pred_check_branch
        %212 = sbr.rel (%p209) target = $region32
      $region31: #{tpu_custom_call.1} parent=5 // pred_region
        %s213 = ssub.s32 %s16, 1
        // Predicated region
        $region33: #{tpu_custom_call.1} parent=31 // pred_check
          %p214 = pneg %p54
        $region34: #{tpu_custom_call.1} parent=31 // pred_check_branch
          %216 = sbr.rel (%p214) target = $region36
        $region35: #{tpu_custom_call.1} parent=31 // pred_region
          %217 = dma.done [#allocation3], 1024
        $region36: #{tpu_custom_call.1} parent=31 // pred_fallthru
          _
        %s218 = sand.u32 %s21, 1
        %s219 = scalar_lea.sflag [#allocation6], %s218
        %s220 = sand.u32 %s67, 1
        %s221 = smul.addr %s220, 4096
        %s222 = scalar_lea.vmem [#allocation5], %s221
        // Predicated region
        $region37: #{tpu_custom_call.1} parent=31 // pred_check
          %p223 = pneg %p80
        $region38: #{tpu_custom_call.1} parent=31 // pred_check_branch
          %225 = sbr.rel (%p223) target = $region40
        $region39: #{tpu_custom_call.1} parent=31 // pred_region
          %226 = dma.done %s219, 65536
        $region40: #{tpu_custom_call.1} parent=31 // pred_fallthru
          _
        %s227 = sand.u32 %s21, 1
        %s228 = scalar_lea.sflag [#allocation6], %s227
        %s229 = sand.u32 %s93, 1
        %s230 = smul.addr %s229, 4
        %s231 = scalar_lea.vmem [#allocation7], %s230
        // Predicated region
        $region41: #{tpu_custom_call.1} parent=31 // pred_check
          %p232 = pneg %p106
        $region42: #{tpu_custom_call.1} parent=31 // pred_check_branch
          %234 = sbr.rel (%p232) target = $region44
        $region43: #{tpu_custom_call.1} parent=31 // pred_region
          %235 = dma.done %s228, 64
        $region44: #{tpu_custom_call.1} parent=31 // pred_fallthru
          _
        %p236 = pneg %p54
        %p237 = pneg %p51
        %s238 = sand.u32 %s21, 1
        %s239 = scalar_lea.sflag [#allocation6], %s238
        %s240 = sand.u32 %s67, 1
        %s241 = smul.addr %s240, 4096
        %s242 = scalar_lea.vmem [#allocation5], %s241
        %p243 = pneg %p80
        %p244 = pneg %p77
        %s245 = sand.u32 %s21, 1
        %s246 = scalar_lea.sflag [#allocation6], %s245
        %s247 = sand.u32 %s93, 1
        %s248 = smul.addr %s247, 4
        %s249 = scalar_lea.vmem [#allocation7], %s248
        %p250 = pneg %p106
        %p251 = pneg %p103
        %p252 = pneg %p134
        %p253 = pneg %p131
        %s254 = sand.u32 %s121, 1
        %s255 = scalar_lea.sflag [#allocation4], %s254
        %s256 = sand.u32 %s121, 1
        %s257 = smul.addr %s256, 32
        %s258 = scalar_lea.vmem [#allocation8], %s257
        %s259 = smul.u32 4, %s25
        %s260 = smul.u32 4, %s25
        %s261 = smul.u32 4, %s25
        %v262 = vld [vmem:[#allocation2] sm:$0xff]
        %v263 = vld [vmem:[#allocation2 + $0x8] sm:$0xff]
        %v264 = vld [vmem:[#allocation2 + $0x10] sm:$0xff]
        %v265 = vld [vmem:[#allocation2 + $0x18] sm:$0xff]
        %v266 = vld [vmem:[#allocation2 + $0x20] sm:$0xff]
        %v267 = vld [vmem:[#allocation2 + $0x28] sm:$0xff]
        %v268 = vld [vmem:[#allocation2 + $0x30] sm:$0xff]
        %v269 = vld [vmem:[#allocation2 + $0x38] sm:$0xff]
        %v270 = vld [vmem:[%s222] sm:$0xff]
        %v271 = vld [vmem:[%s222 + $0x8] sm:$0xff]
        %v272 = vld [vmem:[%s222 + $0x10] sm:$0xff]
        %v273 = vld [vmem:[%s222 + $0x18] sm:$0xff]
        %v274 = vld [vmem:[%s222 + $0x20] sm:$0xff]
        %v275 = vld [vmem:[%s222 + $0x28] sm:$0xff]
        %v276 = vld [vmem:[%s222 + $0x30] sm:$0xff]
        %v277 = vld [vmem:[%s222 + $0x38] sm:$0xff]
        %v278 = vld [vmem:[%s222 + $0x40] sm:$0xff]
        %v279 = vld [vmem:[%s222 + $0x48] sm:$0xff]
        %v280 = vld [vmem:[%s222 + $0x50] sm:$0xff]
        %v281 = vld [vmem:[%s222 + $0x58] sm:$0xff]
        %v282 = vld [vmem:[%s222 + $0x60] sm:$0xff]
        %v283 = vld [vmem:[%s222 + $0x68] sm:$0xff]
        %v284 = vld [vmem:[%s222 + $0x70] sm:$0xff]
        %v285 = vld [vmem:[%s222 + $0x78] sm:$0xff]
        %v286 = vld [vmem:[%s222 + $0x80] sm:$0xff]
        %v287 = vld [vmem:[%s222 + $0x88] sm:$0xff]
        %v288 = vld [vmem:[%s222 + $0x90] sm:$0xff]
        %v289 = vld [vmem:[%s222 + $0x98] sm:$0xff]
        %v290 = vld [vmem:[%s222 + $0xa0] sm:$0xff]
        %v291 = vld [vmem:[%s222 + $0xa8] sm:$0xff]
        %v292 = vld [vmem:[%s222 + $0xb0] sm:$0xff]
        %v293 = vld [vmem:[%s222 + $0xb8] sm:$0xff]
        %v294 = vld [vmem:[%s222 + $0xc0] sm:$0xff]
        %v295 = vld [vmem:[%s222 + $0xc8] sm:$0xff]
        %v296 = vld [vmem:[%s222 + $0xd0] sm:$0xff]
        %v297 = vld [vmem:[%s222 + $0xd8] sm:$0xff]
        %v298 = vld [vmem:[%s222 + $0xe0] sm:$0xff]
        %v299 = vld [vmem:[%s222 + $0xe8] sm:$0xff]
        %v300 = vld [vmem:[%s222 + $0xf0] sm:$0xff]
        %v301 = vld [vmem:[%s222 + $0xf8] sm:$0xff]
        %v302 = vld [vmem:[%s222 + $0x100] sm:$0xff]
        %v303 = vld [vmem:[%s222 + $0x108] sm:$0xff]
        %v304 = vld [vmem:[%s222 + $0x110] sm:$0xff]
        %v305 = vld [vmem:[%s222 + $0x118] sm:$0xff]
        %v306 = vld [vmem:[%s222 + $0x120] sm:$0xff]
        %v307 = vld [vmem:[%s222 + $0x128] sm:$0xff]
        %v308 = vld [vmem:[%s222 + $0x130] sm:$0xff]
        %v309 = vld [vmem:[%s222 + $0x138] sm:$0xff]
        %v310 = vld [vmem:[%s222 + $0x140] sm:$0xff]
        %v311 = vld [vmem:[%s222 + $0x148] sm:$0xff]
        %v312 = vld [vmem:[%s222 + $0x150] sm:$0xff]
        %v313 = vld [vmem:[%s222 + $0x158] sm:$0xff]
        %v314 = vld [vmem:[%s222 + $0x160] sm:$0xff]
        %v315 = vld [vmem:[%s222 + $0x168] sm:$0xff]
        %v316 = vld [vmem:[%s222 + $0x170] sm:$0xff]
        %v317 = vld [vmem:[%s222 + $0x178] sm:$0xff]
        %v318 = vld [vmem:[%s222 + $0x180] sm:$0xff]
        %v319 = vld [vmem:[%s222 + $0x188] sm:$0xff]
        %v320 = vld [vmem:[%s222 + $0x190] sm:$0xff]
        %v321 = vld [vmem:[%s222 + $0x198] sm:$0xff]
        %v322 = vld [vmem:[%s222 + $0x1a0] sm:$0xff]
        %v323 = vld [vmem:[%s222 + $0x1a8] sm:$0xff]
        %v324 = vld [vmem:[%s222 + $0x1b0] sm:$0xff]
        %v325 = vld [vmem:[%s222 + $0x1b8] sm:$0xff]
        %v326 = vld [vmem:[%s222 + $0x1c0] sm:$0xff]
        %v327 = vld [vmem:[%s222 + $0x1c8] sm:$0xff]
        %v328 = vld [vmem:[%s222 + $0x1d0] sm:$0xff]
        %v329 = vld [vmem:[%s222 + $0x1d8] sm:$0xff]
        %v330 = vld [vmem:[%s222 + $0x1e0] sm:$0xff]
        %v331 = vld [vmem:[%s222 + $0x1e8] sm:$0xff]
        %v332 = vld [vmem:[%s222 + $0x1f0] sm:$0xff]
        %v333 = vld [vmem:[%s222 + $0x1f8] sm:$0xff]
        %v334 = vld [vmem:[%s222 + $0x200] sm:$0xff]
        %v335 = vld [vmem:[%s222 + $0x208] sm:$0xff]
        %v336 = vld [vmem:[%s222 + $0x210] sm:$0xff]
        %v337 = vld [vmem:[%s222 + $0x218] sm:$0xff]
        %v338 = vld [vmem:[%s222 + $0x220] sm:$0xff]
        %v339 = vld [vmem:[%s222 + $0x228] sm:$0xff]
        %v340 = vld [vmem:[%s222 + $0x230] sm:$0xff]
        %v341 = vld [vmem:[%s222 + $0x238] sm:$0xff]
        %v342 = vld [vmem:[%s222 + $0x240] sm:$0xff]
        %v343 = vld [vmem:[%s222 + $0x248] sm:$0xff]
        %v344 = vld [vmem:[%s222 + $0x250] sm:$0xff]
        %v345 = vld [vmem:[%s222 + $0x258] sm:$0xff]
        %v346 = vld [vmem:[%s222 + $0x260] sm:$0xff]
        %v347 = vld [vmem:[%s222 + $0x268] sm:$0xff]
        %v348 = vld [vmem:[%s222 + $0x270] sm:$0xff]
        %v349 = vld [vmem:[%s222 + $0x278] sm:$0xff]
        %v350 = vld [vmem:[%s222 + $0x280] sm:$0xff]
        %v351 = vld [vmem:[%s222 + $0x288] sm:$0xff]
        %v352 = vld [vmem:[%s222 + $0x290] sm:$0xff]
        %v353 = vld [vmem:[%s222 + $0x298] sm:$0xff]
        %v354 = vld [vmem:[%s222 + $0x2a0] sm:$0xff]
        %v355 = vld [vmem:[%s222 + $0x2a8] sm:$0xff]
        %v356 = vld [vmem:[%s222 + $0x2b0] sm:$0xff]
        %v357 = vld [vmem:[%s222 + $0x2b8] sm:$0xff]
        %v358 = vld [vmem:[%s222 + $0x2c0] sm:$0xff]
        %v359 = vld [vmem:[%s222 + $0x2c8] sm:$0xff]
        %v360 = vld [vmem:[%s222 + $0x2d0] sm:$0xff]
        %v361 = vld [vmem:[%s222 + $0x2d8] sm:$0xff]
        %v362 = vld [vmem:[%s222 + $0x2e0] sm:$0xff]
        %v363 = vld [vmem:[%s222 + $0x2e8] sm:$0xff]
        %v364 = vld [vmem:[%s222 + $0x2f0] sm:$0xff]
        %v365 = vld [vmem:[%s222 + $0x2f8] sm:$0xff]
        %v366 = vld [vmem:[%s222 + $0x300] sm:$0xff]
        %v367 = vld [vmem:[%s222 + $0x308] sm:$0xff]
        %v368 = vld [vmem:[%s222 + $0x310] sm:$0xff]
        %v369 = vld [vmem:[%s222 + $0x318] sm:$0xff]
        %v370 = vld [vmem:[%s222 + $0x320] sm:$0xff]
        %v371 = vld [vmem:[%s222 + $0x328] sm:$0xff]
        %v372 = vld [vmem:[%s222 + $0x330] sm:$0xff]
        %v373 = vld [vmem:[%s222 + $0x338] sm:$0xff]
        %v374 = vld [vmem:[%s222 + $0x340] sm:$0xff]
        %v375 = vld [vmem:[%s222 + $0x348] sm:$0xff]
        %v376 = vld [vmem:[%s222 + $0x350] sm:$0xff]
        %v377 = vld [vmem:[%s222 + $0x358] sm:$0xff]
        %v378 = vld [vmem:[%s222 + $0x360] sm:$0xff]
        %v379 = vld [vmem:[%s222 + $0x368] sm:$0xff]
        %v380 = vld [vmem:[%s222 + $0x370] sm:$0xff]
        %v381 = vld [vmem:[%s222 + $0x378] sm:$0xff]
        %v382 = vld [vmem:[%s222 + $0x380] sm:$0xff]
        %v383 = vld [vmem:[%s222 + $0x388] sm:$0xff]
        %v384 = vld [vmem:[%s222 + $0x390] sm:$0xff]
        %v385 = vld [vmem:[%s222 + $0x398] sm:$0xff]
        %v386 = vld [vmem:[%s222 + $0x3a0] sm:$0xff]
        %v387 = vld [vmem:[%s222 + $0x3a8] sm:$0xff]
        %v388 = vld [vmem:[%s222 + $0x3b0] sm:$0xff]
        %v389 = vld [vmem:[%s222 + $0x3b8] sm:$0xff]
        %v390 = vld [vmem:[%s222 + $0x3c0] sm:$0xff]
        %v391 = vld [vmem:[%s222 + $0x3c8] sm:$0xff]
        %v392 = vld [vmem:[%s222 + $0x3d0] sm:$0xff]
        %v393 = vld [vmem:[%s222 + $0x3d8] sm:$0xff]
        %v394 = vld [vmem:[%s222 + $0x3e0] sm:$0xff]
        %v395 = vld [vmem:[%s222 + $0x3e8] sm:$0xff]
        %v396 = vld [vmem:[%s222 + $0x3f0] sm:$0xff]
        %v397 = vld [vmem:[%s222 + $0x3f8] sm:$0xff]
        %v398 = vld [vmem:[%s222 + $0x400] sm:$0xff]
        %v399 = vld [vmem:[%s222 + $0x408] sm:$0xff]
        %v400 = vld [vmem:[%s222 + $0x410] sm:$0xff]
        %v401 = vld [vmem:[%s222 + $0x418] sm:$0xff]
        %v402 = vld [vmem:[%s222 + $0x420] sm:$0xff]
        %v403 = vld [vmem:[%s222 + $0x428] sm:$0xff]
        %v404 = vld [vmem:[%s222 + $0x430] sm:$0xff]
        %v405 = vld [vmem:[%s222 + $0x438] sm:$0xff]
        %v406 = vld [vmem:[%s222 + $0x440] sm:$0xff]
        %v407 = vld [vmem:[%s222 + $0x448] sm:$0xff]
        %v408 = vld [vmem:[%s222 + $0x450] sm:$0xff]
        %v409 = vld [vmem:[%s222 + $0x458] sm:$0xff]
        %v410 = vld [vmem:[%s222 + $0x460] sm:$0xff]
        %v411 = vld [vmem:[%s222 + $0x468] sm:$0xff]
        %v412 = vld [vmem:[%s222 + $0x470] sm:$0xff]
        %v413 = vld [vmem:[%s222 + $0x478] sm:$0xff]
        %v414 = vld [vmem:[%s222 + $0x480] sm:$0xff]
        %v415 = vld [vmem:[%s222 + $0x488] sm:$0xff]
        %v416 = vld [vmem:[%s222 + $0x490] sm:$0xff]
        %v417 = vld [vmem:[%s222 + $0x498] sm:$0xff]
        %v418 = vld [vmem:[%s222 + $0x4a0] sm:$0xff]
        %v419 = vld [vmem:[%s222 + $0x4a8] sm:$0xff]
        %v420 = vld [vmem:[%s222 + $0x4b0] sm:$0xff]
        %v421 = vld [vmem:[%s222 + $0x4b8] sm:$0xff]
        %v422 = vld [vmem:[%s222 + $0x4c0] sm:$0xff]
        %v423 = vld [vmem:[%s222 + $0x4c8] sm:$0xff]
        %v424 = vld [vmem:[%s222 + $0x4d0] sm:$0xff]
        %v425 = vld [vmem:[%s222 + $0x4d8] sm:$0xff]
        %v426 = vld [vmem:[%s222 + $0x4e0] sm:$0xff]
        %v427 = vld [vmem:[%s222 + $0x4e8] sm:$0xff]
        %v428 = vld [vmem:[%s222 + $0x4f0] sm:$0xff]
        %v429 = vld [vmem:[%s222 + $0x4f8] sm:$0xff]
        %v430 = vld [vmem:[%s222 + $0x500] sm:$0xff]
        %v431 = vld [vmem:[%s222 + $0x508] sm:$0xff]
        %v432 = vld [vmem:[%s222 + $0x510] sm:$0xff]
        %v433 = vld [vmem:[%s222 + $0x518] sm:$0xff]
        %v434 = vld [vmem:[%s222 + $0x520] sm:$0xff]
        %v435 = vld [vmem:[%s222 + $0x528] sm:$0xff]
        %v436 = vld [vmem:[%s222 + $0x530] sm:$0xff]
        %v437 = vld [vmem:[%s222 + $0x538] sm:$0xff]
        %v438 = vld [vmem:[%s222 + $0x540] sm:$0xff]
        %v439 = vld [vmem:[%s222 + $0x548] sm:$0xff]
        %v440 = vld [vmem:[%s222 + $0x550] sm:$0xff]
        %v441 = vld [vmem:[%s222 + $0x558] sm:$0xff]
        %v442 = vld [vmem:[%s222 + $0x560] sm:$0xff]
        %v443 = vld [vmem:[%s222 + $0x568] sm:$0xff]
        %v444 = vld [vmem:[%s222 + $0x570] sm:$0xff]
        %v445 = vld [vmem:[%s222 + $0x578] sm:$0xff]
        %v446 = vld [vmem:[%s222 + $0x580] sm:$0xff]
        %v447 = vld [vmem:[%s222 + $0x588] sm:$0xff]
        %v448 = vld [vmem:[%s222 + $0x590] sm:$0xff]
        %v449 = vld [vmem:[%s222 + $0x598] sm:$0xff]
        %v450 = vld [vmem:[%s222 + $0x5a0] sm:$0xff]
        %v451 = vld [vmem:[%s222 + $0x5a8] sm:$0xff]
        %v452 = vld [vmem:[%s222 + $0x5b0] sm:$0xff]
        %v453 = vld [vmem:[%s222 + $0x5b8] sm:$0xff]
        %v454 = vld [vmem:[%s222 + $0x5c0] sm:$0xff]
        %v455 = vld [vmem:[%s222 + $0x5c8] sm:$0xff]
        %v456 = vld [vmem:[%s222 + $0x5d0] sm:$0xff]
        %v457 = vld [vmem:[%s222 + $0x5d8] sm:$0xff]
        %v458 = vld [vmem:[%s222 + $0x5e0] sm:$0xff]
        %v459 = vld [vmem:[%s222 + $0x5e8] sm:$0xff]
        %v460 = vld [vmem:[%s222 + $0x5f0] sm:$0xff]
        %v461 = vld [vmem:[%s222 + $0x5f8] sm:$0xff]
        %v462 = vld [vmem:[%s222 + $0x600] sm:$0xff]
        %v463 = vld [vmem:[%s222 + $0x608] sm:$0xff]
        %v464 = vld [vmem:[%s222 + $0x610] sm:$0xff]
        %v465 = vld [vmem:[%s222 + $0x618] sm:$0xff]
        %v466 = vld [vmem:[%s222 + $0x620] sm:$0xff]
        %v467 = vld [vmem:[%s222 + $0x628] sm:$0xff]
        %v468 = vld [vmem:[%s222 + $0x630] sm:$0xff]
        %v469 = vld [vmem:[%s222 + $0x638] sm:$0xff]
        %v470 = vld [vmem:[%s222 + $0x640] sm:$0xff]
        %v471 = vld [vmem:[%s222 + $0x648] sm:$0xff]
        %v472 = vld [vmem:[%s222 + $0x650] sm:$0xff]
        %v473 = vld [vmem:[%s222 + $0x658] sm:$0xff]
        %v474 = vld [vmem:[%s222 + $0x660] sm:$0xff]
        %v475 = vld [vmem:[%s222 + $0x668] sm:$0xff]
        %v476 = vld [vmem:[%s222 + $0x670] sm:$0xff]
        %v477 = vld [vmem:[%s222 + $0x678] sm:$0xff]
        %v478 = vld [vmem:[%s222 + $0x680] sm:$0xff]
        %v479 = vld [vmem:[%s222 + $0x688] sm:$0xff]
        %v480 = vld [vmem:[%s222 + $0x690] sm:$0xff]
        %v481 = vld [vmem:[%s222 + $0x698] sm:$0xff]
        %v482 = vld [vmem:[%s222 + $0x6a0] sm:$0xff]
        %v483 = vld [vmem:[%s222 + $0x6a8] sm:$0xff]
        %v484 = vld [vmem:[%s222 + $0x6b0] sm:$0xff]
        %v485 = vld [vmem:[%s222 + $0x6b8] sm:$0xff]
        %v486 = vld [vmem:[%s222 + $0x6c0] sm:$0xff]
        %v487 = vld [vmem:[%s222 + $0x6c8] sm:$0xff]
        %v488 = vld [vmem:[%s222 + $0x6d0] sm:$0xff]
        %v489 = vld [vmem:[%s222 + $0x6d8] sm:$0xff]
        %v490 = vld [vmem:[%s222 + $0x6e0] sm:$0xff]
        %v491 = vld [vmem:[%s222 + $0x6e8] sm:$0xff]
        %v492 = vld [vmem:[%s222 + $0x6f0] sm:$0xff]
        %v493 = vld [vmem:[%s222 + $0x6f8] sm:$0xff]
        %v494 = vld [vmem:[%s222 + $0x700] sm:$0xff]
        %v495 = vld [vmem:[%s222 + $0x708] sm:$0xff]
        %v496 = vld [vmem:[%s222 + $0x710] sm:$0xff]
        %v497 = vld [vmem:[%s222 + $0x718] sm:$0xff]
        %v498 = vld [vmem:[%s222 + $0x720] sm:$0xff]
        %v499 = vld [vmem:[%s222 + $0x728] sm:$0xff]
        %v500 = vld [vmem:[%s222 + $0x730] sm:$0xff]
        %v501 = vld [vmem:[%s222 + $0x738] sm:$0xff]
        %v502 = vld [vmem:[%s222 + $0x740] sm:$0xff]
        %v503 = vld [vmem:[%s222 + $0x748] sm:$0xff]
        %v504 = vld [vmem:[%s222 + $0x750] sm:$0xff]
        %v505 = vld [vmem:[%s222 + $0x758] sm:$0xff]
        %v506 = vld [vmem:[%s222 + $0x760] sm:$0xff]
        %v507 = vld [vmem:[%s222 + $0x768] sm:$0xff]
        %v508 = vld [vmem:[%s222 + $0x770] sm:$0xff]
        %v509 = vld [vmem:[%s222 + $0x778] sm:$0xff]
        %v510 = vld [vmem:[%s222 + $0x780] sm:$0xff]
        %v511 = vld [vmem:[%s222 + $0x788] sm:$0xff]
        %v512 = vld [vmem:[%s222 + $0x790] sm:$0xff]
        %v513 = vld [vmem:[%s222 + $0x798] sm:$0xff]
        %v514 = vld [vmem:[%s222 + $0x7a0] sm:$0xff]
        %v515 = vld [vmem:[%s222 + $0x7a8] sm:$0xff]
        %v516 = vld [vmem:[%s222 + $0x7b0] sm:$0xff]
        %v517 = vld [vmem:[%s222 + $0x7b8] sm:$0xff]
        %v518 = vld [vmem:[%s222 + $0x7c0] sm:$0xff]
        %v519 = vld [vmem:[%s222 + $0x7c8] sm:$0xff]
        %v520 = vld [vmem:[%s222 + $0x7d0] sm:$0xff]
        %v521 = vld [vmem:[%s222 + $0x7d8] sm:$0xff]
        %v522 = vld [vmem:[%s222 + $0x7e0] sm:$0xff]
        %v523 = vld [vmem:[%s222 + $0x7e8] sm:$0xff]
        %v524 = vld [vmem:[%s222 + $0x7f0] sm:$0xff]
        %v525 = vld [vmem:[%s222 + $0x7f8] sm:$0xff]
        %v526 = vld [vmem:[%s222 + $0x800] sm:$0xff]
        %v527 = vld [vmem:[%s222 + $0x808] sm:$0xff]
        %v528 = vld [vmem:[%s222 + $0x810] sm:$0xff]
        %v529 = vld [vmem:[%s222 + $0x818] sm:$0xff]
        %v530 = vld [vmem:[%s222 + $0x820] sm:$0xff]
        %v531 = vld [vmem:[%s222 + $0x828] sm:$0xff]
        %v532 = vld [vmem:[%s222 + $0x830] sm:$0xff]
        %v533 = vld [vmem:[%s222 + $0x838] sm:$0xff]
        %v534 = vld [vmem:[%s222 + $0x840] sm:$0xff]
        %v535 = vld [vmem:[%s222 + $0x848] sm:$0xff]
        %v536 = vld [vmem:[%s222 + $0x850] sm:$0xff]
        %v537 = vld [vmem:[%s222 + $0x858] sm:$0xff]
        %v538 = vld [vmem:[%s222 + $0x860] sm:$0xff]
        %v539 = vld [vmem:[%s222 + $0x868] sm:$0xff]
        %v540 = vld [vmem:[%s222 + $0x870] sm:$0xff]
        %v541 = vld [vmem:[%s222 + $0x878] sm:$0xff]
        %v542 = vld [vmem:[%s222 + $0x880] sm:$0xff]
        %v543 = vld [vmem:[%s222 + $0x888] sm:$0xff]
        %v544 = vld [vmem:[%s222 + $0x890] sm:$0xff]
        %v545 = vld [vmem:[%s222 + $0x898] sm:$0xff]
        %v546 = vld [vmem:[%s222 + $0x8a0] sm:$0xff]
        %v547 = vld [vmem:[%s222 + $0x8a8] sm:$0xff]
        %v548 = vld [vmem:[%s222 + $0x8b0] sm:$0xff]
        %v549 = vld [vmem:[%s222 + $0x8b8] sm:$0xff]
        %v550 = vld [vmem:[%s222 + $0x8c0] sm:$0xff]
        %v551 = vld [vmem:[%s222 + $0x8c8] sm:$0xff]
        %v552 = vld [vmem:[%s222 + $0x8d0] sm:$0xff]
        %v553 = vld [vmem:[%s222 + $0x8d8] sm:$0xff]
        %v554 = vld [vmem:[%s222 + $0x8e0] sm:$0xff]
        %v555 = vld [vmem:[%s222 + $0x8e8] sm:$0xff]
        %v556 = vld [vmem:[%s222 + $0x8f0] sm:$0xff]
        %v557 = vld [vmem:[%s222 + $0x8f8] sm:$0xff]
        %v558 = vld [vmem:[%s222 + $0x900] sm:$0xff]
        %v559 = vld [vmem:[%s222 + $0x908] sm:$0xff]
        %v560 = vld [vmem:[%s222 + $0x910] sm:$0xff]
        %v561 = vld [vmem:[%s222 + $0x918] sm:$0xff]
        %v562 = vld [vmem:[%s222 + $0x920] sm:$0xff]
        %v563 = vld [vmem:[%s222 + $0x928] sm:$0xff]
        %v564 = vld [vmem:[%s222 + $0x930] sm:$0xff]
        %v565 = vld [vmem:[%s222 + $0x938] sm:$0xff]
        %v566 = vld [vmem:[%s222 + $0x940] sm:$0xff]
        %v567 = vld [vmem:[%s222 + $0x948] sm:$0xff]
        %v568 = vld [vmem:[%s222 + $0x950] sm:$0xff]
        %v569 = vld [vmem:[%s222 + $0x958] sm:$0xff]
        %v570 = vld [vmem:[%s222 + $0x960] sm:$0xff]
        %v571 = vld [vmem:[%s222 + $0x968] sm:$0xff]
        %v572 = vld [vmem:[%s222 + $0x970] sm:$0xff]
        %v573 = vld [vmem:[%s222 + $0x978] sm:$0xff]
        %v574 = vld [vmem:[%s222 + $0x980] sm:$0xff]
        %v575 = vld [vmem:[%s222 + $0x988] sm:$0xff]
        %v576 = vld [vmem:[%s222 + $0x990] sm:$0xff]
        %v577 = vld [vmem:[%s222 + $0x998] sm:$0xff]
        %v578 = vld [vmem:[%s222 + $0x9a0] sm:$0xff]
        %v579 = vld [vmem:[%s222 + $0x9a8] sm:$0xff]
        %v580 = vld [vmem:[%s222 + $0x9b0] sm:$0xff]
        %v581 = vld [vmem:[%s222 + $0x9b8] sm:$0xff]
        %v582 = vld [vmem:[%s222 + $0x9c0] sm:$0xff]
        %v583 = vld [vmem:[%s222 + $0x9c8] sm:$0xff]
        %v584 = vld [vmem:[%s222 + $0x9d0] sm:$0xff]
        %v585 = vld [vmem:[%s222 + $0x9d8] sm:$0xff]
        %v586 = vld [vmem:[%s222 + $0x9e0] sm:$0xff]
        %v587 = vld [vmem:[%s222 + $0x9e8] sm:$0xff]
        %v588 = vld [vmem:[%s222 + $0x9f0] sm:$0xff]
        %v589 = vld [vmem:[%s222 + $0x9f8] sm:$0xff]
        %v590 = vld [vmem:[%s222 + $0xa00] sm:$0xff]
        %v591 = vld [vmem:[%s222 + $0xa08] sm:$0xff]
        %v592 = vld [vmem:[%s222 + $0xa10] sm:$0xff]
        %v593 = vld [vmem:[%s222 + $0xa18] sm:$0xff]
        %v594 = vld [vmem:[%s222 + $0xa20] sm:$0xff]
        %v595 = vld [vmem:[%s222 + $0xa28] sm:$0xff]
        %v596 = vld [vmem:[%s222 + $0xa30] sm:$0xff]
        %v597 = vld [vmem:[%s222 + $0xa38] sm:$0xff]
        %v598 = vld [vmem:[%s222 + $0xa40] sm:$0xff]
        %v599 = vld [vmem:[%s222 + $0xa48] sm:$0xff]
        %v600 = vld [vmem:[%s222 + $0xa50] sm:$0xff]
        %v601 = vld [vmem:[%s222 + $0xa58] sm:$0xff]
        %v602 = vld [vmem:[%s222 + $0xa60] sm:$0xff]
        %v603 = vld [vmem:[%s222 + $0xa68] sm:$0xff]
        %v604 = vld [vmem:[%s222 + $0xa70] sm:$0xff]
        %v605 = vld [vmem:[%s222 + $0xa78] sm:$0xff]
        %v606 = vld [vmem:[%s222 + $0xa80] sm:$0xff]
        %v607 = vld [vmem:[%s222 + $0xa88] sm:$0xff]
        %v608 = vld [vmem:[%s222 + $0xa90] sm:$0xff]
        %v609 = vld [vmem:[%s222 + $0xa98] sm:$0xff]
        %v610 = vld [vmem:[%s222 + $0xaa0] sm:$0xff]
        %v611 = vld [vmem:[%s222 + $0xaa8] sm:$0xff]
        %v612 = vld [vmem:[%s222 + $0xab0] sm:$0xff]
        %v613 = vld [vmem:[%s222 + $0xab8] sm:$0xff]
        %v614 = vld [vmem:[%s222 + $0xac0] sm:$0xff]
        %v615 = vld [vmem:[%s222 + $0xac8] sm:$0xff]
        %v616 = vld [vmem:[%s222 + $0xad0] sm:$0xff]
        %v617 = vld [vmem:[%s222 + $0xad8] sm:$0xff]
        %v618 = vld [vmem:[%s222 + $0xae0] sm:$0xff]
        %v619 = vld [vmem:[%s222 + $0xae8] sm:$0xff]
        %v620 = vld [vmem:[%s222 + $0xaf0] sm:$0xff]
        %v621 = vld [vmem:[%s222 + $0xaf8] sm:$0xff]
        %v622 = vld [vmem:[%s222 + $0xb00] sm:$0xff]
        %v623 = vld [vmem:[%s222 + $0xb08] sm:$0xff]
        %v624 = vld [vmem:[%s222 + $0xb10] sm:$0xff]
        %v625 = vld [vmem:[%s222 + $0xb18] sm:$0xff]
        %v626 = vld [vmem:[%s222 + $0xb20] sm:$0xff]
        %v627 = vld [vmem:[%s222 + $0xb28] sm:$0xff]
        %v628 = vld [vmem:[%s222 + $0xb30] sm:$0xff]
        %v629 = vld [vmem:[%s222 + $0xb38] sm:$0xff]
        %v630 = vld [vmem:[%s222 + $0xb40] sm:$0xff]
        %v631 = vld [vmem:[%s222 + $0xb48] sm:$0xff]
        %v632 = vld [vmem:[%s222 + $0xb50] sm:$0xff]
        %v633 = vld [vmem:[%s222 + $0xb58] sm:$0xff]
        %v634 = vld [vmem:[%s222 + $0xb60] sm:$0xff]
        %v635 = vld [vmem:[%s222 + $0xb68] sm:$0xff]
        %v636 = vld [vmem:[%s222 + $0xb70] sm:$0xff]
        %v637 = vld [vmem:[%s222 + $0xb78] sm:$0xff]
        %v638 = vld [vmem:[%s222 + $0xb80] sm:$0xff]
        %v639 = vld [vmem:[%s222 + $0xb88] sm:$0xff]
        %v640 = vld [vmem:[%s222 + $0xb90] sm:$0xff]
        %v641 = vld [vmem:[%s222 + $0xb98] sm:$0xff]
        %v642 = vld [vmem:[%s222 + $0xba0] sm:$0xff]
        %v643 = vld [vmem:[%s222 + $0xba8] sm:$0xff]
        %v644 = vld [vmem:[%s222 + $0xbb0] sm:$0xff]
        %v645 = vld [vmem:[%s222 + $0xbb8] sm:$0xff]
        %v646 = vld [vmem:[%s222 + $0xbc0] sm:$0xff]
        %v647 = vld [vmem:[%s222 + $0xbc8] sm:$0xff]
        %v648 = vld [vmem:[%s222 + $0xbd0] sm:$0xff]
        %v649 = vld [vmem:[%s222 + $0xbd8] sm:$0xff]
        %v650 = vld [vmem:[%s222 + $0xbe0] sm:$0xff]
        %v651 = vld [vmem:[%s222 + $0xbe8] sm:$0xff]
        %v652 = vld [vmem:[%s222 + $0xbf0] sm:$0xff]
        %v653 = vld [vmem:[%s222 + $0xbf8] sm:$0xff]
        %v654 = vld [vmem:[%s222 + $0xc00] sm:$0xff]
        %v655 = vld [vmem:[%s222 + $0xc08] sm:$0xff]
        %v656 = vld [vmem:[%s222 + $0xc10] sm:$0xff]
        %v657 = vld [vmem:[%s222 + $0xc18] sm:$0xff]
        %v658 = vld [vmem:[%s222 + $0xc20] sm:$0xff]
        %v659 = vld [vmem:[%s222 + $0xc28] sm:$0xff]
        %v660 = vld [vmem:[%s222 + $0xc30] sm:$0xff]
        %v661 = vld [vmem:[%s222 + $0xc38] sm:$0xff]
        %v662 = vld [vmem:[%s222 + $0xc40] sm:$0xff]
        %v663 = vld [vmem:[%s222 + $0xc48] sm:$0xff]
        %v664 = vld [vmem:[%s222 + $0xc50] sm:$0xff]
        %v665 = vld [vmem:[%s222 + $0xc58] sm:$0xff]
        %v666 = vld [vmem:[%s222 + $0xc60] sm:$0xff]
        %v667 = vld [vmem:[%s222 + $0xc68] sm:$0xff]
        %v668 = vld [vmem:[%s222 + $0xc70] sm:$0xff]
        %v669 = vld [vmem:[%s222 + $0xc78] sm:$0xff]
        %v670 = vld [vmem:[%s222 + $0xc80] sm:$0xff]
        %v671 = vld [vmem:[%s222 + $0xc88] sm:$0xff]
        %v672 = vld [vmem:[%s222 + $0xc90] sm:$0xff]
        %v673 = vld [vmem:[%s222 + $0xc98] sm:$0xff]
        %v674 = vld [vmem:[%s222 + $0xca0] sm:$0xff]
        %v675 = vld [vmem:[%s222 + $0xca8] sm:$0xff]
        %v676 = vld [vmem:[%s222 + $0xcb0] sm:$0xff]
        %v677 = vld [vmem:[%s222 + $0xcb8] sm:$0xff]
        %v678 = vld [vmem:[%s222 + $0xcc0] sm:$0xff]
        %v679 = vld [vmem:[%s222 + $0xcc8] sm:$0xff]
        %v680 = vld [vmem:[%s222 + $0xcd0] sm:$0xff]
        %v681 = vld [vmem:[%s222 + $0xcd8] sm:$0xff]
        %v682 = vld [vmem:[%s222 + $0xce0] sm:$0xff]
        %v683 = vld [vmem:[%s222 + $0xce8] sm:$0xff]
        %v684 = vld [vmem:[%s222 + $0xcf0] sm:$0xff]
        %v685 = vld [vmem:[%s222 + $0xcf8] sm:$0xff]
        %v686 = vld [vmem:[%s222 + $0xd00] sm:$0xff]
        %v687 = vld [vmem:[%s222 + $0xd08] sm:$0xff]
        %v688 = vld [vmem:[%s222 + $0xd10] sm:$0xff]
        %v689 = vld [vmem:[%s222 + $0xd18] sm:$0xff]
        %v690 = vld [vmem:[%s222 + $0xd20] sm:$0xff]
        %v691 = vld [vmem:[%s222 + $0xd28] sm:$0xff]
        %v692 = vld [vmem:[%s222 + $0xd30] sm:$0xff]
        %v693 = vld [vmem:[%s222 + $0xd38] sm:$0xff]
        %v694 = vld [vmem:[%s222 + $0xd40] sm:$0xff]
        %v695 = vld [vmem:[%s222 + $0xd48] sm:$0xff]
        %v696 = vld [vmem:[%s222 + $0xd50] sm:$0xff]
        %v697 = vld [vmem:[%s222 + $0xd58] sm:$0xff]
        %v698 = vld [vmem:[%s222 + $0xd60] sm:$0xff]
        %v699 = vld [vmem:[%s222 + $0xd68] sm:$0xff]
        %v700 = vld [vmem:[%s222 + $0xd70] sm:$0xff]
        %v701 = vld [vmem:[%s222 + $0xd78] sm:$0xff]
        %v702 = vld [vmem:[%s222 + $0xd80] sm:$0xff]
        %v703 = vld [vmem:[%s222 + $0xd88] sm:$0xff]
        %v704 = vld [vmem:[%s222 + $0xd90] sm:$0xff]
        %v705 = vld [vmem:[%s222 + $0xd98] sm:$0xff]
        %v706 = vld [vmem:[%s222 + $0xda0] sm:$0xff]
        %v707 = vld [vmem:[%s222 + $0xda8] sm:$0xff]
        %v708 = vld [vmem:[%s222 + $0xdb0] sm:$0xff]
        %v709 = vld [vmem:[%s222 + $0xdb8] sm:$0xff]
        %v710 = vld [vmem:[%s222 + $0xdc0] sm:$0xff]
        %v711 = vld [vmem:[%s222 + $0xdc8] sm:$0xff]
        %v712 = vld [vmem:[%s222 + $0xdd0] sm:$0xff]
        %v713 = vld [vmem:[%s222 + $0xdd8] sm:$0xff]
        %v714 = vld [vmem:[%s222 + $0xde0] sm:$0xff]
        %v715 = vld [vmem:[%s222 + $0xde8] sm:$0xff]
        %v716 = vld [vmem:[%s222 + $0xdf0] sm:$0xff]
        %v717 = vld [vmem:[%s222 + $0xdf8] sm:$0xff]
        %v718 = vld [vmem:[%s222 + $0xe00] sm:$0xff]
        %v719 = vld [vmem:[%s222 + $0xe08] sm:$0xff]
        %v720 = vld [vmem:[%s222 + $0xe10] sm:$0xff]
        %v721 = vld [vmem:[%s222 + $0xe18] sm:$0xff]
        %v722 = vld [vmem:[%s222 + $0xe20] sm:$0xff]
        %v723 = vld [vmem:[%s222 + $0xe28] sm:$0xff]
        %v724 = vld [vmem:[%s222 + $0xe30] sm:$0xff]
        %v725 = vld [vmem:[%s222 + $0xe38] sm:$0xff]
        %v726 = vld [vmem:[%s222 + $0xe40] sm:$0xff]
        %v727 = vld [vmem:[%s222 + $0xe48] sm:$0xff]
        %v728 = vld [vmem:[%s222 + $0xe50] sm:$0xff]
        %v729 = vld [vmem:[%s222 + $0xe58] sm:$0xff]
        %v730 = vld [vmem:[%s222 + $0xe60] sm:$0xff]
        %v731 = vld [vmem:[%s222 + $0xe68] sm:$0xff]
        %v732 = vld [vmem:[%s222 + $0xe70] sm:$0xff]
        %v733 = vld [vmem:[%s222 + $0xe78] sm:$0xff]
        %v734 = vld [vmem:[%s222 + $0xe80] sm:$0xff]
        %v735 = vld [vmem:[%s222 + $0xe88] sm:$0xff]
        %v736 = vld [vmem:[%s222 + $0xe90] sm:$0xff]
        %v737 = vld [vmem:[%s222 + $0xe98] sm:$0xff]
        %v738 = vld [vmem:[%s222 + $0xea0] sm:$0xff]
        %v739 = vld [vmem:[%s222 + $0xea8] sm:$0xff]
        %v740 = vld [vmem:[%s222 + $0xeb0] sm:$0xff]
        %v741 = vld [vmem:[%s222 + $0xeb8] sm:$0xff]
        %v742 = vld [vmem:[%s222 + $0xec0] sm:$0xff]
        %v743 = vld [vmem:[%s222 + $0xec8] sm:$0xff]
        %v744 = vld [vmem:[%s222 + $0xed0] sm:$0xff]
        %v745 = vld [vmem:[%s222 + $0xed8] sm:$0xff]
        %v746 = vld [vmem:[%s222 + $0xee0] sm:$0xff]
        %v747 = vld [vmem:[%s222 + $0xee8] sm:$0xff]
        %v748 = vld [vmem:[%s222 + $0xef0] sm:$0xff]
        %v749 = vld [vmem:[%s222 + $0xef8] sm:$0xff]
        %v750 = vld [vmem:[%s222 + $0xf00] sm:$0xff]
        %v751 = vld [vmem:[%s222 + $0xf08] sm:$0xff]
        %v752 = vld [vmem:[%s222 + $0xf10] sm:$0xff]
        %v753 = vld [vmem:[%s222 + $0xf18] sm:$0xff]
        %v754 = vld [vmem:[%s222 + $0xf20] sm:$0xff]
        %v755 = vld [vmem:[%s222 + $0xf28] sm:$0xff]
        %v756 = vld [vmem:[%s222 + $0xf30] sm:$0xff]
        %v757 = vld [vmem:[%s222 + $0xf38] sm:$0xff]
        %v758 = vld [vmem:[%s222 + $0xf40] sm:$0xff]
        %v759 = vld [vmem:[%s222 + $0xf48] sm:$0xff]
        %v760 = vld [vmem:[%s222 + $0xf50] sm:$0xff]
        %v761 = vld [vmem:[%s222 + $0xf58] sm:$0xff]
        %v762 = vld [vmem:[%s222 + $0xf60] sm:$0xff]
        %v763 = vld [vmem:[%s222 + $0xf68] sm:$0xff]
        %v764 = vld [vmem:[%s222 + $0xf70] sm:$0xff]
        %v765 = vld [vmem:[%s222 + $0xf78] sm:$0xff]
        %v766 = vld [vmem:[%s222 + $0xf80] sm:$0xff]
        %v767 = vld [vmem:[%s222 + $0xf88] sm:$0xff]
        %v768 = vld [vmem:[%s222 + $0xf90] sm:$0xff]
        %v769 = vld [vmem:[%s222 + $0xf98] sm:$0xff]
        %v770 = vld [vmem:[%s222 + $0xfa0] sm:$0xff]
        %v771 = vld [vmem:[%s222 + $0xfa8] sm:$0xff]
        %v772 = vld [vmem:[%s222 + $0xfb0] sm:$0xff]
        %v773 = vld [vmem:[%s222 + $0xfb8] sm:$0xff]
        %v774 = vld [vmem:[%s222 + $0xfc0] sm:$0xff]
        %v775 = vld [vmem:[%s222 + $0xfc8] sm:$0xff]
        %v776 = vld [vmem:[%s222 + $0xfd0] sm:$0xff]
        %v777 = vld [vmem:[%s222 + $0xfd8] sm:$0xff]
        %v778 = vld [vmem:[%s222 + $0xfe0] sm:$0xff]
        %v779 = vld [vmem:[%s222 + $0xfe8] sm:$0xff]
        %v780 = vld [vmem:[%s222 + $0xff0] sm:$0xff]
        %v781 = vld [vmem:[%s222 + $0xff8] sm:$0xff]
        %v782 = vld [vmem:[%s231] sm:$0xf]
        %v784 = vlaneseq
        %v785 = vshrl.u32 %v784, 7
        %v786 = vsub.s32 0, %v785
        %v787 = vrot.slane %v782, %v786
        %v788 = vlaneseq
        %v789 = vshrl.u32 %v788, 7
        %v790 = vsub.s32 1, %v789
        %v791 = vrot.slane %v782, %v790
        %v792 = vlaneseq
        %v793 = vshrl.u32 %v792, 7
        %v794 = vsub.s32 2, %v793
        %v795 = vrot.slane %v782, %v794
        %v796 = vlaneseq
        %v797 = vshrl.u32 %v796, 7
        %v798 = vsub.s32 3, %v797
        %v799 = vrot.slane %v782, %v798
        %v804 = vand.u32 %v331, 4294901760
        %805 = vmatprep.subr.mxu0 %v804
        %v806 = vand.u32 %v330, 4294901760
        %807 = vmatpush1.msra.mxu0 %v806
        %v808 = vand.u32 %v327, 4294901760
        %809 = vmatprep.subr.mxu0 %v808
        %v810 = vand.u32 %v326, 4294901760
        %811 = vmatpush1.msra.mxu0 %v810
        %v812 = vand.u32 %v323, 4294901760
        %813 = vmatprep.subr.mxu0 %v812
        %v814 = vand.u32 %v322, 4294901760
        %815 = vmatpush1.msra.mxu0 %v814
        %v816 = vand.u32 %v319, 4294901760
        %817 = vmatprep.subr.mxu0 %v816
        %v818 = vand.u32 %v318, 4294901760
        %819 = vmatpush1.msra.mxu0 %v818
        %v820 = vand.u32 %v315, 4294901760
        %821 = vmatprep.subr.mxu0 %v820
        %v822 = vand.u32 %v314, 4294901760
        %823 = vmatpush1.msra.mxu0 %v822
        %v824 = vand.u32 %v311, 4294901760
        %825 = vmatprep.subr.mxu0 %v824
        %v826 = vand.u32 %v310, 4294901760
        %827 = vmatpush1.msra.mxu0 %v826
        %v828 = vand.u32 %v307, 4294901760
        %829 = vmatprep.subr.mxu0 %v828
        %v830 = vand.u32 %v306, 4294901760
        %831 = vmatpush1.msra.mxu0 %v830
        %v832 = vand.u32 %v303, 4294901760
        %833 = vmatprep.subr.mxu0 %v832
        %v834 = vand.u32 %v302, 4294901760
        %835 = vmatpush1.msra.mxu0 %v834
        %v836 = vand.u32 %v299, 4294901760
        %837 = vmatprep.subr.mxu0 %v836
        %v838 = vand.u32 %v298, 4294901760
        %839 = vmatpush1.msra.mxu0 %v838
        %v840 = vand.u32 %v295, 4294901760
        %841 = vmatprep.subr.mxu0 %v840
        %v842 = vand.u32 %v294, 4294901760
        %843 = vmatpush1.msra.mxu0 %v842
        %v844 = vand.u32 %v291, 4294901760
        %845 = vmatprep.subr.mxu0 %v844
        %v846 = vand.u32 %v290, 4294901760
        %847 = vmatpush1.msra.mxu0 %v846
        %v848 = vand.u32 %v287, 4294901760
        %849 = vmatprep.subr.mxu0 %v848
        %v850 = vand.u32 %v286, 4294901760
        %851 = vmatpush1.msra.mxu0 %v850
        %v852 = vand.u32 %v283, 4294901760
        %853 = vmatprep.subr.mxu0 %v852
        %v854 = vand.u32 %v282, 4294901760
        %855 = vmatpush1.msra.mxu0 %v854
        %v856 = vand.u32 %v279, 4294901760
        %857 = vmatprep.subr.mxu0 %v856
        %v858 = vand.u32 %v278, 4294901760
        %859 = vmatpush1.msra.mxu0 %v858
        %v860 = vand.u32 %v275, 4294901760
        %861 = vmatprep.subr.mxu0 %v860
        %v862 = vand.u32 %v274, 4294901760
        %863 = vmatpush1.msra.mxu0 %v862
        %v864 = vand.u32 %v271, 4294901760
        %865 = vmatprep.subr.mxu0 %v864
        %v866 = vand.u32 %v270, 4294901760
        %867 = vmatpush1.msra.mxu0 %v866
        %v868 = vand.u32 %v395, 4294901760
        %869 = vmatprep.subr.mxu0 %v868
        %v870 = vand.u32 %v394, 4294901760
        %871 = vmatpush2.msra.mxu0 %v870
        %v872 = vand.u32 %v391, 4294901760
        %873 = vmatprep.subr.mxu0 %v872
        %v874 = vand.u32 %v390, 4294901760
        %875 = vmatpush2.msra.mxu0 %v874
        %v876 = vand.u32 %v387, 4294901760
        %877 = vmatprep.subr.mxu0 %v876
        %v878 = vand.u32 %v386, 4294901760
        %879 = vmatpush2.msra.mxu0 %v878
        %v880 = vand.u32 %v383, 4294901760
        %881 = vmatprep.subr.mxu0 %v880
        %v882 = vand.u32 %v382, 4294901760
        %883 = vmatpush2.msra.mxu0 %v882
        %v884 = vand.u32 %v379, 4294901760
        %885 = vmatprep.subr.mxu0 %v884
        %v886 = vand.u32 %v378, 4294901760
        %887 = vmatpush2.msra.mxu0 %v886
        %v888 = vand.u32 %v375, 4294901760
        %889 = vmatprep.subr.mxu0 %v888
        %v890 = vand.u32 %v374, 4294901760
        %891 = vmatpush2.msra.mxu0 %v890
        %v892 = vand.u32 %v371, 4294901760
        %893 = vmatprep.subr.mxu0 %v892
        %v894 = vand.u32 %v370, 4294901760
        %895 = vmatpush2.msra.mxu0 %v894
        %v896 = vand.u32 %v367, 4294901760
        %897 = vmatprep.subr.mxu0 %v896
        %v898 = vand.u32 %v366, 4294901760
        %899 = vmatpush2.msra.mxu0 %v898
        %v900 = vand.u32 %v363, 4294901760
        %901 = vmatprep.subr.mxu0 %v900
        %v902 = vand.u32 %v362, 4294901760
        %903 = vmatpush2.msra.mxu0 %v902
        %v904 = vand.u32 %v359, 4294901760
        %905 = vmatprep.subr.mxu0 %v904
        %v906 = vand.u32 %v358, 4294901760
        %907 = vmatpush2.msra.mxu0 %v906
        %v908 = vand.u32 %v355, 4294901760
        %909 = vmatprep.subr.mxu0 %v908
        %v910 = vand.u32 %v354, 4294901760
        %911 = vmatpush2.msra.mxu0 %v910
        %v912 = vand.u32 %v351, 4294901760
        %913 = vmatprep.subr.mxu0 %v912
        %v914 = vand.u32 %v350, 4294901760
        %915 = vmatpush2.msra.mxu0 %v914
        %v916 = vand.u32 %v347, 4294901760
        %917 = vmatprep.subr.mxu0 %v916
        %v918 = vand.u32 %v346, 4294901760
        %919 = vmatpush2.msra.mxu0 %v918
        %v920 = vand.u32 %v343, 4294901760
        %921 = vmatprep.subr.mxu0 %v920
        %v922 = vand.u32 %v342, 4294901760
        %923 = vmatpush2.msra.mxu0 %v922
        %v924 = vand.u32 %v339, 4294901760
        %925 = vmatprep.subr.mxu0 %v924
        %v926 = vand.u32 %v338, 4294901760
        %927 = vmatpush2.msra.mxu0 %v926
        %v928 = vand.u32 %v335, 4294901760
        %929 = vmatprep.subr.mxu0 %v928
        %v930 = vand.u32 %v334, 4294901760
        %931 = vmatpush2.msra.mxu0 %v930
        %v932 = vand.u32 %v263, 4294901760
        %v933 = vsub.f32 %v263, %v932
        %v934 = vand.u32 %v933, 4294901760
        %v935 = vsub.f32 %v933, %v934
        %v936 = vand.u32 %v935, 4294901760
        %937 = vmatprep.mubr.f32.mxu0 %v936
        %v938 = vand.u32 %v262, 4294901760
        %v939 = vsub.f32 %v262, %v938
        %v940 = vand.u32 %v939, 4294901760
        %v941 = vsub.f32 %v939, %v940
        %v942 = vand.u32 %v941, 4294901760
        %943 = vmatmul.mubr.f32.gmra.mxu0 %v942
        %v944 = vpop.f32.mrf.mxu0
        %v945 = vadd.f32 %v787, %v944
        %v946 = vpop.f32.mrf.mxu0
        %v947 = vadd.f32 %v791, %v946
        %948 = vdwg.mxu0
        %v949 = vand.u32 %v331, 4294901760
        %v950 = vsub.f32 %v331, %v949
        %v951 = vand.u32 %v950, 4294901760
        %v952 = vsub.f32 %v950, %v951
        %v953 = vand.u32 %v952, 4294901760
        %954 = vmatprep.subr.mxu0 %v953
        %v955 = vand.u32 %v330, 4294901760
        %v956 = vsub.f32 %v330, %v955
        %v957 = vand.u32 %v956, 4294901760
        %v958 = vsub.f32 %v956, %v957
        %v959 = vand.u32 %v958, 4294901760
        %960 = vmatpush1.msra.mxu0 %v959
        %v961 = vand.u32 %v327, 4294901760
        %v962 = vsub.f32 %v327, %v961
        %v963 = vand.u32 %v962, 4294901760
        %v964 = vsub.f32 %v962, %v963
        %v965 = vand.u32 %v964, 4294901760
        %966 = vmatprep.subr.mxu0 %v965
        %v967 = vand.u32 %v326, 4294901760
        %v968 = vsub.f32 %v326, %v967
        %v969 = vand.u32 %v968, 4294901760
        %v970 = vsub.f32 %v968, %v969
        %v971 = vand.u32 %v970, 4294901760
        %972 = vmatpush1.msra.mxu0 %v971
        %v973 = vand.u32 %v323, 4294901760
        %v974 = vsub.f32 %v323, %v973
        %v975 = vand.u32 %v974, 4294901760
        %v976 = vsub.f32 %v974, %v975
        %v977 = vand.u32 %v976, 4294901760
        %978 = vmatprep.subr.mxu0 %v977
        %v979 = vand.u32 %v322, 4294901760
        %v980 = vsub.f32 %v322, %v979
        %v981 = vand.u32 %v980, 4294901760
        %v982 = vsub.f32 %v980, %v981
        %v983 = vand.u32 %v982, 4294901760
        %984 = vmatpush1.msra.mxu0 %v983
        %v985 = vand.u32 %v319, 4294901760
        %v986 = vsub.f32 %v319, %v985
        %v987 = vand.u32 %v986, 4294901760
        %v988 = vsub.f32 %v986, %v987
        %v989 = vand.u32 %v988, 4294901760
        %990 = vmatprep.subr.mxu0 %v989
        %v991 = vand.u32 %v318, 4294901760
        %v992 = vsub.f32 %v318, %v991
        %v993 = vand.u32 %v992, 4294901760
        %v994 = vsub.f32 %v992, %v993
        %v995 = vand.u32 %v994, 4294901760
        %996 = vmatpush1.msra.mxu0 %v995
        %v997 = vand.u32 %v315, 4294901760
        %v998 = vsub.f32 %v315, %v997
        %v999 = vand.u32 %v998, 4294901760
        %v1000 = vsub.f32 %v998, %v999
        %v1001 = vand.u32 %v1000, 4294901760
        %1002 = vmatprep.subr.mxu0 %v1001
        %v1003 = vand.u32 %v314, 4294901760
        %v1004 = vsub.f32 %v314, %v1003
        %v1005 = vand.u32 %v1004, 4294901760
        %v1006 = vsub.f32 %v1004, %v1005
        %v1007 = vand.u32 %v1006, 4294901760
        %1008 = vmatpush1.msra.mxu0 %v1007
        %v1009 = vand.u32 %v311, 4294901760
        %v1010 = vsub.f32 %v311, %v1009
        %v1011 = vand.u32 %v1010, 4294901760
        %v1012 = vsub.f32 %v1010, %v1011
        %v1013 = vand.u32 %v1012, 4294901760
        %1014 = vmatprep.subr.mxu0 %v1013
        %v1015 = vand.u32 %v310, 4294901760
        %v1016 = vsub.f32 %v310, %v1015
        %v1017 = vand.u32 %v1016, 4294901760
        %v1018 = vsub.f32 %v1016, %v1017
        %v1019 = vand.u32 %v1018, 4294901760
        %1020 = vmatpush1.msra.mxu0 %v1019
        %v1021 = vand.u32 %v307, 4294901760
        %v1022 = vsub.f32 %v307, %v1021
        %v1023 = vand.u32 %v1022, 4294901760
        %v1024 = vsub.f32 %v1022, %v1023
        %v1025 = vand.u32 %v1024, 4294901760
        %1026 = vmatprep.subr.mxu0 %v1025
        %v1027 = vand.u32 %v306, 4294901760
        %v1028 = vsub.f32 %v306, %v1027
        %v1029 = vand.u32 %v1028, 4294901760
        %v1030 = vsub.f32 %v1028, %v1029
        %v1031 = vand.u32 %v1030, 4294901760
        %1032 = vmatpush1.msra.mxu0 %v1031
        %v1033 = vand.u32 %v303, 4294901760
        %v1034 = vsub.f32 %v303, %v1033
        %v1035 = vand.u32 %v1034, 4294901760
        %v1036 = vsub.f32 %v1034, %v1035
        %v1037 = vand.u32 %v1036, 4294901760
        %1038 = vmatprep.subr.mxu0 %v1037
        %v1039 = vand.u32 %v302, 4294901760
        %v1040 = vsub.f32 %v302, %v1039
        %v1041 = vand.u32 %v1040, 4294901760
        %v1042 = vsub.f32 %v1040, %v1041
        %v1043 = vand.u32 %v1042, 4294901760
        %1044 = vmatpush1.msra.mxu0 %v1043
        %v1045 = vand.u32 %v299, 4294901760
        %v1046 = vsub.f32 %v299, %v1045
        %v1047 = vand.u32 %v1046, 4294901760
        %v1048 = vsub.f32 %v1046, %v1047
        %v1049 = vand.u32 %v1048, 4294901760
        %1050 = vmatprep.subr.mxu0 %v1049
        %v1051 = vand.u32 %v298, 4294901760
        %v1052 = vsub.f32 %v298, %v1051
        %v1053 = vand.u32 %v1052, 4294901760
        %v1054 = vsub.f32 %v1052, %v1053
        %v1055 = vand.u32 %v1054, 4294901760
        %1056 = vmatpush1.msra.mxu0 %v1055
        %v1057 = vand.u32 %v295, 4294901760
        %v1058 = vsub.f32 %v295, %v1057
        %v1059 = vand.u32 %v1058, 4294901760
        %v1060 = vsub.f32 %v1058, %v1059
        %v1061 = vand.u32 %v1060, 4294901760
        %1062 = vmatprep.subr.mxu0 %v1061
        %v1063 = vand.u32 %v294, 4294901760
        %v1064 = vsub.f32 %v294, %v1063
        %v1065 = vand.u32 %v1064, 4294901760
        %v1066 = vsub.f32 %v1064, %v1065
        %v1067 = vand.u32 %v1066, 4294901760
        %1068 = vmatpush1.msra.mxu0 %v1067
        %v1069 = vand.u32 %v291, 4294901760
        %v1070 = vsub.f32 %v291, %v1069
        %v1071 = vand.u32 %v1070, 4294901760
        %v1072 = vsub.f32 %v1070, %v1071
        %v1073 = vand.u32 %v1072, 4294901760
        %1074 = vmatprep.subr.mxu0 %v1073
        %v1075 = vand.u32 %v290, 4294901760
        %v1076 = vsub.f32 %v290, %v1075
        %v1077 = vand.u32 %v1076, 4294901760
        %v1078 = vsub.f32 %v1076, %v1077
        %v1079 = vand.u32 %v1078, 4294901760
        %1080 = vmatpush1.msra.mxu0 %v1079
        %v1081 = vand.u32 %v287, 4294901760
        %v1082 = vsub.f32 %v287, %v1081
        %v1083 = vand.u32 %v1082, 4294901760
        %v1084 = vsub.f32 %v1082, %v1083
        %v1085 = vand.u32 %v1084, 4294901760
        %1086 = vmatprep.subr.mxu0 %v1085
        %v1087 = vand.u32 %v286, 4294901760
        %v1088 = vsub.f32 %v286, %v1087
        %v1089 = vand.u32 %v1088, 4294901760
        %v1090 = vsub.f32 %v1088, %v1089
        %v1091 = vand.u32 %v1090, 4294901760
        %1092 = vmatpush1.msra.mxu0 %v1091
        %v1093 = vand.u32 %v283, 4294901760
        %v1094 = vsub.f32 %v283, %v1093
        %v1095 = vand.u32 %v1094, 4294901760
        %v1096 = vsub.f32 %v1094, %v1095
        %v1097 = vand.u32 %v1096, 4294901760
        %1098 = vmatprep.subr.mxu0 %v1097
        %v1099 = vand.u32 %v282, 4294901760
        %v1100 = vsub.f32 %v282, %v1099
        %v1101 = vand.u32 %v1100, 4294901760
        %v1102 = vsub.f32 %v1100, %v1101
        %v1103 = vand.u32 %v1102, 4294901760
        %1104 = vmatpush1.msra.mxu0 %v1103
        %v1105 = vand.u32 %v279, 4294901760
        %v1106 = vsub.f32 %v279, %v1105
        %v1107 = vand.u32 %v1106, 4294901760
        %v1108 = vsub.f32 %v1106, %v1107
        %v1109 = vand.u32 %v1108, 4294901760
        %1110 = vmatprep.subr.mxu0 %v1109
        %v1111 = vand.u32 %v278, 4294901760
        %v1112 = vsub.f32 %v278, %v1111
        %v1113 = vand.u32 %v1112, 4294901760
        %v1114 = vsub.f32 %v1112, %v1113
        %v1115 = vand.u32 %v1114, 4294901760
        %1116 = vmatpush1.msra.mxu0 %v1115
        %v1117 = vand.u32 %v275, 4294901760
        %v1118 = vsub.f32 %v275, %v1117
        %v1119 = vand.u32 %v1118, 4294901760
        %v1120 = vsub.f32 %v1118, %v1119
        %v1121 = vand.u32 %v1120, 4294901760
        %1122 = vmatprep.subr.mxu0 %v1121
        %v1123 = vand.u32 %v274, 4294901760
        %v1124 = vsub.f32 %v274, %v1123
        %v1125 = vand.u32 %v1124, 4294901760
        %v1126 = vsub.f32 %v1124, %v1125
        %v1127 = vand.u32 %v1126, 4294901760
        %1128 = vmatpush1.msra.mxu0 %v1127
        %v1129 = vand.u32 %v271, 4294901760
        %v1130 = vsub.f32 %v271, %v1129
        %v1131 = vand.u32 %v1130, 4294901760
        %v1132 = vsub.f32 %v1130, %v1131
        %v1133 = vand.u32 %v1132, 4294901760
        %1134 = vmatprep.subr.mxu0 %v1133
        %v1135 = vand.u32 %v270, 4294901760
        %v1136 = vsub.f32 %v270, %v1135
        %v1137 = vand.u32 %v1136, 4294901760
        %v1138 = vsub.f32 %v1136, %v1137
        %v1139 = vand.u32 %v1138, 4294901760
        %1140 = vmatpush1.msra.mxu0 %v1139
        %v1141 = vand.u32 %v395, 4294901760
        %v1142 = vsub.f32 %v395, %v1141
        %v1143 = vand.u32 %v1142, 4294901760
        %v1144 = vsub.f32 %v1142, %v1143
        %v1145 = vand.u32 %v1144, 4294901760
        %1146 = vmatprep.subr.mxu0 %v1145
        %v1147 = vand.u32 %v394, 4294901760
        %v1148 = vsub.f32 %v394, %v1147
        %v1149 = vand.u32 %v1148, 4294901760
        %v1150 = vsub.f32 %v1148, %v1149
        %v1151 = vand.u32 %v1150, 4294901760
        %1152 = vmatpush2.msra.mxu0 %v1151
        %v1153 = vand.u32 %v391, 4294901760
        %v1154 = vsub.f32 %v391, %v1153
        %v1155 = vand.u32 %v1154, 4294901760
        %v1156 = vsub.f32 %v1154, %v1155
        %v1157 = vand.u32 %v1156, 4294901760
        %1158 = vmatprep.subr.mxu0 %v1157
        %v1159 = vand.u32 %v390, 4294901760
        %v1160 = vsub.f32 %v390, %v1159
        %v1161 = vand.u32 %v1160, 4294901760
        %v1162 = vsub.f32 %v1160, %v1161
        %v1163 = vand.u32 %v1162, 4294901760
        %1164 = vmatpush2.msra.mxu0 %v1163
        %v1165 = vand.u32 %v387, 4294901760
        %v1166 = vsub.f32 %v387, %v1165
        %v1167 = vand.u32 %v1166, 4294901760
        %v1168 = vsub.f32 %v1166, %v1167
        %v1169 = vand.u32 %v1168, 4294901760
        %1170 = vmatprep.subr.mxu0 %v1169
        %v1171 = vand.u32 %v386, 4294901760
        %v1172 = vsub.f32 %v386, %v1171
        %v1173 = vand.u32 %v1172, 4294901760
        %v1174 = vsub.f32 %v1172, %v1173
        %v1175 = vand.u32 %v1174, 4294901760
        %1176 = vmatpush2.msra.mxu0 %v1175
        %v1177 = vand.u32 %v383, 4294901760
        %v1178 = vsub.f32 %v383, %v1177
        %v1179 = vand.u32 %v1178, 4294901760
        %v1180 = vsub.f32 %v1178, %v1179
        %v1181 = vand.u32 %v1180, 4294901760
        %1182 = vmatprep.subr.mxu0 %v1181
        %v1183 = vand.u32 %v382, 4294901760
        %v1184 = vsub.f32 %v382, %v1183
        %v1185 = vand.u32 %v1184, 4294901760
        %v1186 = vsub.f32 %v1184, %v1185
        %v1187 = vand.u32 %v1186, 4294901760
        %1188 = vmatpush2.msra.mxu0 %v1187
        %v1189 = vand.u32 %v379, 4294901760
        %v1190 = vsub.f32 %v379, %v1189
        %v1191 = vand.u32 %v1190, 4294901760
        %v1192 = vsub.f32 %v1190, %v1191
        %v1193 = vand.u32 %v1192, 4294901760
        %1194 = vmatprep.subr.mxu0 %v1193
        %v1195 = vand.u32 %v378, 4294901760
        %v1196 = vsub.f32 %v378, %v1195
        %v1197 = vand.u32 %v1196, 4294901760
        %v1198 = vsub.f32 %v1196, %v1197
        %v1199 = vand.u32 %v1198, 4294901760
        %1200 = vmatpush2.msra.mxu0 %v1199
        %v1201 = vand.u32 %v375, 4294901760
        %v1202 = vsub.f32 %v375, %v1201
        %v1203 = vand.u32 %v1202, 4294901760
        %v1204 = vsub.f32 %v1202, %v1203
        %v1205 = vand.u32 %v1204, 4294901760
        %1206 = vmatprep.subr.mxu0 %v1205
        %v1207 = vand.u32 %v374, 4294901760
        %v1208 = vsub.f32 %v374, %v1207
        %v1209 = vand.u32 %v1208, 4294901760
        %v1210 = vsub.f32 %v1208, %v1209
        %v1211 = vand.u32 %v1210, 4294901760
        %1212 = vmatpush2.msra.mxu0 %v1211
        %v1213 = vand.u32 %v371, 4294901760
        %v1214 = vsub.f32 %v371, %v1213
        %v1215 = vand.u32 %v1214, 4294901760
        %v1216 = vsub.f32 %v1214, %v1215
        %v1217 = vand.u32 %v1216, 4294901760
        %1218 = vmatprep.subr.mxu0 %v1217
        %v1219 = vand.u32 %v370, 4294901760
        %v1220 = vsub.f32 %v370, %v1219
        %v1221 = vand.u32 %v1220, 4294901760
        %v1222 = vsub.f32 %v1220, %v1221
        %v1223 = vand.u32 %v1222, 4294901760
        %1224 = vmatpush2.msra.mxu0 %v1223
        %v1225 = vand.u32 %v367, 4294901760
        %v1226 = vsub.f32 %v367, %v1225
        %v1227 = vand.u32 %v1226, 4294901760
        %v1228 = vsub.f32 %v1226, %v1227
        %v1229 = vand.u32 %v1228, 4294901760
        %1230 = vmatprep.subr.mxu0 %v1229
        %v1231 = vand.u32 %v366, 4294901760
        %v1232 = vsub.f32 %v366, %v1231
        %v1233 = vand.u32 %v1232, 4294901760
        %v1234 = vsub.f32 %v1232, %v1233
        %v1235 = vand.u32 %v1234, 4294901760
        %1236 = vmatpush2.msra.mxu0 %v1235
        %v1237 = vand.u32 %v363, 4294901760
        %v1238 = vsub.f32 %v363, %v1237
        %v1239 = vand.u32 %v1238, 4294901760
        %v1240 = vsub.f32 %v1238, %v1239
        %v1241 = vand.u32 %v1240, 4294901760
        %1242 = vmatprep.subr.mxu0 %v1241
        %v1243 = vand.u32 %v362, 4294901760
        %v1244 = vsub.f32 %v362, %v1243
        %v1245 = vand.u32 %v1244, 4294901760
        %v1246 = vsub.f32 %v1244, %v1245
        %v1247 = vand.u32 %v1246, 4294901760
        %1248 = vmatpush2.msra.mxu0 %v1247
        %v1249 = vand.u32 %v359, 4294901760
        %v1250 = vsub.f32 %v359, %v1249
        %v1251 = vand.u32 %v1250, 4294901760
        %v1252 = vsub.f32 %v1250, %v1251
        %v1253 = vand.u32 %v1252, 4294901760
        %1254 = vmatprep.subr.mxu0 %v1253
        %v1255 = vand.u32 %v358, 4294901760
        %v1256 = vsub.f32 %v358, %v1255
        %v1257 = vand.u32 %v1256, 4294901760
        %v1258 = vsub.f32 %v1256, %v1257
        %v1259 = vand.u32 %v1258, 4294901760
        %1260 = vmatpush2.msra.mxu0 %v1259
        %v1261 = vand.u32 %v355, 4294901760
        %v1262 = vsub.f32 %v355, %v1261
        %v1263 = vand.u32 %v1262, 4294901760
        %v1264 = vsub.f32 %v1262, %v1263
        %v1265 = vand.u32 %v1264, 4294901760
        %1266 = vmatprep.subr.mxu0 %v1265
        %v1267 = vand.u32 %v354, 4294901760
        %v1268 = vsub.f32 %v354, %v1267
        %v1269 = vand.u32 %v1268, 4294901760
        %v1270 = vsub.f32 %v1268, %v1269
        %v1271 = vand.u32 %v1270, 4294901760
        %1272 = vmatpush2.msra.mxu0 %v1271
        %v1273 = vand.u32 %v351, 4294901760
        %v1274 = vsub.f32 %v351, %v1273
        %v1275 = vand.u32 %v1274, 4294901760
        %v1276 = vsub.f32 %v1274, %v1275
        %v1277 = vand.u32 %v1276, 4294901760
        %1278 = vmatprep.subr.mxu0 %v1277
        %v1279 = vand.u32 %v350, 4294901760
        %v1280 = vsub.f32 %v350, %v1279
        %v1281 = vand.u32 %v1280, 4294901760
        %v1282 = vsub.f32 %v1280, %v1281
        %v1283 = vand.u32 %v1282, 4294901760
        %1284 = vmatpush2.msra.mxu0 %v1283
        %v1285 = vand.u32 %v347, 4294901760
        %v1286 = vsub.f32 %v347, %v1285
        %v1287 = vand.u32 %v1286, 4294901760
        %v1288 = vsub.f32 %v1286, %v1287
        %v1289 = vand.u32 %v1288, 4294901760
        %1290 = vmatprep.subr.mxu0 %v1289
        %v1291 = vand.u32 %v346, 4294901760
        %v1292 = vsub.f32 %v346, %v1291
        %v1293 = vand.u32 %v1292, 4294901760
        %v1294 = vsub.f32 %v1292, %v1293
        %v1295 = vand.u32 %v1294, 4294901760
        %1296 = vmatpush2.msra.mxu0 %v1295
        %v1297 = vand.u32 %v343, 4294901760
        %v1298 = vsub.f32 %v343, %v1297
        %v1299 = vand.u32 %v1298, 4294901760
        %v1300 = vsub.f32 %v1298, %v1299
        %v1301 = vand.u32 %v1300, 4294901760
        %1302 = vmatprep.subr.mxu0 %v1301
        %v1303 = vand.u32 %v342, 4294901760
        %v1304 = vsub.f32 %v342, %v1303
        %v1305 = vand.u32 %v1304, 4294901760
        %v1306 = vsub.f32 %v1304, %v1305
        %v1307 = vand.u32 %v1306, 4294901760
        %1308 = vmatpush2.msra.mxu0 %v1307
        %v1309 = vand.u32 %v339, 4294901760
        %v1310 = vsub.f32 %v339, %v1309
        %v1311 = vand.u32 %v1310, 4294901760
        %v1312 = vsub.f32 %v1310, %v1311
        %v1313 = vand.u32 %v1312, 4294901760
        %1314 = vmatprep.subr.mxu0 %v1313
        %v1315 = vand.u32 %v338, 4294901760
        %v1316 = vsub.f32 %v338, %v1315
        %v1317 = vand.u32 %v1316, 4294901760
        %v1318 = vsub.f32 %v1316, %v1317
        %v1319 = vand.u32 %v1318, 4294901760
        %1320 = vmatpush2.msra.mxu0 %v1319
        %v1321 = vand.u32 %v335, 4294901760
        %v1322 = vsub.f32 %v335, %v1321
        %v1323 = vand.u32 %v1322, 4294901760
        %v1324 = vsub.f32 %v1322, %v1323
        %v1325 = vand.u32 %v1324, 4294901760
        %1326 = vmatprep.subr.mxu0 %v1325
        %v1327 = vand.u32 %v334, 4294901760
        %v1328 = vsub.f32 %v334, %v1327
        %v1329 = vand.u32 %v1328, 4294901760
        %v1330 = vsub.f32 %v1328, %v1329
        %v1331 = vand.u32 %v1330, 4294901760
        %1332 = vmatpush2.msra.mxu0 %v1331
        %v1333 = vand.u32 %v263, 4294901760
        %1334 = vmatprep.mubr.f32.mxu0 %v1333
        %v1335 = vand.u32 %v262, 4294901760
        %1336 = vmatmul.mubr.f32.gmra.mxu0 %v1335
        %v1337 = vpop.f32.mrf.mxu0
        %v1338 = vadd.f32 %v945, %v1337
        %v1339 = vpop.f32.mrf.mxu0
        %v1340 = vadd.f32 %v947, %v1339
        %1341 = vdwg.mxu0
        %v1342 = vand.u32 %v331, 4294901760
        %v1343 = vsub.f32 %v331, %v1342
        %1344 = vmatprep.subr.mxu0 %v1343
        %v1345 = vand.u32 %v330, 4294901760
        %v1346 = vsub.f32 %v330, %v1345
        %1347 = vmatpush1.msra.mxu0 %v1346
        %v1348 = vand.u32 %v327, 4294901760
        %v1349 = vsub.f32 %v327, %v1348
        %1350 = vmatprep.subr.mxu0 %v1349
        %v1351 = vand.u32 %v326, 4294901760
        %v1352 = vsub.f32 %v326, %v1351
        %1353 = vmatpush1.msra.mxu0 %v1352
        %v1354 = vand.u32 %v323, 4294901760
        %v1355 = vsub.f32 %v323, %v1354
        %1356 = vmatprep.subr.mxu0 %v1355
        %v1357 = vand.u32 %v322, 4294901760
        %v1358 = vsub.f32 %v322, %v1357
        %1359 = vmatpush1.msra.mxu0 %v1358
        %v1360 = vand.u32 %v319, 4294901760
        %v1361 = vsub.f32 %v319, %v1360
        %1362 = vmatprep.subr.mxu0 %v1361
        %v1363 = vand.u32 %v318, 4294901760
        %v1364 = vsub.f32 %v318, %v1363
        %1365 = vmatpush1.msra.mxu0 %v1364
        %v1366 = vand.u32 %v315, 4294901760
        %v1367 = vsub.f32 %v315, %v1366
        %1368 = vmatprep.subr.mxu0 %v1367
        %v1369 = vand.u32 %v314, 4294901760
        %v1370 = vsub.f32 %v314, %v1369
        %1371 = vmatpush1.msra.mxu0 %v1370
        %v1372 = vand.u32 %v311, 4294901760
        %v1373 = vsub.f32 %v311, %v1372
        %1374 = vmatprep.subr.mxu0 %v1373
        %v1375 = vand.u32 %v310, 4294901760
        %v1376 = vsub.f32 %v310, %v1375
        %1377 = vmatpush1.msra.mxu0 %v1376
        %v1378 = vand.u32 %v307, 4294901760
        %v1379 = vsub.f32 %v307, %v1378
        %1380 = vmatprep.subr.mxu0 %v1379
        %v1381 = vand.u32 %v306, 4294901760
        %v1382 = vsub.f32 %v306, %v1381
        %1383 = vmatpush1.msra.mxu0 %v1382
        %v1384 = vand.u32 %v303, 4294901760
        %v1385 = vsub.f32 %v303, %v1384
        %1386 = vmatprep.subr.mxu0 %v1385
        %v1387 = vand.u32 %v302, 4294901760
        %v1388 = vsub.f32 %v302, %v1387
        %1389 = vmatpush1.msra.mxu0 %v1388
        %v1390 = vand.u32 %v299, 4294901760
        %v1391 = vsub.f32 %v299, %v1390
        %1392 = vmatprep.subr.mxu0 %v1391
        %v1393 = vand.u32 %v298, 4294901760
        %v1394 = vsub.f32 %v298, %v1393
        %1395 = vmatpush1.msra.mxu0 %v1394
        %v1396 = vand.u32 %v295, 4294901760
        %v1397 = vsub.f32 %v295, %v1396
        %1398 = vmatprep.subr.mxu0 %v1397
        %v1399 = vand.u32 %v294, 4294901760
        %v1400 = vsub.f32 %v294, %v1399
        %1401 = vmatpush1.msra.mxu0 %v1400
        %v1402 = vand.u32 %v291, 4294901760
        %v1403 = vsub.f32 %v291, %v1402
        %1404 = vmatprep.subr.mxu0 %v1403
        %v1405 = vand.u32 %v290, 4294901760
        %v1406 = vsub.f32 %v290, %v1405
        %1407 = vmatpush1.msra.mxu0 %v1406
        %v1408 = vand.u32 %v287, 4294901760
        %v1409 = vsub.f32 %v287, %v1408
        %1410 = vmatprep.subr.mxu0 %v1409
        %v1411 = vand.u32 %v286, 4294901760
        %v1412 = vsub.f32 %v286, %v1411
        %1413 = vmatpush1.msra.mxu0 %v1412
        %v1414 = vand.u32 %v283, 4294901760
        %v1415 = vsub.f32 %v283, %v1414
        %1416 = vmatprep.subr.mxu0 %v1415
        %v1417 = vand.u32 %v282, 4294901760
        %v1418 = vsub.f32 %v282, %v1417
        %1419 = vmatpush1.msra.mxu0 %v1418
        %v1420 = vand.u32 %v279, 4294901760
        %v1421 = vsub.f32 %v279, %v1420
        %1422 = vmatprep.subr.mxu0 %v1421
        %v1423 = vand.u32 %v278, 4294901760
        %v1424 = vsub.f32 %v278, %v1423
        %1425 = vmatpush1.msra.mxu0 %v1424
        %v1426 = vand.u32 %v275, 4294901760
        %v1427 = vsub.f32 %v275, %v1426
        %1428 = vmatprep.subr.mxu0 %v1427
        %v1429 = vand.u32 %v274, 4294901760
        %v1430 = vsub.f32 %v274, %v1429
        %1431 = vmatpush1.msra.mxu0 %v1430
        %v1432 = vand.u32 %v271, 4294901760
        %v1433 = vsub.f32 %v271, %v1432
        %1434 = vmatprep.subr.mxu0 %v1433
        %v1435 = vand.u32 %v270, 4294901760
        %v1436 = vsub.f32 %v270, %v1435
        %1437 = vmatpush1.msra.mxu0 %v1436
        %v1438 = vand.u32 %v395, 4294901760
        %v1439 = vsub.f32 %v395, %v1438
        %1440 = vmatprep.subr.mxu0 %v1439
        %v1441 = vand.u32 %v394, 4294901760
        %v1442 = vsub.f32 %v394, %v1441
        %1443 = vmatpush2.msra.mxu0 %v1442
        %v1444 = vand.u32 %v391, 4294901760
        %v1445 = vsub.f32 %v391, %v1444
        %1446 = vmatprep.subr.mxu0 %v1445
        %v1447 = vand.u32 %v390, 4294901760
        %v1448 = vsub.f32 %v390, %v1447
        %1449 = vmatpush2.msra.mxu0 %v1448
        %v1450 = vand.u32 %v387, 4294901760
        %v1451 = vsub.f32 %v387, %v1450
        %1452 = vmatprep.subr.mxu0 %v1451
        %v1453 = vand.u32 %v386, 4294901760
        %v1454 = vsub.f32 %v386, %v1453
        %1455 = vmatpush2.msra.mxu0 %v1454
        %v1456 = vand.u32 %v383, 4294901760
        %v1457 = vsub.f32 %v383, %v1456
        %1458 = vmatprep.subr.mxu0 %v1457
        %v1459 = vand.u32 %v382, 4294901760
        %v1460 = vsub.f32 %v382, %v1459
        %1461 = vmatpush2.msra.mxu0 %v1460
        %v1462 = vand.u32 %v379, 4294901760
        %v1463 = vsub.f32 %v379, %v1462
        %1464 = vmatprep.subr.mxu0 %v1463
        %v1465 = vand.u32 %v378, 4294901760
        %v1466 = vsub.f32 %v378, %v1465
        %1467 = vmatpush2.msra.mxu0 %v1466
        %v1468 = vand.u32 %v375, 4294901760
        %v1469 = vsub.f32 %v375, %v1468
        %1470 = vmatprep.subr.mxu0 %v1469
        %v1471 = vand.u32 %v374, 4294901760
        %v1472 = vsub.f32 %v374, %v1471
        %1473 = vmatpush2.msra.mxu0 %v1472
        %v1474 = vand.u32 %v371, 4294901760
        %v1475 = vsub.f32 %v371, %v1474
        %1476 = vmatprep.subr.mxu0 %v1475
        %v1477 = vand.u32 %v370, 4294901760
        %v1478 = vsub.f32 %v370, %v1477
        %1479 = vmatpush2.msra.mxu0 %v1478
        %v1480 = vand.u32 %v367, 4294901760
        %v1481 = vsub.f32 %v367, %v1480
        %1482 = vmatprep.subr.mxu0 %v1481
        %v1483 = vand.u32 %v366, 4294901760
        %v1484 = vsub.f32 %v366, %v1483
        %1485 = vmatpush2.msra.mxu0 %v1484
        %v1486 = vand.u32 %v363, 4294901760
        %v1487 = vsub.f32 %v363, %v1486
        %1488 = vmatprep.subr.mxu0 %v1487
        %v1489 = vand.u32 %v362, 4294901760
        %v1490 = vsub.f32 %v362, %v1489
        %1491 = vmatpush2.msra.mxu0 %v1490
        %v1492 = vand.u32 %v359, 4294901760
        %v1493 = vsub.f32 %v359, %v1492
        %1494 = vmatprep.subr.mxu0 %v1493
        %v1495 = vand.u32 %v358, 4294901760
        %v1496 = vsub.f32 %v358, %v1495
        %1497 = vmatpush2.msra.mxu0 %v1496
        %v1498 = vand.u32 %v355, 4294901760
        %v1499 = vsub.f32 %v355, %v1498
        %1500 = vmatprep.subr.mxu0 %v1499
        %v1501 = vand.u32 %v354, 4294901760
        %v1502 = vsub.f32 %v354, %v1501
        %1503 = vmatpush2.msra.mxu0 %v1502
        %v1504 = vand.u32 %v351, 4294901760
        %v1505 = vsub.f32 %v351, %v1504
        %1506 = vmatprep.subr.mxu0 %v1505
        %v1507 = vand.u32 %v350, 4294901760
        %v1508 = vsub.f32 %v350, %v1507
        %1509 = vmatpush2.msra.mxu0 %v1508
        %v1510 = vand.u32 %v347, 4294901760
        %v1511 = vsub.f32 %v347, %v1510
        %1512 = vmatprep.subr.mxu0 %v1511
        %v1513 = vand.u32 %v346, 4294901760
        %v1514 = vsub.f32 %v346, %v1513
        %1515 = vmatpush2.msra.mxu0 %v1514
        %v1516 = vand.u32 %v343, 4294901760
        %v1517 = vsub.f32 %v343, %v1516
        %1518 = vmatprep.subr.mxu0 %v1517
        %v1519 = vand.u32 %v342, 4294901760
        %v1520 = vsub.f32 %v342, %v1519
        %1521 = vmatpush2.msra.mxu0 %v1520
        %v1522 = vand.u32 %v339, 4294901760
        %v1523 = vsub.f32 %v339, %v1522
        %1524 = vmatprep.subr.mxu0 %v1523
        %v1525 = vand.u32 %v338, 4294901760
        %v1526 = vsub.f32 %v338, %v1525
        %1527 = vmatpush2.msra.mxu0 %v1526
        %v1528 = vand.u32 %v335, 4294901760
        %v1529 = vsub.f32 %v335, %v1528
        %1530 = vmatprep.subr.mxu0 %v1529
        %v1531 = vand.u32 %v334, 4294901760
        %v1532 = vsub.f32 %v334, %v1531
        %1533 = vmatpush2.msra.mxu0 %v1532
        %v1534 = vand.u32 %v263, 4294901760
        %v1535 = vsub.f32 %v263, %v1534
        %1536 = vmatprep.mubr.f32.mxu0 %v1535
        %v1537 = vand.u32 %v262, 4294901760
        %v1538 = vsub.f32 %v262, %v1537
        %1539 = vmatmul.mubr.f32.gmra.mxu0 %v1538
        %v1540 = vpop.f32.mrf.mxu0
        %v1541 = vadd.f32 %v1338, %v1540
        %v1542 = vpop.f32.mrf.mxu0
        %v1543 = vadd.f32 %v1340, %v1542
        %1544 = vdwg.mxu0
        %v1545 = vand.u32 %v331, 4294901760
        %1546 = vmatprep.subr.mxu0 %v1545
        %v1547 = vand.u32 %v330, 4294901760
        %1548 = vmatpush1.msra.mxu0 %v1547
        %v1549 = vand.u32 %v327, 4294901760
        %1550 = vmatprep.subr.mxu0 %v1549
        %v1551 = vand.u32 %v326, 4294901760
        %1552 = vmatpush1.msra.mxu0 %v1551
        %v1553 = vand.u32 %v323, 4294901760
        %1554 = vmatprep.subr.mxu0 %v1553
        %v1555 = vand.u32 %v322, 4294901760
        %1556 = vmatpush1.msra.mxu0 %v1555
        %v1557 = vand.u32 %v319, 4294901760
        %1558 = vmatprep.subr.mxu0 %v1557
        %v1559 = vand.u32 %v318, 4294901760
        %1560 = vmatpush1.msra.mxu0 %v1559
        %v1561 = vand.u32 %v315, 4294901760
        %1562 = vmatprep.subr.mxu0 %v1561
        %v1563 = vand.u32 %v314, 4294901760
        %1564 = vmatpush1.msra.mxu0 %v1563
        %v1565 = vand.u32 %v311, 4294901760
        %1566 = vmatprep.subr.mxu0 %v1565
        %v1567 = vand.u32 %v310, 4294901760
        %1568 = vmatpush1.msra.mxu0 %v1567
        %v1569 = vand.u32 %v307, 4294901760
        %1570 = vmatprep.subr.mxu0 %v1569
        %v1571 = vand.u32 %v306, 4294901760
        %1572 = vmatpush1.msra.mxu0 %v1571
        %v1573 = vand.u32 %v303, 4294901760
        %1574 = vmatprep.subr.mxu0 %v1573
        %v1575 = vand.u32 %v302, 4294901760
        %1576 = vmatpush1.msra.mxu0 %v1575
        %v1577 = vand.u32 %v299, 4294901760
        %1578 = vmatprep.subr.mxu0 %v1577
        %v1579 = vand.u32 %v298, 4294901760
        %1580 = vmatpush1.msra.mxu0 %v1579
        %v1581 = vand.u32 %v295, 4294901760
        %1582 = vmatprep.subr.mxu0 %v1581
        %v1583 = vand.u32 %v294, 4294901760
        %1584 = vmatpush1.msra.mxu0 %v1583
        %v1585 = vand.u32 %v291, 4294901760
        %1586 = vmatprep.subr.mxu0 %v1585
        %v1587 = vand.u32 %v290, 4294901760
        %1588 = vmatpush1.msra.mxu0 %v1587
        %v1589 = vand.u32 %v287, 4294901760
        %1590 = vmatprep.subr.mxu0 %v1589
        %v1591 = vand.u32 %v286, 4294901760
        %1592 = vmatpush1.msra.mxu0 %v1591
        %v1593 = vand.u32 %v283, 4294901760
        %1594 = vmatprep.subr.mxu0 %v1593
        %v1595 = vand.u32 %v282, 4294901760
        %1596 = vmatpush1.msra.mxu0 %v1595
        %v1597 = vand.u32 %v279, 4294901760
        %1598 = vmatprep.subr.mxu0 %v1597
        %v1599 = vand.u32 %v278, 4294901760
        %1600 = vmatpush1.msra.mxu0 %v1599
        %v1601 = vand.u32 %v275, 4294901760
        %1602 = vmatprep.subr.mxu0 %v1601
        %v1603 = vand.u32 %v274, 4294901760
        %1604 = vmatpush1.msra.mxu0 %v1603
        %v1605 = vand.u32 %v271, 4294901760
        %1606 = vmatprep.subr.mxu0 %v1605
        %v1607 = vand.u32 %v270, 4294901760
        %1608 = vmatpush1.msra.mxu0 %v1607
        %v1609 = vand.u32 %v395, 4294901760
        %1610 = vmatprep.subr.mxu0 %v1609
        %v1611 = vand.u32 %v394, 4294901760
        %1612 = vmatpush2.msra.mxu0 %v1611
        %v1613 = vand.u32 %v391, 4294901760
        %1614 = vmatprep.subr.mxu0 %v1613
        %v1615 = vand.u32 %v390, 4294901760
        %1616 = vmatpush2.msra.mxu0 %v1615
        %v1617 = vand.u32 %v387, 4294901760
        %1618 = vmatprep.subr.mxu0 %v1617
        %v1619 = vand.u32 %v386, 4294901760
        %1620 = vmatpush2.msra.mxu0 %v1619
        %v1621 = vand.u32 %v383, 4294901760
        %1622 = vmatprep.subr.mxu0 %v1621
        %v1623 = vand.u32 %v382, 4294901760
        %1624 = vmatpush2.msra.mxu0 %v1623
        %v1625 = vand.u32 %v379, 4294901760
        %1626 = vmatprep.subr.mxu0 %v1625
        %v1627 = vand.u32 %v378, 4294901760
        %1628 = vmatpush2.msra.mxu0 %v1627
        %v1629 = vand.u32 %v375, 4294901760
        %1630 = vmatprep.subr.mxu0 %v1629
        %v1631 = vand.u32 %v374, 4294901760
        %1632 = vmatpush2.msra.mxu0 %v1631
        %v1633 = vand.u32 %v371, 4294901760
        %1634 = vmatprep.subr.mxu0 %v1633
        %v1635 = vand.u32 %v370, 4294901760
        %1636 = vmatpush2.msra.mxu0 %v1635
        %v1637 = vand.u32 %v367, 4294901760
        %1638 = vmatprep.subr.mxu0 %v1637
        %v1639 = vand.u32 %v366, 4294901760
        %1640 = vmatpush2.msra.mxu0 %v1639
        %v1641 = vand.u32 %v363, 4294901760
        %1642 = vmatprep.subr.mxu0 %v1641
        %v1643 = vand.u32 %v362, 4294901760
        %1644 = vmatpush2.msra.mxu0 %v1643
        %v1645 = vand.u32 %v359, 4294901760
        %1646 = vmatprep.subr.mxu0 %v1645
        %v1647 = vand.u32 %v358, 4294901760
        %1648 = vmatpush2.msra.mxu0 %v1647
        %v1649 = vand.u32 %v355, 4294901760
        %1650 = vmatprep.subr.mxu0 %v1649
        %v1651 = vand.u32 %v354, 4294901760
        %1652 = vmatpush2.msra.mxu0 %v1651
        %v1653 = vand.u32 %v351, 4294901760
        %1654 = vmatprep.subr.mxu0 %v1653
        %v1655 = vand.u32 %v350, 4294901760
        %1656 = vmatpush2.msra.mxu0 %v1655
        %v1657 = vand.u32 %v347, 4294901760
        %1658 = vmatprep.subr.mxu0 %v1657
        %v1659 = vand.u32 %v346, 4294901760
        %1660 = vmatpush2.msra.mxu0 %v1659
        %v1661 = vand.u32 %v343, 4294901760
        %1662 = vmatprep.subr.mxu0 %v1661
        %v1663 = vand.u32 %v342, 4294901760
        %1664 = vmatpush2.msra.mxu0 %v1663
        %v1665 = vand.u32 %v339, 4294901760
        %1666 = vmatprep.subr.mxu0 %v1665
        %v1667 = vand.u32 %v338, 4294901760
        %1668 = vmatpush2.msra.mxu0 %v1667
        %v1669 = vand.u32 %v335, 4294901760
        %1670 = vmatprep.subr.mxu0 %v1669
        %v1671 = vand.u32 %v334, 4294901760
        %1672 = vmatpush2.msra.mxu0 %v1671
        %v1673 = vand.u32 %v263, 4294901760
        %v1674 = vsub.f32 %v263, %v1673
        %v1675 = vand.u32 %v1674, 4294901760
        %1676 = vmatprep.mubr.f32.mxu0 %v1675
        %v1677 = vand.u32 %v262, 4294901760
        %v1678 = vsub.f32 %v262, %v1677
        %v1679 = vand.u32 %v1678, 4294901760
        %1680 = vmatmul.mubr.f32.gmra.mxu0 %v1679
        %v1681 = vpop.f32.mrf.mxu0
        %v1682 = vadd.f32 %v1541, %v1681
        %v1683 = vpop.f32.mrf.mxu0
        %v1684 = vadd.f32 %v1543, %v1683
        %1685 = vdwg.mxu0
        %v1686 = vand.u32 %v331, 4294901760
        %v1687 = vsub.f32 %v331, %v1686
        %v1688 = vand.u32 %v1687, 4294901760
        %1689 = vmatprep.subr.mxu0 %v1688
        %v1690 = vand.u32 %v330, 4294901760
        %v1691 = vsub.f32 %v330, %v1690
        %v1692 = vand.u32 %v1691, 4294901760
        %1693 = vmatpush1.msra.mxu0 %v1692
        %v1694 = vand.u32 %v327, 4294901760
        %v1695 = vsub.f32 %v327, %v1694
        %v1696 = vand.u32 %v1695, 4294901760
        %1697 = vmatprep.subr.mxu0 %v1696
        %v1698 = vand.u32 %v326, 4294901760
        %v1699 = vsub.f32 %v326, %v1698
        %v1700 = vand.u32 %v1699, 4294901760
        %1701 = vmatpush1.msra.mxu0 %v1700
        %v1702 = vand.u32 %v323, 4294901760
        %v1703 = vsub.f32 %v323, %v1702
        %v1704 = vand.u32 %v1703, 4294901760
        %1705 = vmatprep.subr.mxu0 %v1704
        %v1706 = vand.u32 %v322, 4294901760
        %v1707 = vsub.f32 %v322, %v1706
        %v1708 = vand.u32 %v1707, 4294901760
        %1709 = vmatpush1.msra.mxu0 %v1708
        %v1710 = vand.u32 %v319, 4294901760
        %v1711 = vsub.f32 %v319, %v1710
        %v1712 = vand.u32 %v1711, 4294901760
        %1713 = vmatprep.subr.mxu0 %v1712
        %v1714 = vand.u32 %v318, 4294901760
        %v1715 = vsub.f32 %v318, %v1714
        %v1716 = vand.u32 %v1715, 4294901760
        %1717 = vmatpush1.msra.mxu0 %v1716
        %v1718 = vand.u32 %v315, 4294901760
        %v1719 = vsub.f32 %v315, %v1718
        %v1720 = vand.u32 %v1719, 4294901760
        %1721 = vmatprep.subr.mxu0 %v1720
        %v1722 = vand.u32 %v314, 4294901760
        %v1723 = vsub.f32 %v314, %v1722
        %v1724 = vand.u32 %v1723, 4294901760
        %1725 = vmatpush1.msra.mxu0 %v1724
        %v1726 = vand.u32 %v311, 4294901760
        %v1727 = vsub.f32 %v311, %v1726
        %v1728 = vand.u32 %v1727, 4294901760
        %1729 = vmatprep.subr.mxu0 %v1728
        %v1730 = vand.u32 %v310, 4294901760
        %v1731 = vsub.f32 %v310, %v1730
        %v1732 = vand.u32 %v1731, 4294901760
        %1733 = vmatpush1.msra.mxu0 %v1732
        %v1734 = vand.u32 %v307, 4294901760
        %v1735 = vsub.f32 %v307, %v1734
        %v1736 = vand.u32 %v1735, 4294901760
        %1737 = vmatprep.subr.mxu0 %v1736
        %v1738 = vand.u32 %v306, 4294901760
        %v1739 = vsub.f32 %v306, %v1738
        %v1740 = vand.u32 %v1739, 4294901760
        %1741 = vmatpush1.msra.mxu0 %v1740
        %v1742 = vand.u32 %v303, 4294901760
        %v1743 = vsub.f32 %v303, %v1742
        %v1744 = vand.u32 %v1743, 4294901760
        %1745 = vmatprep.subr.mxu0 %v1744
        %v1746 = vand.u32 %v302, 4294901760
        %v1747 = vsub.f32 %v302, %v1746
        %v1748 = vand.u32 %v1747, 4294901760
        %1749 = vmatpush1.msra.mxu0 %v1748
        %v1750 = vand.u32 %v299, 4294901760
        %v1751 = vsub.f32 %v299, %v1750
        %v1752 = vand.u32 %v1751, 4294901760
        %1753 = vmatprep.subr.mxu0 %v1752
        %v1754 = vand.u32 %v298, 4294901760
        %v1755 = vsub.f32 %v298, %v1754
        %v1756 = vand.u32 %v1755, 4294901760
        %1757 = vmatpush1.msra.mxu0 %v1756
        %v1758 = vand.u32 %v295, 4294901760
        %v1759 = vsub.f32 %v295, %v1758
        %v1760 = vand.u32 %v1759, 4294901760
        %1761 = vmatprep.subr.mxu0 %v1760
        %v1762 = vand.u32 %v294, 4294901760
        %v1763 = vsub.f32 %v294, %v1762
        %v1764 = vand.u32 %v1763, 4294901760
        %1765 = vmatpush1.msra.mxu0 %v1764
        %v1766 = vand.u32 %v291, 4294901760
        %v1767 = vsub.f32 %v291, %v1766
        %v1768 = vand.u32 %v1767, 4294901760
        %1769 = vmatprep.subr.mxu0 %v1768
        %v1770 = vand.u32 %v290, 4294901760
        %v1771 = vsub.f32 %v290, %v1770
        %v1772 = vand.u32 %v1771, 4294901760
        %1773 = vmatpush1.msra.mxu0 %v1772
        %v1774 = vand.u32 %v287, 4294901760
        %v1775 = vsub.f32 %v287, %v1774
        %v1776 = vand.u32 %v1775, 4294901760
        %1777 = vmatprep.subr.mxu0 %v1776
        %v1778 = vand.u32 %v286, 4294901760
        %v1779 = vsub.f32 %v286, %v1778
        %v1780 = vand.u32 %v1779, 4294901760
        %1781 = vmatpush1.msra.mxu0 %v1780
        %v1782 = vand.u32 %v283, 4294901760
        %v1783 = vsub.f32 %v283, %v1782
        %v1784 = vand.u32 %v1783, 4294901760
        %1785 = vmatprep.subr.mxu0 %v1784
        %v1786 = vand.u32 %v282, 4294901760
        %v1787 = vsub.f32 %v282, %v1786
        %v1788 = vand.u32 %v1787, 4294901760
        %1789 = vmatpush1.msra.mxu0 %v1788
        %v1790 = vand.u32 %v279, 4294901760
        %v1791 = vsub.f32 %v279, %v1790
        %v1792 = vand.u32 %v1791, 4294901760
        %1793 = vmatprep.subr.mxu0 %v1792
        %v1794 = vand.u32 %v278, 4294901760
        %v1795 = vsub.f32 %v278, %v1794
        %v1796 = vand.u32 %v1795, 4294901760
        %1797 = vmatpush1.msra.mxu0 %v1796
        %v1798 = vand.u32 %v275, 4294901760
        %v1799 = vsub.f32 %v275, %v1798
        %v1800 = vand.u32 %v1799, 4294901760
        %1801 = vmatprep.subr.mxu0 %v1800
        %v1802 = vand.u32 %v274, 4294901760
        %v1803 = vsub.f32 %v274, %v1802
        %v1804 = vand.u32 %v1803, 4294901760
        %1805 = vmatpush1.msra.mxu0 %v1804
        %v1806 = vand.u32 %v271, 4294901760
        %v1807 = vsub.f32 %v271, %v1806
        %v1808 = vand.u32 %v1807, 4294901760
        %1809 = vmatprep.subr.mxu0 %v1808
        %v1810 = vand.u32 %v270, 4294901760
        %v1811 = vsub.f32 %v270, %v1810
        %v1812 = vand.u32 %v1811, 4294901760
        %1813 = vmatpush1.msra.mxu0 %v1812
        %v1814 = vand.u32 %v395, 4294901760
        %v1815 = vsub.f32 %v395, %v1814
        %v1816 = vand.u32 %v1815, 4294901760
        %1817 = vmatprep.subr.mxu0 %v1816
        %v1818 = vand.u32 %v394, 4294901760
        %v1819 = vsub.f32 %v394, %v1818
        %v1820 = vand.u32 %v1819, 4294901760
        %1821 = vmatpush2.msra.mxu0 %v1820
        %v1822 = vand.u32 %v391, 4294901760
        %v1823 = vsub.f32 %v391, %v1822
        %v1824 = vand.u32 %v1823, 4294901760
        %1825 = vmatprep.subr.mxu0 %v1824
        %v1826 = vand.u32 %v390, 4294901760
        %v1827 = vsub.f32 %v390, %v1826
        %v1828 = vand.u32 %v1827, 4294901760
        %1829 = vmatpush2.msra.mxu0 %v1828
        %v1830 = vand.u32 %v387, 4294901760
        %v1831 = vsub.f32 %v387, %v1830
        %v1832 = vand.u32 %v1831, 4294901760
        %1833 = vmatprep.subr.mxu0 %v1832
        %v1834 = vand.u32 %v386, 4294901760
        %v1835 = vsub.f32 %v386, %v1834
        %v1836 = vand.u32 %v1835, 4294901760
        %1837 = vmatpush2.msra.mxu0 %v1836
        %v1838 = vand.u32 %v383, 4294901760
        %v1839 = vsub.f32 %v383, %v1838
        %v1840 = vand.u32 %v1839, 4294901760
        %1841 = vmatprep.subr.mxu0 %v1840
        %v1842 = vand.u32 %v382, 4294901760
        %v1843 = vsub.f32 %v382, %v1842
        %v1844 = vand.u32 %v1843, 4294901760
        %1845 = vmatpush2.msra.mxu0 %v1844
        %v1846 = vand.u32 %v379, 4294901760
        %v1847 = vsub.f32 %v379, %v1846
        %v1848 = vand.u32 %v1847, 4294901760
        %1849 = vmatprep.subr.mxu0 %v1848
        %v1850 = vand.u32 %v378, 4294901760
        %v1851 = vsub.f32 %v378, %v1850
        %v1852 = vand.u32 %v1851, 4294901760
        %1853 = vmatpush2.msra.mxu0 %v1852
        %v1854 = vand.u32 %v375, 4294901760
        %v1855 = vsub.f32 %v375, %v1854
        %v1856 = vand.u32 %v1855, 4294901760
        %1857 = vmatprep.subr.mxu0 %v1856
        %v1858 = vand.u32 %v374, 4294901760
        %v1859 = vsub.f32 %v374, %v1858
        %v1860 = vand.u32 %v1859, 4294901760
        %1861 = vmatpush2.msra.mxu0 %v1860
        %v1862 = vand.u32 %v371, 4294901760
        %v1863 = vsub.f32 %v371, %v1862
        %v1864 = vand.u32 %v1863, 4294901760
        %1865 = vmatprep.subr.mxu0 %v1864
        %v1866 = vand.u32 %v370, 4294901760
        %v1867 = vsub.f32 %v370, %v1866
        %v1868 = vand.u32 %v1867, 4294901760
        %1869 = vmatpush2.msra.mxu0 %v1868
        %v1870 = vand.u32 %v367, 4294901760
        %v1871 = vsub.f32 %v367, %v1870
        %v1872 = vand.u32 %v1871, 4294901760
        %1873 = vmatprep.subr.mxu0 %v1872
        %v1874 = vand.u32 %v366, 4294901760
        %v1875 = vsub.f32 %v366, %v1874
        %v1876 = vand.u32 %v1875, 4294901760
        %1877 = vmatpush2.msra.mxu0 %v1876
        %v1878 = vand.u32 %v363, 4294901760
        %v1879 = vsub.f32 %v363, %v1878
        %v1880 = vand.u32 %v1879, 4294901760
        %1881 = vmatprep.subr.mxu0 %v1880
        %v1882 = vand.u32 %v362, 4294901760
        %v1883 = vsub.f32 %v362, %v1882
        %v1884 = vand.u32 %v1883, 4294901760
        %1885 = vmatpush2.msra.mxu0 %v1884
        %v1886 = vand.u32 %v359, 4294901760
        %v1887 = vsub.f32 %v359, %v1886
        %v1888 = vand.u32 %v1887, 4294901760
        %1889 = vmatprep.subr.mxu0 %v1888
        %v1890 = vand.u32 %v358, 4294901760
        %v1891 = vsub.f32 %v358, %v1890
        %v1892 = vand.u32 %v1891, 4294901760
        %1893 = vmatpush2.msra.mxu0 %v1892
        %v1894 = vand.u32 %v355, 4294901760
        %v1895 = vsub.f32 %v355, %v1894
        %v1896 = vand.u32 %v1895, 4294901760
        %1897 = vmatprep.subr.mxu0 %v1896
        %v1898 = vand.u32 %v354, 4294901760
        %v1899 = vsub.f32 %v354, %v1898
        %v1900 = vand.u32 %v1899, 4294901760
        %1901 = vmatpush2.msra.mxu0 %v1900
        %v1902 = vand.u32 %v351, 4294901760
        %v1903 = vsub.f32 %v351, %v1902
        %v1904 = vand.u32 %v1903, 4294901760
        %1905 = vmatprep.subr.mxu0 %v1904
        %v1906 = vand.u32 %v350, 4294901760
        %v1907 = vsub.f32 %v350, %v1906
        %v1908 = vand.u32 %v1907, 4294901760
        %1909 = vmatpush2.msra.mxu0 %v1908
        %v1910 = vand.u32 %v347, 4294901760
        %v1911 = vsub.f32 %v347, %v1910
        %v1912 = vand.u32 %v1911, 4294901760
        %1913 = vmatprep.subr.mxu0 %v1912
        %v1914 = vand.u32 %v346, 4294901760
        %v1915 = vsub.f32 %v346, %v1914
        %v1916 = vand.u32 %v1915, 4294901760
        %1917 = vmatpush2.msra.mxu0 %v1916
        %v1918 = vand.u32 %v343, 4294901760
        %v1919 = vsub.f32 %v343, %v1918
        %v1920 = vand.u32 %v1919, 4294901760
        %1921 = vmatprep.subr.mxu0 %v1920
        %v1922 = vand.u32 %v342, 4294901760
        %v1923 = vsub.f32 %v342, %v1922
        %v1924 = vand.u32 %v1923, 4294901760
        %1925 = vmatpush2.msra.mxu0 %v1924
        %v1926 = vand.u32 %v339, 4294901760
        %v1927 = vsub.f32 %v339, %v1926
        %v1928 = vand.u32 %v1927, 4294901760
        %1929 = vmatprep.subr.mxu0 %v1928
        %v1930 = vand.u32 %v338, 4294901760
        %v1931 = vsub.f32 %v338, %v1930
        %v1932 = vand.u32 %v1931, 4294901760
        %1933 = vmatpush2.msra.mxu0 %v1932
        %v1934 = vand.u32 %v335, 4294901760
        %v1935 = vsub.f32 %v335, %v1934
        %v1936 = vand.u32 %v1935, 4294901760
        %1937 = vmatprep.subr.mxu0 %v1936
        %v1938 = vand.u32 %v334, 4294901760
        %v1939 = vsub.f32 %v334, %v1938
        %v1940 = vand.u32 %v1939, 4294901760
        %1941 = vmatpush2.msra.mxu0 %v1940
        %v1942 = vand.u32 %v263, 4294901760
        %1943 = vmatprep.mubr.f32.mxu0 %v1942
        %v1944 = vand.u32 %v262, 4294901760
        %1945 = vmatmul.mubr.f32.gmra.mxu0 %v1944
        %v1946 = vpop.f32.mrf.mxu0
        %v1947 = vadd.f32 %v1682, %v1946
        %v1948 = vpop.f32.mrf.mxu0
        %v1949 = vadd.f32 %v1684, %v1948
        %1950 = vdwg.mxu0
        %v1951 = vand.u32 %v331, 4294901760
        %1952 = vmatprep.subr.mxu0 %v1951
        %v1953 = vand.u32 %v330, 4294901760
        %1954 = vmatpush1.msra.mxu0 %v1953
        %v1955 = vand.u32 %v327, 4294901760
        %1956 = vmatprep.subr.mxu0 %v1955
        %v1957 = vand.u32 %v326, 4294901760
        %1958 = vmatpush1.msra.mxu0 %v1957
        %v1959 = vand.u32 %v323, 4294901760
        %1960 = vmatprep.subr.mxu0 %v1959
        %v1961 = vand.u32 %v322, 4294901760
        %1962 = vmatpush1.msra.mxu0 %v1961
        %v1963 = vand.u32 %v319, 4294901760
        %1964 = vmatprep.subr.mxu0 %v1963
        %v1965 = vand.u32 %v318, 4294901760
        %1966 = vmatpush1.msra.mxu0 %v1965
        %v1967 = vand.u32 %v315, 4294901760
        %1968 = vmatprep.subr.mxu0 %v1967
        %v1969 = vand.u32 %v314, 4294901760
        %1970 = vmatpush1.msra.mxu0 %v1969
        %v1971 = vand.u32 %v311, 4294901760
        %1972 = vmatprep.subr.mxu0 %v1971
        %v1973 = vand.u32 %v310, 4294901760
        %1974 = vmatpush1.msra.mxu0 %v1973
        %v1975 = vand.u32 %v307, 4294901760
        %1976 = vmatprep.subr.mxu0 %v1975
        %v1977 = vand.u32 %v306, 4294901760
        %1978 = vmatpush1.msra.mxu0 %v1977
        %v1979 = vand.u32 %v303, 4294901760
        %1980 = vmatprep.subr.mxu0 %v1979
        %v1981 = vand.u32 %v302, 4294901760
        %1982 = vmatpush1.msra.mxu0 %v1981
        %v1983 = vand.u32 %v299, 4294901760
        %1984 = vmatprep.subr.mxu0 %v1983
        %v1985 = vand.u32 %v298, 4294901760
        %1986 = vmatpush1.msra.mxu0 %v1985
        %v1987 = vand.u32 %v295, 4294901760
        %1988 = vmatprep.subr.mxu0 %v1987
        %v1989 = vand.u32 %v294, 4294901760
        %1990 = vmatpush1.msra.mxu0 %v1989
        %v1991 = vand.u32 %v291, 4294901760
        %1992 = vmatprep.subr.mxu0 %v1991
        %v1993 = vand.u32 %v290, 4294901760
        %1994 = vmatpush1.msra.mxu0 %v1993
        %v1995 = vand.u32 %v287, 4294901760
        %1996 = vmatprep.subr.mxu0 %v1995
        %v1997 = vand.u32 %v286, 4294901760
        %1998 = vmatpush1.msra.mxu0 %v1997
        %v1999 = vand.u32 %v283, 4294901760
        %2000 = vmatprep.subr.mxu0 %v1999
        %v2001 = vand.u32 %v282, 4294901760
        %2002 = vmatpush1.msra.mxu0 %v2001
        %v2003 = vand.u32 %v279, 4294901760
        %2004 = vmatprep.subr.mxu0 %v2003
        %v2005 = vand.u32 %v278, 4294901760
        %2006 = vmatpush1.msra.mxu0 %v2005
        %v2007 = vand.u32 %v275, 4294901760
        %2008 = vmatprep.subr.mxu0 %v2007
        %v2009 = vand.u32 %v274, 4294901760
        %2010 = vmatpush1.msra.mxu0 %v2009
        %v2011 = vand.u32 %v271, 4294901760
        %2012 = vmatprep.subr.mxu0 %v2011
        %v2013 = vand.u32 %v270, 4294901760
        %2014 = vmatpush1.msra.mxu0 %v2013
        %v2015 = vand.u32 %v395, 4294901760
        %2016 = vmatprep.subr.mxu0 %v2015
        %v2017 = vand.u32 %v394, 4294901760
        %2018 = vmatpush2.msra.mxu0 %v2017
        %v2019 = vand.u32 %v391, 4294901760
        %2020 = vmatprep.subr.mxu0 %v2019
        %v2021 = vand.u32 %v390, 4294901760
        %2022 = vmatpush2.msra.mxu0 %v2021
        %v2023 = vand.u32 %v387, 4294901760
        %2024 = vmatprep.subr.mxu0 %v2023
        %v2025 = vand.u32 %v386, 4294901760
        %2026 = vmatpush2.msra.mxu0 %v2025
        %v2027 = vand.u32 %v383, 4294901760
        %2028 = vmatprep.subr.mxu0 %v2027
        %v2029 = vand.u32 %v382, 4294901760
        %2030 = vmatpush2.msra.mxu0 %v2029
        %v2031 = vand.u32 %v379, 4294901760
        %2032 = vmatprep.subr.mxu0 %v2031
        %v2033 = vand.u32 %v378, 4294901760
        %2034 = vmatpush2.msra.mxu0 %v2033
        %v2035 = vand.u32 %v375, 4294901760
        %2036 = vmatprep.subr.mxu0 %v2035
        %v2037 = vand.u32 %v374, 4294901760
        %2038 = vmatpush2.msra.mxu0 %v2037
        %v2039 = vand.u32 %v371, 4294901760
        %2040 = vmatprep.subr.mxu0 %v2039
        %v2041 = vand.u32 %v370, 4294901760
        %2042 = vmatpush2.msra.mxu0 %v2041
        %v2043 = vand.u32 %v367, 4294901760
        %2044 = vmatprep.subr.mxu0 %v2043
        %v2045 = vand.u32 %v366, 4294901760
        %2046 = vmatpush2.msra.mxu0 %v2045
        %v2047 = vand.u32 %v363, 4294901760
        %2048 = vmatprep.subr.mxu0 %v2047
        %v2049 = vand.u32 %v362, 4294901760
        %2050 = vmatpush2.msra.mxu0 %v2049
        %v2051 = vand.u32 %v359, 4294901760
        %2052 = vmatprep.subr.mxu0 %v2051
        %v2053 = vand.u32 %v358, 4294901760
        %2054 = vmatpush2.msra.mxu0 %v2053
        %v2055 = vand.u32 %v355, 4294901760
        %2056 = vmatprep.subr.mxu0 %v2055
        %v2057 = vand.u32 %v354, 4294901760
        %2058 = vmatpush2.msra.mxu0 %v2057
        %v2059 = vand.u32 %v351, 4294901760
        %2060 = vmatprep.subr.mxu0 %v2059
        %v2061 = vand.u32 %v350, 4294901760
        %2062 = vmatpush2.msra.mxu0 %v2061
        %v2063 = vand.u32 %v347, 4294901760
        %2064 = vmatprep.subr.mxu0 %v2063
        %v2065 = vand.u32 %v346, 4294901760
        %2066 = vmatpush2.msra.mxu0 %v2065
        %v2067 = vand.u32 %v343, 4294901760
        %2068 = vmatprep.subr.mxu0 %v2067
        %v2069 = vand.u32 %v342, 4294901760
        %2070 = vmatpush2.msra.mxu0 %v2069
        %v2071 = vand.u32 %v339, 4294901760
        %2072 = vmatprep.subr.mxu0 %v2071
        %v2073 = vand.u32 %v338, 4294901760
        %2074 = vmatpush2.msra.mxu0 %v2073
        %v2075 = vand.u32 %v335, 4294901760
        %2076 = vmatprep.subr.mxu0 %v2075
        %v2077 = vand.u32 %v334, 4294901760
        %2078 = vmatpush2.msra.mxu0 %v2077
        %v2079 = vand.u32 %v263, 4294901760
        %2080 = vmatprep.mubr.f32.mxu0 %v2079
        %v2081 = vand.u32 %v262, 4294901760
        %2082 = vmatmul.mubr.f32.gmra.mxu0 %v2081
        %v2083 = vpop.f32.mrf.mxu0
        %v2084 = vadd.f32 %v1947, %v2083
        %v2085 = vpop.f32.mrf.mxu0
        %v2086 = vadd.f32 %v1949, %v2085
        %2087 = vdwg.mxu0
        %v2088 = vand.u32 %v459, 4294901760
        %2089 = vmatprep.subr.mxu0 %v2088
        %v2090 = vand.u32 %v458, 4294901760
        %2091 = vmatpush1.msra.mxu0 %v2090
        %v2092 = vand.u32 %v455, 4294901760
        %2093 = vmatprep.subr.mxu0 %v2092
        %v2094 = vand.u32 %v454, 4294901760
        %2095 = vmatpush1.msra.mxu0 %v2094
        %v2096 = vand.u32 %v451, 4294901760
        %2097 = vmatprep.subr.mxu0 %v2096
        %v2098 = vand.u32 %v450, 4294901760
        %2099 = vmatpush1.msra.mxu0 %v2098
        %v2100 = vand.u32 %v447, 4294901760
        %2101 = vmatprep.subr.mxu0 %v2100
        %v2102 = vand.u32 %v446, 4294901760
        %2103 = vmatpush1.msra.mxu0 %v2102
        %v2104 = vand.u32 %v443, 4294901760
        %2105 = vmatprep.subr.mxu0 %v2104
        %v2106 = vand.u32 %v442, 4294901760
        %2107 = vmatpush1.msra.mxu0 %v2106
        %v2108 = vand.u32 %v439, 4294901760
        %2109 = vmatprep.subr.mxu0 %v2108
        %v2110 = vand.u32 %v438, 4294901760
        %2111 = vmatpush1.msra.mxu0 %v2110
        %v2112 = vand.u32 %v435, 4294901760
        %2113 = vmatprep.subr.mxu0 %v2112
        %v2114 = vand.u32 %v434, 4294901760
        %2115 = vmatpush1.msra.mxu0 %v2114
        %v2116 = vand.u32 %v431, 4294901760
        %2117 = vmatprep.subr.mxu0 %v2116
        %v2118 = vand.u32 %v430, 4294901760
        %2119 = vmatpush1.msra.mxu0 %v2118
        %v2120 = vand.u32 %v427, 4294901760
        %2121 = vmatprep.subr.mxu0 %v2120
        %v2122 = vand.u32 %v426, 4294901760
        %2123 = vmatpush1.msra.mxu0 %v2122
        %v2124 = vand.u32 %v423, 4294901760
        %2125 = vmatprep.subr.mxu0 %v2124
        %v2126 = vand.u32 %v422, 4294901760
        %2127 = vmatpush1.msra.mxu0 %v2126
        %v2128 = vand.u32 %v419, 4294901760
        %2129 = vmatprep.subr.mxu0 %v2128
        %v2130 = vand.u32 %v418, 4294901760
        %2131 = vmatpush1.msra.mxu0 %v2130
        %v2132 = vand.u32 %v415, 4294901760
        %2133 = vmatprep.subr.mxu0 %v2132
        %v2134 = vand.u32 %v414, 4294901760
        %2135 = vmatpush1.msra.mxu0 %v2134
        %v2136 = vand.u32 %v411, 4294901760
        %2137 = vmatprep.subr.mxu0 %v2136
        %v2138 = vand.u32 %v410, 4294901760
        %2139 = vmatpush1.msra.mxu0 %v2138
        %v2140 = vand.u32 %v407, 4294901760
        %2141 = vmatprep.subr.mxu0 %v2140
        %v2142 = vand.u32 %v406, 4294901760
        %2143 = vmatpush1.msra.mxu0 %v2142
        %v2144 = vand.u32 %v403, 4294901760
        %2145 = vmatprep.subr.mxu0 %v2144
        %v2146 = vand.u32 %v402, 4294901760
        %2147 = vmatpush1.msra.mxu0 %v2146
        %v2148 = vand.u32 %v399, 4294901760
        %2149 = vmatprep.subr.mxu0 %v2148
        %v2150 = vand.u32 %v398, 4294901760
        %2151 = vmatpush1.msra.mxu0 %v2150
        %v2152 = vand.u32 %v523, 4294901760
        %2153 = vmatprep.subr.mxu0 %v2152
        %v2154 = vand.u32 %v522, 4294901760
        %2155 = vmatpush2.msra.mxu0 %v2154
        %v2156 = vand.u32 %v519, 4294901760
        %2157 = vmatprep.subr.mxu0 %v2156
        %v2158 = vand.u32 %v518, 4294901760
        %2159 = vmatpush2.msra.mxu0 %v2158
        %v2160 = vand.u32 %v515, 4294901760
        %2161 = vmatprep.subr.mxu0 %v2160
        %v2162 = vand.u32 %v514, 4294901760
        %2163 = vmatpush2.msra.mxu0 %v2162
        %v2164 = vand.u32 %v511, 4294901760
        %2165 = vmatprep.subr.mxu0 %v2164
        %v2166 = vand.u32 %v510, 4294901760
        %2167 = vmatpush2.msra.mxu0 %v2166
        %v2168 = vand.u32 %v507, 4294901760
        %2169 = vmatprep.subr.mxu0 %v2168
        %v2170 = vand.u32 %v506, 4294901760
        %2171 = vmatpush2.msra.mxu0 %v2170
        %v2172 = vand.u32 %v503, 4294901760
        %2173 = vmatprep.subr.mxu0 %v2172
        %v2174 = vand.u32 %v502, 4294901760
        %2175 = vmatpush2.msra.mxu0 %v2174
        %v2176 = vand.u32 %v499, 4294901760
        %2177 = vmatprep.subr.mxu0 %v2176
        %v2178 = vand.u32 %v498, 4294901760
        %2179 = vmatpush2.msra.mxu0 %v2178
        %v2180 = vand.u32 %v495, 4294901760
        %2181 = vmatprep.subr.mxu0 %v2180
        %v2182 = vand.u32 %v494, 4294901760
        %2183 = vmatpush2.msra.mxu0 %v2182
        %v2184 = vand.u32 %v491, 4294901760
        %2185 = vmatprep.subr.mxu0 %v2184
        %v2186 = vand.u32 %v490, 4294901760
        %2187 = vmatpush2.msra.mxu0 %v2186
        %v2188 = vand.u32 %v487, 4294901760
        %2189 = vmatprep.subr.mxu0 %v2188
        %v2190 = vand.u32 %v486, 4294901760
        %2191 = vmatpush2.msra.mxu0 %v2190
        %v2192 = vand.u32 %v483, 4294901760
        %2193 = vmatprep.subr.mxu0 %v2192
        %v2194 = vand.u32 %v482, 4294901760
        %2195 = vmatpush2.msra.mxu0 %v2194
        %v2196 = vand.u32 %v479, 4294901760
        %2197 = vmatprep.subr.mxu0 %v2196
        %v2198 = vand.u32 %v478, 4294901760
        %2199 = vmatpush2.msra.mxu0 %v2198
        %v2200 = vand.u32 %v475, 4294901760
        %2201 = vmatprep.subr.mxu0 %v2200
        %v2202 = vand.u32 %v474, 4294901760
        %2203 = vmatpush2.msra.mxu0 %v2202
        %v2204 = vand.u32 %v471, 4294901760
        %2205 = vmatprep.subr.mxu0 %v2204
        %v2206 = vand.u32 %v470, 4294901760
        %2207 = vmatpush2.msra.mxu0 %v2206
        %v2208 = vand.u32 %v467, 4294901760
        %2209 = vmatprep.subr.mxu0 %v2208
        %v2210 = vand.u32 %v466, 4294901760
        %2211 = vmatpush2.msra.mxu0 %v2210
        %v2212 = vand.u32 %v463, 4294901760
        %2213 = vmatprep.subr.mxu0 %v2212
        %v2214 = vand.u32 %v462, 4294901760
        %2215 = vmatpush2.msra.mxu0 %v2214
        %v2216 = vand.u32 %v265, 4294901760
        %v2217 = vsub.f32 %v265, %v2216
        %v2218 = vand.u32 %v2217, 4294901760
        %v2219 = vsub.f32 %v2217, %v2218
        %v2220 = vand.u32 %v2219, 4294901760
        %2221 = vmatprep.mubr.f32.mxu0 %v2220
        %v2222 = vand.u32 %v264, 4294901760
        %v2223 = vsub.f32 %v264, %v2222
        %v2224 = vand.u32 %v2223, 4294901760
        %v2225 = vsub.f32 %v2223, %v2224
        %v2226 = vand.u32 %v2225, 4294901760
        %2227 = vmatmul.mubr.f32.gmra.mxu0 %v2226
        %v2228 = vpop.f32.mrf.mxu0
        %v2229 = vadd.f32 %v2084, %v2228
        %v2230 = vpop.f32.mrf.mxu0
        %v2231 = vadd.f32 %v2086, %v2230
        %2232 = vdwg.mxu0
        %v2233 = vand.u32 %v459, 4294901760
        %v2234 = vsub.f32 %v459, %v2233
        %v2235 = vand.u32 %v2234, 4294901760
        %v2236 = vsub.f32 %v2234, %v2235
        %v2237 = vand.u32 %v2236, 4294901760
        %2238 = vmatprep.subr.mxu0 %v2237
        %v2239 = vand.u32 %v458, 4294901760
        %v2240 = vsub.f32 %v458, %v2239
        %v2241 = vand.u32 %v2240, 4294901760
        %v2242 = vsub.f32 %v2240, %v2241
        %v2243 = vand.u32 %v2242, 4294901760
        %2244 = vmatpush1.msra.mxu0 %v2243
        %v2245 = vand.u32 %v455, 4294901760
        %v2246 = vsub.f32 %v455, %v2245
        %v2247 = vand.u32 %v2246, 4294901760
        %v2248 = vsub.f32 %v2246, %v2247
        %v2249 = vand.u32 %v2248, 4294901760
        %2250 = vmatprep.subr.mxu0 %v2249
        %v2251 = vand.u32 %v454, 4294901760
        %v2252 = vsub.f32 %v454, %v2251
        %v2253 = vand.u32 %v2252, 4294901760
        %v2254 = vsub.f32 %v2252, %v2253
        %v2255 = vand.u32 %v2254, 4294901760
        %2256 = vmatpush1.msra.mxu0 %v2255
        %v2257 = vand.u32 %v451, 4294901760
        %v2258 = vsub.f32 %v451, %v2257
        %v2259 = vand.u32 %v2258, 4294901760
        %v2260 = vsub.f32 %v2258, %v2259
        %v2261 = vand.u32 %v2260, 4294901760
        %2262 = vmatprep.subr.mxu0 %v2261
        %v2263 = vand.u32 %v450, 4294901760
        %v2264 = vsub.f32 %v450, %v2263
        %v2265 = vand.u32 %v2264, 4294901760
        %v2266 = vsub.f32 %v2264, %v2265
        %v2267 = vand.u32 %v2266, 4294901760
        %2268 = vmatpush1.msra.mxu0 %v2267
        %v2269 = vand.u32 %v447, 4294901760
        %v2270 = vsub.f32 %v447, %v2269
        %v2271 = vand.u32 %v2270, 4294901760
        %v2272 = vsub.f32 %v2270, %v2271
        %v2273 = vand.u32 %v2272, 4294901760
        %2274 = vmatprep.subr.mxu0 %v2273
        %v2275 = vand.u32 %v446, 4294901760
        %v2276 = vsub.f32 %v446, %v2275
        %v2277 = vand.u32 %v2276, 4294901760
        %v2278 = vsub.f32 %v2276, %v2277
        %v2279 = vand.u32 %v2278, 4294901760
        %2280 = vmatpush1.msra.mxu0 %v2279
        %v2281 = vand.u32 %v443, 4294901760
        %v2282 = vsub.f32 %v443, %v2281
        %v2283 = vand.u32 %v2282, 4294901760
        %v2284 = vsub.f32 %v2282, %v2283
        %v2285 = vand.u32 %v2284, 4294901760
        %2286 = vmatprep.subr.mxu0 %v2285
        %v2287 = vand.u32 %v442, 4294901760
        %v2288 = vsub.f32 %v442, %v2287
        %v2289 = vand.u32 %v2288, 4294901760
        %v2290 = vsub.f32 %v2288, %v2289
        %v2291 = vand.u32 %v2290, 4294901760
        %2292 = vmatpush1.msra.mxu0 %v2291
        %v2293 = vand.u32 %v439, 4294901760
        %v2294 = vsub.f32 %v439, %v2293
        %v2295 = vand.u32 %v2294, 4294901760
        %v2296 = vsub.f32 %v2294, %v2295
        %v2297 = vand.u32 %v2296, 4294901760
        %2298 = vmatprep.subr.mxu0 %v2297
        %v2299 = vand.u32 %v438, 4294901760
        %v2300 = vsub.f32 %v438, %v2299
        %v2301 = vand.u32 %v2300, 4294901760
        %v2302 = vsub.f32 %v2300, %v2301
        %v2303 = vand.u32 %v2302, 4294901760
        %2304 = vmatpush1.msra.mxu0 %v2303
        %v2305 = vand.u32 %v435, 4294901760
        %v2306 = vsub.f32 %v435, %v2305
        %v2307 = vand.u32 %v2306, 4294901760
        %v2308 = vsub.f32 %v2306, %v2307
        %v2309 = vand.u32 %v2308, 4294901760
        %2310 = vmatprep.subr.mxu0 %v2309
        %v2311 = vand.u32 %v434, 4294901760
        %v2312 = vsub.f32 %v434, %v2311
        %v2313 = vand.u32 %v2312, 4294901760
        %v2314 = vsub.f32 %v2312, %v2313
        %v2315 = vand.u32 %v2314, 4294901760
        %2316 = vmatpush1.msra.mxu0 %v2315
        %v2317 = vand.u32 %v431, 4294901760
        %v2318 = vsub.f32 %v431, %v2317
        %v2319 = vand.u32 %v2318, 4294901760
        %v2320 = vsub.f32 %v2318, %v2319
        %v2321 = vand.u32 %v2320, 4294901760
        %2322 = vmatprep.subr.mxu0 %v2321
        %v2323 = vand.u32 %v430, 4294901760
        %v2324 = vsub.f32 %v430, %v2323
        %v2325 = vand.u32 %v2324, 4294901760
        %v2326 = vsub.f32 %v2324, %v2325
        %v2327 = vand.u32 %v2326, 4294901760
        %2328 = vmatpush1.msra.mxu0 %v2327
        %v2329 = vand.u32 %v427, 4294901760
        %v2330 = vsub.f32 %v427, %v2329
        %v2331 = vand.u32 %v2330, 4294901760
        %v2332 = vsub.f32 %v2330, %v2331
        %v2333 = vand.u32 %v2332, 4294901760
        %2334 = vmatprep.subr.mxu0 %v2333
        %v2335 = vand.u32 %v426, 4294901760
        %v2336 = vsub.f32 %v426, %v2335
        %v2337 = vand.u32 %v2336, 4294901760
        %v2338 = vsub.f32 %v2336, %v2337
        %v2339 = vand.u32 %v2338, 4294901760
        %2340 = vmatpush1.msra.mxu0 %v2339
        %v2341 = vand.u32 %v423, 4294901760
        %v2342 = vsub.f32 %v423, %v2341
        %v2343 = vand.u32 %v2342, 4294901760
        %v2344 = vsub.f32 %v2342, %v2343
        %v2345 = vand.u32 %v2344, 4294901760
        %2346 = vmatprep.subr.mxu0 %v2345
        %v2347 = vand.u32 %v422, 4294901760
        %v2348 = vsub.f32 %v422, %v2347
        %v2349 = vand.u32 %v2348, 4294901760
        %v2350 = vsub.f32 %v2348, %v2349
        %v2351 = vand.u32 %v2350, 4294901760
        %2352 = vmatpush1.msra.mxu0 %v2351
        %v2353 = vand.u32 %v419, 4294901760
        %v2354 = vsub.f32 %v419, %v2353
        %v2355 = vand.u32 %v2354, 4294901760
        %v2356 = vsub.f32 %v2354, %v2355
        %v2357 = vand.u32 %v2356, 4294901760
        %2358 = vmatprep.subr.mxu0 %v2357
        %v2359 = vand.u32 %v418, 4294901760
        %v2360 = vsub.f32 %v418, %v2359
        %v2361 = vand.u32 %v2360, 4294901760
        %v2362 = vsub.f32 %v2360, %v2361
        %v2363 = vand.u32 %v2362, 4294901760
        %2364 = vmatpush1.msra.mxu0 %v2363
        %v2365 = vand.u32 %v415, 4294901760
        %v2366 = vsub.f32 %v415, %v2365
        %v2367 = vand.u32 %v2366, 4294901760
        %v2368 = vsub.f32 %v2366, %v2367
        %v2369 = vand.u32 %v2368, 4294901760
        %2370 = vmatprep.subr.mxu0 %v2369
        %v2371 = vand.u32 %v414, 4294901760
        %v2372 = vsub.f32 %v414, %v2371
        %v2373 = vand.u32 %v2372, 4294901760
        %v2374 = vsub.f32 %v2372, %v2373
        %v2375 = vand.u32 %v2374, 4294901760
        %2376 = vmatpush1.msra.mxu0 %v2375
        %v2377 = vand.u32 %v411, 4294901760
        %v2378 = vsub.f32 %v411, %v2377
        %v2379 = vand.u32 %v2378, 4294901760
        %v2380 = vsub.f32 %v2378, %v2379
        %v2381 = vand.u32 %v2380, 4294901760
        %2382 = vmatprep.subr.mxu0 %v2381
        %v2383 = vand.u32 %v410, 4294901760
        %v2384 = vsub.f32 %v410, %v2383
        %v2385 = vand.u32 %v2384, 4294901760
        %v2386 = vsub.f32 %v2384, %v2385
        %v2387 = vand.u32 %v2386, 4294901760
        %2388 = vmatpush1.msra.mxu0 %v2387
        %v2389 = vand.u32 %v407, 4294901760
        %v2390 = vsub.f32 %v407, %v2389
        %v2391 = vand.u32 %v2390, 4294901760
        %v2392 = vsub.f32 %v2390, %v2391
        %v2393 = vand.u32 %v2392, 4294901760
        %2394 = vmatprep.subr.mxu0 %v2393
        %v2395 = vand.u32 %v406, 4294901760
        %v2396 = vsub.f32 %v406, %v2395
        %v2397 = vand.u32 %v2396, 4294901760
        %v2398 = vsub.f32 %v2396, %v2397
        %v2399 = vand.u32 %v2398, 4294901760
        %2400 = vmatpush1.msra.mxu0 %v2399
        %v2401 = vand.u32 %v403, 4294901760
        %v2402 = vsub.f32 %v403, %v2401
        %v2403 = vand.u32 %v2402, 4294901760
        %v2404 = vsub.f32 %v2402, %v2403
        %v2405 = vand.u32 %v2404, 4294901760
        %2406 = vmatprep.subr.mxu0 %v2405
        %v2407 = vand.u32 %v402, 4294901760
        %v2408 = vsub.f32 %v402, %v2407
        %v2409 = vand.u32 %v2408, 4294901760
        %v2410 = vsub.f32 %v2408, %v2409
        %v2411 = vand.u32 %v2410, 4294901760
        %2412 = vmatpush1.msra.mxu0 %v2411
        %v2413 = vand.u32 %v399, 4294901760
        %v2414 = vsub.f32 %v399, %v2413
        %v2415 = vand.u32 %v2414, 4294901760
        %v2416 = vsub.f32 %v2414, %v2415
        %v2417 = vand.u32 %v2416, 4294901760
        %2418 = vmatprep.subr.mxu0 %v2417
        %v2419 = vand.u32 %v398, 4294901760
        %v2420 = vsub.f32 %v398, %v2419
        %v2421 = vand.u32 %v2420, 4294901760
        %v2422 = vsub.f32 %v2420, %v2421
        %v2423 = vand.u32 %v2422, 4294901760
        %2424 = vmatpush1.msra.mxu0 %v2423
        %v2425 = vand.u32 %v523, 4294901760
        %v2426 = vsub.f32 %v523, %v2425
        %v2427 = vand.u32 %v2426, 4294901760
        %v2428 = vsub.f32 %v2426, %v2427
        %v2429 = vand.u32 %v2428, 4294901760
        %2430 = vmatprep.subr.mxu0 %v2429
        %v2431 = vand.u32 %v522, 4294901760
        %v2432 = vsub.f32 %v522, %v2431
        %v2433 = vand.u32 %v2432, 4294901760
        %v2434 = vsub.f32 %v2432, %v2433
        %v2435 = vand.u32 %v2434, 4294901760
        %2436 = vmatpush2.msra.mxu0 %v2435
        %v2437 = vand.u32 %v519, 4294901760
        %v2438 = vsub.f32 %v519, %v2437
        %v2439 = vand.u32 %v2438, 4294901760
        %v2440 = vsub.f32 %v2438, %v2439
        %v2441 = vand.u32 %v2440, 4294901760
        %2442 = vmatprep.subr.mxu0 %v2441
        %v2443 = vand.u32 %v518, 4294901760
        %v2444 = vsub.f32 %v518, %v2443
        %v2445 = vand.u32 %v2444, 4294901760
        %v2446 = vsub.f32 %v2444, %v2445
        %v2447 = vand.u32 %v2446, 4294901760
        %2448 = vmatpush2.msra.mxu0 %v2447
        %v2449 = vand.u32 %v515, 4294901760
        %v2450 = vsub.f32 %v515, %v2449
        %v2451 = vand.u32 %v2450, 4294901760
        %v2452 = vsub.f32 %v2450, %v2451
        %v2453 = vand.u32 %v2452, 4294901760
        %2454 = vmatprep.subr.mxu0 %v2453
        %v2455 = vand.u32 %v514, 4294901760
        %v2456 = vsub.f32 %v514, %v2455
        %v2457 = vand.u32 %v2456, 4294901760
        %v2458 = vsub.f32 %v2456, %v2457
        %v2459 = vand.u32 %v2458, 4294901760
        %2460 = vmatpush2.msra.mxu0 %v2459
        %v2461 = vand.u32 %v511, 4294901760
        %v2462 = vsub.f32 %v511, %v2461
        %v2463 = vand.u32 %v2462, 4294901760
        %v2464 = vsub.f32 %v2462, %v2463
        %v2465 = vand.u32 %v2464, 4294901760
        %2466 = vmatprep.subr.mxu0 %v2465
        %v2467 = vand.u32 %v510, 4294901760
        %v2468 = vsub.f32 %v510, %v2467
        %v2469 = vand.u32 %v2468, 4294901760
        %v2470 = vsub.f32 %v2468, %v2469
        %v2471 = vand.u32 %v2470, 4294901760
        %2472 = vmatpush2.msra.mxu0 %v2471
        %v2473 = vand.u32 %v507, 4294901760
        %v2474 = vsub.f32 %v507, %v2473
        %v2475 = vand.u32 %v2474, 4294901760
        %v2476 = vsub.f32 %v2474, %v2475
        %v2477 = vand.u32 %v2476, 4294901760
        %2478 = vmatprep.subr.mxu0 %v2477
        %v2479 = vand.u32 %v506, 4294901760
        %v2480 = vsub.f32 %v506, %v2479
        %v2481 = vand.u32 %v2480, 4294901760
        %v2482 = vsub.f32 %v2480, %v2481
        %v2483 = vand.u32 %v2482, 4294901760
        %2484 = vmatpush2.msra.mxu0 %v2483
        %v2485 = vand.u32 %v503, 4294901760
        %v2486 = vsub.f32 %v503, %v2485
        %v2487 = vand.u32 %v2486, 4294901760
        %v2488 = vsub.f32 %v2486, %v2487
        %v2489 = vand.u32 %v2488, 4294901760
        %2490 = vmatprep.subr.mxu0 %v2489
        %v2491 = vand.u32 %v502, 4294901760
        %v2492 = vsub.f32 %v502, %v2491
        %v2493 = vand.u32 %v2492, 4294901760
        %v2494 = vsub.f32 %v2492, %v2493
        %v2495 = vand.u32 %v2494, 4294901760
        %2496 = vmatpush2.msra.mxu0 %v2495
        %v2497 = vand.u32 %v499, 4294901760
        %v2498 = vsub.f32 %v499, %v2497
        %v2499 = vand.u32 %v2498, 4294901760
        %v2500 = vsub.f32 %v2498, %v2499
        %v2501 = vand.u32 %v2500, 4294901760
        %2502 = vmatprep.subr.mxu0 %v2501
        %v2503 = vand.u32 %v498, 4294901760
        %v2504 = vsub.f32 %v498, %v2503
        %v2505 = vand.u32 %v2504, 4294901760
        %v2506 = vsub.f32 %v2504, %v2505
        %v2507 = vand.u32 %v2506, 4294901760
        %2508 = vmatpush2.msra.mxu0 %v2507
        %v2509 = vand.u32 %v495, 4294901760
        %v2510 = vsub.f32 %v495, %v2509
        %v2511 = vand.u32 %v2510, 4294901760
        %v2512 = vsub.f32 %v2510, %v2511
        %v2513 = vand.u32 %v2512, 4294901760
        %2514 = vmatprep.subr.mxu0 %v2513
        %v2515 = vand.u32 %v494, 4294901760
        %v2516 = vsub.f32 %v494, %v2515
        %v2517 = vand.u32 %v2516, 4294901760
        %v2518 = vsub.f32 %v2516, %v2517
        %v2519 = vand.u32 %v2518, 4294901760
        %2520 = vmatpush2.msra.mxu0 %v2519
        %v2521 = vand.u32 %v491, 4294901760
        %v2522 = vsub.f32 %v491, %v2521
        %v2523 = vand.u32 %v2522, 4294901760
        %v2524 = vsub.f32 %v2522, %v2523
        %v2525 = vand.u32 %v2524, 4294901760
        %2526 = vmatprep.subr.mxu0 %v2525
        %v2527 = vand.u32 %v490, 4294901760
        %v2528 = vsub.f32 %v490, %v2527
        %v2529 = vand.u32 %v2528, 4294901760
        %v2530 = vsub.f32 %v2528, %v2529
        %v2531 = vand.u32 %v2530, 4294901760
        %2532 = vmatpush2.msra.mxu0 %v2531
        %v2533 = vand.u32 %v487, 4294901760
        %v2534 = vsub.f32 %v487, %v2533
        %v2535 = vand.u32 %v2534, 4294901760
        %v2536 = vsub.f32 %v2534, %v2535
        %v2537 = vand.u32 %v2536, 4294901760
        %2538 = vmatprep.subr.mxu0 %v2537
        %v2539 = vand.u32 %v486, 4294901760
        %v2540 = vsub.f32 %v486, %v2539
        %v2541 = vand.u32 %v2540, 4294901760
        %v2542 = vsub.f32 %v2540, %v2541
        %v2543 = vand.u32 %v2542, 4294901760
        %2544 = vmatpush2.msra.mxu0 %v2543
        %v2545 = vand.u32 %v483, 4294901760
        %v2546 = vsub.f32 %v483, %v2545
        %v2547 = vand.u32 %v2546, 4294901760
        %v2548 = vsub.f32 %v2546, %v2547
        %v2549 = vand.u32 %v2548, 4294901760
        %2550 = vmatprep.subr.mxu0 %v2549
        %v2551 = vand.u32 %v482, 4294901760
        %v2552 = vsub.f32 %v482, %v2551
        %v2553 = vand.u32 %v2552, 4294901760
        %v2554 = vsub.f32 %v2552, %v2553
        %v2555 = vand.u32 %v2554, 4294901760
        %2556 = vmatpush2.msra.mxu0 %v2555
        %v2557 = vand.u32 %v479, 4294901760
        %v2558 = vsub.f32 %v479, %v2557
        %v2559 = vand.u32 %v2558, 4294901760
        %v2560 = vsub.f32 %v2558, %v2559
        %v2561 = vand.u32 %v2560, 4294901760
        %2562 = vmatprep.subr.mxu0 %v2561
        %v2563 = vand.u32 %v478, 4294901760
        %v2564 = vsub.f32 %v478, %v2563
        %v2565 = vand.u32 %v2564, 4294901760
        %v2566 = vsub.f32 %v2564, %v2565
        %v2567 = vand.u32 %v2566, 4294901760
        %2568 = vmatpush2.msra.mxu0 %v2567
        %v2569 = vand.u32 %v475, 4294901760
        %v2570 = vsub.f32 %v475, %v2569
        %v2571 = vand.u32 %v2570, 4294901760
        %v2572 = vsub.f32 %v2570, %v2571
        %v2573 = vand.u32 %v2572, 4294901760
        %2574 = vmatprep.subr.mxu0 %v2573
        %v2575 = vand.u32 %v474, 4294901760
        %v2576 = vsub.f32 %v474, %v2575
        %v2577 = vand.u32 %v2576, 4294901760
        %v2578 = vsub.f32 %v2576, %v2577
        %v2579 = vand.u32 %v2578, 4294901760
        %2580 = vmatpush2.msra.mxu0 %v2579
        %v2581 = vand.u32 %v471, 4294901760
        %v2582 = vsub.f32 %v471, %v2581
        %v2583 = vand.u32 %v2582, 4294901760
        %v2584 = vsub.f32 %v2582, %v2583
        %v2585 = vand.u32 %v2584, 4294901760
        %2586 = vmatprep.subr.mxu0 %v2585
        %v2587 = vand.u32 %v470, 4294901760
        %v2588 = vsub.f32 %v470, %v2587
        %v2589 = vand.u32 %v2588, 4294901760
        %v2590 = vsub.f32 %v2588, %v2589
        %v2591 = vand.u32 %v2590, 4294901760
        %2592 = vmatpush2.msra.mxu0 %v2591
        %v2593 = vand.u32 %v467, 4294901760
        %v2594 = vsub.f32 %v467, %v2593
        %v2595 = vand.u32 %v2594, 4294901760
        %v2596 = vsub.f32 %v2594, %v2595
        %v2597 = vand.u32 %v2596, 4294901760
        %2598 = vmatprep.subr.mxu0 %v2597
        %v2599 = vand.u32 %v466, 4294901760
        %v2600 = vsub.f32 %v466, %v2599
        %v2601 = vand.u32 %v2600, 4294901760
        %v2602 = vsub.f32 %v2600, %v2601
        %v2603 = vand.u32 %v2602, 4294901760
        %2604 = vmatpush2.msra.mxu0 %v2603
        %v2605 = vand.u32 %v463, 4294901760
        %v2606 = vsub.f32 %v463, %v2605
        %v2607 = vand.u32 %v2606, 4294901760
        %v2608 = vsub.f32 %v2606, %v2607
        %v2609 = vand.u32 %v2608, 4294901760
        %2610 = vmatprep.subr.mxu0 %v2609
        %v2611 = vand.u32 %v462, 4294901760
        %v2612 = vsub.f32 %v462, %v2611
        %v2613 = vand.u32 %v2612, 4294901760
        %v2614 = vsub.f32 %v2612, %v2613
        %v2615 = vand.u32 %v2614, 4294901760
        %2616 = vmatpush2.msra.mxu0 %v2615
        %v2617 = vand.u32 %v265, 4294901760
        %2618 = vmatprep.mubr.f32.mxu0 %v2617
        %v2619 = vand.u32 %v264, 4294901760
        %2620 = vmatmul.mubr.f32.gmra.mxu0 %v2619
        %v2621 = vpop.f32.mrf.mxu0
        %v2622 = vadd.f32 %v2229, %v2621
        %v2623 = vpop.f32.mrf.mxu0
        %v2624 = vadd.f32 %v2231, %v2623
        %2625 = vdwg.mxu0
        %v2626 = vand.u32 %v459, 4294901760
        %v2627 = vsub.f32 %v459, %v2626
        %2628 = vmatprep.subr.mxu0 %v2627
        %v2629 = vand.u32 %v458, 4294901760
        %v2630 = vsub.f32 %v458, %v2629
        %2631 = vmatpush1.msra.mxu0 %v2630
        %v2632 = vand.u32 %v455, 4294901760
        %v2633 = vsub.f32 %v455, %v2632
        %2634 = vmatprep.subr.mxu0 %v2633
        %v2635 = vand.u32 %v454, 4294901760
        %v2636 = vsub.f32 %v454, %v2635
        %2637 = vmatpush1.msra.mxu0 %v2636
        %v2638 = vand.u32 %v451, 4294901760
        %v2639 = vsub.f32 %v451, %v2638
        %2640 = vmatprep.subr.mxu0 %v2639
        %v2641 = vand.u32 %v450, 4294901760
        %v2642 = vsub.f32 %v450, %v2641
        %2643 = vmatpush1.msra.mxu0 %v2642
        %v2644 = vand.u32 %v447, 4294901760
        %v2645 = vsub.f32 %v447, %v2644
        %2646 = vmatprep.subr.mxu0 %v2645
        %v2647 = vand.u32 %v446, 4294901760
        %v2648 = vsub.f32 %v446, %v2647
        %2649 = vmatpush1.msra.mxu0 %v2648
        %v2650 = vand.u32 %v443, 4294901760
        %v2651 = vsub.f32 %v443, %v2650
        %2652 = vmatprep.subr.mxu0 %v2651
        %v2653 = vand.u32 %v442, 4294901760
        %v2654 = vsub.f32 %v442, %v2653
        %2655 = vmatpush1.msra.mxu0 %v2654
        %v2656 = vand.u32 %v439, 4294901760
        %v2657 = vsub.f32 %v439, %v2656
        %2658 = vmatprep.subr.mxu0 %v2657
        %v2659 = vand.u32 %v438, 4294901760
        %v2660 = vsub.f32 %v438, %v2659
        %2661 = vmatpush1.msra.mxu0 %v2660
        %v2662 = vand.u32 %v435, 4294901760
        %v2663 = vsub.f32 %v435, %v2662
        %2664 = vmatprep.subr.mxu0 %v2663
        %v2665 = vand.u32 %v434, 4294901760
        %v2666 = vsub.f32 %v434, %v2665
        %2667 = vmatpush1.msra.mxu0 %v2666
        %v2668 = vand.u32 %v431, 4294901760
        %v2669 = vsub.f32 %v431, %v2668
        %2670 = vmatprep.subr.mxu0 %v2669
        %v2671 = vand.u32 %v430, 4294901760
        %v2672 = vsub.f32 %v430, %v2671
        %2673 = vmatpush1.msra.mxu0 %v2672
        %v2674 = vand.u32 %v427, 4294901760
        %v2675 = vsub.f32 %v427, %v2674
        %2676 = vmatprep.subr.mxu0 %v2675
        %v2677 = vand.u32 %v426, 4294901760
        %v2678 = vsub.f32 %v426, %v2677
        %2679 = vmatpush1.msra.mxu0 %v2678
        %v2680 = vand.u32 %v423, 4294901760
        %v2681 = vsub.f32 %v423, %v2680
        %2682 = vmatprep.subr.mxu0 %v2681
        %v2683 = vand.u32 %v422, 4294901760
        %v2684 = vsub.f32 %v422, %v2683
        %2685 = vmatpush1.msra.mxu0 %v2684
        %v2686 = vand.u32 %v419, 4294901760
        %v2687 = vsub.f32 %v419, %v2686
        %2688 = vmatprep.subr.mxu0 %v2687
        %v2689 = vand.u32 %v418, 4294901760
        %v2690 = vsub.f32 %v418, %v2689
        %2691 = vmatpush1.msra.mxu0 %v2690
        %v2692 = vand.u32 %v415, 4294901760
        %v2693 = vsub.f32 %v415, %v2692
        %2694 = vmatprep.subr.mxu0 %v2693
        %v2695 = vand.u32 %v414, 4294901760
        %v2696 = vsub.f32 %v414, %v2695
        %2697 = vmatpush1.msra.mxu0 %v2696
        %v2698 = vand.u32 %v411, 4294901760
        %v2699 = vsub.f32 %v411, %v2698
        %2700 = vmatprep.subr.mxu0 %v2699
        %v2701 = vand.u32 %v410, 4294901760
        %v2702 = vsub.f32 %v410, %v2701
        %2703 = vmatpush1.msra.mxu0 %v2702
        %v2704 = vand.u32 %v407, 4294901760
        %v2705 = vsub.f32 %v407, %v2704
        %2706 = vmatprep.subr.mxu0 %v2705
        %v2707 = vand.u32 %v406, 4294901760
        %v2708 = vsub.f32 %v406, %v2707
        %2709 = vmatpush1.msra.mxu0 %v2708
        %v2710 = vand.u32 %v403, 4294901760
        %v2711 = vsub.f32 %v403, %v2710
        %2712 = vmatprep.subr.mxu0 %v2711
        %v2713 = vand.u32 %v402, 4294901760
        %v2714 = vsub.f32 %v402, %v2713
        %2715 = vmatpush1.msra.mxu0 %v2714
        %v2716 = vand.u32 %v399, 4294901760
        %v2717 = vsub.f32 %v399, %v2716
        %2718 = vmatprep.subr.mxu0 %v2717
        %v2719 = vand.u32 %v398, 4294901760
        %v2720 = vsub.f32 %v398, %v2719
        %2721 = vmatpush1.msra.mxu0 %v2720
        %v2722 = vand.u32 %v523, 4294901760
        %v2723 = vsub.f32 %v523, %v2722
        %2724 = vmatprep.subr.mxu0 %v2723
        %v2725 = vand.u32 %v522, 4294901760
        %v2726 = vsub.f32 %v522, %v2725
        %2727 = vmatpush2.msra.mxu0 %v2726
        %v2728 = vand.u32 %v519, 4294901760
        %v2729 = vsub.f32 %v519, %v2728
        %2730 = vmatprep.subr.mxu0 %v2729
        %v2731 = vand.u32 %v518, 4294901760
        %v2732 = vsub.f32 %v518, %v2731
        %2733 = vmatpush2.msra.mxu0 %v2732
        %v2734 = vand.u32 %v515, 4294901760
        %v2735 = vsub.f32 %v515, %v2734
        %2736 = vmatprep.subr.mxu0 %v2735
        %v2737 = vand.u32 %v514, 4294901760
        %v2738 = vsub.f32 %v514, %v2737
        %2739 = vmatpush2.msra.mxu0 %v2738
        %v2740 = vand.u32 %v511, 4294901760
        %v2741 = vsub.f32 %v511, %v2740
        %2742 = vmatprep.subr.mxu0 %v2741
        %v2743 = vand.u32 %v510, 4294901760
        %v2744 = vsub.f32 %v510, %v2743
        %2745 = vmatpush2.msra.mxu0 %v2744
        %v2746 = vand.u32 %v507, 4294901760
        %v2747 = vsub.f32 %v507, %v2746
        %2748 = vmatprep.subr.mxu0 %v2747
        %v2749 = vand.u32 %v506, 4294901760
        %v2750 = vsub.f32 %v506, %v2749
        %2751 = vmatpush2.msra.mxu0 %v2750
        %v2752 = vand.u32 %v503, 4294901760
        %v2753 = vsub.f32 %v503, %v2752
        %2754 = vmatprep.subr.mxu0 %v2753
        %v2755 = vand.u32 %v502, 4294901760
        %v2756 = vsub.f32 %v502, %v2755
        %2757 = vmatpush2.msra.mxu0 %v2756
        %v2758 = vand.u32 %v499, 4294901760
        %v2759 = vsub.f32 %v499, %v2758
        %2760 = vmatprep.subr.mxu0 %v2759
        %v2761 = vand.u32 %v498, 4294901760
        %v2762 = vsub.f32 %v498, %v2761
        %2763 = vmatpush2.msra.mxu0 %v2762
        %v2764 = vand.u32 %v495, 4294901760
        %v2765 = vsub.f32 %v495, %v2764
        %2766 = vmatprep.subr.mxu0 %v2765
        %v2767 = vand.u32 %v494, 4294901760
        %v2768 = vsub.f32 %v494, %v2767
        %2769 = vmatpush2.msra.mxu0 %v2768
        %v2770 = vand.u32 %v491, 4294901760
        %v2771 = vsub.f32 %v491, %v2770
        %2772 = vmatprep.subr.mxu0 %v2771
        %v2773 = vand.u32 %v490, 4294901760
        %v2774 = vsub.f32 %v490, %v2773
        %2775 = vmatpush2.msra.mxu0 %v2774
        %v2776 = vand.u32 %v487, 4294901760
        %v2777 = vsub.f32 %v487, %v2776
        %2778 = vmatprep.subr.mxu0 %v2777
        %v2779 = vand.u32 %v486, 4294901760
        %v2780 = vsub.f32 %v486, %v2779
        %2781 = vmatpush2.msra.mxu0 %v2780
        %v2782 = vand.u32 %v483, 4294901760
        %v2783 = vsub.f32 %v483, %v2782
        %2784 = vmatprep.subr.mxu0 %v2783
        %v2785 = vand.u32 %v482, 4294901760
        %v2786 = vsub.f32 %v482, %v2785
        %2787 = vmatpush2.msra.mxu0 %v2786
        %v2788 = vand.u32 %v479, 4294901760
        %v2789 = vsub.f32 %v479, %v2788
        %2790 = vmatprep.subr.mxu0 %v2789
        %v2791 = vand.u32 %v478, 4294901760
        %v2792 = vsub.f32 %v478, %v2791
        %2793 = vmatpush2.msra.mxu0 %v2792
        %v2794 = vand.u32 %v475, 4294901760
        %v2795 = vsub.f32 %v475, %v2794
        %2796 = vmatprep.subr.mxu0 %v2795
        %v2797 = vand.u32 %v474, 4294901760
        %v2798 = vsub.f32 %v474, %v2797
        %2799 = vmatpush2.msra.mxu0 %v2798
        %v2800 = vand.u32 %v471, 4294901760
        %v2801 = vsub.f32 %v471, %v2800
        %2802 = vmatprep.subr.mxu0 %v2801
        %v2803 = vand.u32 %v470, 4294901760
        %v2804 = vsub.f32 %v470, %v2803
        %2805 = vmatpush2.msra.mxu0 %v2804
        %v2806 = vand.u32 %v467, 4294901760
        %v2807 = vsub.f32 %v467, %v2806
        %2808 = vmatprep.subr.mxu0 %v2807
        %v2809 = vand.u32 %v466, 4294901760
        %v2810 = vsub.f32 %v466, %v2809
        %2811 = vmatpush2.msra.mxu0 %v2810
        %v2812 = vand.u32 %v463, 4294901760
        %v2813 = vsub.f32 %v463, %v2812
        %2814 = vmatprep.subr.mxu0 %v2813
        %v2815 = vand.u32 %v462, 4294901760
        %v2816 = vsub.f32 %v462, %v2815
        %2817 = vmatpush2.msra.mxu0 %v2816
        %v2818 = vand.u32 %v265, 4294901760
        %v2819 = vsub.f32 %v265, %v2818
        %2820 = vmatprep.mubr.f32.mxu0 %v2819
        %v2821 = vand.u32 %v264, 4294901760
        %v2822 = vsub.f32 %v264, %v2821
        %2823 = vmatmul.mubr.f32.gmra.mxu0 %v2822
        %v2824 = vpop.f32.mrf.mxu0
        %v2825 = vadd.f32 %v2622, %v2824
        %v2826 = vpop.f32.mrf.mxu0
        %v2827 = vadd.f32 %v2624, %v2826
        %2828 = vdwg.mxu0
        %v2829 = vand.u32 %v459, 4294901760
        %2830 = vmatprep.subr.mxu0 %v2829
        %v2831 = vand.u32 %v458, 4294901760
        %2832 = vmatpush1.msra.mxu0 %v2831
        %v2833 = vand.u32 %v455, 4294901760
        %2834 = vmatprep.subr.mxu0 %v2833
        %v2835 = vand.u32 %v454, 4294901760
        %2836 = vmatpush1.msra.mxu0 %v2835
        %v2837 = vand.u32 %v451, 4294901760
        %2838 = vmatprep.subr.mxu0 %v2837
        %v2839 = vand.u32 %v450, 4294901760
        %2840 = vmatpush1.msra.mxu0 %v2839
        %v2841 = vand.u32 %v447, 4294901760
        %2842 = vmatprep.subr.mxu0 %v2841
        %v2843 = vand.u32 %v446, 4294901760
        %2844 = vmatpush1.msra.mxu0 %v2843
        %v2845 = vand.u32 %v443, 4294901760
        %2846 = vmatprep.subr.mxu0 %v2845
        %v2847 = vand.u32 %v442, 4294901760
        %2848 = vmatpush1.msra.mxu0 %v2847
        %v2849 = vand.u32 %v439, 4294901760
        %2850 = vmatprep.subr.mxu0 %v2849
        %v2851 = vand.u32 %v438, 4294901760
        %2852 = vmatpush1.msra.mxu0 %v2851
        %v2853 = vand.u32 %v435, 4294901760
        %2854 = vmatprep.subr.mxu0 %v2853
        %v2855 = vand.u32 %v434, 4294901760
        %2856 = vmatpush1.msra.mxu0 %v2855
        %v2857 = vand.u32 %v431, 4294901760
        %2858 = vmatprep.subr.mxu0 %v2857
        %v2859 = vand.u32 %v430, 4294901760
        %2860 = vmatpush1.msra.mxu0 %v2859
        %v2861 = vand.u32 %v427, 4294901760
        %2862 = vmatprep.subr.mxu0 %v2861
        %v2863 = vand.u32 %v426, 4294901760
        %2864 = vmatpush1.msra.mxu0 %v2863
        %v2865 = vand.u32 %v423, 4294901760
        %2866 = vmatprep.subr.mxu0 %v2865
        %v2867 = vand.u32 %v422, 4294901760
        %2868 = vmatpush1.msra.mxu0 %v2867
        %v2869 = vand.u32 %v419, 4294901760
        %2870 = vmatprep.subr.mxu0 %v2869
        %v2871 = vand.u32 %v418, 4294901760
        %2872 = vmatpush1.msra.mxu0 %v2871
        %v2873 = vand.u32 %v415, 4294901760
        %2874 = vmatprep.subr.mxu0 %v2873
        %v2875 = vand.u32 %v414, 4294901760
        %2876 = vmatpush1.msra.mxu0 %v2875
        %v2877 = vand.u32 %v411, 4294901760
        %2878 = vmatprep.subr.mxu0 %v2877
        %v2879 = vand.u32 %v410, 4294901760
        %2880 = vmatpush1.msra.mxu0 %v2879
        %v2881 = vand.u32 %v407, 4294901760
        %2882 = vmatprep.subr.mxu0 %v2881
        %v2883 = vand.u32 %v406, 4294901760
        %2884 = vmatpush1.msra.mxu0 %v2883
        %v2885 = vand.u32 %v403, 4294901760
        %2886 = vmatprep.subr.mxu0 %v2885
        %v2887 = vand.u32 %v402, 4294901760
        %2888 = vmatpush1.msra.mxu0 %v2887
        %v2889 = vand.u32 %v399, 4294901760
        %2890 = vmatprep.subr.mxu0 %v2889
        %v2891 = vand.u32 %v398, 4294901760
        %2892 = vmatpush1.msra.mxu0 %v2891
        %v2893 = vand.u32 %v523, 4294901760
        %2894 = vmatprep.subr.mxu0 %v2893
        %v2895 = vand.u32 %v522, 4294901760
        %2896 = vmatpush2.msra.mxu0 %v2895
        %v2897 = vand.u32 %v519, 4294901760
        %2898 = vmatprep.subr.mxu0 %v2897
        %v2899 = vand.u32 %v518, 4294901760
        %2900 = vmatpush2.msra.mxu0 %v2899
        %v2901 = vand.u32 %v515, 4294901760
        %2902 = vmatprep.subr.mxu0 %v2901
        %v2903 = vand.u32 %v514, 4294901760
        %2904 = vmatpush2.msra.mxu0 %v2903
        %v2905 = vand.u32 %v511, 4294901760
        %2906 = vmatprep.subr.mxu0 %v2905
        %v2907 = vand.u32 %v510, 4294901760
        %2908 = vmatpush2.msra.mxu0 %v2907
        %v2909 = vand.u32 %v507, 4294901760
        %2910 = vmatprep.subr.mxu0 %v2909
        %v2911 = vand.u32 %v506, 4294901760
        %2912 = vmatpush2.msra.mxu0 %v2911
        %v2913 = vand.u32 %v503, 4294901760
        %2914 = vmatprep.subr.mxu0 %v2913
        %v2915 = vand.u32 %v502, 4294901760
        %2916 = vmatpush2.msra.mxu0 %v2915
        %v2917 = vand.u32 %v499, 4294901760
        %2918 = vmatprep.subr.mxu0 %v2917
        %v2919 = vand.u32 %v498, 4294901760
        %2920 = vmatpush2.msra.mxu0 %v2919
        %v2921 = vand.u32 %v495, 4294901760
        %2922 = vmatprep.subr.mxu0 %v2921
        %v2923 = vand.u32 %v494, 4294901760
        %2924 = vmatpush2.msra.mxu0 %v2923
        %v2925 = vand.u32 %v491, 4294901760
        %2926 = vmatprep.subr.mxu0 %v2925
        %v2927 = vand.u32 %v490, 4294901760
        %2928 = vmatpush2.msra.mxu0 %v2927
        %v2929 = vand.u32 %v487, 4294901760
        %2930 = vmatprep.subr.mxu0 %v2929
        %v2931 = vand.u32 %v486, 4294901760
        %2932 = vmatpush2.msra.mxu0 %v2931
        %v2933 = vand.u32 %v483, 4294901760
        %2934 = vmatprep.subr.mxu0 %v2933
        %v2935 = vand.u32 %v482, 4294901760
        %2936 = vmatpush2.msra.mxu0 %v2935
        %v2937 = vand.u32 %v479, 4294901760
        %2938 = vmatprep.subr.mxu0 %v2937
        %v2939 = vand.u32 %v478, 4294901760
        %2940 = vmatpush2.msra.mxu0 %v2939
        %v2941 = vand.u32 %v475, 4294901760
        %2942 = vmatprep.subr.mxu0 %v2941
        %v2943 = vand.u32 %v474, 4294901760
        %2944 = vmatpush2.msra.mxu0 %v2943
        %v2945 = vand.u32 %v471, 4294901760
        %2946 = vmatprep.subr.mxu0 %v2945
        %v2947 = vand.u32 %v470, 4294901760
        %2948 = vmatpush2.msra.mxu0 %v2947
        %v2949 = vand.u32 %v467, 4294901760
        %2950 = vmatprep.subr.mxu0 %v2949
        %v2951 = vand.u32 %v466, 4294901760
        %2952 = vmatpush2.msra.mxu0 %v2951
        %v2953 = vand.u32 %v463, 4294901760
        %2954 = vmatprep.subr.mxu0 %v2953
        %v2955 = vand.u32 %v462, 4294901760
        %2956 = vmatpush2.msra.mxu0 %v2955
        %v2957 = vand.u32 %v265, 4294901760
        %v2958 = vsub.f32 %v265, %v2957
        %v2959 = vand.u32 %v2958, 4294901760
        %2960 = vmatprep.mubr.f32.mxu0 %v2959
        %v2961 = vand.u32 %v264, 4294901760
        %v2962 = vsub.f32 %v264, %v2961
        %v2963 = vand.u32 %v2962, 4294901760
        %2964 = vmatmul.mubr.f32.gmra.mxu0 %v2963
        %v2965 = vpop.f32.mrf.mxu0
        %v2966 = vadd.f32 %v2825, %v2965
        %v2967 = vpop.f32.mrf.mxu0
        %v2968 = vadd.f32 %v2827, %v2967
        %2969 = vdwg.mxu0
        %v2970 = vand.u32 %v459, 4294901760
        %v2971 = vsub.f32 %v459, %v2970
        %v2972 = vand.u32 %v2971, 4294901760
        %2973 = vmatprep.subr.mxu0 %v2972
        %v2974 = vand.u32 %v458, 4294901760
        %v2975 = vsub.f32 %v458, %v2974
        %v2976 = vand.u32 %v2975, 4294901760
        %2977 = vmatpush1.msra.mxu0 %v2976
        %v2978 = vand.u32 %v455, 4294901760
        %v2979 = vsub.f32 %v455, %v2978
        %v2980 = vand.u32 %v2979, 4294901760
        %2981 = vmatprep.subr.mxu0 %v2980
        %v2982 = vand.u32 %v454, 4294901760
        %v2983 = vsub.f32 %v454, %v2982
        %v2984 = vand.u32 %v2983, 4294901760
        %2985 = vmatpush1.msra.mxu0 %v2984
        %v2986 = vand.u32 %v451, 4294901760
        %v2987 = vsub.f32 %v451, %v2986
        %v2988 = vand.u32 %v2987, 4294901760
        %2989 = vmatprep.subr.mxu0 %v2988
        %v2990 = vand.u32 %v450, 4294901760
        %v2991 = vsub.f32 %v450, %v2990
        %v2992 = vand.u32 %v2991, 4294901760
        %2993 = vmatpush1.msra.mxu0 %v2992
        %v2994 = vand.u32 %v447, 4294901760
        %v2995 = vsub.f32 %v447, %v2994
        %v2996 = vand.u32 %v2995, 4294901760
        %2997 = vmatprep.subr.mxu0 %v2996
        %v2998 = vand.u32 %v446, 4294901760
        %v2999 = vsub.f32 %v446, %v2998
        %v3000 = vand.u32 %v2999, 4294901760
        %3001 = vmatpush1.msra.mxu0 %v3000
        %v3002 = vand.u32 %v443, 4294901760
        %v3003 = vsub.f32 %v443, %v3002
        %v3004 = vand.u32 %v3003, 4294901760
        %3005 = vmatprep.subr.mxu0 %v3004
        %v3006 = vand.u32 %v442, 4294901760
        %v3007 = vsub.f32 %v442, %v3006
        %v3008 = vand.u32 %v3007, 4294901760
        %3009 = vmatpush1.msra.mxu0 %v3008
        %v3010 = vand.u32 %v439, 4294901760
        %v3011 = vsub.f32 %v439, %v3010
        %v3012 = vand.u32 %v3011, 4294901760
        %3013 = vmatprep.subr.mxu0 %v3012
        %v3014 = vand.u32 %v438, 4294901760
        %v3015 = vsub.f32 %v438, %v3014
        %v3016 = vand.u32 %v3015, 4294901760
        %3017 = vmatpush1.msra.mxu0 %v3016
        %v3018 = vand.u32 %v435, 4294901760
        %v3019 = vsub.f32 %v435, %v3018
        %v3020 = vand.u32 %v3019, 4294901760
        %3021 = vmatprep.subr.mxu0 %v3020
        %v3022 = vand.u32 %v434, 4294901760
        %v3023 = vsub.f32 %v434, %v3022
        %v3024 = vand.u32 %v3023, 4294901760
        %3025 = vmatpush1.msra.mxu0 %v3024
        %v3026 = vand.u32 %v431, 4294901760
        %v3027 = vsub.f32 %v431, %v3026
        %v3028 = vand.u32 %v3027, 4294901760
        %3029 = vmatprep.subr.mxu0 %v3028
        %v3030 = vand.u32 %v430, 4294901760
        %v3031 = vsub.f32 %v430, %v3030
        %v3032 = vand.u32 %v3031, 4294901760
        %3033 = vmatpush1.msra.mxu0 %v3032
        %v3034 = vand.u32 %v427, 4294901760
        %v3035 = vsub.f32 %v427, %v3034
        %v3036 = vand.u32 %v3035, 4294901760
        %3037 = vmatprep.subr.mxu0 %v3036
        %v3038 = vand.u32 %v426, 4294901760
        %v3039 = vsub.f32 %v426, %v3038
        %v3040 = vand.u32 %v3039, 4294901760
        %3041 = vmatpush1.msra.mxu0 %v3040
        %v3042 = vand.u32 %v423, 4294901760
        %v3043 = vsub.f32 %v423, %v3042
        %v3044 = vand.u32 %v3043, 4294901760
        %3045 = vmatprep.subr.mxu0 %v3044
        %v3046 = vand.u32 %v422, 4294901760
        %v3047 = vsub.f32 %v422, %v3046
        %v3048 = vand.u32 %v3047, 4294901760
        %3049 = vmatpush1.msra.mxu0 %v3048
        %v3050 = vand.u32 %v419, 4294901760
        %v3051 = vsub.f32 %v419, %v3050
        %v3052 = vand.u32 %v3051, 4294901760
        %3053 = vmatprep.subr.mxu0 %v3052
        %v3054 = vand.u32 %v418, 4294901760
        %v3055 = vsub.f32 %v418, %v3054
        %v3056 = vand.u32 %v3055, 4294901760
        %3057 = vmatpush1.msra.mxu0 %v3056
        %v3058 = vand.u32 %v415, 4294901760
        %v3059 = vsub.f32 %v415, %v3058
        %v3060 = vand.u32 %v3059, 4294901760
        %3061 = vmatprep.subr.mxu0 %v3060
        %v3062 = vand.u32 %v414, 4294901760
        %v3063 = vsub.f32 %v414, %v3062
        %v3064 = vand.u32 %v3063, 4294901760
        %3065 = vmatpush1.msra.mxu0 %v3064
        %v3066 = vand.u32 %v411, 4294901760
        %v3067 = vsub.f32 %v411, %v3066
        %v3068 = vand.u32 %v3067, 4294901760
        %3069 = vmatprep.subr.mxu0 %v3068
        %v3070 = vand.u32 %v410, 4294901760
        %v3071 = vsub.f32 %v410, %v3070
        %v3072 = vand.u32 %v3071, 4294901760
        %3073 = vmatpush1.msra.mxu0 %v3072
        %v3074 = vand.u32 %v407, 4294901760
        %v3075 = vsub.f32 %v407, %v3074
        %v3076 = vand.u32 %v3075, 4294901760
        %3077 = vmatprep.subr.mxu0 %v3076
        %v3078 = vand.u32 %v406, 4294901760
        %v3079 = vsub.f32 %v406, %v3078
        %v3080 = vand.u32 %v3079, 4294901760
        %3081 = vmatpush1.msra.mxu0 %v3080
        %v3082 = vand.u32 %v403, 4294901760
        %v3083 = vsub.f32 %v403, %v3082
        %v3084 = vand.u32 %v3083, 4294901760
        %3085 = vmatprep.subr.mxu0 %v3084
        %v3086 = vand.u32 %v402, 4294901760
        %v3087 = vsub.f32 %v402, %v3086
        %v3088 = vand.u32 %v3087, 4294901760
        %3089 = vmatpush1.msra.mxu0 %v3088
        %v3090 = vand.u32 %v399, 4294901760
        %v3091 = vsub.f32 %v399, %v3090
        %v3092 = vand.u32 %v3091, 4294901760
        %3093 = vmatprep.subr.mxu0 %v3092
        %v3094 = vand.u32 %v398, 4294901760
        %v3095 = vsub.f32 %v398, %v3094
        %v3096 = vand.u32 %v3095, 4294901760
        %3097 = vmatpush1.msra.mxu0 %v3096
        %v3098 = vand.u32 %v523, 4294901760
        %v3099 = vsub.f32 %v523, %v3098
        %v3100 = vand.u32 %v3099, 4294901760
        %3101 = vmatprep.subr.mxu0 %v3100
        %v3102 = vand.u32 %v522, 4294901760
        %v3103 = vsub.f32 %v522, %v3102
        %v3104 = vand.u32 %v3103, 4294901760
        %3105 = vmatpush2.msra.mxu0 %v3104
        %v3106 = vand.u32 %v519, 4294901760
        %v3107 = vsub.f32 %v519, %v3106
        %v3108 = vand.u32 %v3107, 4294901760
        %3109 = vmatprep.subr.mxu0 %v3108
        %v3110 = vand.u32 %v518, 4294901760
        %v3111 = vsub.f32 %v518, %v3110
        %v3112 = vand.u32 %v3111, 4294901760
        %3113 = vmatpush2.msra.mxu0 %v3112
        %v3114 = vand.u32 %v515, 4294901760
        %v3115 = vsub.f32 %v515, %v3114
        %v3116 = vand.u32 %v3115, 4294901760
        %3117 = vmatprep.subr.mxu0 %v3116
        %v3118 = vand.u32 %v514, 4294901760
        %v3119 = vsub.f32 %v514, %v3118
        %v3120 = vand.u32 %v3119, 4294901760
        %3121 = vmatpush2.msra.mxu0 %v3120
        %v3122 = vand.u32 %v511, 4294901760
        %v3123 = vsub.f32 %v511, %v3122
        %v3124 = vand.u32 %v3123, 4294901760
        %3125 = vmatprep.subr.mxu0 %v3124
        %v3126 = vand.u32 %v510, 4294901760
        %v3127 = vsub.f32 %v510, %v3126
        %v3128 = vand.u32 %v3127, 4294901760
        %3129 = vmatpush2.msra.mxu0 %v3128
        %v3130 = vand.u32 %v507, 4294901760
        %v3131 = vsub.f32 %v507, %v3130
        %v3132 = vand.u32 %v3131, 4294901760
        %3133 = vmatprep.subr.mxu0 %v3132
        %v3134 = vand.u32 %v506, 4294901760
        %v3135 = vsub.f32 %v506, %v3134
        %v3136 = vand.u32 %v3135, 4294901760
        %3137 = vmatpush2.msra.mxu0 %v3136
        %v3138 = vand.u32 %v503, 4294901760
        %v3139 = vsub.f32 %v503, %v3138
        %v3140 = vand.u32 %v3139, 4294901760
        %3141 = vmatprep.subr.mxu0 %v3140
        %v3142 = vand.u32 %v502, 4294901760
        %v3143 = vsub.f32 %v502, %v3142
        %v3144 = vand.u32 %v3143, 4294901760
        %3145 = vmatpush2.msra.mxu0 %v3144
        %v3146 = vand.u32 %v499, 4294901760
        %v3147 = vsub.f32 %v499, %v3146
        %v3148 = vand.u32 %v3147, 4294901760
        %3149 = vmatprep.subr.mxu0 %v3148
        %v3150 = vand.u32 %v498, 4294901760
        %v3151 = vsub.f32 %v498, %v3150
        %v3152 = vand.u32 %v3151, 4294901760
        %3153 = vmatpush2.msra.mxu0 %v3152
        %v3154 = vand.u32 %v495, 4294901760
        %v3155 = vsub.f32 %v495, %v3154
        %v3156 = vand.u32 %v3155, 4294901760
        %3157 = vmatprep.subr.mxu0 %v3156
        %v3158 = vand.u32 %v494, 4294901760
        %v3159 = vsub.f32 %v494, %v3158
        %v3160 = vand.u32 %v3159, 4294901760
        %3161 = vmatpush2.msra.mxu0 %v3160
        %v3162 = vand.u32 %v491, 4294901760
        %v3163 = vsub.f32 %v491, %v3162
        %v3164 = vand.u32 %v3163, 4294901760
        %3165 = vmatprep.subr.mxu0 %v3164
        %v3166 = vand.u32 %v490, 4294901760
        %v3167 = vsub.f32 %v490, %v3166
        %v3168 = vand.u32 %v3167, 4294901760
        %3169 = vmatpush2.msra.mxu0 %v3168
        %v3170 = vand.u32 %v487, 4294901760
        %v3171 = vsub.f32 %v487, %v3170
        %v3172 = vand.u32 %v3171, 4294901760
        %3173 = vmatprep.subr.mxu0 %v3172
        %v3174 = vand.u32 %v486, 4294901760
        %v3175 = vsub.f32 %v486, %v3174
        %v3176 = vand.u32 %v3175, 4294901760
        %3177 = vmatpush2.msra.mxu0 %v3176
        %v3178 = vand.u32 %v483, 4294901760
        %v3179 = vsub.f32 %v483, %v3178
        %v3180 = vand.u32 %v3179, 4294901760
        %3181 = vmatprep.subr.mxu0 %v3180
        %v3182 = vand.u32 %v482, 4294901760
        %v3183 = vsub.f32 %v482, %v3182
        %v3184 = vand.u32 %v3183, 4294901760
        %3185 = vmatpush2.msra.mxu0 %v3184
        %v3186 = vand.u32 %v479, 4294901760
        %v3187 = vsub.f32 %v479, %v3186
        %v3188 = vand.u32 %v3187, 4294901760
        %3189 = vmatprep.subr.mxu0 %v3188
        %v3190 = vand.u32 %v478, 4294901760
        %v3191 = vsub.f32 %v478, %v3190
        %v3192 = vand.u32 %v3191, 4294901760
        %3193 = vmatpush2.msra.mxu0 %v3192
        %v3194 = vand.u32 %v475, 4294901760
        %v3195 = vsub.f32 %v475, %v3194
        %v3196 = vand.u32 %v3195, 4294901760
        %3197 = vmatprep.subr.mxu0 %v3196
        %v3198 = vand.u32 %v474, 4294901760
        %v3199 = vsub.f32 %v474, %v3198
        %v3200 = vand.u32 %v3199, 4294901760
        %3201 = vmatpush2.msra.mxu0 %v3200
        %v3202 = vand.u32 %v471, 4294901760
        %v3203 = vsub.f32 %v471, %v3202
        %v3204 = vand.u32 %v3203, 4294901760
        %3205 = vmatprep.subr.mxu0 %v3204
        %v3206 = vand.u32 %v470, 4294901760
        %v3207 = vsub.f32 %v470, %v3206
        %v3208 = vand.u32 %v3207, 4294901760
        %3209 = vmatpush2.msra.mxu0 %v3208
        %v3210 = vand.u32 %v467, 4294901760
        %v3211 = vsub.f32 %v467, %v3210
        %v3212 = vand.u32 %v3211, 4294901760
        %3213 = vmatprep.subr.mxu0 %v3212
        %v3214 = vand.u32 %v466, 4294901760
        %v3215 = vsub.f32 %v466, %v3214
        %v3216 = vand.u32 %v3215, 4294901760
        %3217 = vmatpush2.msra.mxu0 %v3216
        %v3218 = vand.u32 %v463, 4294901760
        %v3219 = vsub.f32 %v463, %v3218
        %v3220 = vand.u32 %v3219, 4294901760
        %3221 = vmatprep.subr.mxu0 %v3220
        %v3222 = vand.u32 %v462, 4294901760
        %v3223 = vsub.f32 %v462, %v3222
        %v3224 = vand.u32 %v3223, 4294901760
        %3225 = vmatpush2.msra.mxu0 %v3224
        %v3226 = vand.u32 %v265, 4294901760
        %3227 = vmatprep.mubr.f32.mxu0 %v3226
        %v3228 = vand.u32 %v264, 4294901760
        %3229 = vmatmul.mubr.f32.gmra.mxu0 %v3228
        %v3230 = vpop.f32.mrf.mxu0
        %v3231 = vadd.f32 %v2966, %v3230
        %v3232 = vpop.f32.mrf.mxu0
        %v3233 = vadd.f32 %v2968, %v3232
        %3234 = vdwg.mxu0
        %v3235 = vand.u32 %v459, 4294901760
        %3236 = vmatprep.subr.mxu0 %v3235
        %v3237 = vand.u32 %v458, 4294901760
        %3238 = vmatpush1.msra.mxu0 %v3237
        %v3239 = vand.u32 %v455, 4294901760
        %3240 = vmatprep.subr.mxu0 %v3239
        %v3241 = vand.u32 %v454, 4294901760
        %3242 = vmatpush1.msra.mxu0 %v3241
        %v3243 = vand.u32 %v451, 4294901760
        %3244 = vmatprep.subr.mxu0 %v3243
        %v3245 = vand.u32 %v450, 4294901760
        %3246 = vmatpush1.msra.mxu0 %v3245
        %v3247 = vand.u32 %v447, 4294901760
        %3248 = vmatprep.subr.mxu0 %v3247
        %v3249 = vand.u32 %v446, 4294901760
        %3250 = vmatpush1.msra.mxu0 %v3249
        %v3251 = vand.u32 %v443, 4294901760
        %3252 = vmatprep.subr.mxu0 %v3251
        %v3253 = vand.u32 %v442, 4294901760
        %3254 = vmatpush1.msra.mxu0 %v3253
        %v3255 = vand.u32 %v439, 4294901760
        %3256 = vmatprep.subr.mxu0 %v3255
        %v3257 = vand.u32 %v438, 4294901760
        %3258 = vmatpush1.msra.mxu0 %v3257
        %v3259 = vand.u32 %v435, 4294901760
        %3260 = vmatprep.subr.mxu0 %v3259
        %v3261 = vand.u32 %v434, 4294901760
        %3262 = vmatpush1.msra.mxu0 %v3261
        %v3263 = vand.u32 %v431, 4294901760
        %3264 = vmatprep.subr.mxu0 %v3263
        %v3265 = vand.u32 %v430, 4294901760
        %3266 = vmatpush1.msra.mxu0 %v3265
        %v3267 = vand.u32 %v427, 4294901760
        %3268 = vmatprep.subr.mxu0 %v3267
        %v3269 = vand.u32 %v426, 4294901760
        %3270 = vmatpush1.msra.mxu0 %v3269
        %v3271 = vand.u32 %v423, 4294901760
        %3272 = vmatprep.subr.mxu0 %v3271
        %v3273 = vand.u32 %v422, 4294901760
        %3274 = vmatpush1.msra.mxu0 %v3273
        %v3275 = vand.u32 %v419, 4294901760
        %3276 = vmatprep.subr.mxu0 %v3275
        %v3277 = vand.u32 %v418, 4294901760
        %3278 = vmatpush1.msra.mxu0 %v3277
        %v3279 = vand.u32 %v415, 4294901760
        %3280 = vmatprep.subr.mxu0 %v3279
        %v3281 = vand.u32 %v414, 4294901760
        %3282 = vmatpush1.msra.mxu0 %v3281
        %v3283 = vand.u32 %v411, 4294901760
        %3284 = vmatprep.subr.mxu0 %v3283
        %v3285 = vand.u32 %v410, 4294901760
        %3286 = vmatpush1.msra.mxu0 %v3285
        %v3287 = vand.u32 %v407, 4294901760
        %3288 = vmatprep.subr.mxu0 %v3287
        %v3289 = vand.u32 %v406, 4294901760
        %3290 = vmatpush1.msra.mxu0 %v3289
        %v3291 = vand.u32 %v403, 4294901760
        %3292 = vmatprep.subr.mxu0 %v3291
        %v3293 = vand.u32 %v402, 4294901760
        %3294 = vmatpush1.msra.mxu0 %v3293
        %v3295 = vand.u32 %v399, 4294901760
        %3296 = vmatprep.subr.mxu0 %v3295
        %v3297 = vand.u32 %v398, 4294901760
        %3298 = vmatpush1.msra.mxu0 %v3297
        %v3299 = vand.u32 %v523, 4294901760
        %3300 = vmatprep.subr.mxu0 %v3299
        %v3301 = vand.u32 %v522, 4294901760
        %3302 = vmatpush2.msra.mxu0 %v3301
        %v3303 = vand.u32 %v519, 4294901760
        %3304 = vmatprep.subr.mxu0 %v3303
        %v3305 = vand.u32 %v518, 4294901760
        %3306 = vmatpush2.msra.mxu0 %v3305
        %v3307 = vand.u32 %v515, 4294901760
        %3308 = vmatprep.subr.mxu0 %v3307
        %v3309 = vand.u32 %v514, 4294901760
        %3310 = vmatpush2.msra.mxu0 %v3309
        %v3311 = vand.u32 %v511, 4294901760
        %3312 = vmatprep.subr.mxu0 %v3311
        %v3313 = vand.u32 %v510, 4294901760
        %3314 = vmatpush2.msra.mxu0 %v3313
        %v3315 = vand.u32 %v507, 4294901760
        %3316 = vmatprep.subr.mxu0 %v3315
        %v3317 = vand.u32 %v506, 4294901760
        %3318 = vmatpush2.msra.mxu0 %v3317
        %v3319 = vand.u32 %v503, 4294901760
        %3320 = vmatprep.subr.mxu0 %v3319
        %v3321 = vand.u32 %v502, 4294901760
        %3322 = vmatpush2.msra.mxu0 %v3321
        %v3323 = vand.u32 %v499, 4294901760
        %3324 = vmatprep.subr.mxu0 %v3323
        %v3325 = vand.u32 %v498, 4294901760
        %3326 = vmatpush2.msra.mxu0 %v3325
        %v3327 = vand.u32 %v495, 4294901760
        %3328 = vmatprep.subr.mxu0 %v3327
        %v3329 = vand.u32 %v494, 4294901760
        %3330 = vmatpush2.msra.mxu0 %v3329
        %v3331 = vand.u32 %v491, 4294901760
        %3332 = vmatprep.subr.mxu0 %v3331
        %v3333 = vand.u32 %v490, 4294901760
        %3334 = vmatpush2.msra.mxu0 %v3333
        %v3335 = vand.u32 %v487, 4294901760
        %3336 = vmatprep.subr.mxu0 %v3335
        %v3337 = vand.u32 %v486, 4294901760
        %3338 = vmatpush2.msra.mxu0 %v3337
        %v3339 = vand.u32 %v483, 4294901760
        %3340 = vmatprep.subr.mxu0 %v3339
        %v3341 = vand.u32 %v482, 4294901760
        %3342 = vmatpush2.msra.mxu0 %v3341
        %v3343 = vand.u32 %v479, 4294901760
        %3344 = vmatprep.subr.mxu0 %v3343
        %v3345 = vand.u32 %v478, 4294901760
        %3346 = vmatpush2.msra.mxu0 %v3345
        %v3347 = vand.u32 %v475, 4294901760
        %3348 = vmatprep.subr.mxu0 %v3347
        %v3349 = vand.u32 %v474, 4294901760
        %3350 = vmatpush2.msra.mxu0 %v3349
        %v3351 = vand.u32 %v471, 4294901760
        %3352 = vmatprep.subr.mxu0 %v3351
        %v3353 = vand.u32 %v470, 4294901760
        %3354 = vmatpush2.msra.mxu0 %v3353
        %v3355 = vand.u32 %v467, 4294901760
        %3356 = vmatprep.subr.mxu0 %v3355
        %v3357 = vand.u32 %v466, 4294901760
        %3358 = vmatpush2.msra.mxu0 %v3357
        %v3359 = vand.u32 %v463, 4294901760
        %3360 = vmatprep.subr.mxu0 %v3359
        %v3361 = vand.u32 %v462, 4294901760
        %3362 = vmatpush2.msra.mxu0 %v3361
        %v3363 = vand.u32 %v265, 4294901760
        %3364 = vmatprep.mubr.f32.mxu0 %v3363
        %v3365 = vand.u32 %v264, 4294901760
        %3366 = vmatmul.mubr.f32.gmra.mxu0 %v3365
        %v3367 = vpop.f32.mrf.mxu0
        %v3368 = vadd.f32 %v3231, %v3367
        %v3369 = vpop.f32.mrf.mxu0
        %v3370 = vadd.f32 %v3233, %v3369
        %3371 = vdwg.mxu0
        %v3372 = vand.u32 %v587, 4294901760
        %3373 = vmatprep.subr.mxu0 %v3372
        %v3374 = vand.u32 %v586, 4294901760
        %3375 = vmatpush1.msra.mxu0 %v3374
        %v3376 = vand.u32 %v583, 4294901760
        %3377 = vmatprep.subr.mxu0 %v3376
        %v3378 = vand.u32 %v582, 4294901760
        %3379 = vmatpush1.msra.mxu0 %v3378
        %v3380 = vand.u32 %v579, 4294901760
        %3381 = vmatprep.subr.mxu0 %v3380
        %v3382 = vand.u32 %v578, 4294901760
        %3383 = vmatpush1.msra.mxu0 %v3382
        %v3384 = vand.u32 %v575, 4294901760
        %3385 = vmatprep.subr.mxu0 %v3384
        %v3386 = vand.u32 %v574, 4294901760
        %3387 = vmatpush1.msra.mxu0 %v3386
        %v3388 = vand.u32 %v571, 4294901760
        %3389 = vmatprep.subr.mxu0 %v3388
        %v3390 = vand.u32 %v570, 4294901760
        %3391 = vmatpush1.msra.mxu0 %v3390
        %v3392 = vand.u32 %v567, 4294901760
        %3393 = vmatprep.subr.mxu0 %v3392
        %v3394 = vand.u32 %v566, 4294901760
        %3395 = vmatpush1.msra.mxu0 %v3394
        %v3396 = vand.u32 %v563, 4294901760
        %3397 = vmatprep.subr.mxu0 %v3396
        %v3398 = vand.u32 %v562, 4294901760
        %3399 = vmatpush1.msra.mxu0 %v3398
        %v3400 = vand.u32 %v559, 4294901760
        %3401 = vmatprep.subr.mxu0 %v3400
        %v3402 = vand.u32 %v558, 4294901760
        %3403 = vmatpush1.msra.mxu0 %v3402
        %v3404 = vand.u32 %v555, 4294901760
        %3405 = vmatprep.subr.mxu0 %v3404
        %v3406 = vand.u32 %v554, 4294901760
        %3407 = vmatpush1.msra.mxu0 %v3406
        %v3408 = vand.u32 %v551, 4294901760
        %3409 = vmatprep.subr.mxu0 %v3408
        %v3410 = vand.u32 %v550, 4294901760
        %3411 = vmatpush1.msra.mxu0 %v3410
        %v3412 = vand.u32 %v547, 4294901760
        %3413 = vmatprep.subr.mxu0 %v3412
        %v3414 = vand.u32 %v546, 4294901760
        %3415 = vmatpush1.msra.mxu0 %v3414
        %v3416 = vand.u32 %v543, 4294901760
        %3417 = vmatprep.subr.mxu0 %v3416
        %v3418 = vand.u32 %v542, 4294901760
        %3419 = vmatpush1.msra.mxu0 %v3418
        %v3420 = vand.u32 %v539, 4294901760
        %3421 = vmatprep.subr.mxu0 %v3420
        %v3422 = vand.u32 %v538, 4294901760
        %3423 = vmatpush1.msra.mxu0 %v3422
        %v3424 = vand.u32 %v535, 4294901760
        %3425 = vmatprep.subr.mxu0 %v3424
        %v3426 = vand.u32 %v534, 4294901760
        %3427 = vmatpush1.msra.mxu0 %v3426
        %v3428 = vand.u32 %v531, 4294901760
        %3429 = vmatprep.subr.mxu0 %v3428
        %v3430 = vand.u32 %v530, 4294901760
        %3431 = vmatpush1.msra.mxu0 %v3430
        %v3432 = vand.u32 %v527, 4294901760
        %3433 = vmatprep.subr.mxu0 %v3432
        %v3434 = vand.u32 %v526, 4294901760
        %3435 = vmatpush1.msra.mxu0 %v3434
        %v3436 = vand.u32 %v651, 4294901760
        %3437 = vmatprep.subr.mxu0 %v3436
        %v3438 = vand.u32 %v650, 4294901760
        %3439 = vmatpush2.msra.mxu0 %v3438
        %v3440 = vand.u32 %v647, 4294901760
        %3441 = vmatprep.subr.mxu0 %v3440
        %v3442 = vand.u32 %v646, 4294901760
        %3443 = vmatpush2.msra.mxu0 %v3442
        %v3444 = vand.u32 %v643, 4294901760
        %3445 = vmatprep.subr.mxu0 %v3444
        %v3446 = vand.u32 %v642, 4294901760
        %3447 = vmatpush2.msra.mxu0 %v3446
        %v3448 = vand.u32 %v639, 4294901760
        %3449 = vmatprep.subr.mxu0 %v3448
        %v3450 = vand.u32 %v638, 4294901760
        %3451 = vmatpush2.msra.mxu0 %v3450
        %v3452 = vand.u32 %v635, 4294901760
        %3453 = vmatprep.subr.mxu0 %v3452
        %v3454 = vand.u32 %v634, 4294901760
        %3455 = vmatpush2.msra.mxu0 %v3454
        %v3456 = vand.u32 %v631, 4294901760
        %3457 = vmatprep.subr.mxu0 %v3456
        %v3458 = vand.u32 %v630, 4294901760
        %3459 = vmatpush2.msra.mxu0 %v3458
        %v3460 = vand.u32 %v627, 4294901760
        %3461 = vmatprep.subr.mxu0 %v3460
        %v3462 = vand.u32 %v626, 4294901760
        %3463 = vmatpush2.msra.mxu0 %v3462
        %v3464 = vand.u32 %v623, 4294901760
        %3465 = vmatprep.subr.mxu0 %v3464
        %v3466 = vand.u32 %v622, 4294901760
        %3467 = vmatpush2.msra.mxu0 %v3466
        %v3468 = vand.u32 %v619, 4294901760
        %3469 = vmatprep.subr.mxu0 %v3468
        %v3470 = vand.u32 %v618, 4294901760
        %3471 = vmatpush2.msra.mxu0 %v3470
        %v3472 = vand.u32 %v615, 4294901760
        %3473 = vmatprep.subr.mxu0 %v3472
        %v3474 = vand.u32 %v614, 4294901760
        %3475 = vmatpush2.msra.mxu0 %v3474
        %v3476 = vand.u32 %v611, 4294901760
        %3477 = vmatprep.subr.mxu0 %v3476
        %v3478 = vand.u32 %v610, 4294901760
        %3479 = vmatpush2.msra.mxu0 %v3478
        %v3480 = vand.u32 %v607, 4294901760
        %3481 = vmatprep.subr.mxu0 %v3480
        %v3482 = vand.u32 %v606, 4294901760
        %3483 = vmatpush2.msra.mxu0 %v3482
        %v3484 = vand.u32 %v603, 4294901760
        %3485 = vmatprep.subr.mxu0 %v3484
        %v3486 = vand.u32 %v602, 4294901760
        %3487 = vmatpush2.msra.mxu0 %v3486
        %v3488 = vand.u32 %v599, 4294901760
        %3489 = vmatprep.subr.mxu0 %v3488
        %v3490 = vand.u32 %v598, 4294901760
        %3491 = vmatpush2.msra.mxu0 %v3490
        %v3492 = vand.u32 %v595, 4294901760
        %3493 = vmatprep.subr.mxu0 %v3492
        %v3494 = vand.u32 %v594, 4294901760
        %3495 = vmatpush2.msra.mxu0 %v3494
        %v3496 = vand.u32 %v591, 4294901760
        %3497 = vmatprep.subr.mxu0 %v3496
        %v3498 = vand.u32 %v590, 4294901760
        %3499 = vmatpush2.msra.mxu0 %v3498
        %v3500 = vand.u32 %v267, 4294901760
        %v3501 = vsub.f32 %v267, %v3500
        %v3502 = vand.u32 %v3501, 4294901760
        %v3503 = vsub.f32 %v3501, %v3502
        %v3504 = vand.u32 %v3503, 4294901760
        %3505 = vmatprep.mubr.f32.mxu0 %v3504
        %v3506 = vand.u32 %v266, 4294901760
        %v3507 = vsub.f32 %v266, %v3506
        %v3508 = vand.u32 %v3507, 4294901760
        %v3509 = vsub.f32 %v3507, %v3508
        %v3510 = vand.u32 %v3509, 4294901760
        %3511 = vmatmul.mubr.f32.gmra.mxu0 %v3510
        %v3512 = vpop.f32.mrf.mxu0
        %v3513 = vadd.f32 %v3368, %v3512
        %v3514 = vpop.f32.mrf.mxu0
        %v3515 = vadd.f32 %v3370, %v3514
        %3516 = vdwg.mxu0
        %v3517 = vand.u32 %v587, 4294901760
        %v3518 = vsub.f32 %v587, %v3517
        %v3519 = vand.u32 %v3518, 4294901760
        %v3520 = vsub.f32 %v3518, %v3519
        %v3521 = vand.u32 %v3520, 4294901760
        %3522 = vmatprep.subr.mxu0 %v3521
        %v3523 = vand.u32 %v586, 4294901760
        %v3524 = vsub.f32 %v586, %v3523
        %v3525 = vand.u32 %v3524, 4294901760
        %v3526 = vsub.f32 %v3524, %v3525
        %v3527 = vand.u32 %v3526, 4294901760
        %3528 = vmatpush1.msra.mxu0 %v3527
        %v3529 = vand.u32 %v583, 4294901760
        %v3530 = vsub.f32 %v583, %v3529
        %v3531 = vand.u32 %v3530, 4294901760
        %v3532 = vsub.f32 %v3530, %v3531
        %v3533 = vand.u32 %v3532, 4294901760
        %3534 = vmatprep.subr.mxu0 %v3533
        %v3535 = vand.u32 %v582, 4294901760
        %v3536 = vsub.f32 %v582, %v3535
        %v3537 = vand.u32 %v3536, 4294901760
        %v3538 = vsub.f32 %v3536, %v3537
        %v3539 = vand.u32 %v3538, 4294901760
        %3540 = vmatpush1.msra.mxu0 %v3539
        %v3541 = vand.u32 %v579, 4294901760
        %v3542 = vsub.f32 %v579, %v3541
        %v3543 = vand.u32 %v3542, 4294901760
        %v3544 = vsub.f32 %v3542, %v3543
        %v3545 = vand.u32 %v3544, 4294901760
        %3546 = vmatprep.subr.mxu0 %v3545
        %v3547 = vand.u32 %v578, 4294901760
        %v3548 = vsub.f32 %v578, %v3547
        %v3549 = vand.u32 %v3548, 4294901760
        %v3550 = vsub.f32 %v3548, %v3549
        %v3551 = vand.u32 %v3550, 4294901760
        %3552 = vmatpush1.msra.mxu0 %v3551
        %v3553 = vand.u32 %v575, 4294901760
        %v3554 = vsub.f32 %v575, %v3553
        %v3555 = vand.u32 %v3554, 4294901760
        %v3556 = vsub.f32 %v3554, %v3555
        %v3557 = vand.u32 %v3556, 4294901760
        %3558 = vmatprep.subr.mxu0 %v3557
        %v3559 = vand.u32 %v574, 4294901760
        %v3560 = vsub.f32 %v574, %v3559
        %v3561 = vand.u32 %v3560, 4294901760
        %v3562 = vsub.f32 %v3560, %v3561
        %v3563 = vand.u32 %v3562, 4294901760
        %3564 = vmatpush1.msra.mxu0 %v3563
        %v3565 = vand.u32 %v571, 4294901760
        %v3566 = vsub.f32 %v571, %v3565
        %v3567 = vand.u32 %v3566, 4294901760
        %v3568 = vsub.f32 %v3566, %v3567
        %v3569 = vand.u32 %v3568, 4294901760
        %3570 = vmatprep.subr.mxu0 %v3569
        %v3571 = vand.u32 %v570, 4294901760
        %v3572 = vsub.f32 %v570, %v3571
        %v3573 = vand.u32 %v3572, 4294901760
        %v3574 = vsub.f32 %v3572, %v3573
        %v3575 = vand.u32 %v3574, 4294901760
        %3576 = vmatpush1.msra.mxu0 %v3575
        %v3577 = vand.u32 %v567, 4294901760
        %v3578 = vsub.f32 %v567, %v3577
        %v3579 = vand.u32 %v3578, 4294901760
        %v3580 = vsub.f32 %v3578, %v3579
        %v3581 = vand.u32 %v3580, 4294901760
        %3582 = vmatprep.subr.mxu0 %v3581
        %v3583 = vand.u32 %v566, 4294901760
        %v3584 = vsub.f32 %v566, %v3583
        %v3585 = vand.u32 %v3584, 4294901760
        %v3586 = vsub.f32 %v3584, %v3585
        %v3587 = vand.u32 %v3586, 4294901760
        %3588 = vmatpush1.msra.mxu0 %v3587
        %v3589 = vand.u32 %v563, 4294901760
        %v3590 = vsub.f32 %v563, %v3589
        %v3591 = vand.u32 %v3590, 4294901760
        %v3592 = vsub.f32 %v3590, %v3591
        %v3593 = vand.u32 %v3592, 4294901760
        %3594 = vmatprep.subr.mxu0 %v3593
        %v3595 = vand.u32 %v562, 4294901760
        %v3596 = vsub.f32 %v562, %v3595
        %v3597 = vand.u32 %v3596, 4294901760
        %v3598 = vsub.f32 %v3596, %v3597
        %v3599 = vand.u32 %v3598, 4294901760
        %3600 = vmatpush1.msra.mxu0 %v3599
        %v3601 = vand.u32 %v559, 4294901760
        %v3602 = vsub.f32 %v559, %v3601
        %v3603 = vand.u32 %v3602, 4294901760
        %v3604 = vsub.f32 %v3602, %v3603
        %v3605 = vand.u32 %v3604, 4294901760
        %3606 = vmatprep.subr.mxu0 %v3605
        %v3607 = vand.u32 %v558, 4294901760
        %v3608 = vsub.f32 %v558, %v3607
        %v3609 = vand.u32 %v3608, 4294901760
        %v3610 = vsub.f32 %v3608, %v3609
        %v3611 = vand.u32 %v3610, 4294901760
        %3612 = vmatpush1.msra.mxu0 %v3611
        %v3613 = vand.u32 %v555, 4294901760
        %v3614 = vsub.f32 %v555, %v3613
        %v3615 = vand.u32 %v3614, 4294901760
        %v3616 = vsub.f32 %v3614, %v3615
        %v3617 = vand.u32 %v3616, 4294901760
        %3618 = vmatprep.subr.mxu0 %v3617
        %v3619 = vand.u32 %v554, 4294901760
        %v3620 = vsub.f32 %v554, %v3619
        %v3621 = vand.u32 %v3620, 4294901760
        %v3622 = vsub.f32 %v3620, %v3621
        %v3623 = vand.u32 %v3622, 4294901760
        %3624 = vmatpush1.msra.mxu0 %v3623
        %v3625 = vand.u32 %v551, 4294901760
        %v3626 = vsub.f32 %v551, %v3625
        %v3627 = vand.u32 %v3626, 4294901760
        %v3628 = vsub.f32 %v3626, %v3627
        %v3629 = vand.u32 %v3628, 4294901760
        %3630 = vmatprep.subr.mxu0 %v3629
        %v3631 = vand.u32 %v550, 4294901760
        %v3632 = vsub.f32 %v550, %v3631
        %v3633 = vand.u32 %v3632, 4294901760
        %v3634 = vsub.f32 %v3632, %v3633
        %v3635 = vand.u32 %v3634, 4294901760
        %3636 = vmatpush1.msra.mxu0 %v3635
        %v3637 = vand.u32 %v547, 4294901760
        %v3638 = vsub.f32 %v547, %v3637
        %v3639 = vand.u32 %v3638, 4294901760
        %v3640 = vsub.f32 %v3638, %v3639
        %v3641 = vand.u32 %v3640, 4294901760
        %3642 = vmatprep.subr.mxu0 %v3641
        %v3643 = vand.u32 %v546, 4294901760
        %v3644 = vsub.f32 %v546, %v3643
        %v3645 = vand.u32 %v3644, 4294901760
        %v3646 = vsub.f32 %v3644, %v3645
        %v3647 = vand.u32 %v3646, 4294901760
        %3648 = vmatpush1.msra.mxu0 %v3647
        %v3649 = vand.u32 %v543, 4294901760
        %v3650 = vsub.f32 %v543, %v3649
        %v3651 = vand.u32 %v3650, 4294901760
        %v3652 = vsub.f32 %v3650, %v3651
        %v3653 = vand.u32 %v3652, 4294901760
        %3654 = vmatprep.subr.mxu0 %v3653
        %v3655 = vand.u32 %v542, 4294901760
        %v3656 = vsub.f32 %v542, %v3655
        %v3657 = vand.u32 %v3656, 4294901760
        %v3658 = vsub.f32 %v3656, %v3657
        %v3659 = vand.u32 %v3658, 4294901760
        %3660 = vmatpush1.msra.mxu0 %v3659
        %v3661 = vand.u32 %v539, 4294901760
        %v3662 = vsub.f32 %v539, %v3661
        %v3663 = vand.u32 %v3662, 4294901760
        %v3664 = vsub.f32 %v3662, %v3663
        %v3665 = vand.u32 %v3664, 4294901760
        %3666 = vmatprep.subr.mxu0 %v3665
        %v3667 = vand.u32 %v538, 4294901760
        %v3668 = vsub.f32 %v538, %v3667
        %v3669 = vand.u32 %v3668, 4294901760
        %v3670 = vsub.f32 %v3668, %v3669
        %v3671 = vand.u32 %v3670, 4294901760
        %3672 = vmatpush1.msra.mxu0 %v3671
        %v3673 = vand.u32 %v535, 4294901760
        %v3674 = vsub.f32 %v535, %v3673
        %v3675 = vand.u32 %v3674, 4294901760
        %v3676 = vsub.f32 %v3674, %v3675
        %v3677 = vand.u32 %v3676, 4294901760
        %3678 = vmatprep.subr.mxu0 %v3677
        %v3679 = vand.u32 %v534, 4294901760
        %v3680 = vsub.f32 %v534, %v3679
        %v3681 = vand.u32 %v3680, 4294901760
        %v3682 = vsub.f32 %v3680, %v3681
        %v3683 = vand.u32 %v3682, 4294901760
        %3684 = vmatpush1.msra.mxu0 %v3683
        %v3685 = vand.u32 %v531, 4294901760
        %v3686 = vsub.f32 %v531, %v3685
        %v3687 = vand.u32 %v3686, 4294901760
        %v3688 = vsub.f32 %v3686, %v3687
        %v3689 = vand.u32 %v3688, 4294901760
        %3690 = vmatprep.subr.mxu0 %v3689
        %v3691 = vand.u32 %v530, 4294901760
        %v3692 = vsub.f32 %v530, %v3691
        %v3693 = vand.u32 %v3692, 4294901760
        %v3694 = vsub.f32 %v3692, %v3693
        %v3695 = vand.u32 %v3694, 4294901760
        %3696 = vmatpush1.msra.mxu0 %v3695
        %v3697 = vand.u32 %v527, 4294901760
        %v3698 = vsub.f32 %v527, %v3697
        %v3699 = vand.u32 %v3698, 4294901760
        %v3700 = vsub.f32 %v3698, %v3699
        %v3701 = vand.u32 %v3700, 4294901760
        %3702 = vmatprep.subr.mxu0 %v3701
        %v3703 = vand.u32 %v526, 4294901760
        %v3704 = vsub.f32 %v526, %v3703
        %v3705 = vand.u32 %v3704, 4294901760
        %v3706 = vsub.f32 %v3704, %v3705
        %v3707 = vand.u32 %v3706, 4294901760
        %3708 = vmatpush1.msra.mxu0 %v3707
        %v3709 = vand.u32 %v651, 4294901760
        %v3710 = vsub.f32 %v651, %v3709
        %v3711 = vand.u32 %v3710, 4294901760
        %v3712 = vsub.f32 %v3710, %v3711
        %v3713 = vand.u32 %v3712, 4294901760
        %3714 = vmatprep.subr.mxu0 %v3713
        %v3715 = vand.u32 %v650, 4294901760
        %v3716 = vsub.f32 %v650, %v3715
        %v3717 = vand.u32 %v3716, 4294901760
        %v3718 = vsub.f32 %v3716, %v3717
        %v3719 = vand.u32 %v3718, 4294901760
        %3720 = vmatpush2.msra.mxu0 %v3719
        %v3721 = vand.u32 %v647, 4294901760
        %v3722 = vsub.f32 %v647, %v3721
        %v3723 = vand.u32 %v3722, 4294901760
        %v3724 = vsub.f32 %v3722, %v3723
        %v3725 = vand.u32 %v3724, 4294901760
        %3726 = vmatprep.subr.mxu0 %v3725
        %v3727 = vand.u32 %v646, 4294901760
        %v3728 = vsub.f32 %v646, %v3727
        %v3729 = vand.u32 %v3728, 4294901760
        %v3730 = vsub.f32 %v3728, %v3729
        %v3731 = vand.u32 %v3730, 4294901760
        %3732 = vmatpush2.msra.mxu0 %v3731
        %v3733 = vand.u32 %v643, 4294901760
        %v3734 = vsub.f32 %v643, %v3733
        %v3735 = vand.u32 %v3734, 4294901760
        %v3736 = vsub.f32 %v3734, %v3735
        %v3737 = vand.u32 %v3736, 4294901760
        %3738 = vmatprep.subr.mxu0 %v3737
        %v3739 = vand.u32 %v642, 4294901760
        %v3740 = vsub.f32 %v642, %v3739
        %v3741 = vand.u32 %v3740, 4294901760
        %v3742 = vsub.f32 %v3740, %v3741
        %v3743 = vand.u32 %v3742, 4294901760
        %3744 = vmatpush2.msra.mxu0 %v3743
        %v3745 = vand.u32 %v639, 4294901760
        %v3746 = vsub.f32 %v639, %v3745
        %v3747 = vand.u32 %v3746, 4294901760
        %v3748 = vsub.f32 %v3746, %v3747
        %v3749 = vand.u32 %v3748, 4294901760
        %3750 = vmatprep.subr.mxu0 %v3749
        %v3751 = vand.u32 %v638, 4294901760
        %v3752 = vsub.f32 %v638, %v3751
        %v3753 = vand.u32 %v3752, 4294901760
        %v3754 = vsub.f32 %v3752, %v3753
        %v3755 = vand.u32 %v3754, 4294901760
        %3756 = vmatpush2.msra.mxu0 %v3755
        %v3757 = vand.u32 %v635, 4294901760
        %v3758 = vsub.f32 %v635, %v3757
        %v3759 = vand.u32 %v3758, 4294901760
        %v3760 = vsub.f32 %v3758, %v3759
        %v3761 = vand.u32 %v3760, 4294901760
        %3762 = vmatprep.subr.mxu0 %v3761
        %v3763 = vand.u32 %v634, 4294901760
        %v3764 = vsub.f32 %v634, %v3763
        %v3765 = vand.u32 %v3764, 4294901760
        %v3766 = vsub.f32 %v3764, %v3765
        %v3767 = vand.u32 %v3766, 4294901760
        %3768 = vmatpush2.msra.mxu0 %v3767
        %v3769 = vand.u32 %v631, 4294901760
        %v3770 = vsub.f32 %v631, %v3769
        %v3771 = vand.u32 %v3770, 4294901760
        %v3772 = vsub.f32 %v3770, %v3771
        %v3773 = vand.u32 %v3772, 4294901760
        %3774 = vmatprep.subr.mxu0 %v3773
        %v3775 = vand.u32 %v630, 4294901760
        %v3776 = vsub.f32 %v630, %v3775
        %v3777 = vand.u32 %v3776, 4294901760
        %v3778 = vsub.f32 %v3776, %v3777
        %v3779 = vand.u32 %v3778, 4294901760
        %3780 = vmatpush2.msra.mxu0 %v3779
        %v3781 = vand.u32 %v627, 4294901760
        %v3782 = vsub.f32 %v627, %v3781
        %v3783 = vand.u32 %v3782, 4294901760
        %v3784 = vsub.f32 %v3782, %v3783
        %v3785 = vand.u32 %v3784, 4294901760
        %3786 = vmatprep.subr.mxu0 %v3785
        %v3787 = vand.u32 %v626, 4294901760
        %v3788 = vsub.f32 %v626, %v3787
        %v3789 = vand.u32 %v3788, 4294901760
        %v3790 = vsub.f32 %v3788, %v3789
        %v3791 = vand.u32 %v3790, 4294901760
        %3792 = vmatpush2.msra.mxu0 %v3791
        %v3793 = vand.u32 %v623, 4294901760
        %v3794 = vsub.f32 %v623, %v3793
        %v3795 = vand.u32 %v3794, 4294901760
        %v3796 = vsub.f32 %v3794, %v3795
        %v3797 = vand.u32 %v3796, 4294901760
        %3798 = vmatprep.subr.mxu0 %v3797
        %v3799 = vand.u32 %v622, 4294901760
        %v3800 = vsub.f32 %v622, %v3799
        %v3801 = vand.u32 %v3800, 4294901760
        %v3802 = vsub.f32 %v3800, %v3801
        %v3803 = vand.u32 %v3802, 4294901760
        %3804 = vmatpush2.msra.mxu0 %v3803
        %v3805 = vand.u32 %v619, 4294901760
        %v3806 = vsub.f32 %v619, %v3805
        %v3807 = vand.u32 %v3806, 4294901760
        %v3808 = vsub.f32 %v3806, %v3807
        %v3809 = vand.u32 %v3808, 4294901760
        %3810 = vmatprep.subr.mxu0 %v3809
        %v3811 = vand.u32 %v618, 4294901760
        %v3812 = vsub.f32 %v618, %v3811
        %v3813 = vand.u32 %v3812, 4294901760
        %v3814 = vsub.f32 %v3812, %v3813
        %v3815 = vand.u32 %v3814, 4294901760
        %3816 = vmatpush2.msra.mxu0 %v3815
        %v3817 = vand.u32 %v615, 4294901760
        %v3818 = vsub.f32 %v615, %v3817
        %v3819 = vand.u32 %v3818, 4294901760
        %v3820 = vsub.f32 %v3818, %v3819
        %v3821 = vand.u32 %v3820, 4294901760
        %3822 = vmatprep.subr.mxu0 %v3821
        %v3823 = vand.u32 %v614, 4294901760
        %v3824 = vsub.f32 %v614, %v3823
        %v3825 = vand.u32 %v3824, 4294901760
        %v3826 = vsub.f32 %v3824, %v3825
        %v3827 = vand.u32 %v3826, 4294901760
        %3828 = vmatpush2.msra.mxu0 %v3827
        %v3829 = vand.u32 %v611, 4294901760
        %v3830 = vsub.f32 %v611, %v3829
        %v3831 = vand.u32 %v3830, 4294901760
        %v3832 = vsub.f32 %v3830, %v3831
        %v3833 = vand.u32 %v3832, 4294901760
        %3834 = vmatprep.subr.mxu0 %v3833
        %v3835 = vand.u32 %v610, 4294901760
        %v3836 = vsub.f32 %v610, %v3835
        %v3837 = vand.u32 %v3836, 4294901760
        %v3838 = vsub.f32 %v3836, %v3837
        %v3839 = vand.u32 %v3838, 4294901760
        %3840 = vmatpush2.msra.mxu0 %v3839
        %v3841 = vand.u32 %v607, 4294901760
        %v3842 = vsub.f32 %v607, %v3841
        %v3843 = vand.u32 %v3842, 4294901760
        %v3844 = vsub.f32 %v3842, %v3843
        %v3845 = vand.u32 %v3844, 4294901760
        %3846 = vmatprep.subr.mxu0 %v3845
        %v3847 = vand.u32 %v606, 4294901760
        %v3848 = vsub.f32 %v606, %v3847
        %v3849 = vand.u32 %v3848, 4294901760
        %v3850 = vsub.f32 %v3848, %v3849
        %v3851 = vand.u32 %v3850, 4294901760
        %3852 = vmatpush2.msra.mxu0 %v3851
        %v3853 = vand.u32 %v603, 4294901760
        %v3854 = vsub.f32 %v603, %v3853
        %v3855 = vand.u32 %v3854, 4294901760
        %v3856 = vsub.f32 %v3854, %v3855
        %v3857 = vand.u32 %v3856, 4294901760
        %3858 = vmatprep.subr.mxu0 %v3857
        %v3859 = vand.u32 %v602, 4294901760
        %v3860 = vsub.f32 %v602, %v3859
        %v3861 = vand.u32 %v3860, 4294901760
        %v3862 = vsub.f32 %v3860, %v3861
        %v3863 = vand.u32 %v3862, 4294901760
        %3864 = vmatpush2.msra.mxu0 %v3863
        %v3865 = vand.u32 %v599, 4294901760
        %v3866 = vsub.f32 %v599, %v3865
        %v3867 = vand.u32 %v3866, 4294901760
        %v3868 = vsub.f32 %v3866, %v3867
        %v3869 = vand.u32 %v3868, 4294901760
        %3870 = vmatprep.subr.mxu0 %v3869
        %v3871 = vand.u32 %v598, 4294901760
        %v3872 = vsub.f32 %v598, %v3871
        %v3873 = vand.u32 %v3872, 4294901760
        %v3874 = vsub.f32 %v3872, %v3873
        %v3875 = vand.u32 %v3874, 4294901760
        %3876 = vmatpush2.msra.mxu0 %v3875
        %v3877 = vand.u32 %v595, 4294901760
        %v3878 = vsub.f32 %v595, %v3877
        %v3879 = vand.u32 %v3878, 4294901760
        %v3880 = vsub.f32 %v3878, %v3879
        %v3881 = vand.u32 %v3880, 4294901760
        %3882 = vmatprep.subr.mxu0 %v3881
        %v3883 = vand.u32 %v594, 4294901760
        %v3884 = vsub.f32 %v594, %v3883
        %v3885 = vand.u32 %v3884, 4294901760
        %v3886 = vsub.f32 %v3884, %v3885
        %v3887 = vand.u32 %v3886, 4294901760
        %3888 = vmatpush2.msra.mxu0 %v3887
        %v3889 = vand.u32 %v591, 4294901760
        %v3890 = vsub.f32 %v591, %v3889
        %v3891 = vand.u32 %v3890, 4294901760
        %v3892 = vsub.f32 %v3890, %v3891
        %v3893 = vand.u32 %v3892, 4294901760
        %3894 = vmatprep.subr.mxu0 %v3893
        %v3895 = vand.u32 %v590, 4294901760
        %v3896 = vsub.f32 %v590, %v3895
        %v3897 = vand.u32 %v3896, 4294901760
        %v3898 = vsub.f32 %v3896, %v3897
        %v3899 = vand.u32 %v3898, 4294901760
        %3900 = vmatpush2.msra.mxu0 %v3899
        %v3901 = vand.u32 %v267, 4294901760
        %3902 = vmatprep.mubr.f32.mxu0 %v3901
        %v3903 = vand.u32 %v266, 4294901760
        %3904 = vmatmul.mubr.f32.gmra.mxu0 %v3903
        %v3905 = vpop.f32.mrf.mxu0
        %v3906 = vadd.f32 %v3513, %v3905
        %v3907 = vpop.f32.mrf.mxu0
        %v3908 = vadd.f32 %v3515, %v3907
        %3909 = vdwg.mxu0
        %v3910 = vand.u32 %v587, 4294901760
        %v3911 = vsub.f32 %v587, %v3910
        %3912 = vmatprep.subr.mxu0 %v3911
        %v3913 = vand.u32 %v586, 4294901760
        %v3914 = vsub.f32 %v586, %v3913
        %3915 = vmatpush1.msra.mxu0 %v3914
        %v3916 = vand.u32 %v583, 4294901760
        %v3917 = vsub.f32 %v583, %v3916
        %3918 = vmatprep.subr.mxu0 %v3917
        %v3919 = vand.u32 %v582, 4294901760
        %v3920 = vsub.f32 %v582, %v3919
        %3921 = vmatpush1.msra.mxu0 %v3920
        %v3922 = vand.u32 %v579, 4294901760
        %v3923 = vsub.f32 %v579, %v3922
        %3924 = vmatprep.subr.mxu0 %v3923
        %v3925 = vand.u32 %v578, 4294901760
        %v3926 = vsub.f32 %v578, %v3925
        %3927 = vmatpush1.msra.mxu0 %v3926
        %v3928 = vand.u32 %v575, 4294901760
        %v3929 = vsub.f32 %v575, %v3928
        %3930 = vmatprep.subr.mxu0 %v3929
        %v3931 = vand.u32 %v574, 4294901760
        %v3932 = vsub.f32 %v574, %v3931
        %3933 = vmatpush1.msra.mxu0 %v3932
        %v3934 = vand.u32 %v571, 4294901760
        %v3935 = vsub.f32 %v571, %v3934
        %3936 = vmatprep.subr.mxu0 %v3935
        %v3937 = vand.u32 %v570, 4294901760
        %v3938 = vsub.f32 %v570, %v3937
        %3939 = vmatpush1.msra.mxu0 %v3938
        %v3940 = vand.u32 %v567, 4294901760
        %v3941 = vsub.f32 %v567, %v3940
        %3942 = vmatprep.subr.mxu0 %v3941
        %v3943 = vand.u32 %v566, 4294901760
        %v3944 = vsub.f32 %v566, %v3943
        %3945 = vmatpush1.msra.mxu0 %v3944
        %v3946 = vand.u32 %v563, 4294901760
        %v3947 = vsub.f32 %v563, %v3946
        %3948 = vmatprep.subr.mxu0 %v3947
        %v3949 = vand.u32 %v562, 4294901760
        %v3950 = vsub.f32 %v562, %v3949
        %3951 = vmatpush1.msra.mxu0 %v3950
        %v3952 = vand.u32 %v559, 4294901760
        %v3953 = vsub.f32 %v559, %v3952
        %3954 = vmatprep.subr.mxu0 %v3953
        %v3955 = vand.u32 %v558, 4294901760
        %v3956 = vsub.f32 %v558, %v3955
        %3957 = vmatpush1.msra.mxu0 %v3956
        %v3958 = vand.u32 %v555, 4294901760
        %v3959 = vsub.f32 %v555, %v3958
        %3960 = vmatprep.subr.mxu0 %v3959
        %v3961 = vand.u32 %v554, 4294901760
        %v3962 = vsub.f32 %v554, %v3961
        %3963 = vmatpush1.msra.mxu0 %v3962
        %v3964 = vand.u32 %v551, 4294901760
        %v3965 = vsub.f32 %v551, %v3964
        %3966 = vmatprep.subr.mxu0 %v3965
        %v3967 = vand.u32 %v550, 4294901760
        %v3968 = vsub.f32 %v550, %v3967
        %3969 = vmatpush1.msra.mxu0 %v3968
        %v3970 = vand.u32 %v547, 4294901760
        %v3971 = vsub.f32 %v547, %v3970
        %3972 = vmatprep.subr.mxu0 %v3971
        %v3973 = vand.u32 %v546, 4294901760
        %v3974 = vsub.f32 %v546, %v3973
        %3975 = vmatpush1.msra.mxu0 %v3974
        %v3976 = vand.u32 %v543, 4294901760
        %v3977 = vsub.f32 %v543, %v3976
        %3978 = vmatprep.subr.mxu0 %v3977
        %v3979 = vand.u32 %v542, 4294901760
        %v3980 = vsub.f32 %v542, %v3979
        %3981 = vmatpush1.msra.mxu0 %v3980
        %v3982 = vand.u32 %v539, 4294901760
        %v3983 = vsub.f32 %v539, %v3982
        %3984 = vmatprep.subr.mxu0 %v3983
        %v3985 = vand.u32 %v538, 4294901760
        %v3986 = vsub.f32 %v538, %v3985
        %3987 = vmatpush1.msra.mxu0 %v3986
        %v3988 = vand.u32 %v535, 4294901760
        %v3989 = vsub.f32 %v535, %v3988
        %3990 = vmatprep.subr.mxu0 %v3989
        %v3991 = vand.u32 %v534, 4294901760
        %v3992 = vsub.f32 %v534, %v3991
        %3993 = vmatpush1.msra.mxu0 %v3992
        %v3994 = vand.u32 %v531, 4294901760
        %v3995 = vsub.f32 %v531, %v3994
        %3996 = vmatprep.subr.mxu0 %v3995
        %v3997 = vand.u32 %v530, 4294901760
        %v3998 = vsub.f32 %v530, %v3997
        %3999 = vmatpush1.msra.mxu0 %v3998
        %v4000 = vand.u32 %v527, 4294901760
        %v4001 = vsub.f32 %v527, %v4000
        %4002 = vmatprep.subr.mxu0 %v4001
        %v4003 = vand.u32 %v526, 4294901760
        %v4004 = vsub.f32 %v526, %v4003
        %4005 = vmatpush1.msra.mxu0 %v4004
        %v4006 = vand.u32 %v651, 4294901760
        %v4007 = vsub.f32 %v651, %v4006
        %4008 = vmatprep.subr.mxu0 %v4007
        %v4009 = vand.u32 %v650, 4294901760
        %v4010 = vsub.f32 %v650, %v4009
        %4011 = vmatpush2.msra.mxu0 %v4010
        %v4012 = vand.u32 %v647, 4294901760
        %v4013 = vsub.f32 %v647, %v4012
        %4014 = vmatprep.subr.mxu0 %v4013
        %v4015 = vand.u32 %v646, 4294901760
        %v4016 = vsub.f32 %v646, %v4015
        %4017 = vmatpush2.msra.mxu0 %v4016
        %v4018 = vand.u32 %v643, 4294901760
        %v4019 = vsub.f32 %v643, %v4018
        %4020 = vmatprep.subr.mxu0 %v4019
        %v4021 = vand.u32 %v642, 4294901760
        %v4022 = vsub.f32 %v642, %v4021
        %4023 = vmatpush2.msra.mxu0 %v4022
        %v4024 = vand.u32 %v639, 4294901760
        %v4025 = vsub.f32 %v639, %v4024
        %4026 = vmatprep.subr.mxu0 %v4025
        %v4027 = vand.u32 %v638, 4294901760
        %v4028 = vsub.f32 %v638, %v4027
        %4029 = vmatpush2.msra.mxu0 %v4028
        %v4030 = vand.u32 %v635, 4294901760
        %v4031 = vsub.f32 %v635, %v4030
        %4032 = vmatprep.subr.mxu0 %v4031
        %v4033 = vand.u32 %v634, 4294901760
        %v4034 = vsub.f32 %v634, %v4033
        %4035 = vmatpush2.msra.mxu0 %v4034
        %v4036 = vand.u32 %v631, 4294901760
        %v4037 = vsub.f32 %v631, %v4036
        %4038 = vmatprep.subr.mxu0 %v4037
        %v4039 = vand.u32 %v630, 4294901760
        %v4040 = vsub.f32 %v630, %v4039
        %4041 = vmatpush2.msra.mxu0 %v4040
        %v4042 = vand.u32 %v627, 4294901760
        %v4043 = vsub.f32 %v627, %v4042
        %4044 = vmatprep.subr.mxu0 %v4043
        %v4045 = vand.u32 %v626, 4294901760
        %v4046 = vsub.f32 %v626, %v4045
        %4047 = vmatpush2.msra.mxu0 %v4046
        %v4048 = vand.u32 %v623, 4294901760
        %v4049 = vsub.f32 %v623, %v4048
        %4050 = vmatprep.subr.mxu0 %v4049
        %v4051 = vand.u32 %v622, 4294901760
        %v4052 = vsub.f32 %v622, %v4051
        %4053 = vmatpush2.msra.mxu0 %v4052
        %v4054 = vand.u32 %v619, 4294901760
        %v4055 = vsub.f32 %v619, %v4054
        %4056 = vmatprep.subr.mxu0 %v4055
        %v4057 = vand.u32 %v618, 4294901760
        %v4058 = vsub.f32 %v618, %v4057
        %4059 = vmatpush2.msra.mxu0 %v4058
        %v4060 = vand.u32 %v615, 4294901760
        %v4061 = vsub.f32 %v615, %v4060
        %4062 = vmatprep.subr.mxu0 %v4061
        %v4063 = vand.u32 %v614, 4294901760
        %v4064 = vsub.f32 %v614, %v4063
        %4065 = vmatpush2.msra.mxu0 %v4064
        %v4066 = vand.u32 %v611, 4294901760
        %v4067 = vsub.f32 %v611, %v4066
        %4068 = vmatprep.subr.mxu0 %v4067
        %v4069 = vand.u32 %v610, 4294901760
        %v4070 = vsub.f32 %v610, %v4069
        %4071 = vmatpush2.msra.mxu0 %v4070
        %v4072 = vand.u32 %v607, 4294901760
        %v4073 = vsub.f32 %v607, %v4072
        %4074 = vmatprep.subr.mxu0 %v4073
        %v4075 = vand.u32 %v606, 4294901760
        %v4076 = vsub.f32 %v606, %v4075
        %4077 = vmatpush2.msra.mxu0 %v4076
        %v4078 = vand.u32 %v603, 4294901760
        %v4079 = vsub.f32 %v603, %v4078
        %4080 = vmatprep.subr.mxu0 %v4079
        %v4081 = vand.u32 %v602, 4294901760
        %v4082 = vsub.f32 %v602, %v4081
        %4083 = vmatpush2.msra.mxu0 %v4082
        %v4084 = vand.u32 %v599, 4294901760
        %v4085 = vsub.f32 %v599, %v4084
        %4086 = vmatprep.subr.mxu0 %v4085
        %v4087 = vand.u32 %v598, 4294901760
        %v4088 = vsub.f32 %v598, %v4087
        %4089 = vmatpush2.msra.mxu0 %v4088
        %v4090 = vand.u32 %v595, 4294901760
        %v4091 = vsub.f32 %v595, %v4090
        %4092 = vmatprep.subr.mxu0 %v4091
        %v4093 = vand.u32 %v594, 4294901760
        %v4094 = vsub.f32 %v594, %v4093
        %4095 = vmatpush2.msra.mxu0 %v4094
        %v4096 = vand.u32 %v591, 4294901760
        %v4097 = vsub.f32 %v591, %v4096
        %4098 = vmatprep.subr.mxu0 %v4097
        %v4099 = vand.u32 %v590, 4294901760
        %v4100 = vsub.f32 %v590, %v4099
        %4101 = vmatpush2.msra.mxu0 %v4100
        %v4102 = vand.u32 %v267, 4294901760
        %v4103 = vsub.f32 %v267, %v4102
        %4104 = vmatprep.mubr.f32.mxu0 %v4103
        %v4105 = vand.u32 %v266, 4294901760
        %v4106 = vsub.f32 %v266, %v4105
        %4107 = vmatmul.mubr.f32.gmra.mxu0 %v4106
        %v4108 = vpop.f32.mrf.mxu0
        %v4109 = vadd.f32 %v3906, %v4108
        %v4110 = vpop.f32.mrf.mxu0
        %v4111 = vadd.f32 %v3908, %v4110
        %4112 = vdwg.mxu0
        %v4113 = vand.u32 %v587, 4294901760
        %4114 = vmatprep.subr.mxu0 %v4113
        %v4115 = vand.u32 %v586, 4294901760
        %4116 = vmatpush1.msra.mxu0 %v4115
        %v4117 = vand.u32 %v583, 4294901760
        %4118 = vmatprep.subr.mxu0 %v4117
        %v4119 = vand.u32 %v582, 4294901760
        %4120 = vmatpush1.msra.mxu0 %v4119
        %v4121 = vand.u32 %v579, 4294901760
        %4122 = vmatprep.subr.mxu0 %v4121
        %v4123 = vand.u32 %v578, 4294901760
        %4124 = vmatpush1.msra.mxu0 %v4123
        %v4125 = vand.u32 %v575, 4294901760
        %4126 = vmatprep.subr.mxu0 %v4125
        %v4127 = vand.u32 %v574, 4294901760
        %4128 = vmatpush1.msra.mxu0 %v4127
        %v4129 = vand.u32 %v571, 4294901760
        %4130 = vmatprep.subr.mxu0 %v4129
        %v4131 = vand.u32 %v570, 4294901760
        %4132 = vmatpush1.msra.mxu0 %v4131
        %v4133 = vand.u32 %v567, 4294901760
        %4134 = vmatprep.subr.mxu0 %v4133
        %v4135 = vand.u32 %v566, 4294901760
        %4136 = vmatpush1.msra.mxu0 %v4135
        %v4137 = vand.u32 %v563, 4294901760
        %4138 = vmatprep.subr.mxu0 %v4137
        %v4139 = vand.u32 %v562, 4294901760
        %4140 = vmatpush1.msra.mxu0 %v4139
        %v4141 = vand.u32 %v559, 4294901760
        %4142 = vmatprep.subr.mxu0 %v4141
        %v4143 = vand.u32 %v558, 4294901760
        %4144 = vmatpush1.msra.mxu0 %v4143
        %v4145 = vand.u32 %v555, 4294901760
        %4146 = vmatprep.subr.mxu0 %v4145
        %v4147 = vand.u32 %v554, 4294901760
        %4148 = vmatpush1.msra.mxu0 %v4147
        %v4149 = vand.u32 %v551, 4294901760
        %4150 = vmatprep.subr.mxu0 %v4149
        %v4151 = vand.u32 %v550, 4294901760
        %4152 = vmatpush1.msra.mxu0 %v4151
        %v4153 = vand.u32 %v547, 4294901760
        %4154 = vmatprep.subr.mxu0 %v4153
        %v4155 = vand.u32 %v546, 4294901760
        %4156 = vmatpush1.msra.mxu0 %v4155
        %v4157 = vand.u32 %v543, 4294901760
        %4158 = vmatprep.subr.mxu0 %v4157
        %v4159 = vand.u32 %v542, 4294901760
        %4160 = vmatpush1.msra.mxu0 %v4159
        %v4161 = vand.u32 %v539, 4294901760
        %4162 = vmatprep.subr.mxu0 %v4161
        %v4163 = vand.u32 %v538, 4294901760
        %4164 = vmatpush1.msra.mxu0 %v4163
        %v4165 = vand.u32 %v535, 4294901760
        %4166 = vmatprep.subr.mxu0 %v4165
        %v4167 = vand.u32 %v534, 4294901760
        %4168 = vmatpush1.msra.mxu0 %v4167
        %v4169 = vand.u32 %v531, 4294901760
        %4170 = vmatprep.subr.mxu0 %v4169
        %v4171 = vand.u32 %v530, 4294901760
        %4172 = vmatpush1.msra.mxu0 %v4171
        %v4173 = vand.u32 %v527, 4294901760
        %4174 = vmatprep.subr.mxu0 %v4173
        %v4175 = vand.u32 %v526, 4294901760
        %4176 = vmatpush1.msra.mxu0 %v4175
        %v4177 = vand.u32 %v651, 4294901760
        %4178 = vmatprep.subr.mxu0 %v4177
        %v4179 = vand.u32 %v650, 4294901760
        %4180 = vmatpush2.msra.mxu0 %v4179
        %v4181 = vand.u32 %v647, 4294901760
        %4182 = vmatprep.subr.mxu0 %v4181
        %v4183 = vand.u32 %v646, 4294901760
        %4184 = vmatpush2.msra.mxu0 %v4183
        %v4185 = vand.u32 %v643, 4294901760
        %4186 = vmatprep.subr.mxu0 %v4185
        %v4187 = vand.u32 %v642, 4294901760
        %4188 = vmatpush2.msra.mxu0 %v4187
        %v4189 = vand.u32 %v639, 4294901760
        %4190 = vmatprep.subr.mxu0 %v4189
        %v4191 = vand.u32 %v638, 4294901760
        %4192 = vmatpush2.msra.mxu0 %v4191
        %v4193 = vand.u32 %v635, 4294901760
        %4194 = vmatprep.subr.mxu0 %v4193
        %v4195 = vand.u32 %v634, 4294901760
        %4196 = vmatpush2.msra.mxu0 %v4195
        %v4197 = vand.u32 %v631, 4294901760
        %4198 = vmatprep.subr.mxu0 %v4197
        %v4199 = vand.u32 %v630, 4294901760
        %4200 = vmatpush2.msra.mxu0 %v4199
        %v4201 = vand.u32 %v627, 4294901760
        %4202 = vmatprep.subr.mxu0 %v4201
        %v4203 = vand.u32 %v626, 4294901760
        %4204 = vmatpush2.msra.mxu0 %v4203
        %v4205 = vand.u32 %v623, 4294901760
        %4206 = vmatprep.subr.mxu0 %v4205
        %v4207 = vand.u32 %v622, 4294901760
        %4208 = vmatpush2.msra.mxu0 %v4207
        %v4209 = vand.u32 %v619, 4294901760
        %4210 = vmatprep.subr.mxu0 %v4209
        %v4211 = vand.u32 %v618, 4294901760
        %4212 = vmatpush2.msra.mxu0 %v4211
        %v4213 = vand.u32 %v615, 4294901760
        %4214 = vmatprep.subr.mxu0 %v4213
        %v4215 = vand.u32 %v614, 4294901760
        %4216 = vmatpush2.msra.mxu0 %v4215
        %v4217 = vand.u32 %v611, 4294901760
        %4218 = vmatprep.subr.mxu0 %v4217
        %v4219 = vand.u32 %v610, 4294901760
        %4220 = vmatpush2.msra.mxu0 %v4219
        %v4221 = vand.u32 %v607, 4294901760
        %4222 = vmatprep.subr.mxu0 %v4221
        %v4223 = vand.u32 %v606, 4294901760
        %4224 = vmatpush2.msra.mxu0 %v4223
        %v4225 = vand.u32 %v603, 4294901760
        %4226 = vmatprep.subr.mxu0 %v4225
        %v4227 = vand.u32 %v602, 4294901760
        %4228 = vmatpush2.msra.mxu0 %v4227
        %v4229 = vand.u32 %v599, 4294901760
        %4230 = vmatprep.subr.mxu0 %v4229
        %v4231 = vand.u32 %v598, 4294901760
        %4232 = vmatpush2.msra.mxu0 %v4231
        %v4233 = vand.u32 %v595, 4294901760
        %4234 = vmatprep.subr.mxu0 %v4233
        %v4235 = vand.u32 %v594, 4294901760
        %4236 = vmatpush2.msra.mxu0 %v4235
        %v4237 = vand.u32 %v591, 4294901760
        %4238 = vmatprep.subr.mxu0 %v4237
        %v4239 = vand.u32 %v590, 4294901760
        %4240 = vmatpush2.msra.mxu0 %v4239
        %v4241 = vand.u32 %v267, 4294901760
        %v4242 = vsub.f32 %v267, %v4241
        %v4243 = vand.u32 %v4242, 4294901760
        %4244 = vmatprep.mubr.f32.mxu0 %v4243
        %v4245 = vand.u32 %v266, 4294901760
        %v4246 = vsub.f32 %v266, %v4245
        %v4247 = vand.u32 %v4246, 4294901760
        %4248 = vmatmul.mubr.f32.gmra.mxu0 %v4247
        %v4249 = vpop.f32.mrf.mxu0
        %v4250 = vadd.f32 %v4109, %v4249
        %v4251 = vpop.f32.mrf.mxu0
        %v4252 = vadd.f32 %v4111, %v4251
        %4253 = vdwg.mxu0
        %v4254 = vand.u32 %v587, 4294901760
        %v4255 = vsub.f32 %v587, %v4254
        %v4256 = vand.u32 %v4255, 4294901760
        %4257 = vmatprep.subr.mxu0 %v4256
        %v4258 = vand.u32 %v586, 4294901760
        %v4259 = vsub.f32 %v586, %v4258
        %v4260 = vand.u32 %v4259, 4294901760
        %4261 = vmatpush1.msra.mxu0 %v4260
        %v4262 = vand.u32 %v583, 4294901760
        %v4263 = vsub.f32 %v583, %v4262
        %v4264 = vand.u32 %v4263, 4294901760
        %4265 = vmatprep.subr.mxu0 %v4264
        %v4266 = vand.u32 %v582, 4294901760
        %v4267 = vsub.f32 %v582, %v4266
        %v4268 = vand.u32 %v4267, 4294901760
        %4269 = vmatpush1.msra.mxu0 %v4268
        %v4270 = vand.u32 %v579, 4294901760
        %v4271 = vsub.f32 %v579, %v4270
        %v4272 = vand.u32 %v4271, 4294901760
        %4273 = vmatprep.subr.mxu0 %v4272
        %v4274 = vand.u32 %v578, 4294901760
        %v4275 = vsub.f32 %v578, %v4274
        %v4276 = vand.u32 %v4275, 4294901760
        %4277 = vmatpush1.msra.mxu0 %v4276
        %v4278 = vand.u32 %v575, 4294901760
        %v4279 = vsub.f32 %v575, %v4278
        %v4280 = vand.u32 %v4279, 4294901760
        %4281 = vmatprep.subr.mxu0 %v4280
        %v4282 = vand.u32 %v574, 4294901760
        %v4283 = vsub.f32 %v574, %v4282
        %v4284 = vand.u32 %v4283, 4294901760
        %4285 = vmatpush1.msra.mxu0 %v4284
        %v4286 = vand.u32 %v571, 4294901760
        %v4287 = vsub.f32 %v571, %v4286
        %v4288 = vand.u32 %v4287, 4294901760
        %4289 = vmatprep.subr.mxu0 %v4288
        %v4290 = vand.u32 %v570, 4294901760
        %v4291 = vsub.f32 %v570, %v4290
        %v4292 = vand.u32 %v4291, 4294901760
        %4293 = vmatpush1.msra.mxu0 %v4292
        %v4294 = vand.u32 %v567, 4294901760
        %v4295 = vsub.f32 %v567, %v4294
        %v4296 = vand.u32 %v4295, 4294901760
        %4297 = vmatprep.subr.mxu0 %v4296
        %v4298 = vand.u32 %v566, 4294901760
        %v4299 = vsub.f32 %v566, %v4298
        %v4300 = vand.u32 %v4299, 4294901760
        %4301 = vmatpush1.msra.mxu0 %v4300
        %v4302 = vand.u32 %v563, 4294901760
        %v4303 = vsub.f32 %v563, %v4302
        %v4304 = vand.u32 %v4303, 4294901760
        %4305 = vmatprep.subr.mxu0 %v4304
        %v4306 = vand.u32 %v562, 4294901760
        %v4307 = vsub.f32 %v562, %v4306
        %v4308 = vand.u32 %v4307, 4294901760
        %4309 = vmatpush1.msra.mxu0 %v4308
        %v4310 = vand.u32 %v559, 4294901760
        %v4311 = vsub.f32 %v559, %v4310
        %v4312 = vand.u32 %v4311, 4294901760
        %4313 = vmatprep.subr.mxu0 %v4312
        %v4314 = vand.u32 %v558, 4294901760
        %v4315 = vsub.f32 %v558, %v4314
        %v4316 = vand.u32 %v4315, 4294901760
        %4317 = vmatpush1.msra.mxu0 %v4316
        %v4318 = vand.u32 %v555, 4294901760
        %v4319 = vsub.f32 %v555, %v4318
        %v4320 = vand.u32 %v4319, 4294901760
        %4321 = vmatprep.subr.mxu0 %v4320
        %v4322 = vand.u32 %v554, 4294901760
        %v4323 = vsub.f32 %v554, %v4322
        %v4324 = vand.u32 %v4323, 4294901760
        %4325 = vmatpush1.msra.mxu0 %v4324
        %v4326 = vand.u32 %v551, 4294901760
        %v4327 = vsub.f32 %v551, %v4326
        %v4328 = vand.u32 %v4327, 4294901760
        %4329 = vmatprep.subr.mxu0 %v4328
        %v4330 = vand.u32 %v550, 4294901760
        %v4331 = vsub.f32 %v550, %v4330
        %v4332 = vand.u32 %v4331, 4294901760
        %4333 = vmatpush1.msra.mxu0 %v4332
        %v4334 = vand.u32 %v547, 4294901760
        %v4335 = vsub.f32 %v547, %v4334
        %v4336 = vand.u32 %v4335, 4294901760
        %4337 = vmatprep.subr.mxu0 %v4336
        %v4338 = vand.u32 %v546, 4294901760
        %v4339 = vsub.f32 %v546, %v4338
        %v4340 = vand.u32 %v4339, 4294901760
        %4341 = vmatpush1.msra.mxu0 %v4340
        %v4342 = vand.u32 %v543, 4294901760
        %v4343 = vsub.f32 %v543, %v4342
        %v4344 = vand.u32 %v4343, 4294901760
        %4345 = vmatprep.subr.mxu0 %v4344
        %v4346 = vand.u32 %v542, 4294901760
        %v4347 = vsub.f32 %v542, %v4346
        %v4348 = vand.u32 %v4347, 4294901760
        %4349 = vmatpush1.msra.mxu0 %v4348
        %v4350 = vand.u32 %v539, 4294901760
        %v4351 = vsub.f32 %v539, %v4350
        %v4352 = vand.u32 %v4351, 4294901760
        %4353 = vmatprep.subr.mxu0 %v4352
        %v4354 = vand.u32 %v538, 4294901760
        %v4355 = vsub.f32 %v538, %v4354
        %v4356 = vand.u32 %v4355, 4294901760
        %4357 = vmatpush1.msra.mxu0 %v4356
        %v4358 = vand.u32 %v535, 4294901760
        %v4359 = vsub.f32 %v535, %v4358
        %v4360 = vand.u32 %v4359, 4294901760
        %4361 = vmatprep.subr.mxu0 %v4360
        %v4362 = vand.u32 %v534, 4294901760
        %v4363 = vsub.f32 %v534, %v4362
        %v4364 = vand.u32 %v4363, 4294901760
        %4365 = vmatpush1.msra.mxu0 %v4364
        %v4366 = vand.u32 %v531, 4294901760
        %v4367 = vsub.f32 %v531, %v4366
        %v4368 = vand.u32 %v4367, 4294901760
        %4369 = vmatprep.subr.mxu0 %v4368
        %v4370 = vand.u32 %v530, 4294901760
        %v4371 = vsub.f32 %v530, %v4370
        %v4372 = vand.u32 %v4371, 4294901760
        %4373 = vmatpush1.msra.mxu0 %v4372
        %v4374 = vand.u32 %v527, 4294901760
        %v4375 = vsub.f32 %v527, %v4374
        %v4376 = vand.u32 %v4375, 4294901760
        %4377 = vmatprep.subr.mxu0 %v4376
        %v4378 = vand.u32 %v526, 4294901760
        %v4379 = vsub.f32 %v526, %v4378
        %v4380 = vand.u32 %v4379, 4294901760
        %4381 = vmatpush1.msra.mxu0 %v4380
        %v4382 = vand.u32 %v651, 4294901760
        %v4383 = vsub.f32 %v651, %v4382
        %v4384 = vand.u32 %v4383, 4294901760
        %4385 = vmatprep.subr.mxu0 %v4384
        %v4386 = vand.u32 %v650, 4294901760
        %v4387 = vsub.f32 %v650, %v4386
        %v4388 = vand.u32 %v4387, 4294901760
        %4389 = vmatpush2.msra.mxu0 %v4388
        %v4390 = vand.u32 %v647, 4294901760
        %v4391 = vsub.f32 %v647, %v4390
        %v4392 = vand.u32 %v4391, 4294901760
        %4393 = vmatprep.subr.mxu0 %v4392
        %v4394 = vand.u32 %v646, 4294901760
        %v4395 = vsub.f32 %v646, %v4394
        %v4396 = vand.u32 %v4395, 4294901760
        %4397 = vmatpush2.msra.mxu0 %v4396
        %v4398 = vand.u32 %v643, 4294901760
        %v4399 = vsub.f32 %v643, %v4398
        %v4400 = vand.u32 %v4399, 4294901760
        %4401 = vmatprep.subr.mxu0 %v4400
        %v4402 = vand.u32 %v642, 4294901760
        %v4403 = vsub.f32 %v642, %v4402
        %v4404 = vand.u32 %v4403, 4294901760
        %4405 = vmatpush2.msra.mxu0 %v4404
        %v4406 = vand.u32 %v639, 4294901760
        %v4407 = vsub.f32 %v639, %v4406
        %v4408 = vand.u32 %v4407, 4294901760
        %4409 = vmatprep.subr.mxu0 %v4408
        %v4410 = vand.u32 %v638, 4294901760
        %v4411 = vsub.f32 %v638, %v4410
        %v4412 = vand.u32 %v4411, 4294901760
        %4413 = vmatpush2.msra.mxu0 %v4412
        %v4414 = vand.u32 %v635, 4294901760
        %v4415 = vsub.f32 %v635, %v4414
        %v4416 = vand.u32 %v4415, 4294901760
        %4417 = vmatprep.subr.mxu0 %v4416
        %v4418 = vand.u32 %v634, 4294901760
        %v4419 = vsub.f32 %v634, %v4418
        %v4420 = vand.u32 %v4419, 4294901760
        %4421 = vmatpush2.msra.mxu0 %v4420
        %v4422 = vand.u32 %v631, 4294901760
        %v4423 = vsub.f32 %v631, %v4422
        %v4424 = vand.u32 %v4423, 4294901760
        %4425 = vmatprep.subr.mxu0 %v4424
        %v4426 = vand.u32 %v630, 4294901760
        %v4427 = vsub.f32 %v630, %v4426
        %v4428 = vand.u32 %v4427, 4294901760
        %4429 = vmatpush2.msra.mxu0 %v4428
        %v4430 = vand.u32 %v627, 4294901760
        %v4431 = vsub.f32 %v627, %v4430
        %v4432 = vand.u32 %v4431, 4294901760
        %4433 = vmatprep.subr.mxu0 %v4432
        %v4434 = vand.u32 %v626, 4294901760
        %v4435 = vsub.f32 %v626, %v4434
        %v4436 = vand.u32 %v4435, 4294901760
        %4437 = vmatpush2.msra.mxu0 %v4436
        %v4438 = vand.u32 %v623, 4294901760
        %v4439 = vsub.f32 %v623, %v4438
        %v4440 = vand.u32 %v4439, 4294901760
        %4441 = vmatprep.subr.mxu0 %v4440
        %v4442 = vand.u32 %v622, 4294901760
        %v4443 = vsub.f32 %v622, %v4442
        %v4444 = vand.u32 %v4443, 4294901760
        %4445 = vmatpush2.msra.mxu0 %v4444
        %v4446 = vand.u32 %v619, 4294901760
        %v4447 = vsub.f32 %v619, %v4446
        %v4448 = vand.u32 %v4447, 4294901760
        %4449 = vmatprep.subr.mxu0 %v4448
        %v4450 = vand.u32 %v618, 4294901760
        %v4451 = vsub.f32 %v618, %v4450
        %v4452 = vand.u32 %v4451, 4294901760
        %4453 = vmatpush2.msra.mxu0 %v4452
        %v4454 = vand.u32 %v615, 4294901760
        %v4455 = vsub.f32 %v615, %v4454
        %v4456 = vand.u32 %v4455, 4294901760
        %4457 = vmatprep.subr.mxu0 %v4456
        %v4458 = vand.u32 %v614, 4294901760
        %v4459 = vsub.f32 %v614, %v4458
        %v4460 = vand.u32 %v4459, 4294901760
        %4461 = vmatpush2.msra.mxu0 %v4460
        %v4462 = vand.u32 %v611, 4294901760
        %v4463 = vsub.f32 %v611, %v4462
        %v4464 = vand.u32 %v4463, 4294901760
        %4465 = vmatprep.subr.mxu0 %v4464
        %v4466 = vand.u32 %v610, 4294901760
        %v4467 = vsub.f32 %v610, %v4466
        %v4468 = vand.u32 %v4467, 4294901760
        %4469 = vmatpush2.msra.mxu0 %v4468
        %v4470 = vand.u32 %v607, 4294901760
        %v4471 = vsub.f32 %v607, %v4470
        %v4472 = vand.u32 %v4471, 4294901760
        %4473 = vmatprep.subr.mxu0 %v4472
        %v4474 = vand.u32 %v606, 4294901760
        %v4475 = vsub.f32 %v606, %v4474
        %v4476 = vand.u32 %v4475, 4294901760
        %4477 = vmatpush2.msra.mxu0 %v4476
        %v4478 = vand.u32 %v603, 4294901760
        %v4479 = vsub.f32 %v603, %v4478
        %v4480 = vand.u32 %v4479, 4294901760
        %4481 = vmatprep.subr.mxu0 %v4480
        %v4482 = vand.u32 %v602, 4294901760
        %v4483 = vsub.f32 %v602, %v4482
        %v4484 = vand.u32 %v4483, 4294901760
        %4485 = vmatpush2.msra.mxu0 %v4484
        %v4486 = vand.u32 %v599, 4294901760
        %v4487 = vsub.f32 %v599, %v4486
        %v4488 = vand.u32 %v4487, 4294901760
        %4489 = vmatprep.subr.mxu0 %v4488
        %v4490 = vand.u32 %v598, 4294901760
        %v4491 = vsub.f32 %v598, %v4490
        %v4492 = vand.u32 %v4491, 4294901760
        %4493 = vmatpush2.msra.mxu0 %v4492
        %v4494 = vand.u32 %v595, 4294901760
        %v4495 = vsub.f32 %v595, %v4494
        %v4496 = vand.u32 %v4495, 4294901760
        %4497 = vmatprep.subr.mxu0 %v4496
        %v4498 = vand.u32 %v594, 4294901760
        %v4499 = vsub.f32 %v594, %v4498
        %v4500 = vand.u32 %v4499, 4294901760
        %4501 = vmatpush2.msra.mxu0 %v4500
        %v4502 = vand.u32 %v591, 4294901760
        %v4503 = vsub.f32 %v591, %v4502
        %v4504 = vand.u32 %v4503, 4294901760
        %4505 = vmatprep.subr.mxu0 %v4504
        %v4506 = vand.u32 %v590, 4294901760
        %v4507 = vsub.f32 %v590, %v4506
        %v4508 = vand.u32 %v4507, 4294901760
        %4509 = vmatpush2.msra.mxu0 %v4508
        %v4510 = vand.u32 %v267, 4294901760
        %4511 = vmatprep.mubr.f32.mxu0 %v4510
        %v4512 = vand.u32 %v266, 4294901760
        %4513 = vmatmul.mubr.f32.gmra.mxu0 %v4512
        %v4514 = vpop.f32.mrf.mxu0
        %v4515 = vadd.f32 %v4250, %v4514
        %v4516 = vpop.f32.mrf.mxu0
        %v4517 = vadd.f32 %v4252, %v4516
        %4518 = vdwg.mxu0
        %v4519 = vand.u32 %v587, 4294901760
        %4520 = vmatprep.subr.mxu0 %v4519
        %v4521 = vand.u32 %v586, 4294901760
        %4522 = vmatpush1.msra.mxu0 %v4521
        %v4523 = vand.u32 %v583, 4294901760
        %4524 = vmatprep.subr.mxu0 %v4523
        %v4525 = vand.u32 %v582, 4294901760
        %4526 = vmatpush1.msra.mxu0 %v4525
        %v4527 = vand.u32 %v579, 4294901760
        %4528 = vmatprep.subr.mxu0 %v4527
        %v4529 = vand.u32 %v578, 4294901760
        %4530 = vmatpush1.msra.mxu0 %v4529
        %v4531 = vand.u32 %v575, 4294901760
        %4532 = vmatprep.subr.mxu0 %v4531
        %v4533 = vand.u32 %v574, 4294901760
        %4534 = vmatpush1.msra.mxu0 %v4533
        %v4535 = vand.u32 %v571, 4294901760
        %4536 = vmatprep.subr.mxu0 %v4535
        %v4537 = vand.u32 %v570, 4294901760
        %4538 = vmatpush1.msra.mxu0 %v4537
        %v4539 = vand.u32 %v567, 4294901760
        %4540 = vmatprep.subr.mxu0 %v4539
        %v4541 = vand.u32 %v566, 4294901760
        %4542 = vmatpush1.msra.mxu0 %v4541
        %v4543 = vand.u32 %v563, 4294901760
        %4544 = vmatprep.subr.mxu0 %v4543
        %v4545 = vand.u32 %v562, 4294901760
        %4546 = vmatpush1.msra.mxu0 %v4545
        %v4547 = vand.u32 %v559, 4294901760
        %4548 = vmatprep.subr.mxu0 %v4547
        %v4549 = vand.u32 %v558, 4294901760
        %4550 = vmatpush1.msra.mxu0 %v4549
        %v4551 = vand.u32 %v555, 4294901760
        %4552 = vmatprep.subr.mxu0 %v4551
        %v4553 = vand.u32 %v554, 4294901760
        %4554 = vmatpush1.msra.mxu0 %v4553
        %v4555 = vand.u32 %v551, 4294901760
        %4556 = vmatprep.subr.mxu0 %v4555
        %v4557 = vand.u32 %v550, 4294901760
        %4558 = vmatpush1.msra.mxu0 %v4557
        %v4559 = vand.u32 %v547, 4294901760
        %4560 = vmatprep.subr.mxu0 %v4559
        %v4561 = vand.u32 %v546, 4294901760
        %4562 = vmatpush1.msra.mxu0 %v4561
        %v4563 = vand.u32 %v543, 4294901760
        %4564 = vmatprep.subr.mxu0 %v4563
        %v4565 = vand.u32 %v542, 4294901760
        %4566 = vmatpush1.msra.mxu0 %v4565
        %v4567 = vand.u32 %v539, 4294901760
        %4568 = vmatprep.subr.mxu0 %v4567
        %v4569 = vand.u32 %v538, 4294901760
        %4570 = vmatpush1.msra.mxu0 %v4569
        %v4571 = vand.u32 %v535, 4294901760
        %4572 = vmatprep.subr.mxu0 %v4571
        %v4573 = vand.u32 %v534, 4294901760
        %4574 = vmatpush1.msra.mxu0 %v4573
        %v4575 = vand.u32 %v531, 4294901760
        %4576 = vmatprep.subr.mxu0 %v4575
        %v4577 = vand.u32 %v530, 4294901760
        %4578 = vmatpush1.msra.mxu0 %v4577
        %v4579 = vand.u32 %v527, 4294901760
        %4580 = vmatprep.subr.mxu0 %v4579
        %v4581 = vand.u32 %v526, 4294901760
        %4582 = vmatpush1.msra.mxu0 %v4581
        %v4583 = vand.u32 %v651, 4294901760
        %4584 = vmatprep.subr.mxu0 %v4583
        %v4585 = vand.u32 %v650, 4294901760
        %4586 = vmatpush2.msra.mxu0 %v4585
        %v4587 = vand.u32 %v647, 4294901760
        %4588 = vmatprep.subr.mxu0 %v4587
        %v4589 = vand.u32 %v646, 4294901760
        %4590 = vmatpush2.msra.mxu0 %v4589
        %v4591 = vand.u32 %v643, 4294901760
        %4592 = vmatprep.subr.mxu0 %v4591
        %v4593 = vand.u32 %v642, 4294901760
        %4594 = vmatpush2.msra.mxu0 %v4593
        %v4595 = vand.u32 %v639, 4294901760
        %4596 = vmatprep.subr.mxu0 %v4595
        %v4597 = vand.u32 %v638, 4294901760
        %4598 = vmatpush2.msra.mxu0 %v4597
        %v4599 = vand.u32 %v635, 4294901760
        %4600 = vmatprep.subr.mxu0 %v4599
        %v4601 = vand.u32 %v634, 4294901760
        %4602 = vmatpush2.msra.mxu0 %v4601
        %v4603 = vand.u32 %v631, 4294901760
        %4604 = vmatprep.subr.mxu0 %v4603
        %v4605 = vand.u32 %v630, 4294901760
        %4606 = vmatpush2.msra.mxu0 %v4605
        %v4607 = vand.u32 %v627, 4294901760
        %4608 = vmatprep.subr.mxu0 %v4607
        %v4609 = vand.u32 %v626, 4294901760
        %4610 = vmatpush2.msra.mxu0 %v4609
        %v4611 = vand.u32 %v623, 4294901760
        %4612 = vmatprep.subr.mxu0 %v4611
        %v4613 = vand.u32 %v622, 4294901760
        %4614 = vmatpush2.msra.mxu0 %v4613
        %v4615 = vand.u32 %v619, 4294901760
        %4616 = vmatprep.subr.mxu0 %v4615
        %v4617 = vand.u32 %v618, 4294901760
        %4618 = vmatpush2.msra.mxu0 %v4617
        %v4619 = vand.u32 %v615, 4294901760
        %4620 = vmatprep.subr.mxu0 %v4619
        %v4621 = vand.u32 %v614, 4294901760
        %4622 = vmatpush2.msra.mxu0 %v4621
        %v4623 = vand.u32 %v611, 4294901760
        %4624 = vmatprep.subr.mxu0 %v4623
        %v4625 = vand.u32 %v610, 4294901760
        %4626 = vmatpush2.msra.mxu0 %v4625
        %v4627 = vand.u32 %v607, 4294901760
        %4628 = vmatprep.subr.mxu0 %v4627
        %v4629 = vand.u32 %v606, 4294901760
        %4630 = vmatpush2.msra.mxu0 %v4629
        %v4631 = vand.u32 %v603, 4294901760
        %4632 = vmatprep.subr.mxu0 %v4631
        %v4633 = vand.u32 %v602, 4294901760
        %4634 = vmatpush2.msra.mxu0 %v4633
        %v4635 = vand.u32 %v599, 4294901760
        %4636 = vmatprep.subr.mxu0 %v4635
        %v4637 = vand.u32 %v598, 4294901760
        %4638 = vmatpush2.msra.mxu0 %v4637
        %v4639 = vand.u32 %v595, 4294901760
        %4640 = vmatprep.subr.mxu0 %v4639
        %v4641 = vand.u32 %v594, 4294901760
        %4642 = vmatpush2.msra.mxu0 %v4641
        %v4643 = vand.u32 %v591, 4294901760
        %4644 = vmatprep.subr.mxu0 %v4643
        %v4645 = vand.u32 %v590, 4294901760
        %4646 = vmatpush2.msra.mxu0 %v4645
        %v4647 = vand.u32 %v267, 4294901760
        %4648 = vmatprep.mubr.f32.mxu0 %v4647
        %v4649 = vand.u32 %v266, 4294901760
        %4650 = vmatmul.mubr.f32.gmra.mxu0 %v4649
        %v4651 = vpop.f32.mrf.mxu0
        %v4652 = vadd.f32 %v4515, %v4651
        %v4653 = vpop.f32.mrf.mxu0
        %v4654 = vadd.f32 %v4517, %v4653
        %4655 = vdwg.mxu0
        %v4656 = vand.u32 %v715, 4294901760
        %4657 = vmatprep.subr.mxu0 %v4656
        %v4658 = vand.u32 %v714, 4294901760
        %4659 = vmatpush1.msra.mxu0 %v4658
        %v4660 = vand.u32 %v711, 4294901760
        %4661 = vmatprep.subr.mxu0 %v4660
        %v4662 = vand.u32 %v710, 4294901760
        %4663 = vmatpush1.msra.mxu0 %v4662
        %v4664 = vand.u32 %v707, 4294901760
        %4665 = vmatprep.subr.mxu0 %v4664
        %v4666 = vand.u32 %v706, 4294901760
        %4667 = vmatpush1.msra.mxu0 %v4666
        %v4668 = vand.u32 %v703, 4294901760
        %4669 = vmatprep.subr.mxu0 %v4668
        %v4670 = vand.u32 %v702, 4294901760
        %4671 = vmatpush1.msra.mxu0 %v4670
        %v4672 = vand.u32 %v699, 4294901760
        %4673 = vmatprep.subr.mxu0 %v4672
        %v4674 = vand.u32 %v698, 4294901760
        %4675 = vmatpush1.msra.mxu0 %v4674
        %v4676 = vand.u32 %v695, 4294901760
        %4677 = vmatprep.subr.mxu0 %v4676
        %v4678 = vand.u32 %v694, 4294901760
        %4679 = vmatpush1.msra.mxu0 %v4678
        %v4680 = vand.u32 %v691, 4294901760
        %4681 = vmatprep.subr.mxu0 %v4680
        %v4682 = vand.u32 %v690, 4294901760
        %4683 = vmatpush1.msra.mxu0 %v4682
        %v4684 = vand.u32 %v687, 4294901760
        %4685 = vmatprep.subr.mxu0 %v4684
        %v4686 = vand.u32 %v686, 4294901760
        %4687 = vmatpush1.msra.mxu0 %v4686
        %v4688 = vand.u32 %v683, 4294901760
        %4689 = vmatprep.subr.mxu0 %v4688
        %v4690 = vand.u32 %v682, 4294901760
        %4691 = vmatpush1.msra.mxu0 %v4690
        %v4692 = vand.u32 %v679, 4294901760
        %4693 = vmatprep.subr.mxu0 %v4692
        %v4694 = vand.u32 %v678, 4294901760
        %4695 = vmatpush1.msra.mxu0 %v4694
        %v4696 = vand.u32 %v675, 4294901760
        %4697 = vmatprep.subr.mxu0 %v4696
        %v4698 = vand.u32 %v674, 4294901760
        %4699 = vmatpush1.msra.mxu0 %v4698
        %v4700 = vand.u32 %v671, 4294901760
        %4701 = vmatprep.subr.mxu0 %v4700
        %v4702 = vand.u32 %v670, 4294901760
        %4703 = vmatpush1.msra.mxu0 %v4702
        %v4704 = vand.u32 %v667, 4294901760
        %4705 = vmatprep.subr.mxu0 %v4704
        %v4706 = vand.u32 %v666, 4294901760
        %4707 = vmatpush1.msra.mxu0 %v4706
        %v4708 = vand.u32 %v663, 4294901760
        %4709 = vmatprep.subr.mxu0 %v4708
        %v4710 = vand.u32 %v662, 4294901760
        %4711 = vmatpush1.msra.mxu0 %v4710
        %v4712 = vand.u32 %v659, 4294901760
        %4713 = vmatprep.subr.mxu0 %v4712
        %v4714 = vand.u32 %v658, 4294901760
        %4715 = vmatpush1.msra.mxu0 %v4714
        %v4716 = vand.u32 %v655, 4294901760
        %4717 = vmatprep.subr.mxu0 %v4716
        %v4718 = vand.u32 %v654, 4294901760
        %4719 = vmatpush1.msra.mxu0 %v4718
        %v4720 = vand.u32 %v779, 4294901760
        %4721 = vmatprep.subr.mxu0 %v4720
        %v4722 = vand.u32 %v778, 4294901760
        %4723 = vmatpush2.msra.mxu0 %v4722
        %v4724 = vand.u32 %v775, 4294901760
        %4725 = vmatprep.subr.mxu0 %v4724
        %v4726 = vand.u32 %v774, 4294901760
        %4727 = vmatpush2.msra.mxu0 %v4726
        %v4728 = vand.u32 %v771, 4294901760
        %4729 = vmatprep.subr.mxu0 %v4728
        %v4730 = vand.u32 %v770, 4294901760
        %4731 = vmatpush2.msra.mxu0 %v4730
        %v4732 = vand.u32 %v767, 4294901760
        %4733 = vmatprep.subr.mxu0 %v4732
        %v4734 = vand.u32 %v766, 4294901760
        %4735 = vmatpush2.msra.mxu0 %v4734
        %v4736 = vand.u32 %v763, 4294901760
        %4737 = vmatprep.subr.mxu0 %v4736
        %v4738 = vand.u32 %v762, 4294901760
        %4739 = vmatpush2.msra.mxu0 %v4738
        %v4740 = vand.u32 %v759, 4294901760
        %4741 = vmatprep.subr.mxu0 %v4740
        %v4742 = vand.u32 %v758, 4294901760
        %4743 = vmatpush2.msra.mxu0 %v4742
        %v4744 = vand.u32 %v755, 4294901760
        %4745 = vmatprep.subr.mxu0 %v4744
        %v4746 = vand.u32 %v754, 4294901760
        %4747 = vmatpush2.msra.mxu0 %v4746
        %v4748 = vand.u32 %v751, 4294901760
        %4749 = vmatprep.subr.mxu0 %v4748
        %v4750 = vand.u32 %v750, 4294901760
        %4751 = vmatpush2.msra.mxu0 %v4750
        %v4752 = vand.u32 %v747, 4294901760
        %4753 = vmatprep.subr.mxu0 %v4752
        %v4754 = vand.u32 %v746, 4294901760
        %4755 = vmatpush2.msra.mxu0 %v4754
        %v4756 = vand.u32 %v743, 4294901760
        %4757 = vmatprep.subr.mxu0 %v4756
        %v4758 = vand.u32 %v742, 4294901760
        %4759 = vmatpush2.msra.mxu0 %v4758
        %v4760 = vand.u32 %v739, 4294901760
        %4761 = vmatprep.subr.mxu0 %v4760
        %v4762 = vand.u32 %v738, 4294901760
        %4763 = vmatpush2.msra.mxu0 %v4762
        %v4764 = vand.u32 %v735, 4294901760
        %4765 = vmatprep.subr.mxu0 %v4764
        %v4766 = vand.u32 %v734, 4294901760
        %4767 = vmatpush2.msra.mxu0 %v4766
        %v4768 = vand.u32 %v731, 4294901760
        %4769 = vmatprep.subr.mxu0 %v4768
        %v4770 = vand.u32 %v730, 4294901760
        %4771 = vmatpush2.msra.mxu0 %v4770
        %v4772 = vand.u32 %v727, 4294901760
        %4773 = vmatprep.subr.mxu0 %v4772
        %v4774 = vand.u32 %v726, 4294901760
        %4775 = vmatpush2.msra.mxu0 %v4774
        %v4776 = vand.u32 %v723, 4294901760
        %4777 = vmatprep.subr.mxu0 %v4776
        %v4778 = vand.u32 %v722, 4294901760
        %4779 = vmatpush2.msra.mxu0 %v4778
        %v4780 = vand.u32 %v719, 4294901760
        %4781 = vmatprep.subr.mxu0 %v4780
        %v4782 = vand.u32 %v718, 4294901760
        %4783 = vmatpush2.msra.mxu0 %v4782
        %v4784 = vand.u32 %v269, 4294901760
        %v4785 = vsub.f32 %v269, %v4784
        %v4786 = vand.u32 %v4785, 4294901760
        %v4787 = vsub.f32 %v4785, %v4786
        %v4788 = vand.u32 %v4787, 4294901760
        %4789 = vmatprep.mubr.f32.mxu0 %v4788
        %v4790 = vand.u32 %v268, 4294901760
        %v4791 = vsub.f32 %v268, %v4790
        %v4792 = vand.u32 %v4791, 4294901760
        %v4793 = vsub.f32 %v4791, %v4792
        %v4794 = vand.u32 %v4793, 4294901760
        %4795 = vmatmul.mubr.f32.gmra.mxu0 %v4794
        %v4796 = vpop.f32.mrf.mxu0
        %v4797 = vadd.f32 %v4652, %v4796
        %v4798 = vpop.f32.mrf.mxu0
        %v4799 = vadd.f32 %v4654, %v4798
        %4800 = vdwg.mxu0
        %v4801 = vand.u32 %v715, 4294901760
        %v4802 = vsub.f32 %v715, %v4801
        %v4803 = vand.u32 %v4802, 4294901760
        %v4804 = vsub.f32 %v4802, %v4803
        %v4805 = vand.u32 %v4804, 4294901760
        %4806 = vmatprep.subr.mxu0 %v4805
        %v4807 = vand.u32 %v714, 4294901760
        %v4808 = vsub.f32 %v714, %v4807
        %v4809 = vand.u32 %v4808, 4294901760
        %v4810 = vsub.f32 %v4808, %v4809
        %v4811 = vand.u32 %v4810, 4294901760
        %4812 = vmatpush1.msra.mxu0 %v4811
        %v4813 = vand.u32 %v711, 4294901760
        %v4814 = vsub.f32 %v711, %v4813
        %v4815 = vand.u32 %v4814, 4294901760
        %v4816 = vsub.f32 %v4814, %v4815
        %v4817 = vand.u32 %v4816, 4294901760
        %4818 = vmatprep.subr.mxu0 %v4817
        %v4819 = vand.u32 %v710, 4294901760
        %v4820 = vsub.f32 %v710, %v4819
        %v4821 = vand.u32 %v4820, 4294901760
        %v4822 = vsub.f32 %v4820, %v4821
        %v4823 = vand.u32 %v4822, 4294901760
        %4824 = vmatpush1.msra.mxu0 %v4823
        %v4825 = vand.u32 %v707, 4294901760
        %v4826 = vsub.f32 %v707, %v4825
        %v4827 = vand.u32 %v4826, 4294901760
        %v4828 = vsub.f32 %v4826, %v4827
        %v4829 = vand.u32 %v4828, 4294901760
        %4830 = vmatprep.subr.mxu0 %v4829
        %v4831 = vand.u32 %v706, 4294901760
        %v4832 = vsub.f32 %v706, %v4831
        %v4833 = vand.u32 %v4832, 4294901760
        %v4834 = vsub.f32 %v4832, %v4833
        %v4835 = vand.u32 %v4834, 4294901760
        %4836 = vmatpush1.msra.mxu0 %v4835
        %v4837 = vand.u32 %v703, 4294901760
        %v4838 = vsub.f32 %v703, %v4837
        %v4839 = vand.u32 %v4838, 4294901760
        %v4840 = vsub.f32 %v4838, %v4839
        %v4841 = vand.u32 %v4840, 4294901760
        %4842 = vmatprep.subr.mxu0 %v4841
        %v4843 = vand.u32 %v702, 4294901760
        %v4844 = vsub.f32 %v702, %v4843
        %v4845 = vand.u32 %v4844, 4294901760
        %v4846 = vsub.f32 %v4844, %v4845
        %v4847 = vand.u32 %v4846, 4294901760
        %4848 = vmatpush1.msra.mxu0 %v4847
        %v4849 = vand.u32 %v699, 4294901760
        %v4850 = vsub.f32 %v699, %v4849
        %v4851 = vand.u32 %v4850, 4294901760
        %v4852 = vsub.f32 %v4850, %v4851
        %v4853 = vand.u32 %v4852, 4294901760
        %4854 = vmatprep.subr.mxu0 %v4853
        %v4855 = vand.u32 %v698, 4294901760
        %v4856 = vsub.f32 %v698, %v4855
        %v4857 = vand.u32 %v4856, 4294901760
        %v4858 = vsub.f32 %v4856, %v4857
        %v4859 = vand.u32 %v4858, 4294901760
        %4860 = vmatpush1.msra.mxu0 %v4859
        %v4861 = vand.u32 %v695, 4294901760
        %v4862 = vsub.f32 %v695, %v4861
        %v4863 = vand.u32 %v4862, 4294901760
        %v4864 = vsub.f32 %v4862, %v4863
        %v4865 = vand.u32 %v4864, 4294901760
        %4866 = vmatprep.subr.mxu0 %v4865
        %v4867 = vand.u32 %v694, 4294901760
        %v4868 = vsub.f32 %v694, %v4867
        %v4869 = vand.u32 %v4868, 4294901760
        %v4870 = vsub.f32 %v4868, %v4869
        %v4871 = vand.u32 %v4870, 4294901760
        %4872 = vmatpush1.msra.mxu0 %v4871
        %v4873 = vand.u32 %v691, 4294901760
        %v4874 = vsub.f32 %v691, %v4873
        %v4875 = vand.u32 %v4874, 4294901760
        %v4876 = vsub.f32 %v4874, %v4875
        %v4877 = vand.u32 %v4876, 4294901760
        %4878 = vmatprep.subr.mxu0 %v4877
        %v4879 = vand.u32 %v690, 4294901760
        %v4880 = vsub.f32 %v690, %v4879
        %v4881 = vand.u32 %v4880, 4294901760
        %v4882 = vsub.f32 %v4880, %v4881
        %v4883 = vand.u32 %v4882, 4294901760
        %4884 = vmatpush1.msra.mxu0 %v4883
        %v4885 = vand.u32 %v687, 4294901760
        %v4886 = vsub.f32 %v687, %v4885
        %v4887 = vand.u32 %v4886, 4294901760
        %v4888 = vsub.f32 %v4886, %v4887
        %v4889 = vand.u32 %v4888, 4294901760
        %4890 = vmatprep.subr.mxu0 %v4889
        %v4891 = vand.u32 %v686, 4294901760
        %v4892 = vsub.f32 %v686, %v4891
        %v4893 = vand.u32 %v4892, 4294901760
        %v4894 = vsub.f32 %v4892, %v4893
        %v4895 = vand.u32 %v4894, 4294901760
        %4896 = vmatpush1.msra.mxu0 %v4895
        %v4897 = vand.u32 %v683, 4294901760
        %v4898 = vsub.f32 %v683, %v4897
        %v4899 = vand.u32 %v4898, 4294901760
        %v4900 = vsub.f32 %v4898, %v4899
        %v4901 = vand.u32 %v4900, 4294901760
        %4902 = vmatprep.subr.mxu0 %v4901
        %v4903 = vand.u32 %v682, 4294901760
        %v4904 = vsub.f32 %v682, %v4903
        %v4905 = vand.u32 %v4904, 4294901760
        %v4906 = vsub.f32 %v4904, %v4905
        %v4907 = vand.u32 %v4906, 4294901760
        %4908 = vmatpush1.msra.mxu0 %v4907
        %v4909 = vand.u32 %v679, 4294901760
        %v4910 = vsub.f32 %v679, %v4909
        %v4911 = vand.u32 %v4910, 4294901760
        %v4912 = vsub.f32 %v4910, %v4911
        %v4913 = vand.u32 %v4912, 4294901760
        %4914 = vmatprep.subr.mxu0 %v4913
        %v4915 = vand.u32 %v678, 4294901760
        %v4916 = vsub.f32 %v678, %v4915
        %v4917 = vand.u32 %v4916, 4294901760
        %v4918 = vsub.f32 %v4916, %v4917
        %v4919 = vand.u32 %v4918, 4294901760
        %4920 = vmatpush1.msra.mxu0 %v4919
        %v4921 = vand.u32 %v675, 4294901760
        %v4922 = vsub.f32 %v675, %v4921
        %v4923 = vand.u32 %v4922, 4294901760
        %v4924 = vsub.f32 %v4922, %v4923
        %v4925 = vand.u32 %v4924, 4294901760
        %4926 = vmatprep.subr.mxu0 %v4925
        %v4927 = vand.u32 %v674, 4294901760
        %v4928 = vsub.f32 %v674, %v4927
        %v4929 = vand.u32 %v4928, 4294901760
        %v4930 = vsub.f32 %v4928, %v4929
        %v4931 = vand.u32 %v4930, 4294901760
        %4932 = vmatpush1.msra.mxu0 %v4931
        %v4933 = vand.u32 %v671, 4294901760
        %v4934 = vsub.f32 %v671, %v4933
        %v4935 = vand.u32 %v4934, 4294901760
        %v4936 = vsub.f32 %v4934, %v4935
        %v4937 = vand.u32 %v4936, 4294901760
        %4938 = vmatprep.subr.mxu0 %v4937
        %v4939 = vand.u32 %v670, 4294901760
        %v4940 = vsub.f32 %v670, %v4939
        %v4941 = vand.u32 %v4940, 4294901760
        %v4942 = vsub.f32 %v4940, %v4941
        %v4943 = vand.u32 %v4942, 4294901760
        %4944 = vmatpush1.msra.mxu0 %v4943
        %v4945 = vand.u32 %v667, 4294901760
        %v4946 = vsub.f32 %v667, %v4945
        %v4947 = vand.u32 %v4946, 4294901760
        %v4948 = vsub.f32 %v4946, %v4947
        %v4949 = vand.u32 %v4948, 4294901760
        %4950 = vmatprep.subr.mxu0 %v4949
        %v4951 = vand.u32 %v666, 4294901760
        %v4952 = vsub.f32 %v666, %v4951
        %v4953 = vand.u32 %v4952, 4294901760
        %v4954 = vsub.f32 %v4952, %v4953
        %v4955 = vand.u32 %v4954, 4294901760
        %4956 = vmatpush1.msra.mxu0 %v4955
        %v4957 = vand.u32 %v663, 4294901760
        %v4958 = vsub.f32 %v663, %v4957
        %v4959 = vand.u32 %v4958, 4294901760
        %v4960 = vsub.f32 %v4958, %v4959
        %v4961 = vand.u32 %v4960, 4294901760
        %4962 = vmatprep.subr.mxu0 %v4961
        %v4963 = vand.u32 %v662, 4294901760
        %v4964 = vsub.f32 %v662, %v4963
        %v4965 = vand.u32 %v4964, 4294901760
        %v4966 = vsub.f32 %v4964, %v4965
        %v4967 = vand.u32 %v4966, 4294901760
        %4968 = vmatpush1.msra.mxu0 %v4967
        %v4969 = vand.u32 %v659, 4294901760
        %v4970 = vsub.f32 %v659, %v4969
        %v4971 = vand.u32 %v4970, 4294901760
        %v4972 = vsub.f32 %v4970, %v4971
        %v4973 = vand.u32 %v4972, 4294901760
        %4974 = vmatprep.subr.mxu0 %v4973
        %v4975 = vand.u32 %v658, 4294901760
        %v4976 = vsub.f32 %v658, %v4975
        %v4977 = vand.u32 %v4976, 4294901760
        %v4978 = vsub.f32 %v4976, %v4977
        %v4979 = vand.u32 %v4978, 4294901760
        %4980 = vmatpush1.msra.mxu0 %v4979
        %v4981 = vand.u32 %v655, 4294901760
        %v4982 = vsub.f32 %v655, %v4981
        %v4983 = vand.u32 %v4982, 4294901760
        %v4984 = vsub.f32 %v4982, %v4983
        %v4985 = vand.u32 %v4984, 4294901760
        %4986 = vmatprep.subr.mxu0 %v4985
        %v4987 = vand.u32 %v654, 4294901760
        %v4988 = vsub.f32 %v654, %v4987
        %v4989 = vand.u32 %v4988, 4294901760
        %v4990 = vsub.f32 %v4988, %v4989
        %v4991 = vand.u32 %v4990, 4294901760
        %4992 = vmatpush1.msra.mxu0 %v4991
        %v4993 = vand.u32 %v779, 4294901760
        %v4994 = vsub.f32 %v779, %v4993
        %v4995 = vand.u32 %v4994, 4294901760
        %v4996 = vsub.f32 %v4994, %v4995
        %v4997 = vand.u32 %v4996, 4294901760
        %4998 = vmatprep.subr.mxu0 %v4997
        %v4999 = vand.u32 %v778, 4294901760
        %v5000 = vsub.f32 %v778, %v4999
        %v5001 = vand.u32 %v5000, 4294901760
        %v5002 = vsub.f32 %v5000, %v5001
        %v5003 = vand.u32 %v5002, 4294901760
        %5004 = vmatpush2.msra.mxu0 %v5003
        %v5005 = vand.u32 %v775, 4294901760
        %v5006 = vsub.f32 %v775, %v5005
        %v5007 = vand.u32 %v5006, 4294901760
        %v5008 = vsub.f32 %v5006, %v5007
        %v5009 = vand.u32 %v5008, 4294901760
        %5010 = vmatprep.subr.mxu0 %v5009
        %v5011 = vand.u32 %v774, 4294901760
        %v5012 = vsub.f32 %v774, %v5011
        %v5013 = vand.u32 %v5012, 4294901760
        %v5014 = vsub.f32 %v5012, %v5013
        %v5015 = vand.u32 %v5014, 4294901760
        %5016 = vmatpush2.msra.mxu0 %v5015
        %v5017 = vand.u32 %v771, 4294901760
        %v5018 = vsub.f32 %v771, %v5017
        %v5019 = vand.u32 %v5018, 4294901760
        %v5020 = vsub.f32 %v5018, %v5019
        %v5021 = vand.u32 %v5020, 4294901760
        %5022 = vmatprep.subr.mxu0 %v5021
        %v5023 = vand.u32 %v770, 4294901760
        %v5024 = vsub.f32 %v770, %v5023
        %v5025 = vand.u32 %v5024, 4294901760
        %v5026 = vsub.f32 %v5024, %v5025
        %v5027 = vand.u32 %v5026, 4294901760
        %5028 = vmatpush2.msra.mxu0 %v5027
        %v5029 = vand.u32 %v767, 4294901760
        %v5030 = vsub.f32 %v767, %v5029
        %v5031 = vand.u32 %v5030, 4294901760
        %v5032 = vsub.f32 %v5030, %v5031
        %v5033 = vand.u32 %v5032, 4294901760
        %5034 = vmatprep.subr.mxu0 %v5033
        %v5035 = vand.u32 %v766, 4294901760
        %v5036 = vsub.f32 %v766, %v5035
        %v5037 = vand.u32 %v5036, 4294901760
        %v5038 = vsub.f32 %v5036, %v5037
        %v5039 = vand.u32 %v5038, 4294901760
        %5040 = vmatpush2.msra.mxu0 %v5039
        %v5041 = vand.u32 %v763, 4294901760
        %v5042 = vsub.f32 %v763, %v5041
        %v5043 = vand.u32 %v5042, 4294901760
        %v5044 = vsub.f32 %v5042, %v5043
        %v5045 = vand.u32 %v5044, 4294901760
        %5046 = vmatprep.subr.mxu0 %v5045
        %v5047 = vand.u32 %v762, 4294901760
        %v5048 = vsub.f32 %v762, %v5047
        %v5049 = vand.u32 %v5048, 4294901760
        %v5050 = vsub.f32 %v5048, %v5049
        %v5051 = vand.u32 %v5050, 4294901760
        %5052 = vmatpush2.msra.mxu0 %v5051
        %v5053 = vand.u32 %v759, 4294901760
        %v5054 = vsub.f32 %v759, %v5053
        %v5055 = vand.u32 %v5054, 4294901760
        %v5056 = vsub.f32 %v5054, %v5055
        %v5057 = vand.u32 %v5056, 4294901760
        %5058 = vmatprep.subr.mxu0 %v5057
        %v5059 = vand.u32 %v758, 4294901760
        %v5060 = vsub.f32 %v758, %v5059
        %v5061 = vand.u32 %v5060, 4294901760
        %v5062 = vsub.f32 %v5060, %v5061
        %v5063 = vand.u32 %v5062, 4294901760
        %5064 = vmatpush2.msra.mxu0 %v5063
        %v5065 = vand.u32 %v755, 4294901760
        %v5066 = vsub.f32 %v755, %v5065
        %v5067 = vand.u32 %v5066, 4294901760
        %v5068 = vsub.f32 %v5066, %v5067
        %v5069 = vand.u32 %v5068, 4294901760
        %5070 = vmatprep.subr.mxu0 %v5069
        %v5071 = vand.u32 %v754, 4294901760
        %v5072 = vsub.f32 %v754, %v5071
        %v5073 = vand.u32 %v5072, 4294901760
        %v5074 = vsub.f32 %v5072, %v5073
        %v5075 = vand.u32 %v5074, 4294901760
        %5076 = vmatpush2.msra.mxu0 %v5075
        %v5077 = vand.u32 %v751, 4294901760
        %v5078 = vsub.f32 %v751, %v5077
        %v5079 = vand.u32 %v5078, 4294901760
        %v5080 = vsub.f32 %v5078, %v5079
        %v5081 = vand.u32 %v5080, 4294901760
        %5082 = vmatprep.subr.mxu0 %v5081
        %v5083 = vand.u32 %v750, 4294901760
        %v5084 = vsub.f32 %v750, %v5083
        %v5085 = vand.u32 %v5084, 4294901760
        %v5086 = vsub.f32 %v5084, %v5085
        %v5087 = vand.u32 %v5086, 4294901760
        %5088 = vmatpush2.msra.mxu0 %v5087
        %v5089 = vand.u32 %v747, 4294901760
        %v5090 = vsub.f32 %v747, %v5089
        %v5091 = vand.u32 %v5090, 4294901760
        %v5092 = vsub.f32 %v5090, %v5091
        %v5093 = vand.u32 %v5092, 4294901760
        %5094 = vmatprep.subr.mxu0 %v5093
        %v5095 = vand.u32 %v746, 4294901760
        %v5096 = vsub.f32 %v746, %v5095
        %v5097 = vand.u32 %v5096, 4294901760
        %v5098 = vsub.f32 %v5096, %v5097
        %v5099 = vand.u32 %v5098, 4294901760
        %5100 = vmatpush2.msra.mxu0 %v5099
        %v5101 = vand.u32 %v743, 4294901760
        %v5102 = vsub.f32 %v743, %v5101
        %v5103 = vand.u32 %v5102, 4294901760
        %v5104 = vsub.f32 %v5102, %v5103
        %v5105 = vand.u32 %v5104, 4294901760
        %5106 = vmatprep.subr.mxu0 %v5105
        %v5107 = vand.u32 %v742, 4294901760
        %v5108 = vsub.f32 %v742, %v5107
        %v5109 = vand.u32 %v5108, 4294901760
        %v5110 = vsub.f32 %v5108, %v5109
        %v5111 = vand.u32 %v5110, 4294901760
        %5112 = vmatpush2.msra.mxu0 %v5111
        %v5113 = vand.u32 %v739, 4294901760
        %v5114 = vsub.f32 %v739, %v5113
        %v5115 = vand.u32 %v5114, 4294901760
        %v5116 = vsub.f32 %v5114, %v5115
        %v5117 = vand.u32 %v5116, 4294901760
        %5118 = vmatprep.subr.mxu0 %v5117
        %v5119 = vand.u32 %v738, 4294901760
        %v5120 = vsub.f32 %v738, %v5119
        %v5121 = vand.u32 %v5120, 4294901760
        %v5122 = vsub.f32 %v5120, %v5121
        %v5123 = vand.u32 %v5122, 4294901760
        %5124 = vmatpush2.msra.mxu0 %v5123
        %v5125 = vand.u32 %v735, 4294901760
        %v5126 = vsub.f32 %v735, %v5125
        %v5127 = vand.u32 %v5126, 4294901760
        %v5128 = vsub.f32 %v5126, %v5127
        %v5129 = vand.u32 %v5128, 4294901760
        %5130 = vmatprep.subr.mxu0 %v5129
        %v5131 = vand.u32 %v734, 4294901760
        %v5132 = vsub.f32 %v734, %v5131
        %v5133 = vand.u32 %v5132, 4294901760
        %v5134 = vsub.f32 %v5132, %v5133
        %v5135 = vand.u32 %v5134, 4294901760
        %5136 = vmatpush2.msra.mxu0 %v5135
        %v5137 = vand.u32 %v731, 4294901760
        %v5138 = vsub.f32 %v731, %v5137
        %v5139 = vand.u32 %v5138, 4294901760
        %v5140 = vsub.f32 %v5138, %v5139
        %v5141 = vand.u32 %v5140, 4294901760
        %5142 = vmatprep.subr.mxu0 %v5141
        %v5143 = vand.u32 %v730, 4294901760
        %v5144 = vsub.f32 %v730, %v5143
        %v5145 = vand.u32 %v5144, 4294901760
        %v5146 = vsub.f32 %v5144, %v5145
        %v5147 = vand.u32 %v5146, 4294901760
        %5148 = vmatpush2.msra.mxu0 %v5147
        %v5149 = vand.u32 %v727, 4294901760
        %v5150 = vsub.f32 %v727, %v5149
        %v5151 = vand.u32 %v5150, 4294901760
        %v5152 = vsub.f32 %v5150, %v5151
        %v5153 = vand.u32 %v5152, 4294901760
        %5154 = vmatprep.subr.mxu0 %v5153
        %v5155 = vand.u32 %v726, 4294901760
        %v5156 = vsub.f32 %v726, %v5155
        %v5157 = vand.u32 %v5156, 4294901760
        %v5158 = vsub.f32 %v5156, %v5157
        %v5159 = vand.u32 %v5158, 4294901760
        %5160 = vmatpush2.msra.mxu0 %v5159
        %v5161 = vand.u32 %v723, 4294901760
        %v5162 = vsub.f32 %v723, %v5161
        %v5163 = vand.u32 %v5162, 4294901760
        %v5164 = vsub.f32 %v5162, %v5163
        %v5165 = vand.u32 %v5164, 4294901760
        %5166 = vmatprep.subr.mxu0 %v5165
        %v5167 = vand.u32 %v722, 4294901760
        %v5168 = vsub.f32 %v722, %v5167
        %v5169 = vand.u32 %v5168, 4294901760
        %v5170 = vsub.f32 %v5168, %v5169
        %v5171 = vand.u32 %v5170, 4294901760
        %5172 = vmatpush2.msra.mxu0 %v5171
        %v5173 = vand.u32 %v719, 4294901760
        %v5174 = vsub.f32 %v719, %v5173
        %v5175 = vand.u32 %v5174, 4294901760
        %v5176 = vsub.f32 %v5174, %v5175
        %v5177 = vand.u32 %v5176, 4294901760
        %5178 = vmatprep.subr.mxu0 %v5177
        %v5179 = vand.u32 %v718, 4294901760
        %v5180 = vsub.f32 %v718, %v5179
        %v5181 = vand.u32 %v5180, 4294901760
        %v5182 = vsub.f32 %v5180, %v5181
        %v5183 = vand.u32 %v5182, 4294901760
        %5184 = vmatpush2.msra.mxu0 %v5183
        %v5185 = vand.u32 %v269, 4294901760
        %5186 = vmatprep.mubr.f32.mxu0 %v5185
        %v5187 = vand.u32 %v268, 4294901760
        %5188 = vmatmul.mubr.f32.gmra.mxu0 %v5187
        %v5189 = vpop.f32.mrf.mxu0
        %v5190 = vadd.f32 %v4797, %v5189
        %v5191 = vpop.f32.mrf.mxu0
        %v5192 = vadd.f32 %v4799, %v5191
        %5193 = vdwg.mxu0
        %v5194 = vand.u32 %v715, 4294901760
        %v5195 = vsub.f32 %v715, %v5194
        %5196 = vmatprep.subr.mxu0 %v5195
        %v5197 = vand.u32 %v714, 4294901760
        %v5198 = vsub.f32 %v714, %v5197
        %5199 = vmatpush1.msra.mxu0 %v5198
        %v5200 = vand.u32 %v711, 4294901760
        %v5201 = vsub.f32 %v711, %v5200
        %5202 = vmatprep.subr.mxu0 %v5201
        %v5203 = vand.u32 %v710, 4294901760
        %v5204 = vsub.f32 %v710, %v5203
        %5205 = vmatpush1.msra.mxu0 %v5204
        %v5206 = vand.u32 %v707, 4294901760
        %v5207 = vsub.f32 %v707, %v5206
        %5208 = vmatprep.subr.mxu0 %v5207
        %v5209 = vand.u32 %v706, 4294901760
        %v5210 = vsub.f32 %v706, %v5209
        %5211 = vmatpush1.msra.mxu0 %v5210
        %v5212 = vand.u32 %v703, 4294901760
        %v5213 = vsub.f32 %v703, %v5212
        %5214 = vmatprep.subr.mxu0 %v5213
        %v5215 = vand.u32 %v702, 4294901760
        %v5216 = vsub.f32 %v702, %v5215
        %5217 = vmatpush1.msra.mxu0 %v5216
        %v5218 = vand.u32 %v699, 4294901760
        %v5219 = vsub.f32 %v699, %v5218
        %5220 = vmatprep.subr.mxu0 %v5219
        %v5221 = vand.u32 %v698, 4294901760
        %v5222 = vsub.f32 %v698, %v5221
        %5223 = vmatpush1.msra.mxu0 %v5222
        %v5224 = vand.u32 %v695, 4294901760
        %v5225 = vsub.f32 %v695, %v5224
        %5226 = vmatprep.subr.mxu0 %v5225
        %v5227 = vand.u32 %v694, 4294901760
        %v5228 = vsub.f32 %v694, %v5227
        %5229 = vmatpush1.msra.mxu0 %v5228
        %v5230 = vand.u32 %v691, 4294901760
        %v5231 = vsub.f32 %v691, %v5230
        %5232 = vmatprep.subr.mxu0 %v5231
        %v5233 = vand.u32 %v690, 4294901760
        %v5234 = vsub.f32 %v690, %v5233
        %5235 = vmatpush1.msra.mxu0 %v5234
        %v5236 = vand.u32 %v687, 4294901760
        %v5237 = vsub.f32 %v687, %v5236
        %5238 = vmatprep.subr.mxu0 %v5237
        %v5239 = vand.u32 %v686, 4294901760
        %v5240 = vsub.f32 %v686, %v5239
        %5241 = vmatpush1.msra.mxu0 %v5240
        %v5242 = vand.u32 %v683, 4294901760
        %v5243 = vsub.f32 %v683, %v5242
        %5244 = vmatprep.subr.mxu0 %v5243
        %v5245 = vand.u32 %v682, 4294901760
        %v5246 = vsub.f32 %v682, %v5245
        %5247 = vmatpush1.msra.mxu0 %v5246
        %v5248 = vand.u32 %v679, 4294901760
        %v5249 = vsub.f32 %v679, %v5248
        %5250 = vmatprep.subr.mxu0 %v5249
        %v5251 = vand.u32 %v678, 4294901760
        %v5252 = vsub.f32 %v678, %v5251
        %5253 = vmatpush1.msra.mxu0 %v5252
        %v5254 = vand.u32 %v675, 4294901760
        %v5255 = vsub.f32 %v675, %v5254
        %5256 = vmatprep.subr.mxu0 %v5255
        %v5257 = vand.u32 %v674, 4294901760
        %v5258 = vsub.f32 %v674, %v5257
        %5259 = vmatpush1.msra.mxu0 %v5258
        %v5260 = vand.u32 %v671, 4294901760
        %v5261 = vsub.f32 %v671, %v5260
        %5262 = vmatprep.subr.mxu0 %v5261
        %v5263 = vand.u32 %v670, 4294901760
        %v5264 = vsub.f32 %v670, %v5263
        %5265 = vmatpush1.msra.mxu0 %v5264
        %v5266 = vand.u32 %v667, 4294901760
        %v5267 = vsub.f32 %v667, %v5266
        %5268 = vmatprep.subr.mxu0 %v5267
        %v5269 = vand.u32 %v666, 4294901760
        %v5270 = vsub.f32 %v666, %v5269
        %5271 = vmatpush1.msra.mxu0 %v5270
        %v5272 = vand.u32 %v663, 4294901760
        %v5273 = vsub.f32 %v663, %v5272
        %5274 = vmatprep.subr.mxu0 %v5273
        %v5275 = vand.u32 %v662, 4294901760
        %v5276 = vsub.f32 %v662, %v5275
        %5277 = vmatpush1.msra.mxu0 %v5276
        %v5278 = vand.u32 %v659, 4294901760
        %v5279 = vsub.f32 %v659, %v5278
        %5280 = vmatprep.subr.mxu0 %v5279
        %v5281 = vand.u32 %v658, 4294901760
        %v5282 = vsub.f32 %v658, %v5281
        %5283 = vmatpush1.msra.mxu0 %v5282
        %v5284 = vand.u32 %v655, 4294901760
        %v5285 = vsub.f32 %v655, %v5284
        %5286 = vmatprep.subr.mxu0 %v5285
        %v5287 = vand.u32 %v654, 4294901760
        %v5288 = vsub.f32 %v654, %v5287
        %5289 = vmatpush1.msra.mxu0 %v5288
        %v5290 = vand.u32 %v779, 4294901760
        %v5291 = vsub.f32 %v779, %v5290
        %5292 = vmatprep.subr.mxu0 %v5291
        %v5293 = vand.u32 %v778, 4294901760
        %v5294 = vsub.f32 %v778, %v5293
        %5295 = vmatpush2.msra.mxu0 %v5294
        %v5296 = vand.u32 %v775, 4294901760
        %v5297 = vsub.f32 %v775, %v5296
        %5298 = vmatprep.subr.mxu0 %v5297
        %v5299 = vand.u32 %v774, 4294901760
        %v5300 = vsub.f32 %v774, %v5299
        %5301 = vmatpush2.msra.mxu0 %v5300
        %v5302 = vand.u32 %v771, 4294901760
        %v5303 = vsub.f32 %v771, %v5302
        %5304 = vmatprep.subr.mxu0 %v5303
        %v5305 = vand.u32 %v770, 4294901760
        %v5306 = vsub.f32 %v770, %v5305
        %5307 = vmatpush2.msra.mxu0 %v5306
        %v5308 = vand.u32 %v767, 4294901760
        %v5309 = vsub.f32 %v767, %v5308
        %5310 = vmatprep.subr.mxu0 %v5309
        %v5311 = vand.u32 %v766, 4294901760
        %v5312 = vsub.f32 %v766, %v5311
        %5313 = vmatpush2.msra.mxu0 %v5312
        %v5314 = vand.u32 %v763, 4294901760
        %v5315 = vsub.f32 %v763, %v5314
        %5316 = vmatprep.subr.mxu0 %v5315
        %v5317 = vand.u32 %v762, 4294901760
        %v5318 = vsub.f32 %v762, %v5317
        %5319 = vmatpush2.msra.mxu0 %v5318
        %v5320 = vand.u32 %v759, 4294901760
        %v5321 = vsub.f32 %v759, %v5320
        %5322 = vmatprep.subr.mxu0 %v5321
        %v5323 = vand.u32 %v758, 4294901760
        %v5324 = vsub.f32 %v758, %v5323
        %5325 = vmatpush2.msra.mxu0 %v5324
        %v5326 = vand.u32 %v755, 4294901760
        %v5327 = vsub.f32 %v755, %v5326
        %5328 = vmatprep.subr.mxu0 %v5327
        %v5329 = vand.u32 %v754, 4294901760
        %v5330 = vsub.f32 %v754, %v5329
        %5331 = vmatpush2.msra.mxu0 %v5330
        %v5332 = vand.u32 %v751, 4294901760
        %v5333 = vsub.f32 %v751, %v5332
        %5334 = vmatprep.subr.mxu0 %v5333
        %v5335 = vand.u32 %v750, 4294901760
        %v5336 = vsub.f32 %v750, %v5335
        %5337 = vmatpush2.msra.mxu0 %v5336
        %v5338 = vand.u32 %v747, 4294901760
        %v5339 = vsub.f32 %v747, %v5338
        %5340 = vmatprep.subr.mxu0 %v5339
        %v5341 = vand.u32 %v746, 4294901760
        %v5342 = vsub.f32 %v746, %v5341
        %5343 = vmatpush2.msra.mxu0 %v5342
        %v5344 = vand.u32 %v743, 4294901760
        %v5345 = vsub.f32 %v743, %v5344
        %5346 = vmatprep.subr.mxu0 %v5345
        %v5347 = vand.u32 %v742, 4294901760
        %v5348 = vsub.f32 %v742, %v5347
        %5349 = vmatpush2.msra.mxu0 %v5348
        %v5350 = vand.u32 %v739, 4294901760
        %v5351 = vsub.f32 %v739, %v5350
        %5352 = vmatprep.subr.mxu0 %v5351
        %v5353 = vand.u32 %v738, 4294901760
        %v5354 = vsub.f32 %v738, %v5353
        %5355 = vmatpush2.msra.mxu0 %v5354
        %v5356 = vand.u32 %v735, 4294901760
        %v5357 = vsub.f32 %v735, %v5356
        %5358 = vmatprep.subr.mxu0 %v5357
        %v5359 = vand.u32 %v734, 4294901760
        %v5360 = vsub.f32 %v734, %v5359
        %5361 = vmatpush2.msra.mxu0 %v5360
        %v5362 = vand.u32 %v731, 4294901760
        %v5363 = vsub.f32 %v731, %v5362
        %5364 = vmatprep.subr.mxu0 %v5363
        %v5365 = vand.u32 %v730, 4294901760
        %v5366 = vsub.f32 %v730, %v5365
        %5367 = vmatpush2.msra.mxu0 %v5366
        %v5368 = vand.u32 %v727, 4294901760
        %v5369 = vsub.f32 %v727, %v5368
        %5370 = vmatprep.subr.mxu0 %v5369
        %v5371 = vand.u32 %v726, 4294901760
        %v5372 = vsub.f32 %v726, %v5371
        %5373 = vmatpush2.msra.mxu0 %v5372
        %v5374 = vand.u32 %v723, 4294901760
        %v5375 = vsub.f32 %v723, %v5374
        %5376 = vmatprep.subr.mxu0 %v5375
        %v5377 = vand.u32 %v722, 4294901760
        %v5378 = vsub.f32 %v722, %v5377
        %5379 = vmatpush2.msra.mxu0 %v5378
        %v5380 = vand.u32 %v719, 4294901760
        %v5381 = vsub.f32 %v719, %v5380
        %5382 = vmatprep.subr.mxu0 %v5381
        %v5383 = vand.u32 %v718, 4294901760
        %v5384 = vsub.f32 %v718, %v5383
        %5385 = vmatpush2.msra.mxu0 %v5384
        %v5386 = vand.u32 %v269, 4294901760
        %v5387 = vsub.f32 %v269, %v5386
        %5388 = vmatprep.mubr.f32.mxu0 %v5387
        %v5389 = vand.u32 %v268, 4294901760
        %v5390 = vsub.f32 %v268, %v5389
        %5391 = vmatmul.mubr.f32.gmra.mxu0 %v5390
        %v5392 = vpop.f32.mrf.mxu0
        %v5393 = vadd.f32 %v5190, %v5392
        %v5394 = vpop.f32.mrf.mxu0
        %v5395 = vadd.f32 %v5192, %v5394
        %5396 = vdwg.mxu0
        %v5397 = vand.u32 %v715, 4294901760
        %5398 = vmatprep.subr.mxu0 %v5397
        %v5399 = vand.u32 %v714, 4294901760
        %5400 = vmatpush1.msra.mxu0 %v5399
        %v5401 = vand.u32 %v711, 4294901760
        %5402 = vmatprep.subr.mxu0 %v5401
        %v5403 = vand.u32 %v710, 4294901760
        %5404 = vmatpush1.msra.mxu0 %v5403
        %v5405 = vand.u32 %v707, 4294901760
        %5406 = vmatprep.subr.mxu0 %v5405
        %v5407 = vand.u32 %v706, 4294901760
        %5408 = vmatpush1.msra.mxu0 %v5407
        %v5409 = vand.u32 %v703, 4294901760
        %5410 = vmatprep.subr.mxu0 %v5409
        %v5411 = vand.u32 %v702, 4294901760
        %5412 = vmatpush1.msra.mxu0 %v5411
        %v5413 = vand.u32 %v699, 4294901760
        %5414 = vmatprep.subr.mxu0 %v5413
        %v5415 = vand.u32 %v698, 4294901760
        %5416 = vmatpush1.msra.mxu0 %v5415
        %v5417 = vand.u32 %v695, 4294901760
        %5418 = vmatprep.subr.mxu0 %v5417
        %v5419 = vand.u32 %v694, 4294901760
        %5420 = vmatpush1.msra.mxu0 %v5419
        %v5421 = vand.u32 %v691, 4294901760
        %5422 = vmatprep.subr.mxu0 %v5421
        %v5423 = vand.u32 %v690, 4294901760
        %5424 = vmatpush1.msra.mxu0 %v5423
        %v5425 = vand.u32 %v687, 4294901760
        %5426 = vmatprep.subr.mxu0 %v5425
        %v5427 = vand.u32 %v686, 4294901760
        %5428 = vmatpush1.msra.mxu0 %v5427
        %v5429 = vand.u32 %v683, 4294901760
        %5430 = vmatprep.subr.mxu0 %v5429
        %v5431 = vand.u32 %v682, 4294901760
        %5432 = vmatpush1.msra.mxu0 %v5431
        %v5433 = vand.u32 %v679, 4294901760
        %5434 = vmatprep.subr.mxu0 %v5433
        %v5435 = vand.u32 %v678, 4294901760
        %5436 = vmatpush1.msra.mxu0 %v5435
        %v5437 = vand.u32 %v675, 4294901760
        %5438 = vmatprep.subr.mxu0 %v5437
        %v5439 = vand.u32 %v674, 4294901760
        %5440 = vmatpush1.msra.mxu0 %v5439
        %v5441 = vand.u32 %v671, 4294901760
        %5442 = vmatprep.subr.mxu0 %v5441
        %v5443 = vand.u32 %v670, 4294901760
        %5444 = vmatpush1.msra.mxu0 %v5443
        %v5445 = vand.u32 %v667, 4294901760
        %5446 = vmatprep.subr.mxu0 %v5445
        %v5447 = vand.u32 %v666, 4294901760
        %5448 = vmatpush1.msra.mxu0 %v5447
        %v5449 = vand.u32 %v663, 4294901760
        %5450 = vmatprep.subr.mxu0 %v5449
        %v5451 = vand.u32 %v662, 4294901760
        %5452 = vmatpush1.msra.mxu0 %v5451
        %v5453 = vand.u32 %v659, 4294901760
        %5454 = vmatprep.subr.mxu0 %v5453
        %v5455 = vand.u32 %v658, 4294901760
        %5456 = vmatpush1.msra.mxu0 %v5455
        %v5457 = vand.u32 %v655, 4294901760
        %5458 = vmatprep.subr.mxu0 %v5457
        %v5459 = vand.u32 %v654, 4294901760
        %5460 = vmatpush1.msra.mxu0 %v5459
        %v5461 = vand.u32 %v779, 4294901760
        %5462 = vmatprep.subr.mxu0 %v5461
        %v5463 = vand.u32 %v778, 4294901760
        %5464 = vmatpush2.msra.mxu0 %v5463
        %v5465 = vand.u32 %v775, 4294901760
        %5466 = vmatprep.subr.mxu0 %v5465
        %v5467 = vand.u32 %v774, 4294901760
        %5468 = vmatpush2.msra.mxu0 %v5467
        %v5469 = vand.u32 %v771, 4294901760
        %5470 = vmatprep.subr.mxu0 %v5469
        %v5471 = vand.u32 %v770, 4294901760
        %5472 = vmatpush2.msra.mxu0 %v5471
        %v5473 = vand.u32 %v767, 4294901760
        %5474 = vmatprep.subr.mxu0 %v5473
        %v5475 = vand.u32 %v766, 4294901760
        %5476 = vmatpush2.msra.mxu0 %v5475
        %v5477 = vand.u32 %v763, 4294901760
        %5478 = vmatprep.subr.mxu0 %v5477
        %v5479 = vand.u32 %v762, 4294901760
        %5480 = vmatpush2.msra.mxu0 %v5479
        %v5481 = vand.u32 %v759, 4294901760
        %5482 = vmatprep.subr.mxu0 %v5481
        %v5483 = vand.u32 %v758, 4294901760
        %5484 = vmatpush2.msra.mxu0 %v5483
        %v5485 = vand.u32 %v755, 4294901760
        %5486 = vmatprep.subr.mxu0 %v5485
        %v5487 = vand.u32 %v754, 4294901760
        %5488 = vmatpush2.msra.mxu0 %v5487
        %v5489 = vand.u32 %v751, 4294901760
        %5490 = vmatprep.subr.mxu0 %v5489
        %v5491 = vand.u32 %v750, 4294901760
        %5492 = vmatpush2.msra.mxu0 %v5491
        %v5493 = vand.u32 %v747, 4294901760
        %5494 = vmatprep.subr.mxu0 %v5493
        %v5495 = vand.u32 %v746, 4294901760
        %5496 = vmatpush2.msra.mxu0 %v5495
        %v5497 = vand.u32 %v743, 4294901760
        %5498 = vmatprep.subr.mxu0 %v5497
        %v5499 = vand.u32 %v742, 4294901760
        %5500 = vmatpush2.msra.mxu0 %v5499
        %v5501 = vand.u32 %v739, 4294901760
        %5502 = vmatprep.subr.mxu0 %v5501
        %v5503 = vand.u32 %v738, 4294901760
        %5504 = vmatpush2.msra.mxu0 %v5503
        %v5505 = vand.u32 %v735, 4294901760
        %5506 = vmatprep.subr.mxu0 %v5505
        %v5507 = vand.u32 %v734, 4294901760
        %5508 = vmatpush2.msra.mxu0 %v5507
        %v5509 = vand.u32 %v731, 4294901760
        %5510 = vmatprep.subr.mxu0 %v5509
        %v5511 = vand.u32 %v730, 4294901760
        %5512 = vmatpush2.msra.mxu0 %v5511
        %v5513 = vand.u32 %v727, 4294901760
        %5514 = vmatprep.subr.mxu0 %v5513
        %v5515 = vand.u32 %v726, 4294901760
        %5516 = vmatpush2.msra.mxu0 %v5515
        %v5517 = vand.u32 %v723, 4294901760
        %5518 = vmatprep.subr.mxu0 %v5517
        %v5519 = vand.u32 %v722, 4294901760
        %5520 = vmatpush2.msra.mxu0 %v5519
        %v5521 = vand.u32 %v719, 4294901760
        %5522 = vmatprep.subr.mxu0 %v5521
        %v5523 = vand.u32 %v718, 4294901760
        %5524 = vmatpush2.msra.mxu0 %v5523
        %v5525 = vand.u32 %v269, 4294901760
        %v5526 = vsub.f32 %v269, %v5525
        %v5527 = vand.u32 %v5526, 4294901760
        %5528 = vmatprep.mubr.f32.mxu0 %v5527
        %v5529 = vand.u32 %v268, 4294901760
        %v5530 = vsub.f32 %v268, %v5529
        %v5531 = vand.u32 %v5530, 4294901760
        %5532 = vmatmul.mubr.f32.gmra.mxu0 %v5531
        %v5533 = vpop.f32.mrf.mxu0
        %v5534 = vadd.f32 %v5393, %v5533
        %v5535 = vpop.f32.mrf.mxu0
        %v5536 = vadd.f32 %v5395, %v5535
        %5537 = vdwg.mxu0
        %v5538 = vand.u32 %v715, 4294901760
        %v5539 = vsub.f32 %v715, %v5538
        %v5540 = vand.u32 %v5539, 4294901760
        %5541 = vmatprep.subr.mxu0 %v5540
        %v5542 = vand.u32 %v714, 4294901760
        %v5543 = vsub.f32 %v714, %v5542
        %v5544 = vand.u32 %v5543, 4294901760
        %5545 = vmatpush1.msra.mxu0 %v5544
        %v5546 = vand.u32 %v711, 4294901760
        %v5547 = vsub.f32 %v711, %v5546
        %v5548 = vand.u32 %v5547, 4294901760
        %5549 = vmatprep.subr.mxu0 %v5548
        %v5550 = vand.u32 %v710, 4294901760
        %v5551 = vsub.f32 %v710, %v5550
        %v5552 = vand.u32 %v5551, 4294901760
        %5553 = vmatpush1.msra.mxu0 %v5552
        %v5554 = vand.u32 %v707, 4294901760
        %v5555 = vsub.f32 %v707, %v5554
        %v5556 = vand.u32 %v5555, 4294901760
        %5557 = vmatprep.subr.mxu0 %v5556
        %v5558 = vand.u32 %v706, 4294901760
        %v5559 = vsub.f32 %v706, %v5558
        %v5560 = vand.u32 %v5559, 4294901760
        %5561 = vmatpush1.msra.mxu0 %v5560
        %v5562 = vand.u32 %v703, 4294901760
        %v5563 = vsub.f32 %v703, %v5562
        %v5564 = vand.u32 %v5563, 4294901760
        %5565 = vmatprep.subr.mxu0 %v5564
        %v5566 = vand.u32 %v702, 4294901760
        %v5567 = vsub.f32 %v702, %v5566
        %v5568 = vand.u32 %v5567, 4294901760
        %5569 = vmatpush1.msra.mxu0 %v5568
        %v5570 = vand.u32 %v699, 4294901760
        %v5571 = vsub.f32 %v699, %v5570
        %v5572 = vand.u32 %v5571, 4294901760
        %5573 = vmatprep.subr.mxu0 %v5572
        %v5574 = vand.u32 %v698, 4294901760
        %v5575 = vsub.f32 %v698, %v5574
        %v5576 = vand.u32 %v5575, 4294901760
        %5577 = vmatpush1.msra.mxu0 %v5576
        %v5578 = vand.u32 %v695, 4294901760
        %v5579 = vsub.f32 %v695, %v5578
        %v5580 = vand.u32 %v5579, 4294901760
        %5581 = vmatprep.subr.mxu0 %v5580
        %v5582 = vand.u32 %v694, 4294901760
        %v5583 = vsub.f32 %v694, %v5582
        %v5584 = vand.u32 %v5583, 4294901760
        %5585 = vmatpush1.msra.mxu0 %v5584
        %v5586 = vand.u32 %v691, 4294901760
        %v5587 = vsub.f32 %v691, %v5586
        %v5588 = vand.u32 %v5587, 4294901760
        %5589 = vmatprep.subr.mxu0 %v5588
        %v5590 = vand.u32 %v690, 4294901760
        %v5591 = vsub.f32 %v690, %v5590
        %v5592 = vand.u32 %v5591, 4294901760
        %5593 = vmatpush1.msra.mxu0 %v5592
        %v5594 = vand.u32 %v687, 4294901760
        %v5595 = vsub.f32 %v687, %v5594
        %v5596 = vand.u32 %v5595, 4294901760
        %5597 = vmatprep.subr.mxu0 %v5596
        %v5598 = vand.u32 %v686, 4294901760
        %v5599 = vsub.f32 %v686, %v5598
        %v5600 = vand.u32 %v5599, 4294901760
        %5601 = vmatpush1.msra.mxu0 %v5600
        %v5602 = vand.u32 %v683, 4294901760
        %v5603 = vsub.f32 %v683, %v5602
        %v5604 = vand.u32 %v5603, 4294901760
        %5605 = vmatprep.subr.mxu0 %v5604
        %v5606 = vand.u32 %v682, 4294901760
        %v5607 = vsub.f32 %v682, %v5606
        %v5608 = vand.u32 %v5607, 4294901760
        %5609 = vmatpush1.msra.mxu0 %v5608
        %v5610 = vand.u32 %v679, 4294901760
        %v5611 = vsub.f32 %v679, %v5610
        %v5612 = vand.u32 %v5611, 4294901760
        %5613 = vmatprep.subr.mxu0 %v5612
        %v5614 = vand.u32 %v678, 4294901760
        %v5615 = vsub.f32 %v678, %v5614
        %v5616 = vand.u32 %v5615, 4294901760
        %5617 = vmatpush1.msra.mxu0 %v5616
        %v5618 = vand.u32 %v675, 4294901760
        %v5619 = vsub.f32 %v675, %v5618
        %v5620 = vand.u32 %v5619, 4294901760
        %5621 = vmatprep.subr.mxu0 %v5620
        %v5622 = vand.u32 %v674, 4294901760
        %v5623 = vsub.f32 %v674, %v5622
        %v5624 = vand.u32 %v5623, 4294901760
        %5625 = vmatpush1.msra.mxu0 %v5624
        %v5626 = vand.u32 %v671, 4294901760
        %v5627 = vsub.f32 %v671, %v5626
        %v5628 = vand.u32 %v5627, 4294901760
        %5629 = vmatprep.subr.mxu0 %v5628
        %v5630 = vand.u32 %v670, 4294901760
        %v5631 = vsub.f32 %v670, %v5630
        %v5632 = vand.u32 %v5631, 4294901760
        %5633 = vmatpush1.msra.mxu0 %v5632
        %v5634 = vand.u32 %v667, 4294901760
        %v5635 = vsub.f32 %v667, %v5634
        %v5636 = vand.u32 %v5635, 4294901760
        %5637 = vmatprep.subr.mxu0 %v5636
        %v5638 = vand.u32 %v666, 4294901760
        %v5639 = vsub.f32 %v666, %v5638
        %v5640 = vand.u32 %v5639, 4294901760
        %5641 = vmatpush1.msra.mxu0 %v5640
        %v5642 = vand.u32 %v663, 4294901760
        %v5643 = vsub.f32 %v663, %v5642
        %v5644 = vand.u32 %v5643, 4294901760
        %5645 = vmatprep.subr.mxu0 %v5644
        %v5646 = vand.u32 %v662, 4294901760
        %v5647 = vsub.f32 %v662, %v5646
        %v5648 = vand.u32 %v5647, 4294901760
        %5649 = vmatpush1.msra.mxu0 %v5648
        %v5650 = vand.u32 %v659, 4294901760
        %v5651 = vsub.f32 %v659, %v5650
        %v5652 = vand.u32 %v5651, 4294901760
        %5653 = vmatprep.subr.mxu0 %v5652
        %v5654 = vand.u32 %v658, 4294901760
        %v5655 = vsub.f32 %v658, %v5654
        %v5656 = vand.u32 %v5655, 4294901760
        %5657 = vmatpush1.msra.mxu0 %v5656
        %v5658 = vand.u32 %v655, 4294901760
        %v5659 = vsub.f32 %v655, %v5658
        %v5660 = vand.u32 %v5659, 4294901760
        %5661 = vmatprep.subr.mxu0 %v5660
        %v5662 = vand.u32 %v654, 4294901760
        %v5663 = vsub.f32 %v654, %v5662
        %v5664 = vand.u32 %v5663, 4294901760
        %5665 = vmatpush1.msra.mxu0 %v5664
        %v5666 = vand.u32 %v779, 4294901760
        %v5667 = vsub.f32 %v779, %v5666
        %v5668 = vand.u32 %v5667, 4294901760
        %5669 = vmatprep.subr.mxu0 %v5668
        %v5670 = vand.u32 %v778, 4294901760
        %v5671 = vsub.f32 %v778, %v5670
        %v5672 = vand.u32 %v5671, 4294901760
        %5673 = vmatpush2.msra.mxu0 %v5672
        %v5674 = vand.u32 %v775, 4294901760
        %v5675 = vsub.f32 %v775, %v5674
        %v5676 = vand.u32 %v5675, 4294901760
        %5677 = vmatprep.subr.mxu0 %v5676
        %v5678 = vand.u32 %v774, 4294901760
        %v5679 = vsub.f32 %v774, %v5678
        %v5680 = vand.u32 %v5679, 4294901760
        %5681 = vmatpush2.msra.mxu0 %v5680
        %v5682 = vand.u32 %v771, 4294901760
        %v5683 = vsub.f32 %v771, %v5682
        %v5684 = vand.u32 %v5683, 4294901760
        %5685 = vmatprep.subr.mxu0 %v5684
        %v5686 = vand.u32 %v770, 4294901760
        %v5687 = vsub.f32 %v770, %v5686
        %v5688 = vand.u32 %v5687, 4294901760
        %5689 = vmatpush2.msra.mxu0 %v5688
        %v5690 = vand.u32 %v767, 4294901760
        %v5691 = vsub.f32 %v767, %v5690
        %v5692 = vand.u32 %v5691, 4294901760
        %5693 = vmatprep.subr.mxu0 %v5692
        %v5694 = vand.u32 %v766, 4294901760
        %v5695 = vsub.f32 %v766, %v5694
        %v5696 = vand.u32 %v5695, 4294901760
        %5697 = vmatpush2.msra.mxu0 %v5696
        %v5698 = vand.u32 %v763, 4294901760
        %v5699 = vsub.f32 %v763, %v5698
        %v5700 = vand.u32 %v5699, 4294901760
        %5701 = vmatprep.subr.mxu0 %v5700
        %v5702 = vand.u32 %v762, 4294901760
        %v5703 = vsub.f32 %v762, %v5702
        %v5704 = vand.u32 %v5703, 4294901760
        %5705 = vmatpush2.msra.mxu0 %v5704
        %v5706 = vand.u32 %v759, 4294901760
        %v5707 = vsub.f32 %v759, %v5706
        %v5708 = vand.u32 %v5707, 4294901760
        %5709 = vmatprep.subr.mxu0 %v5708
        %v5710 = vand.u32 %v758, 4294901760
        %v5711 = vsub.f32 %v758, %v5710
        %v5712 = vand.u32 %v5711, 4294901760
        %5713 = vmatpush2.msra.mxu0 %v5712
        %v5714 = vand.u32 %v755, 4294901760
        %v5715 = vsub.f32 %v755, %v5714
        %v5716 = vand.u32 %v5715, 4294901760
        %5717 = vmatprep.subr.mxu0 %v5716
        %v5718 = vand.u32 %v754, 4294901760
        %v5719 = vsub.f32 %v754, %v5718
        %v5720 = vand.u32 %v5719, 4294901760
        %5721 = vmatpush2.msra.mxu0 %v5720
        %v5722 = vand.u32 %v751, 4294901760
        %v5723 = vsub.f32 %v751, %v5722
        %v5724 = vand.u32 %v5723, 4294901760
        %5725 = vmatprep.subr.mxu0 %v5724
        %v5726 = vand.u32 %v750, 4294901760
        %v5727 = vsub.f32 %v750, %v5726
        %v5728 = vand.u32 %v5727, 4294901760
        %5729 = vmatpush2.msra.mxu0 %v5728
        %v5730 = vand.u32 %v747, 4294901760
        %v5731 = vsub.f32 %v747, %v5730
        %v5732 = vand.u32 %v5731, 4294901760
        %5733 = vmatprep.subr.mxu0 %v5732
        %v5734 = vand.u32 %v746, 4294901760
        %v5735 = vsub.f32 %v746, %v5734
        %v5736 = vand.u32 %v5735, 4294901760
        %5737 = vmatpush2.msra.mxu0 %v5736
        %v5738 = vand.u32 %v743, 4294901760
        %v5739 = vsub.f32 %v743, %v5738
        %v5740 = vand.u32 %v5739, 4294901760
        %5741 = vmatprep.subr.mxu0 %v5740
        %v5742 = vand.u32 %v742, 4294901760
        %v5743 = vsub.f32 %v742, %v5742
        %v5744 = vand.u32 %v5743, 4294901760
        %5745 = vmatpush2.msra.mxu0 %v5744
        %v5746 = vand.u32 %v739, 4294901760
        %v5747 = vsub.f32 %v739, %v5746
        %v5748 = vand.u32 %v5747, 4294901760
        %5749 = vmatprep.subr.mxu0 %v5748
        %v5750 = vand.u32 %v738, 4294901760
        %v5751 = vsub.f32 %v738, %v5750
        %v5752 = vand.u32 %v5751, 4294901760
        %5753 = vmatpush2.msra.mxu0 %v5752
        %v5754 = vand.u32 %v735, 4294901760
        %v5755 = vsub.f32 %v735, %v5754
        %v5756 = vand.u32 %v5755, 4294901760
        %5757 = vmatprep.subr.mxu0 %v5756
        %v5758 = vand.u32 %v734, 4294901760
        %v5759 = vsub.f32 %v734, %v5758
        %v5760 = vand.u32 %v5759, 4294901760
        %5761 = vmatpush2.msra.mxu0 %v5760
        %v5762 = vand.u32 %v731, 4294901760
        %v5763 = vsub.f32 %v731, %v5762
        %v5764 = vand.u32 %v5763, 4294901760
        %5765 = vmatprep.subr.mxu0 %v5764
        %v5766 = vand.u32 %v730, 4294901760
        %v5767 = vsub.f32 %v730, %v5766
        %v5768 = vand.u32 %v5767, 4294901760
        %5769 = vmatpush2.msra.mxu0 %v5768
        %v5770 = vand.u32 %v727, 4294901760
        %v5771 = vsub.f32 %v727, %v5770
        %v5772 = vand.u32 %v5771, 4294901760
        %5773 = vmatprep.subr.mxu0 %v5772
        %v5774 = vand.u32 %v726, 4294901760
        %v5775 = vsub.f32 %v726, %v5774
        %v5776 = vand.u32 %v5775, 4294901760
        %5777 = vmatpush2.msra.mxu0 %v5776
        %v5778 = vand.u32 %v723, 4294901760
        %v5779 = vsub.f32 %v723, %v5778
        %v5780 = vand.u32 %v5779, 4294901760
        %5781 = vmatprep.subr.mxu0 %v5780
        %v5782 = vand.u32 %v722, 4294901760
        %v5783 = vsub.f32 %v722, %v5782
        %v5784 = vand.u32 %v5783, 4294901760
        %5785 = vmatpush2.msra.mxu0 %v5784
        %v5786 = vand.u32 %v719, 4294901760
        %v5787 = vsub.f32 %v719, %v5786
        %v5788 = vand.u32 %v5787, 4294901760
        %5789 = vmatprep.subr.mxu0 %v5788
        %v5790 = vand.u32 %v718, 4294901760
        %v5791 = vsub.f32 %v718, %v5790
        %v5792 = vand.u32 %v5791, 4294901760
        %5793 = vmatpush2.msra.mxu0 %v5792
        %v5794 = vand.u32 %v269, 4294901760
        %5795 = vmatprep.mubr.f32.mxu0 %v5794
        %v5796 = vand.u32 %v268, 4294901760
        %5797 = vmatmul.mubr.f32.gmra.mxu0 %v5796
        %v5798 = vpop.f32.mrf.mxu0
        %v5799 = vadd.f32 %v5534, %v5798
        %v5800 = vpop.f32.mrf.mxu0
        %v5801 = vadd.f32 %v5536, %v5800
        %5802 = vdwg.mxu0
        %v5803 = vand.u32 %v715, 4294901760
        %5804 = vmatprep.subr.mxu0 %v5803
        %v5805 = vand.u32 %v714, 4294901760
        %5806 = vmatpush1.msra.mxu0 %v5805
        %v5807 = vand.u32 %v711, 4294901760
        %5808 = vmatprep.subr.mxu0 %v5807
        %v5809 = vand.u32 %v710, 4294901760
        %5810 = vmatpush1.msra.mxu0 %v5809
        %v5811 = vand.u32 %v707, 4294901760
        %5812 = vmatprep.subr.mxu0 %v5811
        %v5813 = vand.u32 %v706, 4294901760
        %5814 = vmatpush1.msra.mxu0 %v5813
        %v5815 = vand.u32 %v703, 4294901760
        %5816 = vmatprep.subr.mxu0 %v5815
        %v5817 = vand.u32 %v702, 4294901760
        %5818 = vmatpush1.msra.mxu0 %v5817
        %v5819 = vand.u32 %v699, 4294901760
        %5820 = vmatprep.subr.mxu0 %v5819
        %v5821 = vand.u32 %v698, 4294901760
        %5822 = vmatpush1.msra.mxu0 %v5821
        %v5823 = vand.u32 %v695, 4294901760
        %5824 = vmatprep.subr.mxu0 %v5823
        %v5825 = vand.u32 %v694, 4294901760
        %5826 = vmatpush1.msra.mxu0 %v5825
        %v5827 = vand.u32 %v691, 4294901760
        %5828 = vmatprep.subr.mxu0 %v5827
        %v5829 = vand.u32 %v690, 4294901760
        %5830 = vmatpush1.msra.mxu0 %v5829
        %v5831 = vand.u32 %v687, 4294901760
        %5832 = vmatprep.subr.mxu0 %v5831
        %v5833 = vand.u32 %v686, 4294901760
        %5834 = vmatpush1.msra.mxu0 %v5833
        %v5835 = vand.u32 %v683, 4294901760
        %5836 = vmatprep.subr.mxu0 %v5835
        %v5837 = vand.u32 %v682, 4294901760
        %5838 = vmatpush1.msra.mxu0 %v5837
        %v5839 = vand.u32 %v679, 4294901760
        %5840 = vmatprep.subr.mxu0 %v5839
        %v5841 = vand.u32 %v678, 4294901760
        %5842 = vmatpush1.msra.mxu0 %v5841
        %v5843 = vand.u32 %v675, 4294901760
        %5844 = vmatprep.subr.mxu0 %v5843
        %v5845 = vand.u32 %v674, 4294901760
        %5846 = vmatpush1.msra.mxu0 %v5845
        %v5847 = vand.u32 %v671, 4294901760
        %5848 = vmatprep.subr.mxu0 %v5847
        %v5849 = vand.u32 %v670, 4294901760
        %5850 = vmatpush1.msra.mxu0 %v5849
        %v5851 = vand.u32 %v667, 4294901760
        %5852 = vmatprep.subr.mxu0 %v5851
        %v5853 = vand.u32 %v666, 4294901760
        %5854 = vmatpush1.msra.mxu0 %v5853
        %v5855 = vand.u32 %v663, 4294901760
        %5856 = vmatprep.subr.mxu0 %v5855
        %v5857 = vand.u32 %v662, 4294901760
        %5858 = vmatpush1.msra.mxu0 %v5857
        %v5859 = vand.u32 %v659, 4294901760
        %5860 = vmatprep.subr.mxu0 %v5859
        %v5861 = vand.u32 %v658, 4294901760
        %5862 = vmatpush1.msra.mxu0 %v5861
        %v5863 = vand.u32 %v655, 4294901760
        %5864 = vmatprep.subr.mxu0 %v5863
        %v5865 = vand.u32 %v654, 4294901760
        %5866 = vmatpush1.msra.mxu0 %v5865
        %v5867 = vand.u32 %v779, 4294901760
        %5868 = vmatprep.subr.mxu0 %v5867
        %v5869 = vand.u32 %v778, 4294901760
        %5870 = vmatpush2.msra.mxu0 %v5869
        %v5871 = vand.u32 %v775, 4294901760
        %5872 = vmatprep.subr.mxu0 %v5871
        %v5873 = vand.u32 %v774, 4294901760
        %5874 = vmatpush2.msra.mxu0 %v5873
        %v5875 = vand.u32 %v771, 4294901760
        %5876 = vmatprep.subr.mxu0 %v5875
        %v5877 = vand.u32 %v770, 4294901760
        %5878 = vmatpush2.msra.mxu0 %v5877
        %v5879 = vand.u32 %v767, 4294901760
        %5880 = vmatprep.subr.mxu0 %v5879
        %v5881 = vand.u32 %v766, 4294901760
        %5882 = vmatpush2.msra.mxu0 %v5881
        %v5883 = vand.u32 %v763, 4294901760
        %5884 = vmatprep.subr.mxu0 %v5883
        %v5885 = vand.u32 %v762, 4294901760
        %5886 = vmatpush2.msra.mxu0 %v5885
        %v5887 = vand.u32 %v759, 4294901760
        %5888 = vmatprep.subr.mxu0 %v5887
        %v5889 = vand.u32 %v758, 4294901760
        %5890 = vmatpush2.msra.mxu0 %v5889
        %v5891 = vand.u32 %v755, 4294901760
        %5892 = vmatprep.subr.mxu0 %v5891
        %v5893 = vand.u32 %v754, 4294901760
        %5894 = vmatpush2.msra.mxu0 %v5893
        %v5895 = vand.u32 %v751, 4294901760
        %5896 = vmatprep.subr.mxu0 %v5895
        %v5897 = vand.u32 %v750, 4294901760
        %5898 = vmatpush2.msra.mxu0 %v5897
        %v5899 = vand.u32 %v747, 4294901760
        %5900 = vmatprep.subr.mxu0 %v5899
        %v5901 = vand.u32 %v746, 4294901760
        %5902 = vmatpush2.msra.mxu0 %v5901
        %v5903 = vand.u32 %v743, 4294901760
        %5904 = vmatprep.subr.mxu0 %v5903
        %v5905 = vand.u32 %v742, 4294901760
        %5906 = vmatpush2.msra.mxu0 %v5905
        %v5907 = vand.u32 %v739, 4294901760
        %5908 = vmatprep.subr.mxu0 %v5907
        %v5909 = vand.u32 %v738, 4294901760
        %5910 = vmatpush2.msra.mxu0 %v5909
        %v5911 = vand.u32 %v735, 4294901760
        %5912 = vmatprep.subr.mxu0 %v5911
        %v5913 = vand.u32 %v734, 4294901760
        %5914 = vmatpush2.msra.mxu0 %v5913
        %v5915 = vand.u32 %v731, 4294901760
        %5916 = vmatprep.subr.mxu0 %v5915
        %v5917 = vand.u32 %v730, 4294901760
        %5918 = vmatpush2.msra.mxu0 %v5917
        %v5919 = vand.u32 %v727, 4294901760
        %5920 = vmatprep.subr.mxu0 %v5919
        %v5921 = vand.u32 %v726, 4294901760
        %5922 = vmatpush2.msra.mxu0 %v5921
        %v5923 = vand.u32 %v723, 4294901760
        %5924 = vmatprep.subr.mxu0 %v5923
        %v5925 = vand.u32 %v722, 4294901760
        %5926 = vmatpush2.msra.mxu0 %v5925
        %v5927 = vand.u32 %v719, 4294901760
        %5928 = vmatprep.subr.mxu0 %v5927
        %v5929 = vand.u32 %v718, 4294901760
        %5930 = vmatpush2.msra.mxu0 %v5929
        %v5931 = vand.u32 %v269, 4294901760
        %5932 = vmatprep.mubr.f32.mxu0 %v5931
        %v5933 = vand.u32 %v268, 4294901760
        %5934 = vmatmul.mubr.f32.gmra.mxu0 %v5933
        %v5935 = vpop.f32.mrf.mxu0
        %v5936 = vadd.f32 %v5799, %v5935
        %v5937 = vpop.f32.mrf.mxu0
        %v5938 = vadd.f32 %v5801, %v5937
        %5939 = vdwg.mxu0
        %v5940 = vand.u32 %v333, 4294901760
        %5941 = vmatprep.subr.mxu0 %v5940
        %v5942 = vand.u32 %v332, 4294901760
        %5943 = vmatpush1.msra.mxu0 %v5942
        %v5944 = vand.u32 %v329, 4294901760
        %5945 = vmatprep.subr.mxu0 %v5944
        %v5946 = vand.u32 %v328, 4294901760
        %5947 = vmatpush1.msra.mxu0 %v5946
        %v5948 = vand.u32 %v325, 4294901760
        %5949 = vmatprep.subr.mxu0 %v5948
        %v5950 = vand.u32 %v324, 4294901760
        %5951 = vmatpush1.msra.mxu0 %v5950
        %v5952 = vand.u32 %v321, 4294901760
        %5953 = vmatprep.subr.mxu0 %v5952
        %v5954 = vand.u32 %v320, 4294901760
        %5955 = vmatpush1.msra.mxu0 %v5954
        %v5956 = vand.u32 %v317, 4294901760
        %5957 = vmatprep.subr.mxu0 %v5956
        %v5958 = vand.u32 %v316, 4294901760
        %5959 = vmatpush1.msra.mxu0 %v5958
        %v5960 = vand.u32 %v313, 4294901760
        %5961 = vmatprep.subr.mxu0 %v5960
        %v5962 = vand.u32 %v312, 4294901760
        %5963 = vmatpush1.msra.mxu0 %v5962
        %v5964 = vand.u32 %v309, 4294901760
        %5965 = vmatprep.subr.mxu0 %v5964
        %v5966 = vand.u32 %v308, 4294901760
        %5967 = vmatpush1.msra.mxu0 %v5966
        %v5968 = vand.u32 %v305, 4294901760
        %5969 = vmatprep.subr.mxu0 %v5968
        %v5970 = vand.u32 %v304, 4294901760
        %5971 = vmatpush1.msra.mxu0 %v5970
        %v5972 = vand.u32 %v301, 4294901760
        %5973 = vmatprep.subr.mxu0 %v5972
        %v5974 = vand.u32 %v300, 4294901760
        %5975 = vmatpush1.msra.mxu0 %v5974
        %v5976 = vand.u32 %v297, 4294901760
        %5977 = vmatprep.subr.mxu0 %v5976
        %v5978 = vand.u32 %v296, 4294901760
        %5979 = vmatpush1.msra.mxu0 %v5978
        %v5980 = vand.u32 %v293, 4294901760
        %5981 = vmatprep.subr.mxu0 %v5980
        %v5982 = vand.u32 %v292, 4294901760
        %5983 = vmatpush1.msra.mxu0 %v5982
        %v5984 = vand.u32 %v289, 4294901760
        %5985 = vmatprep.subr.mxu0 %v5984
        %v5986 = vand.u32 %v288, 4294901760
        %5987 = vmatpush1.msra.mxu0 %v5986
        %v5988 = vand.u32 %v285, 4294901760
        %5989 = vmatprep.subr.mxu0 %v5988
        %v5990 = vand.u32 %v284, 4294901760
        %5991 = vmatpush1.msra.mxu0 %v5990
        %v5992 = vand.u32 %v281, 4294901760
        %5993 = vmatprep.subr.mxu0 %v5992
        %v5994 = vand.u32 %v280, 4294901760
        %5995 = vmatpush1.msra.mxu0 %v5994
        %v5996 = vand.u32 %v277, 4294901760
        %5997 = vmatprep.subr.mxu0 %v5996
        %v5998 = vand.u32 %v276, 4294901760
        %5999 = vmatpush1.msra.mxu0 %v5998
        %v6000 = vand.u32 %v273, 4294901760
        %6001 = vmatprep.subr.mxu0 %v6000
        %v6002 = vand.u32 %v272, 4294901760
        %6003 = vmatpush1.msra.mxu0 %v6002
        %v6004 = vand.u32 %v397, 4294901760
        %6005 = vmatprep.subr.mxu0 %v6004
        %v6006 = vand.u32 %v396, 4294901760
        %6007 = vmatpush2.msra.mxu0 %v6006
        %v6008 = vand.u32 %v393, 4294901760
        %6009 = vmatprep.subr.mxu0 %v6008
        %v6010 = vand.u32 %v392, 4294901760
        %6011 = vmatpush2.msra.mxu0 %v6010
        %v6012 = vand.u32 %v389, 4294901760
        %6013 = vmatprep.subr.mxu0 %v6012
        %v6014 = vand.u32 %v388, 4294901760
        %6015 = vmatpush2.msra.mxu0 %v6014
        %v6016 = vand.u32 %v385, 4294901760
        %6017 = vmatprep.subr.mxu0 %v6016
        %v6018 = vand.u32 %v384, 4294901760
        %6019 = vmatpush2.msra.mxu0 %v6018
        %v6020 = vand.u32 %v381, 4294901760
        %6021 = vmatprep.subr.mxu0 %v6020
        %v6022 = vand.u32 %v380, 4294901760
        %6023 = vmatpush2.msra.mxu0 %v6022
        %v6024 = vand.u32 %v377, 4294901760
        %6025 = vmatprep.subr.mxu0 %v6024
        %v6026 = vand.u32 %v376, 4294901760
        %6027 = vmatpush2.msra.mxu0 %v6026
        %v6028 = vand.u32 %v373, 4294901760
        %6029 = vmatprep.subr.mxu0 %v6028
        %v6030 = vand.u32 %v372, 4294901760
        %6031 = vmatpush2.msra.mxu0 %v6030
        %v6032 = vand.u32 %v369, 4294901760
        %6033 = vmatprep.subr.mxu0 %v6032
        %v6034 = vand.u32 %v368, 4294901760
        %6035 = vmatpush2.msra.mxu0 %v6034
        %v6036 = vand.u32 %v365, 4294901760
        %6037 = vmatprep.subr.mxu0 %v6036
        %v6038 = vand.u32 %v364, 4294901760
        %6039 = vmatpush2.msra.mxu0 %v6038
        %v6040 = vand.u32 %v361, 4294901760
        %6041 = vmatprep.subr.mxu0 %v6040
        %v6042 = vand.u32 %v360, 4294901760
        %6043 = vmatpush2.msra.mxu0 %v6042
        %v6044 = vand.u32 %v357, 4294901760
        %6045 = vmatprep.subr.mxu0 %v6044
        %v6046 = vand.u32 %v356, 4294901760
        %6047 = vmatpush2.msra.mxu0 %v6046
        %v6048 = vand.u32 %v353, 4294901760
        %6049 = vmatprep.subr.mxu0 %v6048
        %v6050 = vand.u32 %v352, 4294901760
        %6051 = vmatpush2.msra.mxu0 %v6050
        %v6052 = vand.u32 %v349, 4294901760
        %6053 = vmatprep.subr.mxu0 %v6052
        %v6054 = vand.u32 %v348, 4294901760
        %6055 = vmatpush2.msra.mxu0 %v6054
        %v6056 = vand.u32 %v345, 4294901760
        %6057 = vmatprep.subr.mxu0 %v6056
        %v6058 = vand.u32 %v344, 4294901760
        %6059 = vmatpush2.msra.mxu0 %v6058
        %v6060 = vand.u32 %v341, 4294901760
        %6061 = vmatprep.subr.mxu0 %v6060
        %v6062 = vand.u32 %v340, 4294901760
        %6063 = vmatpush2.msra.mxu0 %v6062
        %v6064 = vand.u32 %v337, 4294901760
        %6065 = vmatprep.subr.mxu0 %v6064
        %v6066 = vand.u32 %v336, 4294901760
        %6067 = vmatpush2.msra.mxu0 %v6066
        %v6068 = vand.u32 %v263, 4294901760
        %v6069 = vsub.f32 %v263, %v6068
        %v6070 = vand.u32 %v6069, 4294901760
        %v6071 = vsub.f32 %v6069, %v6070
        %v6072 = vand.u32 %v6071, 4294901760
        %6073 = vmatprep.mubr.f32.mxu0 %v6072
        %v6074 = vand.u32 %v262, 4294901760
        %v6075 = vsub.f32 %v262, %v6074
        %v6076 = vand.u32 %v6075, 4294901760
        %v6077 = vsub.f32 %v6075, %v6076
        %v6078 = vand.u32 %v6077, 4294901760
        %6079 = vmatmul.mubr.f32.gmra.mxu0 %v6078
        %v6080 = vpop.f32.mrf.mxu0
        %v6081 = vadd.f32 %v795, %v6080
        %v6082 = vpop.f32.mrf.mxu0
        %v6083 = vadd.f32 %v799, %v6082
        %6084 = vdwg.mxu0
        %v6085 = vand.u32 %v333, 4294901760
        %v6086 = vsub.f32 %v333, %v6085
        %v6087 = vand.u32 %v6086, 4294901760
        %v6088 = vsub.f32 %v6086, %v6087
        %v6089 = vand.u32 %v6088, 4294901760
        %6090 = vmatprep.subr.mxu0 %v6089
        %v6091 = vand.u32 %v332, 4294901760
        %v6092 = vsub.f32 %v332, %v6091
        %v6093 = vand.u32 %v6092, 4294901760
        %v6094 = vsub.f32 %v6092, %v6093
        %v6095 = vand.u32 %v6094, 4294901760
        %6096 = vmatpush1.msra.mxu0 %v6095
        %v6097 = vand.u32 %v329, 4294901760
        %v6098 = vsub.f32 %v329, %v6097
        %v6099 = vand.u32 %v6098, 4294901760
        %v6100 = vsub.f32 %v6098, %v6099
        %v6101 = vand.u32 %v6100, 4294901760
        %6102 = vmatprep.subr.mxu0 %v6101
        %v6103 = vand.u32 %v328, 4294901760
        %v6104 = vsub.f32 %v328, %v6103
        %v6105 = vand.u32 %v6104, 4294901760
        %v6106 = vsub.f32 %v6104, %v6105
        %v6107 = vand.u32 %v6106, 4294901760
        %6108 = vmatpush1.msra.mxu0 %v6107
        %v6109 = vand.u32 %v325, 4294901760
        %v6110 = vsub.f32 %v325, %v6109
        %v6111 = vand.u32 %v6110, 4294901760
        %v6112 = vsub.f32 %v6110, %v6111
        %v6113 = vand.u32 %v6112, 4294901760
        %6114 = vmatprep.subr.mxu0 %v6113
        %v6115 = vand.u32 %v324, 4294901760
        %v6116 = vsub.f32 %v324, %v6115
        %v6117 = vand.u32 %v6116, 4294901760
        %v6118 = vsub.f32 %v6116, %v6117
        %v6119 = vand.u32 %v6118, 4294901760
        %6120 = vmatpush1.msra.mxu0 %v6119
        %v6121 = vand.u32 %v321, 4294901760
        %v6122 = vsub.f32 %v321, %v6121
        %v6123 = vand.u32 %v6122, 4294901760
        %v6124 = vsub.f32 %v6122, %v6123
        %v6125 = vand.u32 %v6124, 4294901760
        %6126 = vmatprep.subr.mxu0 %v6125
        %v6127 = vand.u32 %v320, 4294901760
        %v6128 = vsub.f32 %v320, %v6127
        %v6129 = vand.u32 %v6128, 4294901760
        %v6130 = vsub.f32 %v6128, %v6129
        %v6131 = vand.u32 %v6130, 4294901760
        %6132 = vmatpush1.msra.mxu0 %v6131
        %v6133 = vand.u32 %v317, 4294901760
        %v6134 = vsub.f32 %v317, %v6133
        %v6135 = vand.u32 %v6134, 4294901760
        %v6136 = vsub.f32 %v6134, %v6135
        %v6137 = vand.u32 %v6136, 4294901760
        %6138 = vmatprep.subr.mxu0 %v6137
        %v6139 = vand.u32 %v316, 4294901760
        %v6140 = vsub.f32 %v316, %v6139
        %v6141 = vand.u32 %v6140, 4294901760
        %v6142 = vsub.f32 %v6140, %v6141
        %v6143 = vand.u32 %v6142, 4294901760
        %6144 = vmatpush1.msra.mxu0 %v6143
        %v6145 = vand.u32 %v313, 4294901760
        %v6146 = vsub.f32 %v313, %v6145
        %v6147 = vand.u32 %v6146, 4294901760
        %v6148 = vsub.f32 %v6146, %v6147
        %v6149 = vand.u32 %v6148, 4294901760
        %6150 = vmatprep.subr.mxu0 %v6149
        %v6151 = vand.u32 %v312, 4294901760
        %v6152 = vsub.f32 %v312, %v6151
        %v6153 = vand.u32 %v6152, 4294901760
        %v6154 = vsub.f32 %v6152, %v6153
        %v6155 = vand.u32 %v6154, 4294901760
        %6156 = vmatpush1.msra.mxu0 %v6155
        %v6157 = vand.u32 %v309, 4294901760
        %v6158 = vsub.f32 %v309, %v6157
        %v6159 = vand.u32 %v6158, 4294901760
        %v6160 = vsub.f32 %v6158, %v6159
        %v6161 = vand.u32 %v6160, 4294901760
        %6162 = vmatprep.subr.mxu0 %v6161
        %v6163 = vand.u32 %v308, 4294901760
        %v6164 = vsub.f32 %v308, %v6163
        %v6165 = vand.u32 %v6164, 4294901760
        %v6166 = vsub.f32 %v6164, %v6165
        %v6167 = vand.u32 %v6166, 4294901760
        %6168 = vmatpush1.msra.mxu0 %v6167
        %v6169 = vand.u32 %v305, 4294901760
        %v6170 = vsub.f32 %v305, %v6169
        %v6171 = vand.u32 %v6170, 4294901760
        %v6172 = vsub.f32 %v6170, %v6171
        %v6173 = vand.u32 %v6172, 4294901760
        %6174 = vmatprep.subr.mxu0 %v6173
        %v6175 = vand.u32 %v304, 4294901760
        %v6176 = vsub.f32 %v304, %v6175
        %v6177 = vand.u32 %v6176, 4294901760
        %v6178 = vsub.f32 %v6176, %v6177
        %v6179 = vand.u32 %v6178, 4294901760
        %6180 = vmatpush1.msra.mxu0 %v6179
        %v6181 = vand.u32 %v301, 4294901760
        %v6182 = vsub.f32 %v301, %v6181
        %v6183 = vand.u32 %v6182, 4294901760
        %v6184 = vsub.f32 %v6182, %v6183
        %v6185 = vand.u32 %v6184, 4294901760
        %6186 = vmatprep.subr.mxu0 %v6185
        %v6187 = vand.u32 %v300, 4294901760
        %v6188 = vsub.f32 %v300, %v6187
        %v6189 = vand.u32 %v6188, 4294901760
        %v6190 = vsub.f32 %v6188, %v6189
        %v6191 = vand.u32 %v6190, 4294901760
        %6192 = vmatpush1.msra.mxu0 %v6191
        %v6193 = vand.u32 %v297, 4294901760
        %v6194 = vsub.f32 %v297, %v6193
        %v6195 = vand.u32 %v6194, 4294901760
        %v6196 = vsub.f32 %v6194, %v6195
        %v6197 = vand.u32 %v6196, 4294901760
        %6198 = vmatprep.subr.mxu0 %v6197
        %v6199 = vand.u32 %v296, 4294901760
        %v6200 = vsub.f32 %v296, %v6199
        %v6201 = vand.u32 %v6200, 4294901760
        %v6202 = vsub.f32 %v6200, %v6201
        %v6203 = vand.u32 %v6202, 4294901760
        %6204 = vmatpush1.msra.mxu0 %v6203
        %v6205 = vand.u32 %v293, 4294901760
        %v6206 = vsub.f32 %v293, %v6205
        %v6207 = vand.u32 %v6206, 4294901760
        %v6208 = vsub.f32 %v6206, %v6207
        %v6209 = vand.u32 %v6208, 4294901760
        %6210 = vmatprep.subr.mxu0 %v6209
        %v6211 = vand.u32 %v292, 4294901760
        %v6212 = vsub.f32 %v292, %v6211
        %v6213 = vand.u32 %v6212, 4294901760
        %v6214 = vsub.f32 %v6212, %v6213
        %v6215 = vand.u32 %v6214, 4294901760
        %6216 = vmatpush1.msra.mxu0 %v6215
        %v6217 = vand.u32 %v289, 4294901760
        %v6218 = vsub.f32 %v289, %v6217
        %v6219 = vand.u32 %v6218, 4294901760
        %v6220 = vsub.f32 %v6218, %v6219
        %v6221 = vand.u32 %v6220, 4294901760
        %6222 = vmatprep.subr.mxu0 %v6221
        %v6223 = vand.u32 %v288, 4294901760
        %v6224 = vsub.f32 %v288, %v6223
        %v6225 = vand.u32 %v6224, 4294901760
        %v6226 = vsub.f32 %v6224, %v6225
        %v6227 = vand.u32 %v6226, 4294901760
        %6228 = vmatpush1.msra.mxu0 %v6227
        %v6229 = vand.u32 %v285, 4294901760
        %v6230 = vsub.f32 %v285, %v6229
        %v6231 = vand.u32 %v6230, 4294901760
        %v6232 = vsub.f32 %v6230, %v6231
        %v6233 = vand.u32 %v6232, 4294901760
        %6234 = vmatprep.subr.mxu0 %v6233
        %v6235 = vand.u32 %v284, 4294901760
        %v6236 = vsub.f32 %v284, %v6235
        %v6237 = vand.u32 %v6236, 4294901760
        %v6238 = vsub.f32 %v6236, %v6237
        %v6239 = vand.u32 %v6238, 4294901760
        %6240 = vmatpush1.msra.mxu0 %v6239
        %v6241 = vand.u32 %v281, 4294901760
        %v6242 = vsub.f32 %v281, %v6241
        %v6243 = vand.u32 %v6242, 4294901760
        %v6244 = vsub.f32 %v6242, %v6243
        %v6245 = vand.u32 %v6244, 4294901760
        %6246 = vmatprep.subr.mxu0 %v6245
        %v6247 = vand.u32 %v280, 4294901760
        %v6248 = vsub.f32 %v280, %v6247
        %v6249 = vand.u32 %v6248, 4294901760
        %v6250 = vsub.f32 %v6248, %v6249
        %v6251 = vand.u32 %v6250, 4294901760
        %6252 = vmatpush1.msra.mxu0 %v6251
        %v6253 = vand.u32 %v277, 4294901760
        %v6254 = vsub.f32 %v277, %v6253
        %v6255 = vand.u32 %v6254, 4294901760
        %v6256 = vsub.f32 %v6254, %v6255
        %v6257 = vand.u32 %v6256, 4294901760
        %6258 = vmatprep.subr.mxu0 %v6257
        %v6259 = vand.u32 %v276, 4294901760
        %v6260 = vsub.f32 %v276, %v6259
        %v6261 = vand.u32 %v6260, 4294901760
        %v6262 = vsub.f32 %v6260, %v6261
        %v6263 = vand.u32 %v6262, 4294901760
        %6264 = vmatpush1.msra.mxu0 %v6263
        %v6265 = vand.u32 %v273, 4294901760
        %v6266 = vsub.f32 %v273, %v6265
        %v6267 = vand.u32 %v6266, 4294901760
        %v6268 = vsub.f32 %v6266, %v6267
        %v6269 = vand.u32 %v6268, 4294901760
        %6270 = vmatprep.subr.mxu0 %v6269
        %v6271 = vand.u32 %v272, 4294901760
        %v6272 = vsub.f32 %v272, %v6271
        %v6273 = vand.u32 %v6272, 4294901760
        %v6274 = vsub.f32 %v6272, %v6273
        %v6275 = vand.u32 %v6274, 4294901760
        %6276 = vmatpush1.msra.mxu0 %v6275
        %v6277 = vand.u32 %v397, 4294901760
        %v6278 = vsub.f32 %v397, %v6277
        %v6279 = vand.u32 %v6278, 4294901760
        %v6280 = vsub.f32 %v6278, %v6279
        %v6281 = vand.u32 %v6280, 4294901760
        %6282 = vmatprep.subr.mxu0 %v6281
        %v6283 = vand.u32 %v396, 4294901760
        %v6284 = vsub.f32 %v396, %v6283
        %v6285 = vand.u32 %v6284, 4294901760
        %v6286 = vsub.f32 %v6284, %v6285
        %v6287 = vand.u32 %v6286, 4294901760
        %6288 = vmatpush2.msra.mxu0 %v6287
        %v6289 = vand.u32 %v393, 4294901760
        %v6290 = vsub.f32 %v393, %v6289
        %v6291 = vand.u32 %v6290, 4294901760
        %v6292 = vsub.f32 %v6290, %v6291
        %v6293 = vand.u32 %v6292, 4294901760
        %6294 = vmatprep.subr.mxu0 %v6293
        %v6295 = vand.u32 %v392, 4294901760
        %v6296 = vsub.f32 %v392, %v6295
        %v6297 = vand.u32 %v6296, 4294901760
        %v6298 = vsub.f32 %v6296, %v6297
        %v6299 = vand.u32 %v6298, 4294901760
        %6300 = vmatpush2.msra.mxu0 %v6299
        %v6301 = vand.u32 %v389, 4294901760
        %v6302 = vsub.f32 %v389, %v6301
        %v6303 = vand.u32 %v6302, 4294901760
        %v6304 = vsub.f32 %v6302, %v6303
        %v6305 = vand.u32 %v6304, 4294901760
        %6306 = vmatprep.subr.mxu0 %v6305
        %v6307 = vand.u32 %v388, 4294901760
        %v6308 = vsub.f32 %v388, %v6307
        %v6309 = vand.u32 %v6308, 4294901760
        %v6310 = vsub.f32 %v6308, %v6309
        %v6311 = vand.u32 %v6310, 4294901760
        %6312 = vmatpush2.msra.mxu0 %v6311
        %v6313 = vand.u32 %v385, 4294901760
        %v6314 = vsub.f32 %v385, %v6313
        %v6315 = vand.u32 %v6314, 4294901760
        %v6316 = vsub.f32 %v6314, %v6315
        %v6317 = vand.u32 %v6316, 4294901760
        %6318 = vmatprep.subr.mxu0 %v6317
        %v6319 = vand.u32 %v384, 4294901760
        %v6320 = vsub.f32 %v384, %v6319
        %v6321 = vand.u32 %v6320, 4294901760
        %v6322 = vsub.f32 %v6320, %v6321
        %v6323 = vand.u32 %v6322, 4294901760
        %6324 = vmatpush2.msra.mxu0 %v6323
        %v6325 = vand.u32 %v381, 4294901760
        %v6326 = vsub.f32 %v381, %v6325
        %v6327 = vand.u32 %v6326, 4294901760
        %v6328 = vsub.f32 %v6326, %v6327
        %v6329 = vand.u32 %v6328, 4294901760
        %6330 = vmatprep.subr.mxu0 %v6329
        %v6331 = vand.u32 %v380, 4294901760
        %v6332 = vsub.f32 %v380, %v6331
        %v6333 = vand.u32 %v6332, 4294901760
        %v6334 = vsub.f32 %v6332, %v6333
        %v6335 = vand.u32 %v6334, 4294901760
        %6336 = vmatpush2.msra.mxu0 %v6335
        %v6337 = vand.u32 %v377, 4294901760
        %v6338 = vsub.f32 %v377, %v6337
        %v6339 = vand.u32 %v6338, 4294901760
        %v6340 = vsub.f32 %v6338, %v6339
        %v6341 = vand.u32 %v6340, 4294901760
        %6342 = vmatprep.subr.mxu0 %v6341
        %v6343 = vand.u32 %v376, 4294901760
        %v6344 = vsub.f32 %v376, %v6343
        %v6345 = vand.u32 %v6344, 4294901760
        %v6346 = vsub.f32 %v6344, %v6345
        %v6347 = vand.u32 %v6346, 4294901760
        %6348 = vmatpush2.msra.mxu0 %v6347
        %v6349 = vand.u32 %v373, 4294901760
        %v6350 = vsub.f32 %v373, %v6349
        %v6351 = vand.u32 %v6350, 4294901760
        %v6352 = vsub.f32 %v6350, %v6351
        %v6353 = vand.u32 %v6352, 4294901760
        %6354 = vmatprep.subr.mxu0 %v6353
        %v6355 = vand.u32 %v372, 4294901760
        %v6356 = vsub.f32 %v372, %v6355
        %v6357 = vand.u32 %v6356, 4294901760
        %v6358 = vsub.f32 %v6356, %v6357
        %v6359 = vand.u32 %v6358, 4294901760
        %6360 = vmatpush2.msra.mxu0 %v6359
        %v6361 = vand.u32 %v369, 4294901760
        %v6362 = vsub.f32 %v369, %v6361
        %v6363 = vand.u32 %v6362, 4294901760
        %v6364 = vsub.f32 %v6362, %v6363
        %v6365 = vand.u32 %v6364, 4294901760
        %6366 = vmatprep.subr.mxu0 %v6365
        %v6367 = vand.u32 %v368, 4294901760
        %v6368 = vsub.f32 %v368, %v6367
        %v6369 = vand.u32 %v6368, 4294901760
        %v6370 = vsub.f32 %v6368, %v6369
        %v6371 = vand.u32 %v6370, 4294901760
        %6372 = vmatpush2.msra.mxu0 %v6371
        %v6373 = vand.u32 %v365, 4294901760
        %v6374 = vsub.f32 %v365, %v6373
        %v6375 = vand.u32 %v6374, 4294901760
        %v6376 = vsub.f32 %v6374, %v6375
        %v6377 = vand.u32 %v6376, 4294901760
        %6378 = vmatprep.subr.mxu0 %v6377
        %v6379 = vand.u32 %v364, 4294901760
        %v6380 = vsub.f32 %v364, %v6379
        %v6381 = vand.u32 %v6380, 4294901760
        %v6382 = vsub.f32 %v6380, %v6381
        %v6383 = vand.u32 %v6382, 4294901760
        %6384 = vmatpush2.msra.mxu0 %v6383
        %v6385 = vand.u32 %v361, 4294901760
        %v6386 = vsub.f32 %v361, %v6385
        %v6387 = vand.u32 %v6386, 4294901760
        %v6388 = vsub.f32 %v6386, %v6387
        %v6389 = vand.u32 %v6388, 4294901760
        %6390 = vmatprep.subr.mxu0 %v6389
        %v6391 = vand.u32 %v360, 4294901760
        %v6392 = vsub.f32 %v360, %v6391
        %v6393 = vand.u32 %v6392, 4294901760
        %v6394 = vsub.f32 %v6392, %v6393
        %v6395 = vand.u32 %v6394, 4294901760
        %6396 = vmatpush2.msra.mxu0 %v6395
        %v6397 = vand.u32 %v357, 4294901760
        %v6398 = vsub.f32 %v357, %v6397
        %v6399 = vand.u32 %v6398, 4294901760
        %v6400 = vsub.f32 %v6398, %v6399
        %v6401 = vand.u32 %v6400, 4294901760
        %6402 = vmatprep.subr.mxu0 %v6401
        %v6403 = vand.u32 %v356, 4294901760
        %v6404 = vsub.f32 %v356, %v6403
        %v6405 = vand.u32 %v6404, 4294901760
        %v6406 = vsub.f32 %v6404, %v6405
        %v6407 = vand.u32 %v6406, 4294901760
        %6408 = vmatpush2.msra.mxu0 %v6407
        %v6409 = vand.u32 %v353, 4294901760
        %v6410 = vsub.f32 %v353, %v6409
        %v6411 = vand.u32 %v6410, 4294901760
        %v6412 = vsub.f32 %v6410, %v6411
        %v6413 = vand.u32 %v6412, 4294901760
        %6414 = vmatprep.subr.mxu0 %v6413
        %v6415 = vand.u32 %v352, 4294901760
        %v6416 = vsub.f32 %v352, %v6415
        %v6417 = vand.u32 %v6416, 4294901760
        %v6418 = vsub.f32 %v6416, %v6417
        %v6419 = vand.u32 %v6418, 4294901760
        %6420 = vmatpush2.msra.mxu0 %v6419
        %v6421 = vand.u32 %v349, 4294901760
        %v6422 = vsub.f32 %v349, %v6421
        %v6423 = vand.u32 %v6422, 4294901760
        %v6424 = vsub.f32 %v6422, %v6423
        %v6425 = vand.u32 %v6424, 4294901760
        %6426 = vmatprep.subr.mxu0 %v6425
        %v6427 = vand.u32 %v348, 4294901760
        %v6428 = vsub.f32 %v348, %v6427
        %v6429 = vand.u32 %v6428, 4294901760
        %v6430 = vsub.f32 %v6428, %v6429
        %v6431 = vand.u32 %v6430, 4294901760
        %6432 = vmatpush2.msra.mxu0 %v6431
        %v6433 = vand.u32 %v345, 4294901760
        %v6434 = vsub.f32 %v345, %v6433
        %v6435 = vand.u32 %v6434, 4294901760
        %v6436 = vsub.f32 %v6434, %v6435
        %v6437 = vand.u32 %v6436, 4294901760
        %6438 = vmatprep.subr.mxu0 %v6437
        %v6439 = vand.u32 %v344, 4294901760
        %v6440 = vsub.f32 %v344, %v6439
        %v6441 = vand.u32 %v6440, 4294901760
        %v6442 = vsub.f32 %v6440, %v6441
        %v6443 = vand.u32 %v6442, 4294901760
        %6444 = vmatpush2.msra.mxu0 %v6443
        %v6445 = vand.u32 %v341, 4294901760
        %v6446 = vsub.f32 %v341, %v6445
        %v6447 = vand.u32 %v6446, 4294901760
        %v6448 = vsub.f32 %v6446, %v6447
        %v6449 = vand.u32 %v6448, 4294901760
        %6450 = vmatprep.subr.mxu0 %v6449
        %v6451 = vand.u32 %v340, 4294901760
        %v6452 = vsub.f32 %v340, %v6451
        %v6453 = vand.u32 %v6452, 4294901760
        %v6454 = vsub.f32 %v6452, %v6453
        %v6455 = vand.u32 %v6454, 4294901760
        %6456 = vmatpush2.msra.mxu0 %v6455
        %v6457 = vand.u32 %v337, 4294901760
        %v6458 = vsub.f32 %v337, %v6457
        %v6459 = vand.u32 %v6458, 4294901760
        %v6460 = vsub.f32 %v6458, %v6459
        %v6461 = vand.u32 %v6460, 4294901760
        %6462 = vmatprep.subr.mxu0 %v6461
        %v6463 = vand.u32 %v336, 4294901760
        %v6464 = vsub.f32 %v336, %v6463
        %v6465 = vand.u32 %v6464, 4294901760
        %v6466 = vsub.f32 %v6464, %v6465
        %v6467 = vand.u32 %v6466, 4294901760
        %6468 = vmatpush2.msra.mxu0 %v6467
        %v6469 = vand.u32 %v263, 4294901760
        %6470 = vmatprep.mubr.f32.mxu0 %v6469
        %v6471 = vand.u32 %v262, 4294901760
        %6472 = vmatmul.mubr.f32.gmra.mxu0 %v6471
        %v6473 = vpop.f32.mrf.mxu0
        %v6474 = vadd.f32 %v6081, %v6473
        %v6475 = vpop.f32.mrf.mxu0
        %v6476 = vadd.f32 %v6083, %v6475
        %6477 = vdwg.mxu0
        %v6478 = vand.u32 %v333, 4294901760
        %v6479 = vsub.f32 %v333, %v6478
        %6480 = vmatprep.subr.mxu0 %v6479
        %v6481 = vand.u32 %v332, 4294901760
        %v6482 = vsub.f32 %v332, %v6481
        %6483 = vmatpush1.msra.mxu0 %v6482
        %v6484 = vand.u32 %v329, 4294901760
        %v6485 = vsub.f32 %v329, %v6484
        %6486 = vmatprep.subr.mxu0 %v6485
        %v6487 = vand.u32 %v328, 4294901760
        %v6488 = vsub.f32 %v328, %v6487
        %6489 = vmatpush1.msra.mxu0 %v6488
        %v6490 = vand.u32 %v325, 4294901760
        %v6491 = vsub.f32 %v325, %v6490
        %6492 = vmatprep.subr.mxu0 %v6491
        %v6493 = vand.u32 %v324, 4294901760
        %v6494 = vsub.f32 %v324, %v6493
        %6495 = vmatpush1.msra.mxu0 %v6494
        %v6496 = vand.u32 %v321, 4294901760
        %v6497 = vsub.f32 %v321, %v6496
        %6498 = vmatprep.subr.mxu0 %v6497
        %v6499 = vand.u32 %v320, 4294901760
        %v6500 = vsub.f32 %v320, %v6499
        %6501 = vmatpush1.msra.mxu0 %v6500
        %v6502 = vand.u32 %v317, 4294901760
        %v6503 = vsub.f32 %v317, %v6502
        %6504 = vmatprep.subr.mxu0 %v6503
        %v6505 = vand.u32 %v316, 4294901760
        %v6506 = vsub.f32 %v316, %v6505
        %6507 = vmatpush1.msra.mxu0 %v6506
        %v6508 = vand.u32 %v313, 4294901760
        %v6509 = vsub.f32 %v313, %v6508
        %6510 = vmatprep.subr.mxu0 %v6509
        %v6511 = vand.u32 %v312, 4294901760
        %v6512 = vsub.f32 %v312, %v6511
        %6513 = vmatpush1.msra.mxu0 %v6512
        %v6514 = vand.u32 %v309, 4294901760
        %v6515 = vsub.f32 %v309, %v6514
        %6516 = vmatprep.subr.mxu0 %v6515
        %v6517 = vand.u32 %v308, 4294901760
        %v6518 = vsub.f32 %v308, %v6517
        %6519 = vmatpush1.msra.mxu0 %v6518
        %v6520 = vand.u32 %v305, 4294901760
        %v6521 = vsub.f32 %v305, %v6520
        %6522 = vmatprep.subr.mxu0 %v6521
        %v6523 = vand.u32 %v304, 4294901760
        %v6524 = vsub.f32 %v304, %v6523
        %6525 = vmatpush1.msra.mxu0 %v6524
        %v6526 = vand.u32 %v301, 4294901760
        %v6527 = vsub.f32 %v301, %v6526
        %6528 = vmatprep.subr.mxu0 %v6527
        %v6529 = vand.u32 %v300, 4294901760
        %v6530 = vsub.f32 %v300, %v6529
        %6531 = vmatpush1.msra.mxu0 %v6530
        %v6532 = vand.u32 %v297, 4294901760
        %v6533 = vsub.f32 %v297, %v6532
        %6534 = vmatprep.subr.mxu0 %v6533
        %v6535 = vand.u32 %v296, 4294901760
        %v6536 = vsub.f32 %v296, %v6535
        %6537 = vmatpush1.msra.mxu0 %v6536
        %v6538 = vand.u32 %v293, 4294901760
        %v6539 = vsub.f32 %v293, %v6538
        %6540 = vmatprep.subr.mxu0 %v6539
        %v6541 = vand.u32 %v292, 4294901760
        %v6542 = vsub.f32 %v292, %v6541
        %6543 = vmatpush1.msra.mxu0 %v6542
        %v6544 = vand.u32 %v289, 4294901760
        %v6545 = vsub.f32 %v289, %v6544
        %6546 = vmatprep.subr.mxu0 %v6545
        %v6547 = vand.u32 %v288, 4294901760
        %v6548 = vsub.f32 %v288, %v6547
        %6549 = vmatpush1.msra.mxu0 %v6548
        %v6550 = vand.u32 %v285, 4294901760
        %v6551 = vsub.f32 %v285, %v6550
        %6552 = vmatprep.subr.mxu0 %v6551
        %v6553 = vand.u32 %v284, 4294901760
        %v6554 = vsub.f32 %v284, %v6553
        %6555 = vmatpush1.msra.mxu0 %v6554
        %v6556 = vand.u32 %v281, 4294901760
        %v6557 = vsub.f32 %v281, %v6556
        %6558 = vmatprep.subr.mxu0 %v6557
        %v6559 = vand.u32 %v280, 4294901760
        %v6560 = vsub.f32 %v280, %v6559
        %6561 = vmatpush1.msra.mxu0 %v6560
        %v6562 = vand.u32 %v277, 4294901760
        %v6563 = vsub.f32 %v277, %v6562
        %6564 = vmatprep.subr.mxu0 %v6563
        %v6565 = vand.u32 %v276, 4294901760
        %v6566 = vsub.f32 %v276, %v6565
        %6567 = vmatpush1.msra.mxu0 %v6566
        %v6568 = vand.u32 %v273, 4294901760
        %v6569 = vsub.f32 %v273, %v6568
        %6570 = vmatprep.subr.mxu0 %v6569
        %v6571 = vand.u32 %v272, 4294901760
        %v6572 = vsub.f32 %v272, %v6571
        %6573 = vmatpush1.msra.mxu0 %v6572
        %v6574 = vand.u32 %v397, 4294901760
        %v6575 = vsub.f32 %v397, %v6574
        %6576 = vmatprep.subr.mxu0 %v6575
        %v6577 = vand.u32 %v396, 4294901760
        %v6578 = vsub.f32 %v396, %v6577
        %6579 = vmatpush2.msra.mxu0 %v6578
        %v6580 = vand.u32 %v393, 4294901760
        %v6581 = vsub.f32 %v393, %v6580
        %6582 = vmatprep.subr.mxu0 %v6581
        %v6583 = vand.u32 %v392, 4294901760
        %v6584 = vsub.f32 %v392, %v6583
        %6585 = vmatpush2.msra.mxu0 %v6584
        %v6586 = vand.u32 %v389, 4294901760
        %v6587 = vsub.f32 %v389, %v6586
        %6588 = vmatprep.subr.mxu0 %v6587
        %v6589 = vand.u32 %v388, 4294901760
        %v6590 = vsub.f32 %v388, %v6589
        %6591 = vmatpush2.msra.mxu0 %v6590
        %v6592 = vand.u32 %v385, 4294901760
        %v6593 = vsub.f32 %v385, %v6592
        %6594 = vmatprep.subr.mxu0 %v6593
        %v6595 = vand.u32 %v384, 4294901760
        %v6596 = vsub.f32 %v384, %v6595
        %6597 = vmatpush2.msra.mxu0 %v6596
        %v6598 = vand.u32 %v381, 4294901760
        %v6599 = vsub.f32 %v381, %v6598
        %6600 = vmatprep.subr.mxu0 %v6599
        %v6601 = vand.u32 %v380, 4294901760
        %v6602 = vsub.f32 %v380, %v6601
        %6603 = vmatpush2.msra.mxu0 %v6602
        %v6604 = vand.u32 %v377, 4294901760
        %v6605 = vsub.f32 %v377, %v6604
        %6606 = vmatprep.subr.mxu0 %v6605
        %v6607 = vand.u32 %v376, 4294901760
        %v6608 = vsub.f32 %v376, %v6607
        %6609 = vmatpush2.msra.mxu0 %v6608
        %v6610 = vand.u32 %v373, 4294901760
        %v6611 = vsub.f32 %v373, %v6610
        %6612 = vmatprep.subr.mxu0 %v6611
        %v6613 = vand.u32 %v372, 4294901760
        %v6614 = vsub.f32 %v372, %v6613
        %6615 = vmatpush2.msra.mxu0 %v6614
        %v6616 = vand.u32 %v369, 4294901760
        %v6617 = vsub.f32 %v369, %v6616
        %6618 = vmatprep.subr.mxu0 %v6617
        %v6619 = vand.u32 %v368, 4294901760
        %v6620 = vsub.f32 %v368, %v6619
        %6621 = vmatpush2.msra.mxu0 %v6620
        %v6622 = vand.u32 %v365, 4294901760
        %v6623 = vsub.f32 %v365, %v6622
        %6624 = vmatprep.subr.mxu0 %v6623
        %v6625 = vand.u32 %v364, 4294901760
        %v6626 = vsub.f32 %v364, %v6625
        %6627 = vmatpush2.msra.mxu0 %v6626
        %v6628 = vand.u32 %v361, 4294901760
        %v6629 = vsub.f32 %v361, %v6628
        %6630 = vmatprep.subr.mxu0 %v6629
        %v6631 = vand.u32 %v360, 4294901760
        %v6632 = vsub.f32 %v360, %v6631
        %6633 = vmatpush2.msra.mxu0 %v6632
        %v6634 = vand.u32 %v357, 4294901760
        %v6635 = vsub.f32 %v357, %v6634
        %6636 = vmatprep.subr.mxu0 %v6635
        %v6637 = vand.u32 %v356, 4294901760
        %v6638 = vsub.f32 %v356, %v6637
        %6639 = vmatpush2.msra.mxu0 %v6638
        %v6640 = vand.u32 %v353, 4294901760
        %v6641 = vsub.f32 %v353, %v6640
        %6642 = vmatprep.subr.mxu0 %v6641
        %v6643 = vand.u32 %v352, 4294901760
        %v6644 = vsub.f32 %v352, %v6643
        %6645 = vmatpush2.msra.mxu0 %v6644
        %v6646 = vand.u32 %v349, 4294901760
        %v6647 = vsub.f32 %v349, %v6646
        %6648 = vmatprep.subr.mxu0 %v6647
        %v6649 = vand.u32 %v348, 4294901760
        %v6650 = vsub.f32 %v348, %v6649
        %6651 = vmatpush2.msra.mxu0 %v6650
        %v6652 = vand.u32 %v345, 4294901760
        %v6653 = vsub.f32 %v345, %v6652
        %6654 = vmatprep.subr.mxu0 %v6653
        %v6655 = vand.u32 %v344, 4294901760
        %v6656 = vsub.f32 %v344, %v6655
        %6657 = vmatpush2.msra.mxu0 %v6656
        %v6658 = vand.u32 %v341, 4294901760
        %v6659 = vsub.f32 %v341, %v6658
        %6660 = vmatprep.subr.mxu0 %v6659
        %v6661 = vand.u32 %v340, 4294901760
        %v6662 = vsub.f32 %v340, %v6661
        %6663 = vmatpush2.msra.mxu0 %v6662
        %v6664 = vand.u32 %v337, 4294901760
        %v6665 = vsub.f32 %v337, %v6664
        %6666 = vmatprep.subr.mxu0 %v6665
        %v6667 = vand.u32 %v336, 4294901760
        %v6668 = vsub.f32 %v336, %v6667
        %6669 = vmatpush2.msra.mxu0 %v6668
        %v6670 = vand.u32 %v263, 4294901760
        %v6671 = vsub.f32 %v263, %v6670
        %6672 = vmatprep.mubr.f32.mxu0 %v6671
        %v6673 = vand.u32 %v262, 4294901760
        %v6674 = vsub.f32 %v262, %v6673
        %6675 = vmatmul.mubr.f32.gmra.mxu0 %v6674
        %v6676 = vpop.f32.mrf.mxu0
        %v6677 = vadd.f32 %v6474, %v6676
        %v6678 = vpop.f32.mrf.mxu0
        %v6679 = vadd.f32 %v6476, %v6678
        %6680 = vdwg.mxu0
        %v6681 = vand.u32 %v333, 4294901760
        %6682 = vmatprep.subr.mxu0 %v6681
        %v6683 = vand.u32 %v332, 4294901760
        %6684 = vmatpush1.msra.mxu0 %v6683
        %v6685 = vand.u32 %v329, 4294901760
        %6686 = vmatprep.subr.mxu0 %v6685
        %v6687 = vand.u32 %v328, 4294901760
        %6688 = vmatpush1.msra.mxu0 %v6687
        %v6689 = vand.u32 %v325, 4294901760
        %6690 = vmatprep.subr.mxu0 %v6689
        %v6691 = vand.u32 %v324, 4294901760
        %6692 = vmatpush1.msra.mxu0 %v6691
        %v6693 = vand.u32 %v321, 4294901760
        %6694 = vmatprep.subr.mxu0 %v6693
        %v6695 = vand.u32 %v320, 4294901760
        %6696 = vmatpush1.msra.mxu0 %v6695
        %v6697 = vand.u32 %v317, 4294901760
        %6698 = vmatprep.subr.mxu0 %v6697
        %v6699 = vand.u32 %v316, 4294901760
        %6700 = vmatpush1.msra.mxu0 %v6699
        %v6701 = vand.u32 %v313, 4294901760
        %6702 = vmatprep.subr.mxu0 %v6701
        %v6703 = vand.u32 %v312, 4294901760
        %6704 = vmatpush1.msra.mxu0 %v6703
        %v6705 = vand.u32 %v309, 4294901760
        %6706 = vmatprep.subr.mxu0 %v6705
        %v6707 = vand.u32 %v308, 4294901760
        %6708 = vmatpush1.msra.mxu0 %v6707
        %v6709 = vand.u32 %v305, 4294901760
        %6710 = vmatprep.subr.mxu0 %v6709
        %v6711 = vand.u32 %v304, 4294901760
        %6712 = vmatpush1.msra.mxu0 %v6711
        %v6713 = vand.u32 %v301, 4294901760
        %6714 = vmatprep.subr.mxu0 %v6713
        %v6715 = vand.u32 %v300, 4294901760
        %6716 = vmatpush1.msra.mxu0 %v6715
        %v6717 = vand.u32 %v297, 4294901760
        %6718 = vmatprep.subr.mxu0 %v6717
        %v6719 = vand.u32 %v296, 4294901760
        %6720 = vmatpush1.msra.mxu0 %v6719
        %v6721 = vand.u32 %v293, 4294901760
        %6722 = vmatprep.subr.mxu0 %v6721
        %v6723 = vand.u32 %v292, 4294901760
        %6724 = vmatpush1.msra.mxu0 %v6723
        %v6725 = vand.u32 %v289, 4294901760
        %6726 = vmatprep.subr.mxu0 %v6725
        %v6727 = vand.u32 %v288, 4294901760
        %6728 = vmatpush1.msra.mxu0 %v6727
        %v6729 = vand.u32 %v285, 4294901760
        %6730 = vmatprep.subr.mxu0 %v6729
        %v6731 = vand.u32 %v284, 4294901760
        %6732 = vmatpush1.msra.mxu0 %v6731
        %v6733 = vand.u32 %v281, 4294901760
        %6734 = vmatprep.subr.mxu0 %v6733
        %v6735 = vand.u32 %v280, 4294901760
        %6736 = vmatpush1.msra.mxu0 %v6735
        %v6737 = vand.u32 %v277, 4294901760
        %6738 = vmatprep.subr.mxu0 %v6737
        %v6739 = vand.u32 %v276, 4294901760
        %6740 = vmatpush1.msra.mxu0 %v6739
        %v6741 = vand.u32 %v273, 4294901760
        %6742 = vmatprep.subr.mxu0 %v6741
        %v6743 = vand.u32 %v272, 4294901760
        %6744 = vmatpush1.msra.mxu0 %v6743
        %v6745 = vand.u32 %v397, 4294901760
        %6746 = vmatprep.subr.mxu0 %v6745
        %v6747 = vand.u32 %v396, 4294901760
        %6748 = vmatpush2.msra.mxu0 %v6747
        %v6749 = vand.u32 %v393, 4294901760
        %6750 = vmatprep.subr.mxu0 %v6749
        %v6751 = vand.u32 %v392, 4294901760
        %6752 = vmatpush2.msra.mxu0 %v6751
        %v6753 = vand.u32 %v389, 4294901760
        %6754 = vmatprep.subr.mxu0 %v6753
        %v6755 = vand.u32 %v388, 4294901760
        %6756 = vmatpush2.msra.mxu0 %v6755
        %v6757 = vand.u32 %v385, 4294901760
        %6758 = vmatprep.subr.mxu0 %v6757
        %v6759 = vand.u32 %v384, 4294901760
        %6760 = vmatpush2.msra.mxu0 %v6759
        %v6761 = vand.u32 %v381, 4294901760
        %6762 = vmatprep.subr.mxu0 %v6761
        %v6763 = vand.u32 %v380, 4294901760
        %6764 = vmatpush2.msra.mxu0 %v6763
        %v6765 = vand.u32 %v377, 4294901760
        %6766 = vmatprep.subr.mxu0 %v6765
        %v6767 = vand.u32 %v376, 4294901760
        %6768 = vmatpush2.msra.mxu0 %v6767
        %v6769 = vand.u32 %v373, 4294901760
        %6770 = vmatprep.subr.mxu0 %v6769
        %v6771 = vand.u32 %v372, 4294901760
        %6772 = vmatpush2.msra.mxu0 %v6771
        %v6773 = vand.u32 %v369, 4294901760
        %6774 = vmatprep.subr.mxu0 %v6773
        %v6775 = vand.u32 %v368, 4294901760
        %6776 = vmatpush2.msra.mxu0 %v6775
        %v6777 = vand.u32 %v365, 4294901760
        %6778 = vmatprep.subr.mxu0 %v6777
        %v6779 = vand.u32 %v364, 4294901760
        %6780 = vmatpush2.msra.mxu0 %v6779
        %v6781 = vand.u32 %v361, 4294901760
        %6782 = vmatprep.subr.mxu0 %v6781
        %v6783 = vand.u32 %v360, 4294901760
        %6784 = vmatpush2.msra.mxu0 %v6783
        %v6785 = vand.u32 %v357, 4294901760
        %6786 = vmatprep.subr.mxu0 %v6785
        %v6787 = vand.u32 %v356, 4294901760
        %6788 = vmatpush2.msra.mxu0 %v6787
        %v6789 = vand.u32 %v353, 4294901760
        %6790 = vmatprep.subr.mxu0 %v6789
        %v6791 = vand.u32 %v352, 4294901760
        %6792 = vmatpush2.msra.mxu0 %v6791
        %v6793 = vand.u32 %v349, 4294901760
        %6794 = vmatprep.subr.mxu0 %v6793
        %v6795 = vand.u32 %v348, 4294901760
        %6796 = vmatpush2.msra.mxu0 %v6795
        %v6797 = vand.u32 %v345, 4294901760
        %6798 = vmatprep.subr.mxu0 %v6797
        %v6799 = vand.u32 %v344, 4294901760
        %6800 = vmatpush2.msra.mxu0 %v6799
        %v6801 = vand.u32 %v341, 4294901760
        %6802 = vmatprep.subr.mxu0 %v6801
        %v6803 = vand.u32 %v340, 4294901760
        %6804 = vmatpush2.msra.mxu0 %v6803
        %v6805 = vand.u32 %v337, 4294901760
        %6806 = vmatprep.subr.mxu0 %v6805
        %v6807 = vand.u32 %v336, 4294901760
        %6808 = vmatpush2.msra.mxu0 %v6807
        %v6809 = vand.u32 %v263, 4294901760
        %v6810 = vsub.f32 %v263, %v6809
        %v6811 = vand.u32 %v6810, 4294901760
        %6812 = vmatprep.mubr.f32.mxu0 %v6811
        %v6813 = vand.u32 %v262, 4294901760
        %v6814 = vsub.f32 %v262, %v6813
        %v6815 = vand.u32 %v6814, 4294901760
        %6816 = vmatmul.mubr.f32.gmra.mxu0 %v6815
        %v6817 = vpop.f32.mrf.mxu0
        %v6818 = vadd.f32 %v6677, %v6817
        %v6819 = vpop.f32.mrf.mxu0
        %v6820 = vadd.f32 %v6679, %v6819
        %6821 = vdwg.mxu0
        %v6822 = vand.u32 %v333, 4294901760
        %v6823 = vsub.f32 %v333, %v6822
        %v6824 = vand.u32 %v6823, 4294901760
        %6825 = vmatprep.subr.mxu0 %v6824
        %v6826 = vand.u32 %v332, 4294901760
        %v6827 = vsub.f32 %v332, %v6826
        %v6828 = vand.u32 %v6827, 4294901760
        %6829 = vmatpush1.msra.mxu0 %v6828
        %v6830 = vand.u32 %v329, 4294901760
        %v6831 = vsub.f32 %v329, %v6830
        %v6832 = vand.u32 %v6831, 4294901760
        %6833 = vmatprep.subr.mxu0 %v6832
        %v6834 = vand.u32 %v328, 4294901760
        %v6835 = vsub.f32 %v328, %v6834
        %v6836 = vand.u32 %v6835, 4294901760
        %6837 = vmatpush1.msra.mxu0 %v6836
        %v6838 = vand.u32 %v325, 4294901760
        %v6839 = vsub.f32 %v325, %v6838
        %v6840 = vand.u32 %v6839, 4294901760
        %6841 = vmatprep.subr.mxu0 %v6840
        %v6842 = vand.u32 %v324, 4294901760
        %v6843 = vsub.f32 %v324, %v6842
        %v6844 = vand.u32 %v6843, 4294901760
        %6845 = vmatpush1.msra.mxu0 %v6844
        %v6846 = vand.u32 %v321, 4294901760
        %v6847 = vsub.f32 %v321, %v6846
        %v6848 = vand.u32 %v6847, 4294901760
        %6849 = vmatprep.subr.mxu0 %v6848
        %v6850 = vand.u32 %v320, 4294901760
        %v6851 = vsub.f32 %v320, %v6850
        %v6852 = vand.u32 %v6851, 4294901760
        %6853 = vmatpush1.msra.mxu0 %v6852
        %v6854 = vand.u32 %v317, 4294901760
        %v6855 = vsub.f32 %v317, %v6854
        %v6856 = vand.u32 %v6855, 4294901760
        %6857 = vmatprep.subr.mxu0 %v6856
        %v6858 = vand.u32 %v316, 4294901760
        %v6859 = vsub.f32 %v316, %v6858
        %v6860 = vand.u32 %v6859, 4294901760
        %6861 = vmatpush1.msra.mxu0 %v6860
        %v6862 = vand.u32 %v313, 4294901760
        %v6863 = vsub.f32 %v313, %v6862
        %v6864 = vand.u32 %v6863, 4294901760
        %6865 = vmatprep.subr.mxu0 %v6864
        %v6866 = vand.u32 %v312, 4294901760
        %v6867 = vsub.f32 %v312, %v6866
        %v6868 = vand.u32 %v6867, 4294901760
        %6869 = vmatpush1.msra.mxu0 %v6868
        %v6870 = vand.u32 %v309, 4294901760
        %v6871 = vsub.f32 %v309, %v6870
        %v6872 = vand.u32 %v6871, 4294901760
        %6873 = vmatprep.subr.mxu0 %v6872
        %v6874 = vand.u32 %v308, 4294901760
        %v6875 = vsub.f32 %v308, %v6874
        %v6876 = vand.u32 %v6875, 4294901760
        %6877 = vmatpush1.msra.mxu0 %v6876
        %v6878 = vand.u32 %v305, 4294901760
        %v6879 = vsub.f32 %v305, %v6878
        %v6880 = vand.u32 %v6879, 4294901760
        %6881 = vmatprep.subr.mxu0 %v6880
        %v6882 = vand.u32 %v304, 4294901760
        %v6883 = vsub.f32 %v304, %v6882
        %v6884 = vand.u32 %v6883, 4294901760
        %6885 = vmatpush1.msra.mxu0 %v6884
        %v6886 = vand.u32 %v301, 4294901760
        %v6887 = vsub.f32 %v301, %v6886
        %v6888 = vand.u32 %v6887, 4294901760
        %6889 = vmatprep.subr.mxu0 %v6888
        %v6890 = vand.u32 %v300, 4294901760
        %v6891 = vsub.f32 %v300, %v6890
        %v6892 = vand.u32 %v6891, 4294901760
        %6893 = vmatpush1.msra.mxu0 %v6892
        %v6894 = vand.u32 %v297, 4294901760
        %v6895 = vsub.f32 %v297, %v6894
        %v6896 = vand.u32 %v6895, 4294901760
        %6897 = vmatprep.subr.mxu0 %v6896
        %v6898 = vand.u32 %v296, 4294901760
        %v6899 = vsub.f32 %v296, %v6898
        %v6900 = vand.u32 %v6899, 4294901760
        %6901 = vmatpush1.msra.mxu0 %v6900
        %v6902 = vand.u32 %v293, 4294901760
        %v6903 = vsub.f32 %v293, %v6902
        %v6904 = vand.u32 %v6903, 4294901760
        %6905 = vmatprep.subr.mxu0 %v6904
        %v6906 = vand.u32 %v292, 4294901760
        %v6907 = vsub.f32 %v292, %v6906
        %v6908 = vand.u32 %v6907, 4294901760
        %6909 = vmatpush1.msra.mxu0 %v6908
        %v6910 = vand.u32 %v289, 4294901760
        %v6911 = vsub.f32 %v289, %v6910
        %v6912 = vand.u32 %v6911, 4294901760
        %6913 = vmatprep.subr.mxu0 %v6912
        %v6914 = vand.u32 %v288, 4294901760
        %v6915 = vsub.f32 %v288, %v6914
        %v6916 = vand.u32 %v6915, 4294901760
        %6917 = vmatpush1.msra.mxu0 %v6916
        %v6918 = vand.u32 %v285, 4294901760
        %v6919 = vsub.f32 %v285, %v6918
        %v6920 = vand.u32 %v6919, 4294901760
        %6921 = vmatprep.subr.mxu0 %v6920
        %v6922 = vand.u32 %v284, 4294901760
        %v6923 = vsub.f32 %v284, %v6922
        %v6924 = vand.u32 %v6923, 4294901760
        %6925 = vmatpush1.msra.mxu0 %v6924
        %v6926 = vand.u32 %v281, 4294901760
        %v6927 = vsub.f32 %v281, %v6926
        %v6928 = vand.u32 %v6927, 4294901760
        %6929 = vmatprep.subr.mxu0 %v6928
        %v6930 = vand.u32 %v280, 4294901760
        %v6931 = vsub.f32 %v280, %v6930
        %v6932 = vand.u32 %v6931, 4294901760
        %6933 = vmatpush1.msra.mxu0 %v6932
        %v6934 = vand.u32 %v277, 4294901760
        %v6935 = vsub.f32 %v277, %v6934
        %v6936 = vand.u32 %v6935, 4294901760
        %6937 = vmatprep.subr.mxu0 %v6936
        %v6938 = vand.u32 %v276, 4294901760
        %v6939 = vsub.f32 %v276, %v6938
        %v6940 = vand.u32 %v6939, 4294901760
        %6941 = vmatpush1.msra.mxu0 %v6940
        %v6942 = vand.u32 %v273, 4294901760
        %v6943 = vsub.f32 %v273, %v6942
        %v6944 = vand.u32 %v6943, 4294901760
        %6945 = vmatprep.subr.mxu0 %v6944
        %v6946 = vand.u32 %v272, 4294901760
        %v6947 = vsub.f32 %v272, %v6946
        %v6948 = vand.u32 %v6947, 4294901760
        %6949 = vmatpush1.msra.mxu0 %v6948
        %v6950 = vand.u32 %v397, 4294901760
        %v6951 = vsub.f32 %v397, %v6950
        %v6952 = vand.u32 %v6951, 4294901760
        %6953 = vmatprep.subr.mxu0 %v6952
        %v6954 = vand.u32 %v396, 4294901760
        %v6955 = vsub.f32 %v396, %v6954
        %v6956 = vand.u32 %v6955, 4294901760
        %6957 = vmatpush2.msra.mxu0 %v6956
        %v6958 = vand.u32 %v393, 4294901760
        %v6959 = vsub.f32 %v393, %v6958
        %v6960 = vand.u32 %v6959, 4294901760
        %6961 = vmatprep.subr.mxu0 %v6960
        %v6962 = vand.u32 %v392, 4294901760
        %v6963 = vsub.f32 %v392, %v6962
        %v6964 = vand.u32 %v6963, 4294901760
        %6965 = vmatpush2.msra.mxu0 %v6964
        %v6966 = vand.u32 %v389, 4294901760
        %v6967 = vsub.f32 %v389, %v6966
        %v6968 = vand.u32 %v6967, 4294901760
        %6969 = vmatprep.subr.mxu0 %v6968
        %v6970 = vand.u32 %v388, 4294901760
        %v6971 = vsub.f32 %v388, %v6970
        %v6972 = vand.u32 %v6971, 4294901760
        %6973 = vmatpush2.msra.mxu0 %v6972
        %v6974 = vand.u32 %v385, 4294901760
        %v6975 = vsub.f32 %v385, %v6974
        %v6976 = vand.u32 %v6975, 4294901760
        %6977 = vmatprep.subr.mxu0 %v6976
        %v6978 = vand.u32 %v384, 4294901760
        %v6979 = vsub.f32 %v384, %v6978
        %v6980 = vand.u32 %v6979, 4294901760
        %6981 = vmatpush2.msra.mxu0 %v6980
        %v6982 = vand.u32 %v381, 4294901760
        %v6983 = vsub.f32 %v381, %v6982
        %v6984 = vand.u32 %v6983, 4294901760
        %6985 = vmatprep.subr.mxu0 %v6984
        %v6986 = vand.u32 %v380, 4294901760
        %v6987 = vsub.f32 %v380, %v6986
        %v6988 = vand.u32 %v6987, 4294901760
        %6989 = vmatpush2.msra.mxu0 %v6988
        %v6990 = vand.u32 %v377, 4294901760
        %v6991 = vsub.f32 %v377, %v6990
        %v6992 = vand.u32 %v6991, 4294901760
        %6993 = vmatprep.subr.mxu0 %v6992
        %v6994 = vand.u32 %v376, 4294901760
        %v6995 = vsub.f32 %v376, %v6994
        %v6996 = vand.u32 %v6995, 4294901760
        %6997 = vmatpush2.msra.mxu0 %v6996
        %v6998 = vand.u32 %v373, 4294901760
        %v6999 = vsub.f32 %v373, %v6998
        %v7000 = vand.u32 %v6999, 4294901760
        %7001 = vmatprep.subr.mxu0 %v7000
        %v7002 = vand.u32 %v372, 4294901760
        %v7003 = vsub.f32 %v372, %v7002
        %v7004 = vand.u32 %v7003, 4294901760
        %7005 = vmatpush2.msra.mxu0 %v7004
        %v7006 = vand.u32 %v369, 4294901760
        %v7007 = vsub.f32 %v369, %v7006
        %v7008 = vand.u32 %v7007, 4294901760
        %7009 = vmatprep.subr.mxu0 %v7008
        %v7010 = vand.u32 %v368, 4294901760
        %v7011 = vsub.f32 %v368, %v7010
        %v7012 = vand.u32 %v7011, 4294901760
        %7013 = vmatpush2.msra.mxu0 %v7012
        %v7014 = vand.u32 %v365, 4294901760
        %v7015 = vsub.f32 %v365, %v7014
        %v7016 = vand.u32 %v7015, 4294901760
        %7017 = vmatprep.subr.mxu0 %v7016
        %v7018 = vand.u32 %v364, 4294901760
        %v7019 = vsub.f32 %v364, %v7018
        %v7020 = vand.u32 %v7019, 4294901760
        %7021 = vmatpush2.msra.mxu0 %v7020
        %v7022 = vand.u32 %v361, 4294901760
        %v7023 = vsub.f32 %v361, %v7022
        %v7024 = vand.u32 %v7023, 4294901760
        %7025 = vmatprep.subr.mxu0 %v7024
        %v7026 = vand.u32 %v360, 4294901760
        %v7027 = vsub.f32 %v360, %v7026
        %v7028 = vand.u32 %v7027, 4294901760
        %7029 = vmatpush2.msra.mxu0 %v7028
        %v7030 = vand.u32 %v357, 4294901760
        %v7031 = vsub.f32 %v357, %v7030
        %v7032 = vand.u32 %v7031, 4294901760
        %7033 = vmatprep.subr.mxu0 %v7032
        %v7034 = vand.u32 %v356, 4294901760
        %v7035 = vsub.f32 %v356, %v7034
        %v7036 = vand.u32 %v7035, 4294901760
        %7037 = vmatpush2.msra.mxu0 %v7036
        %v7038 = vand.u32 %v353, 4294901760
        %v7039 = vsub.f32 %v353, %v7038
        %v7040 = vand.u32 %v7039, 4294901760
        %7041 = vmatprep.subr.mxu0 %v7040
        %v7042 = vand.u32 %v352, 4294901760
        %v7043 = vsub.f32 %v352, %v7042
        %v7044 = vand.u32 %v7043, 4294901760
        %7045 = vmatpush2.msra.mxu0 %v7044
        %v7046 = vand.u32 %v349, 4294901760
        %v7047 = vsub.f32 %v349, %v7046
        %v7048 = vand.u32 %v7047, 4294901760
        %7049 = vmatprep.subr.mxu0 %v7048
        %v7050 = vand.u32 %v348, 4294901760
        %v7051 = vsub.f32 %v348, %v7050
        %v7052 = vand.u32 %v7051, 4294901760
        %7053 = vmatpush2.msra.mxu0 %v7052
        %v7054 = vand.u32 %v345, 4294901760
        %v7055 = vsub.f32 %v345, %v7054
        %v7056 = vand.u32 %v7055, 4294901760
        %7057 = vmatprep.subr.mxu0 %v7056
        %v7058 = vand.u32 %v344, 4294901760
        %v7059 = vsub.f32 %v344, %v7058
        %v7060 = vand.u32 %v7059, 4294901760
        %7061 = vmatpush2.msra.mxu0 %v7060
        %v7062 = vand.u32 %v341, 4294901760
        %v7063 = vsub.f32 %v341, %v7062
        %v7064 = vand.u32 %v7063, 4294901760
        %7065 = vmatprep.subr.mxu0 %v7064
        %v7066 = vand.u32 %v340, 4294901760
        %v7067 = vsub.f32 %v340, %v7066
        %v7068 = vand.u32 %v7067, 4294901760
        %7069 = vmatpush2.msra.mxu0 %v7068
        %v7070 = vand.u32 %v337, 4294901760
        %v7071 = vsub.f32 %v337, %v7070
        %v7072 = vand.u32 %v7071, 4294901760
        %7073 = vmatprep.subr.mxu0 %v7072
        %v7074 = vand.u32 %v336, 4294901760
        %v7075 = vsub.f32 %v336, %v7074
        %v7076 = vand.u32 %v7075, 4294901760
        %7077 = vmatpush2.msra.mxu0 %v7076
        %v7078 = vand.u32 %v263, 4294901760
        %7079 = vmatprep.mubr.f32.mxu0 %v7078
        %v7080 = vand.u32 %v262, 4294901760
        %7081 = vmatmul.mubr.f32.gmra.mxu0 %v7080
        %v7082 = vpop.f32.mrf.mxu0
        %v7083 = vadd.f32 %v6818, %v7082
        %v7084 = vpop.f32.mrf.mxu0
        %v7085 = vadd.f32 %v6820, %v7084
        %7086 = vdwg.mxu0
        %v7087 = vand.u32 %v333, 4294901760
        %7088 = vmatprep.subr.mxu0 %v7087
        %v7089 = vand.u32 %v332, 4294901760
        %7090 = vmatpush1.msra.mxu0 %v7089
        %v7091 = vand.u32 %v329, 4294901760
        %7092 = vmatprep.subr.mxu0 %v7091
        %v7093 = vand.u32 %v328, 4294901760
        %7094 = vmatpush1.msra.mxu0 %v7093
        %v7095 = vand.u32 %v325, 4294901760
        %7096 = vmatprep.subr.mxu0 %v7095
        %v7097 = vand.u32 %v324, 4294901760
        %7098 = vmatpush1.msra.mxu0 %v7097
        %v7099 = vand.u32 %v321, 4294901760
        %7100 = vmatprep.subr.mxu0 %v7099
        %v7101 = vand.u32 %v320, 4294901760
        %7102 = vmatpush1.msra.mxu0 %v7101
        %v7103 = vand.u32 %v317, 4294901760
        %7104 = vmatprep.subr.mxu0 %v7103
        %v7105 = vand.u32 %v316, 4294901760
        %7106 = vmatpush1.msra.mxu0 %v7105
        %v7107 = vand.u32 %v313, 4294901760
        %7108 = vmatprep.subr.mxu0 %v7107
        %v7109 = vand.u32 %v312, 4294901760
        %7110 = vmatpush1.msra.mxu0 %v7109
        %v7111 = vand.u32 %v309, 4294901760
        %7112 = vmatprep.subr.mxu0 %v7111
        %v7113 = vand.u32 %v308, 4294901760
        %7114 = vmatpush1.msra.mxu0 %v7113
        %v7115 = vand.u32 %v305, 4294901760
        %7116 = vmatprep.subr.mxu0 %v7115
        %v7117 = vand.u32 %v304, 4294901760
        %7118 = vmatpush1.msra.mxu0 %v7117
        %v7119 = vand.u32 %v301, 4294901760
        %7120 = vmatprep.subr.mxu0 %v7119
        %v7121 = vand.u32 %v300, 4294901760
        %7122 = vmatpush1.msra.mxu0 %v7121
        %v7123 = vand.u32 %v297, 4294901760
        %7124 = vmatprep.subr.mxu0 %v7123
        %v7125 = vand.u32 %v296, 4294901760
        %7126 = vmatpush1.msra.mxu0 %v7125
        %v7127 = vand.u32 %v293, 4294901760
        %7128 = vmatprep.subr.mxu0 %v7127
        %v7129 = vand.u32 %v292, 4294901760
        %7130 = vmatpush1.msra.mxu0 %v7129
        %v7131 = vand.u32 %v289, 4294901760
        %7132 = vmatprep.subr.mxu0 %v7131
        %v7133 = vand.u32 %v288, 4294901760
        %7134 = vmatpush1.msra.mxu0 %v7133
        %v7135 = vand.u32 %v285, 4294901760
        %7136 = vmatprep.subr.mxu0 %v7135
        %v7137 = vand.u32 %v284, 4294901760
        %7138 = vmatpush1.msra.mxu0 %v7137
        %v7139 = vand.u32 %v281, 4294901760
        %7140 = vmatprep.subr.mxu0 %v7139
        %v7141 = vand.u32 %v280, 4294901760
        %7142 = vmatpush1.msra.mxu0 %v7141
        %v7143 = vand.u32 %v277, 4294901760
        %7144 = vmatprep.subr.mxu0 %v7143
        %v7145 = vand.u32 %v276, 4294901760
        %7146 = vmatpush1.msra.mxu0 %v7145
        %v7147 = vand.u32 %v273, 4294901760
        %7148 = vmatprep.subr.mxu0 %v7147
        %v7149 = vand.u32 %v272, 4294901760
        %7150 = vmatpush1.msra.mxu0 %v7149
        %v7151 = vand.u32 %v397, 4294901760
        %7152 = vmatprep.subr.mxu0 %v7151
        %v7153 = vand.u32 %v396, 4294901760
        %7154 = vmatpush2.msra.mxu0 %v7153
        %v7155 = vand.u32 %v393, 4294901760
        %7156 = vmatprep.subr.mxu0 %v7155
        %v7157 = vand.u32 %v392, 4294901760
        %7158 = vmatpush2.msra.mxu0 %v7157
        %v7159 = vand.u32 %v389, 4294901760
        %7160 = vmatprep.subr.mxu0 %v7159
        %v7161 = vand.u32 %v388, 4294901760
        %7162 = vmatpush2.msra.mxu0 %v7161
        %v7163 = vand.u32 %v385, 4294901760
        %7164 = vmatprep.subr.mxu0 %v7163
        %v7165 = vand.u32 %v384, 4294901760
        %7166 = vmatpush2.msra.mxu0 %v7165
        %v7167 = vand.u32 %v381, 4294901760
        %7168 = vmatprep.subr.mxu0 %v7167
        %v7169 = vand.u32 %v380, 4294901760
        %7170 = vmatpush2.msra.mxu0 %v7169
        %v7171 = vand.u32 %v377, 4294901760
        %7172 = vmatprep.subr.mxu0 %v7171
        %v7173 = vand.u32 %v376, 4294901760
        %7174 = vmatpush2.msra.mxu0 %v7173
        %v7175 = vand.u32 %v373, 4294901760
        %7176 = vmatprep.subr.mxu0 %v7175
        %v7177 = vand.u32 %v372, 4294901760
        %7178 = vmatpush2.msra.mxu0 %v7177
        %v7179 = vand.u32 %v369, 4294901760
        %7180 = vmatprep.subr.mxu0 %v7179
        %v7181 = vand.u32 %v368, 4294901760
        %7182 = vmatpush2.msra.mxu0 %v7181
        %v7183 = vand.u32 %v365, 4294901760
        %7184 = vmatprep.subr.mxu0 %v7183
        %v7185 = vand.u32 %v364, 4294901760
        %7186 = vmatpush2.msra.mxu0 %v7185
        %v7187 = vand.u32 %v361, 4294901760
        %7188 = vmatprep.subr.mxu0 %v7187
        %v7189 = vand.u32 %v360, 4294901760
        %7190 = vmatpush2.msra.mxu0 %v7189
        %v7191 = vand.u32 %v357, 4294901760
        %7192 = vmatprep.subr.mxu0 %v7191
        %v7193 = vand.u32 %v356, 4294901760
        %7194 = vmatpush2.msra.mxu0 %v7193
        %v7195 = vand.u32 %v353, 4294901760
        %7196 = vmatprep.subr.mxu0 %v7195
        %v7197 = vand.u32 %v352, 4294901760
        %7198 = vmatpush2.msra.mxu0 %v7197
        %v7199 = vand.u32 %v349, 4294901760
        %7200 = vmatprep.subr.mxu0 %v7199
        %v7201 = vand.u32 %v348, 4294901760
        %7202 = vmatpush2.msra.mxu0 %v7201
        %v7203 = vand.u32 %v345, 4294901760
        %7204 = vmatprep.subr.mxu0 %v7203
        %v7205 = vand.u32 %v344, 4294901760
        %7206 = vmatpush2.msra.mxu0 %v7205
        %v7207 = vand.u32 %v341, 4294901760
        %7208 = vmatprep.subr.mxu0 %v7207
        %v7209 = vand.u32 %v340, 4294901760
        %7210 = vmatpush2.msra.mxu0 %v7209
        %v7211 = vand.u32 %v337, 4294901760
        %7212 = vmatprep.subr.mxu0 %v7211
        %v7213 = vand.u32 %v336, 4294901760
        %7214 = vmatpush2.msra.mxu0 %v7213
        %v7215 = vand.u32 %v263, 4294901760
        %7216 = vmatprep.mubr.f32.mxu0 %v7215
        %v7217 = vand.u32 %v262, 4294901760
        %7218 = vmatmul.mubr.f32.gmra.mxu0 %v7217
        %v7219 = vpop.f32.mrf.mxu0
        %v7220 = vadd.f32 %v7083, %v7219
        %v7221 = vpop.f32.mrf.mxu0
        %v7222 = vadd.f32 %v7085, %v7221
        %7223 = vdwg.mxu0
        %v7224 = vand.u32 %v461, 4294901760
        %7225 = vmatprep.subr.mxu0 %v7224
        %v7226 = vand.u32 %v460, 4294901760
        %7227 = vmatpush1.msra.mxu0 %v7226
        %v7228 = vand.u32 %v457, 4294901760
        %7229 = vmatprep.subr.mxu0 %v7228
        %v7230 = vand.u32 %v456, 4294901760
        %7231 = vmatpush1.msra.mxu0 %v7230
        %v7232 = vand.u32 %v453, 4294901760
        %7233 = vmatprep.subr.mxu0 %v7232
        %v7234 = vand.u32 %v452, 4294901760
        %7235 = vmatpush1.msra.mxu0 %v7234
        %v7236 = vand.u32 %v449, 4294901760
        %7237 = vmatprep.subr.mxu0 %v7236
        %v7238 = vand.u32 %v448, 4294901760
        %7239 = vmatpush1.msra.mxu0 %v7238
        %v7240 = vand.u32 %v445, 4294901760
        %7241 = vmatprep.subr.mxu0 %v7240
        %v7242 = vand.u32 %v444, 4294901760
        %7243 = vmatpush1.msra.mxu0 %v7242
        %v7244 = vand.u32 %v441, 4294901760
        %7245 = vmatprep.subr.mxu0 %v7244
        %v7246 = vand.u32 %v440, 4294901760
        %7247 = vmatpush1.msra.mxu0 %v7246
        %v7248 = vand.u32 %v437, 4294901760
        %7249 = vmatprep.subr.mxu0 %v7248
        %v7250 = vand.u32 %v436, 4294901760
        %7251 = vmatpush1.msra.mxu0 %v7250
        %v7252 = vand.u32 %v433, 4294901760
        %7253 = vmatprep.subr.mxu0 %v7252
        %v7254 = vand.u32 %v432, 4294901760
        %7255 = vmatpush1.msra.mxu0 %v7254
        %v7256 = vand.u32 %v429, 4294901760
        %7257 = vmatprep.subr.mxu0 %v7256
        %v7258 = vand.u32 %v428, 4294901760
        %7259 = vmatpush1.msra.mxu0 %v7258
        %v7260 = vand.u32 %v425, 4294901760
        %7261 = vmatprep.subr.mxu0 %v7260
        %v7262 = vand.u32 %v424, 4294901760
        %7263 = vmatpush1.msra.mxu0 %v7262
        %v7264 = vand.u32 %v421, 4294901760
        %7265 = vmatprep.subr.mxu0 %v7264
        %v7266 = vand.u32 %v420, 4294901760
        %7267 = vmatpush1.msra.mxu0 %v7266
        %v7268 = vand.u32 %v417, 4294901760
        %7269 = vmatprep.subr.mxu0 %v7268
        %v7270 = vand.u32 %v416, 4294901760
        %7271 = vmatpush1.msra.mxu0 %v7270
        %v7272 = vand.u32 %v413, 4294901760
        %7273 = vmatprep.subr.mxu0 %v7272
        %v7274 = vand.u32 %v412, 4294901760
        %7275 = vmatpush1.msra.mxu0 %v7274
        %v7276 = vand.u32 %v409, 4294901760
        %7277 = vmatprep.subr.mxu0 %v7276
        %v7278 = vand.u32 %v408, 4294901760
        %7279 = vmatpush1.msra.mxu0 %v7278
        %v7280 = vand.u32 %v405, 4294901760
        %7281 = vmatprep.subr.mxu0 %v7280
        %v7282 = vand.u32 %v404, 4294901760
        %7283 = vmatpush1.msra.mxu0 %v7282
        %v7284 = vand.u32 %v401, 4294901760
        %7285 = vmatprep.subr.mxu0 %v7284
        %v7286 = vand.u32 %v400, 4294901760
        %7287 = vmatpush1.msra.mxu0 %v7286
        %v7288 = vand.u32 %v525, 4294901760
        %7289 = vmatprep.subr.mxu0 %v7288
        %v7290 = vand.u32 %v524, 4294901760
        %7291 = vmatpush2.msra.mxu0 %v7290
        %v7292 = vand.u32 %v521, 4294901760
        %7293 = vmatprep.subr.mxu0 %v7292
        %v7294 = vand.u32 %v520, 4294901760
        %7295 = vmatpush2.msra.mxu0 %v7294
        %v7296 = vand.u32 %v517, 4294901760
        %7297 = vmatprep.subr.mxu0 %v7296
        %v7298 = vand.u32 %v516, 4294901760
        %7299 = vmatpush2.msra.mxu0 %v7298
        %v7300 = vand.u32 %v513, 4294901760
        %7301 = vmatprep.subr.mxu0 %v7300
        %v7302 = vand.u32 %v512, 4294901760
        %7303 = vmatpush2.msra.mxu0 %v7302
        %v7304 = vand.u32 %v509, 4294901760
        %7305 = vmatprep.subr.mxu0 %v7304
        %v7306 = vand.u32 %v508, 4294901760
        %7307 = vmatpush2.msra.mxu0 %v7306
        %v7308 = vand.u32 %v505, 4294901760
        %7309 = vmatprep.subr.mxu0 %v7308
        %v7310 = vand.u32 %v504, 4294901760
        %7311 = vmatpush2.msra.mxu0 %v7310
        %v7312 = vand.u32 %v501, 4294901760
        %7313 = vmatprep.subr.mxu0 %v7312
        %v7314 = vand.u32 %v500, 4294901760
        %7315 = vmatpush2.msra.mxu0 %v7314
        %v7316 = vand.u32 %v497, 4294901760
        %7317 = vmatprep.subr.mxu0 %v7316
        %v7318 = vand.u32 %v496, 4294901760
        %7319 = vmatpush2.msra.mxu0 %v7318
        %v7320 = vand.u32 %v493, 4294901760
        %7321 = vmatprep.subr.mxu0 %v7320
        %v7322 = vand.u32 %v492, 4294901760
        %7323 = vmatpush2.msra.mxu0 %v7322
        %v7324 = vand.u32 %v489, 4294901760
        %7325 = vmatprep.subr.mxu0 %v7324
        %v7326 = vand.u32 %v488, 4294901760
        %7327 = vmatpush2.msra.mxu0 %v7326
        %v7328 = vand.u32 %v485, 4294901760
        %7329 = vmatprep.subr.mxu0 %v7328
        %v7330 = vand.u32 %v484, 4294901760
        %7331 = vmatpush2.msra.mxu0 %v7330
        %v7332 = vand.u32 %v481, 4294901760
        %7333 = vmatprep.subr.mxu0 %v7332
        %v7334 = vand.u32 %v480, 4294901760
        %7335 = vmatpush2.msra.mxu0 %v7334
        %v7336 = vand.u32 %v477, 4294901760
        %7337 = vmatprep.subr.mxu0 %v7336
        %v7338 = vand.u32 %v476, 4294901760
        %7339 = vmatpush2.msra.mxu0 %v7338
        %v7340 = vand.u32 %v473, 4294901760
        %7341 = vmatprep.subr.mxu0 %v7340
        %v7342 = vand.u32 %v472, 4294901760
        %7343 = vmatpush2.msra.mxu0 %v7342
        %v7344 = vand.u32 %v469, 4294901760
        %7345 = vmatprep.subr.mxu0 %v7344
        %v7346 = vand.u32 %v468, 4294901760
        %7347 = vmatpush2.msra.mxu0 %v7346
        %v7348 = vand.u32 %v465, 4294901760
        %7349 = vmatprep.subr.mxu0 %v7348
        %v7350 = vand.u32 %v464, 4294901760
        %7351 = vmatpush2.msra.mxu0 %v7350
        %v7352 = vand.u32 %v265, 4294901760
        %v7353 = vsub.f32 %v265, %v7352
        %v7354 = vand.u32 %v7353, 4294901760
        %v7355 = vsub.f32 %v7353, %v7354
        %v7356 = vand.u32 %v7355, 4294901760
        %7357 = vmatprep.mubr.f32.mxu0 %v7356
        %v7358 = vand.u32 %v264, 4294901760
        %v7359 = vsub.f32 %v264, %v7358
        %v7360 = vand.u32 %v7359, 4294901760
        %v7361 = vsub.f32 %v7359, %v7360
        %v7362 = vand.u32 %v7361, 4294901760
        %7363 = vmatmul.mubr.f32.gmra.mxu0 %v7362
        %v7364 = vpop.f32.mrf.mxu0
        %v7365 = vadd.f32 %v7220, %v7364
        %v7366 = vpop.f32.mrf.mxu0
        %v7367 = vadd.f32 %v7222, %v7366
        %7368 = vdwg.mxu0
        %v7369 = vand.u32 %v461, 4294901760
        %v7370 = vsub.f32 %v461, %v7369
        %v7371 = vand.u32 %v7370, 4294901760
        %v7372 = vsub.f32 %v7370, %v7371
        %v7373 = vand.u32 %v7372, 4294901760
        %7374 = vmatprep.subr.mxu0 %v7373
        %v7375 = vand.u32 %v460, 4294901760
        %v7376 = vsub.f32 %v460, %v7375
        %v7377 = vand.u32 %v7376, 4294901760
        %v7378 = vsub.f32 %v7376, %v7377
        %v7379 = vand.u32 %v7378, 4294901760
        %7380 = vmatpush1.msra.mxu0 %v7379
        %v7381 = vand.u32 %v457, 4294901760
        %v7382 = vsub.f32 %v457, %v7381
        %v7383 = vand.u32 %v7382, 4294901760
        %v7384 = vsub.f32 %v7382, %v7383
        %v7385 = vand.u32 %v7384, 4294901760
        %7386 = vmatprep.subr.mxu0 %v7385
        %v7387 = vand.u32 %v456, 4294901760
        %v7388 = vsub.f32 %v456, %v7387
        %v7389 = vand.u32 %v7388, 4294901760
        %v7390 = vsub.f32 %v7388, %v7389
        %v7391 = vand.u32 %v7390, 4294901760
        %7392 = vmatpush1.msra.mxu0 %v7391
        %v7393 = vand.u32 %v453, 4294901760
        %v7394 = vsub.f32 %v453, %v7393
        %v7395 = vand.u32 %v7394, 4294901760
        %v7396 = vsub.f32 %v7394, %v7395
        %v7397 = vand.u32 %v7396, 4294901760
        %7398 = vmatprep.subr.mxu0 %v7397
        %v7399 = vand.u32 %v452, 4294901760
        %v7400 = vsub.f32 %v452, %v7399
        %v7401 = vand.u32 %v7400, 4294901760
        %v7402 = vsub.f32 %v7400, %v7401
        %v7403 = vand.u32 %v7402, 4294901760
        %7404 = vmatpush1.msra.mxu0 %v7403
        %v7405 = vand.u32 %v449, 4294901760
        %v7406 = vsub.f32 %v449, %v7405
        %v7407 = vand.u32 %v7406, 4294901760
        %v7408 = vsub.f32 %v7406, %v7407
        %v7409 = vand.u32 %v7408, 4294901760
        %7410 = vmatprep.subr.mxu0 %v7409
        %v7411 = vand.u32 %v448, 4294901760
        %v7412 = vsub.f32 %v448, %v7411
        %v7413 = vand.u32 %v7412, 4294901760
        %v7414 = vsub.f32 %v7412, %v7413
        %v7415 = vand.u32 %v7414, 4294901760
        %7416 = vmatpush1.msra.mxu0 %v7415
        %v7417 = vand.u32 %v445, 4294901760
        %v7418 = vsub.f32 %v445, %v7417
        %v7419 = vand.u32 %v7418, 4294901760
        %v7420 = vsub.f32 %v7418, %v7419
        %v7421 = vand.u32 %v7420, 4294901760
        %7422 = vmatprep.subr.mxu0 %v7421
        %v7423 = vand.u32 %v444, 4294901760
        %v7424 = vsub.f32 %v444, %v7423
        %v7425 = vand.u32 %v7424, 4294901760
        %v7426 = vsub.f32 %v7424, %v7425
        %v7427 = vand.u32 %v7426, 4294901760
        %7428 = vmatpush1.msra.mxu0 %v7427
        %v7429 = vand.u32 %v441, 4294901760
        %v7430 = vsub.f32 %v441, %v7429
        %v7431 = vand.u32 %v7430, 4294901760
        %v7432 = vsub.f32 %v7430, %v7431
        %v7433 = vand.u32 %v7432, 4294901760
        %7434 = vmatprep.subr.mxu0 %v7433
        %v7435 = vand.u32 %v440, 4294901760
        %v7436 = vsub.f32 %v440, %v7435
        %v7437 = vand.u32 %v7436, 4294901760
        %v7438 = vsub.f32 %v7436, %v7437
        %v7439 = vand.u32 %v7438, 4294901760
        %7440 = vmatpush1.msra.mxu0 %v7439
        %v7441 = vand.u32 %v437, 4294901760
        %v7442 = vsub.f32 %v437, %v7441
        %v7443 = vand.u32 %v7442, 4294901760
        %v7444 = vsub.f32 %v7442, %v7443
        %v7445 = vand.u32 %v7444, 4294901760
        %7446 = vmatprep.subr.mxu0 %v7445
        %v7447 = vand.u32 %v436, 4294901760
        %v7448 = vsub.f32 %v436, %v7447
        %v7449 = vand.u32 %v7448, 4294901760
        %v7450 = vsub.f32 %v7448, %v7449
        %v7451 = vand.u32 %v7450, 4294901760
        %7452 = vmatpush1.msra.mxu0 %v7451
        %v7453 = vand.u32 %v433, 4294901760
        %v7454 = vsub.f32 %v433, %v7453
        %v7455 = vand.u32 %v7454, 4294901760
        %v7456 = vsub.f32 %v7454, %v7455
        %v7457 = vand.u32 %v7456, 4294901760
        %7458 = vmatprep.subr.mxu0 %v7457
        %v7459 = vand.u32 %v432, 4294901760
        %v7460 = vsub.f32 %v432, %v7459
        %v7461 = vand.u32 %v7460, 4294901760
        %v7462 = vsub.f32 %v7460, %v7461
        %v7463 = vand.u32 %v7462, 4294901760
        %7464 = vmatpush1.msra.mxu0 %v7463
        %v7465 = vand.u32 %v429, 4294901760
        %v7466 = vsub.f32 %v429, %v7465
        %v7467 = vand.u32 %v7466, 4294901760
        %v7468 = vsub.f32 %v7466, %v7467
        %v7469 = vand.u32 %v7468, 4294901760
        %7470 = vmatprep.subr.mxu0 %v7469
        %v7471 = vand.u32 %v428, 4294901760
        %v7472 = vsub.f32 %v428, %v7471
        %v7473 = vand.u32 %v7472, 4294901760
        %v7474 = vsub.f32 %v7472, %v7473
        %v7475 = vand.u32 %v7474, 4294901760
        %7476 = vmatpush1.msra.mxu0 %v7475
        %v7477 = vand.u32 %v425, 4294901760
        %v7478 = vsub.f32 %v425, %v7477
        %v7479 = vand.u32 %v7478, 4294901760
        %v7480 = vsub.f32 %v7478, %v7479
        %v7481 = vand.u32 %v7480, 4294901760
        %7482 = vmatprep.subr.mxu0 %v7481
        %v7483 = vand.u32 %v424, 4294901760
        %v7484 = vsub.f32 %v424, %v7483
        %v7485 = vand.u32 %v7484, 4294901760
        %v7486 = vsub.f32 %v7484, %v7485
        %v7487 = vand.u32 %v7486, 4294901760
        %7488 = vmatpush1.msra.mxu0 %v7487
        %v7489 = vand.u32 %v421, 4294901760
        %v7490 = vsub.f32 %v421, %v7489
        %v7491 = vand.u32 %v7490, 4294901760
        %v7492 = vsub.f32 %v7490, %v7491
        %v7493 = vand.u32 %v7492, 4294901760
        %7494 = vmatprep.subr.mxu0 %v7493
        %v7495 = vand.u32 %v420, 4294901760
        %v7496 = vsub.f32 %v420, %v7495
        %v7497 = vand.u32 %v7496, 4294901760
        %v7498 = vsub.f32 %v7496, %v7497
        %v7499 = vand.u32 %v7498, 4294901760
        %7500 = vmatpush1.msra.mxu0 %v7499
        %v7501 = vand.u32 %v417, 4294901760
        %v7502 = vsub.f32 %v417, %v7501
        %v7503 = vand.u32 %v7502, 4294901760
        %v7504 = vsub.f32 %v7502, %v7503
        %v7505 = vand.u32 %v7504, 4294901760
        %7506 = vmatprep.subr.mxu0 %v7505
        %v7507 = vand.u32 %v416, 4294901760
        %v7508 = vsub.f32 %v416, %v7507
        %v7509 = vand.u32 %v7508, 4294901760
        %v7510 = vsub.f32 %v7508, %v7509
        %v7511 = vand.u32 %v7510, 4294901760
        %7512 = vmatpush1.msra.mxu0 %v7511
        %v7513 = vand.u32 %v413, 4294901760
        %v7514 = vsub.f32 %v413, %v7513
        %v7515 = vand.u32 %v7514, 4294901760
        %v7516 = vsub.f32 %v7514, %v7515
        %v7517 = vand.u32 %v7516, 4294901760
        %7518 = vmatprep.subr.mxu0 %v7517
        %v7519 = vand.u32 %v412, 4294901760
        %v7520 = vsub.f32 %v412, %v7519
        %v7521 = vand.u32 %v7520, 4294901760
        %v7522 = vsub.f32 %v7520, %v7521
        %v7523 = vand.u32 %v7522, 4294901760
        %7524 = vmatpush1.msra.mxu0 %v7523
        %v7525 = vand.u32 %v409, 4294901760
        %v7526 = vsub.f32 %v409, %v7525
        %v7527 = vand.u32 %v7526, 4294901760
        %v7528 = vsub.f32 %v7526, %v7527
        %v7529 = vand.u32 %v7528, 4294901760
        %7530 = vmatprep.subr.mxu0 %v7529
        %v7531 = vand.u32 %v408, 4294901760
        %v7532 = vsub.f32 %v408, %v7531
        %v7533 = vand.u32 %v7532, 4294901760
        %v7534 = vsub.f32 %v7532, %v7533
        %v7535 = vand.u32 %v7534, 4294901760
        %7536 = vmatpush1.msra.mxu0 %v7535
        %v7537 = vand.u32 %v405, 4294901760
        %v7538 = vsub.f32 %v405, %v7537
        %v7539 = vand.u32 %v7538, 4294901760
        %v7540 = vsub.f32 %v7538, %v7539
        %v7541 = vand.u32 %v7540, 4294901760
        %7542 = vmatprep.subr.mxu0 %v7541
        %v7543 = vand.u32 %v404, 4294901760
        %v7544 = vsub.f32 %v404, %v7543
        %v7545 = vand.u32 %v7544, 4294901760
        %v7546 = vsub.f32 %v7544, %v7545
        %v7547 = vand.u32 %v7546, 4294901760
        %7548 = vmatpush1.msra.mxu0 %v7547
        %v7549 = vand.u32 %v401, 4294901760
        %v7550 = vsub.f32 %v401, %v7549
        %v7551 = vand.u32 %v7550, 4294901760
        %v7552 = vsub.f32 %v7550, %v7551
        %v7553 = vand.u32 %v7552, 4294901760
        %7554 = vmatprep.subr.mxu0 %v7553
        %v7555 = vand.u32 %v400, 4294901760
        %v7556 = vsub.f32 %v400, %v7555
        %v7557 = vand.u32 %v7556, 4294901760
        %v7558 = vsub.f32 %v7556, %v7557
        %v7559 = vand.u32 %v7558, 4294901760
        %7560 = vmatpush1.msra.mxu0 %v7559
        %v7561 = vand.u32 %v525, 4294901760
        %v7562 = vsub.f32 %v525, %v7561
        %v7563 = vand.u32 %v7562, 4294901760
        %v7564 = vsub.f32 %v7562, %v7563
        %v7565 = vand.u32 %v7564, 4294901760
        %7566 = vmatprep.subr.mxu0 %v7565
        %v7567 = vand.u32 %v524, 4294901760
        %v7568 = vsub.f32 %v524, %v7567
        %v7569 = vand.u32 %v7568, 4294901760
        %v7570 = vsub.f32 %v7568, %v7569
        %v7571 = vand.u32 %v7570, 4294901760
        %7572 = vmatpush2.msra.mxu0 %v7571
        %v7573 = vand.u32 %v521, 4294901760
        %v7574 = vsub.f32 %v521, %v7573
        %v7575 = vand.u32 %v7574, 4294901760
        %v7576 = vsub.f32 %v7574, %v7575
        %v7577 = vand.u32 %v7576, 4294901760
        %7578 = vmatprep.subr.mxu0 %v7577
        %v7579 = vand.u32 %v520, 4294901760
        %v7580 = vsub.f32 %v520, %v7579
        %v7581 = vand.u32 %v7580, 4294901760
        %v7582 = vsub.f32 %v7580, %v7581
        %v7583 = vand.u32 %v7582, 4294901760
        %7584 = vmatpush2.msra.mxu0 %v7583
        %v7585 = vand.u32 %v517, 4294901760
        %v7586 = vsub.f32 %v517, %v7585
        %v7587 = vand.u32 %v7586, 4294901760
        %v7588 = vsub.f32 %v7586, %v7587
        %v7589 = vand.u32 %v7588, 4294901760
        %7590 = vmatprep.subr.mxu0 %v7589
        %v7591 = vand.u32 %v516, 4294901760
        %v7592 = vsub.f32 %v516, %v7591
        %v7593 = vand.u32 %v7592, 4294901760
        %v7594 = vsub.f32 %v7592, %v7593
        %v7595 = vand.u32 %v7594, 4294901760
        %7596 = vmatpush2.msra.mxu0 %v7595
        %v7597 = vand.u32 %v513, 4294901760
        %v7598 = vsub.f32 %v513, %v7597
        %v7599 = vand.u32 %v7598, 4294901760
        %v7600 = vsub.f32 %v7598, %v7599
        %v7601 = vand.u32 %v7600, 4294901760
        %7602 = vmatprep.subr.mxu0 %v7601
        %v7603 = vand.u32 %v512, 4294901760
        %v7604 = vsub.f32 %v512, %v7603
        %v7605 = vand.u32 %v7604, 4294901760
        %v7606 = vsub.f32 %v7604, %v7605
        %v7607 = vand.u32 %v7606, 4294901760
        %7608 = vmatpush2.msra.mxu0 %v7607
        %v7609 = vand.u32 %v509, 4294901760
        %v7610 = vsub.f32 %v509, %v7609
        %v7611 = vand.u32 %v7610, 4294901760
        %v7612 = vsub.f32 %v7610, %v7611
        %v7613 = vand.u32 %v7612, 4294901760
        %7614 = vmatprep.subr.mxu0 %v7613
        %v7615 = vand.u32 %v508, 4294901760
        %v7616 = vsub.f32 %v508, %v7615
        %v7617 = vand.u32 %v7616, 4294901760
        %v7618 = vsub.f32 %v7616, %v7617
        %v7619 = vand.u32 %v7618, 4294901760
        %7620 = vmatpush2.msra.mxu0 %v7619
        %v7621 = vand.u32 %v505, 4294901760
        %v7622 = vsub.f32 %v505, %v7621
        %v7623 = vand.u32 %v7622, 4294901760
        %v7624 = vsub.f32 %v7622, %v7623
        %v7625 = vand.u32 %v7624, 4294901760
        %7626 = vmatprep.subr.mxu0 %v7625
        %v7627 = vand.u32 %v504, 4294901760
        %v7628 = vsub.f32 %v504, %v7627
        %v7629 = vand.u32 %v7628, 4294901760
        %v7630 = vsub.f32 %v7628, %v7629
        %v7631 = vand.u32 %v7630, 4294901760
        %7632 = vmatpush2.msra.mxu0 %v7631
        %v7633 = vand.u32 %v501, 4294901760
        %v7634 = vsub.f32 %v501, %v7633
        %v7635 = vand.u32 %v7634, 4294901760
        %v7636 = vsub.f32 %v7634, %v7635
        %v7637 = vand.u32 %v7636, 4294901760
        %7638 = vmatprep.subr.mxu0 %v7637
        %v7639 = vand.u32 %v500, 4294901760
        %v7640 = vsub.f32 %v500, %v7639
        %v7641 = vand.u32 %v7640, 4294901760
        %v7642 = vsub.f32 %v7640, %v7641
        %v7643 = vand.u32 %v7642, 4294901760
        %7644 = vmatpush2.msra.mxu0 %v7643
        %v7645 = vand.u32 %v497, 4294901760
        %v7646 = vsub.f32 %v497, %v7645
        %v7647 = vand.u32 %v7646, 4294901760
        %v7648 = vsub.f32 %v7646, %v7647
        %v7649 = vand.u32 %v7648, 4294901760
        %7650 = vmatprep.subr.mxu0 %v7649
        %v7651 = vand.u32 %v496, 4294901760
        %v7652 = vsub.f32 %v496, %v7651
        %v7653 = vand.u32 %v7652, 4294901760
        %v7654 = vsub.f32 %v7652, %v7653
        %v7655 = vand.u32 %v7654, 4294901760
        %7656 = vmatpush2.msra.mxu0 %v7655
        %v7657 = vand.u32 %v493, 4294901760
        %v7658 = vsub.f32 %v493, %v7657
        %v7659 = vand.u32 %v7658, 4294901760
        %v7660 = vsub.f32 %v7658, %v7659
        %v7661 = vand.u32 %v7660, 4294901760
        %7662 = vmatprep.subr.mxu0 %v7661
        %v7663 = vand.u32 %v492, 4294901760
        %v7664 = vsub.f32 %v492, %v7663
        %v7665 = vand.u32 %v7664, 4294901760
        %v7666 = vsub.f32 %v7664, %v7665
        %v7667 = vand.u32 %v7666, 4294901760
        %7668 = vmatpush2.msra.mxu0 %v7667
        %v7669 = vand.u32 %v489, 4294901760
        %v7670 = vsub.f32 %v489, %v7669
        %v7671 = vand.u32 %v7670, 4294901760
        %v7672 = vsub.f32 %v7670, %v7671
        %v7673 = vand.u32 %v7672, 4294901760
        %7674 = vmatprep.subr.mxu0 %v7673
        %v7675 = vand.u32 %v488, 4294901760
        %v7676 = vsub.f32 %v488, %v7675
        %v7677 = vand.u32 %v7676, 4294901760
        %v7678 = vsub.f32 %v7676, %v7677
        %v7679 = vand.u32 %v7678, 4294901760
        %7680 = vmatpush2.msra.mxu0 %v7679
        %v7681 = vand.u32 %v485, 4294901760
        %v7682 = vsub.f32 %v485, %v7681
        %v7683 = vand.u32 %v7682, 4294901760
        %v7684 = vsub.f32 %v7682, %v7683
        %v7685 = vand.u32 %v7684, 4294901760
        %7686 = vmatprep.subr.mxu0 %v7685
        %v7687 = vand.u32 %v484, 4294901760
        %v7688 = vsub.f32 %v484, %v7687
        %v7689 = vand.u32 %v7688, 4294901760
        %v7690 = vsub.f32 %v7688, %v7689
        %v7691 = vand.u32 %v7690, 4294901760
        %7692 = vmatpush2.msra.mxu0 %v7691
        %v7693 = vand.u32 %v481, 4294901760
        %v7694 = vsub.f32 %v481, %v7693
        %v7695 = vand.u32 %v7694, 4294901760
        %v7696 = vsub.f32 %v7694, %v7695
        %v7697 = vand.u32 %v7696, 4294901760
        %7698 = vmatprep.subr.mxu0 %v7697
        %v7699 = vand.u32 %v480, 4294901760
        %v7700 = vsub.f32 %v480, %v7699
        %v7701 = vand.u32 %v7700, 4294901760
        %v7702 = vsub.f32 %v7700, %v7701
        %v7703 = vand.u32 %v7702, 4294901760
        %7704 = vmatpush2.msra.mxu0 %v7703
        %v7705 = vand.u32 %v477, 4294901760
        %v7706 = vsub.f32 %v477, %v7705
        %v7707 = vand.u32 %v7706, 4294901760
        %v7708 = vsub.f32 %v7706, %v7707
        %v7709 = vand.u32 %v7708, 4294901760
        %7710 = vmatprep.subr.mxu0 %v7709
        %v7711 = vand.u32 %v476, 4294901760
        %v7712 = vsub.f32 %v476, %v7711
        %v7713 = vand.u32 %v7712, 4294901760
        %v7714 = vsub.f32 %v7712, %v7713
        %v7715 = vand.u32 %v7714, 4294901760
        %7716 = vmatpush2.msra.mxu0 %v7715
        %v7717 = vand.u32 %v473, 4294901760
        %v7718 = vsub.f32 %v473, %v7717
        %v7719 = vand.u32 %v7718, 4294901760
        %v7720 = vsub.f32 %v7718, %v7719
        %v7721 = vand.u32 %v7720, 4294901760
        %7722 = vmatprep.subr.mxu0 %v7721
        %v7723 = vand.u32 %v472, 4294901760
        %v7724 = vsub.f32 %v472, %v7723
        %v7725 = vand.u32 %v7724, 4294901760
        %v7726 = vsub.f32 %v7724, %v7725
        %v7727 = vand.u32 %v7726, 4294901760
        %7728 = vmatpush2.msra.mxu0 %v7727
        %v7729 = vand.u32 %v469, 4294901760
        %v7730 = vsub.f32 %v469, %v7729
        %v7731 = vand.u32 %v7730, 4294901760
        %v7732 = vsub.f32 %v7730, %v7731
        %v7733 = vand.u32 %v7732, 4294901760
        %7734 = vmatprep.subr.mxu0 %v7733
        %v7735 = vand.u32 %v468, 4294901760
        %v7736 = vsub.f32 %v468, %v7735
        %v7737 = vand.u32 %v7736, 4294901760
        %v7738 = vsub.f32 %v7736, %v7737
        %v7739 = vand.u32 %v7738, 4294901760
        %7740 = vmatpush2.msra.mxu0 %v7739
        %v7741 = vand.u32 %v465, 4294901760
        %v7742 = vsub.f32 %v465, %v7741
        %v7743 = vand.u32 %v7742, 4294901760
        %v7744 = vsub.f32 %v7742, %v7743
        %v7745 = vand.u32 %v7744, 4294901760
        %7746 = vmatprep.subr.mxu0 %v7745
        %v7747 = vand.u32 %v464, 4294901760
        %v7748 = vsub.f32 %v464, %v7747
        %v7749 = vand.u32 %v7748, 4294901760
        %v7750 = vsub.f32 %v7748, %v7749
        %v7751 = vand.u32 %v7750, 4294901760
        %7752 = vmatpush2.msra.mxu0 %v7751
        %v7753 = vand.u32 %v265, 4294901760
        %7754 = vmatprep.mubr.f32.mxu0 %v7753
        %v7755 = vand.u32 %v264, 4294901760
        %7756 = vmatmul.mubr.f32.gmra.mxu0 %v7755
        %v7757 = vpop.f32.mrf.mxu0
        %v7758 = vadd.f32 %v7365, %v7757
        %v7759 = vpop.f32.mrf.mxu0
        %v7760 = vadd.f32 %v7367, %v7759
        %7761 = vdwg.mxu0
        %v7762 = vand.u32 %v461, 4294901760
        %v7763 = vsub.f32 %v461, %v7762
        %7764 = vmatprep.subr.mxu0 %v7763
        %v7765 = vand.u32 %v460, 4294901760
        %v7766 = vsub.f32 %v460, %v7765
        %7767 = vmatpush1.msra.mxu0 %v7766
        %v7768 = vand.u32 %v457, 4294901760
        %v7769 = vsub.f32 %v457, %v7768
        %7770 = vmatprep.subr.mxu0 %v7769
        %v7771 = vand.u32 %v456, 4294901760
        %v7772 = vsub.f32 %v456, %v7771
        %7773 = vmatpush1.msra.mxu0 %v7772
        %v7774 = vand.u32 %v453, 4294901760
        %v7775 = vsub.f32 %v453, %v7774
        %7776 = vmatprep.subr.mxu0 %v7775
        %v7777 = vand.u32 %v452, 4294901760
        %v7778 = vsub.f32 %v452, %v7777
        %7779 = vmatpush1.msra.mxu0 %v7778
        %v7780 = vand.u32 %v449, 4294901760
        %v7781 = vsub.f32 %v449, %v7780
        %7782 = vmatprep.subr.mxu0 %v7781
        %v7783 = vand.u32 %v448, 4294901760
        %v7784 = vsub.f32 %v448, %v7783
        %7785 = vmatpush1.msra.mxu0 %v7784
        %v7786 = vand.u32 %v445, 4294901760
        %v7787 = vsub.f32 %v445, %v7786
        %7788 = vmatprep.subr.mxu0 %v7787
        %v7789 = vand.u32 %v444, 4294901760
        %v7790 = vsub.f32 %v444, %v7789
        %7791 = vmatpush1.msra.mxu0 %v7790
        %v7792 = vand.u32 %v441, 4294901760
        %v7793 = vsub.f32 %v441, %v7792
        %7794 = vmatprep.subr.mxu0 %v7793
        %v7795 = vand.u32 %v440, 4294901760
        %v7796 = vsub.f32 %v440, %v7795
        %7797 = vmatpush1.msra.mxu0 %v7796
        %v7798 = vand.u32 %v437, 4294901760
        %v7799 = vsub.f32 %v437, %v7798
        %7800 = vmatprep.subr.mxu0 %v7799
        %v7801 = vand.u32 %v436, 4294901760
        %v7802 = vsub.f32 %v436, %v7801
        %7803 = vmatpush1.msra.mxu0 %v7802
        %v7804 = vand.u32 %v433, 4294901760
        %v7805 = vsub.f32 %v433, %v7804
        %7806 = vmatprep.subr.mxu0 %v7805
        %v7807 = vand.u32 %v432, 4294901760
        %v7808 = vsub.f32 %v432, %v7807
        %7809 = vmatpush1.msra.mxu0 %v7808
        %v7810 = vand.u32 %v429, 4294901760
        %v7811 = vsub.f32 %v429, %v7810
        %7812 = vmatprep.subr.mxu0 %v7811
        %v7813 = vand.u32 %v428, 4294901760
        %v7814 = vsub.f32 %v428, %v7813
        %7815 = vmatpush1.msra.mxu0 %v7814
        %v7816 = vand.u32 %v425, 4294901760
        %v7817 = vsub.f32 %v425, %v7816
        %7818 = vmatprep.subr.mxu0 %v7817
        %v7819 = vand.u32 %v424, 4294901760
        %v7820 = vsub.f32 %v424, %v7819
        %7821 = vmatpush1.msra.mxu0 %v7820
        %v7822 = vand.u32 %v421, 4294901760
        %v7823 = vsub.f32 %v421, %v7822
        %7824 = vmatprep.subr.mxu0 %v7823
        %v7825 = vand.u32 %v420, 4294901760
        %v7826 = vsub.f32 %v420, %v7825
        %7827 = vmatpush1.msra.mxu0 %v7826
        %v7828 = vand.u32 %v417, 4294901760
        %v7829 = vsub.f32 %v417, %v7828
        %7830 = vmatprep.subr.mxu0 %v7829
        %v7831 = vand.u32 %v416, 4294901760
        %v7832 = vsub.f32 %v416, %v7831
        %7833 = vmatpush1.msra.mxu0 %v7832
        %v7834 = vand.u32 %v413, 4294901760
        %v7835 = vsub.f32 %v413, %v7834
        %7836 = vmatprep.subr.mxu0 %v7835
        %v7837 = vand.u32 %v412, 4294901760
        %v7838 = vsub.f32 %v412, %v7837
        %7839 = vmatpush1.msra.mxu0 %v7838
        %v7840 = vand.u32 %v409, 4294901760
        %v7841 = vsub.f32 %v409, %v7840
        %7842 = vmatprep.subr.mxu0 %v7841
        %v7843 = vand.u32 %v408, 4294901760
        %v7844 = vsub.f32 %v408, %v7843
        %7845 = vmatpush1.msra.mxu0 %v7844
        %v7846 = vand.u32 %v405, 4294901760
        %v7847 = vsub.f32 %v405, %v7846
        %7848 = vmatprep.subr.mxu0 %v7847
        %v7849 = vand.u32 %v404, 4294901760
        %v7850 = vsub.f32 %v404, %v7849
        %7851 = vmatpush1.msra.mxu0 %v7850
        %v7852 = vand.u32 %v401, 4294901760
        %v7853 = vsub.f32 %v401, %v7852
        %7854 = vmatprep.subr.mxu0 %v7853
        %v7855 = vand.u32 %v400, 4294901760
        %v7856 = vsub.f32 %v400, %v7855
        %7857 = vmatpush1.msra.mxu0 %v7856
        %v7858 = vand.u32 %v525, 4294901760
        %v7859 = vsub.f32 %v525, %v7858
        %7860 = vmatprep.subr.mxu0 %v7859
        %v7861 = vand.u32 %v524, 4294901760
        %v7862 = vsub.f32 %v524, %v7861
        %7863 = vmatpush2.msra.mxu0 %v7862
        %v7864 = vand.u32 %v521, 4294901760
        %v7865 = vsub.f32 %v521, %v7864
        %7866 = vmatprep.subr.mxu0 %v7865
        %v7867 = vand.u32 %v520, 4294901760
        %v7868 = vsub.f32 %v520, %v7867
        %7869 = vmatpush2.msra.mxu0 %v7868
        %v7870 = vand.u32 %v517, 4294901760
        %v7871 = vsub.f32 %v517, %v7870
        %7872 = vmatprep.subr.mxu0 %v7871
        %v7873 = vand.u32 %v516, 4294901760
        %v7874 = vsub.f32 %v516, %v7873
        %7875 = vmatpush2.msra.mxu0 %v7874
        %v7876 = vand.u32 %v513, 4294901760
        %v7877 = vsub.f32 %v513, %v7876
        %7878 = vmatprep.subr.mxu0 %v7877
        %v7879 = vand.u32 %v512, 4294901760
        %v7880 = vsub.f32 %v512, %v7879
        %7881 = vmatpush2.msra.mxu0 %v7880
        %v7882 = vand.u32 %v509, 4294901760
        %v7883 = vsub.f32 %v509, %v7882
        %7884 = vmatprep.subr.mxu0 %v7883
        %v7885 = vand.u32 %v508, 4294901760
        %v7886 = vsub.f32 %v508, %v7885
        %7887 = vmatpush2.msra.mxu0 %v7886
        %v7888 = vand.u32 %v505, 4294901760
        %v7889 = vsub.f32 %v505, %v7888
        %7890 = vmatprep.subr.mxu0 %v7889
        %v7891 = vand.u32 %v504, 4294901760
        %v7892 = vsub.f32 %v504, %v7891
        %7893 = vmatpush2.msra.mxu0 %v7892
        %v7894 = vand.u32 %v501, 4294901760
        %v7895 = vsub.f32 %v501, %v7894
        %7896 = vmatprep.subr.mxu0 %v7895
        %v7897 = vand.u32 %v500, 4294901760
        %v7898 = vsub.f32 %v500, %v7897
        %7899 = vmatpush2.msra.mxu0 %v7898
        %v7900 = vand.u32 %v497, 4294901760
        %v7901 = vsub.f32 %v497, %v7900
        %7902 = vmatprep.subr.mxu0 %v7901
        %v7903 = vand.u32 %v496, 4294901760
        %v7904 = vsub.f32 %v496, %v7903
        %7905 = vmatpush2.msra.mxu0 %v7904
        %v7906 = vand.u32 %v493, 4294901760
        %v7907 = vsub.f32 %v493, %v7906
        %7908 = vmatprep.subr.mxu0 %v7907
        %v7909 = vand.u32 %v492, 4294901760
        %v7910 = vsub.f32 %v492, %v7909
        %7911 = vmatpush2.msra.mxu0 %v7910
        %v7912 = vand.u32 %v489, 4294901760
        %v7913 = vsub.f32 %v489, %v7912
        %7914 = vmatprep.subr.mxu0 %v7913
        %v7915 = vand.u32 %v488, 4294901760
        %v7916 = vsub.f32 %v488, %v7915
        %7917 = vmatpush2.msra.mxu0 %v7916
        %v7918 = vand.u32 %v485, 4294901760
        %v7919 = vsub.f32 %v485, %v7918
        %7920 = vmatprep.subr.mxu0 %v7919
        %v7921 = vand.u32 %v484, 4294901760
        %v7922 = vsub.f32 %v484, %v7921
        %7923 = vmatpush2.msra.mxu0 %v7922
        %v7924 = vand.u32 %v481, 4294901760
        %v7925 = vsub.f32 %v481, %v7924
        %7926 = vmatprep.subr.mxu0 %v7925
        %v7927 = vand.u32 %v480, 4294901760
        %v7928 = vsub.f32 %v480, %v7927
        %7929 = vmatpush2.msra.mxu0 %v7928
        %v7930 = vand.u32 %v477, 4294901760
        %v7931 = vsub.f32 %v477, %v7930
        %7932 = vmatprep.subr.mxu0 %v7931
        %v7933 = vand.u32 %v476, 4294901760
        %v7934 = vsub.f32 %v476, %v7933
        %7935 = vmatpush2.msra.mxu0 %v7934
        %v7936 = vand.u32 %v473, 4294901760
        %v7937 = vsub.f32 %v473, %v7936
        %7938 = vmatprep.subr.mxu0 %v7937
        %v7939 = vand.u32 %v472, 4294901760
        %v7940 = vsub.f32 %v472, %v7939
        %7941 = vmatpush2.msra.mxu0 %v7940
        %v7942 = vand.u32 %v469, 4294901760
        %v7943 = vsub.f32 %v469, %v7942
        %7944 = vmatprep.subr.mxu0 %v7943
        %v7945 = vand.u32 %v468, 4294901760
        %v7946 = vsub.f32 %v468, %v7945
        %7947 = vmatpush2.msra.mxu0 %v7946
        %v7948 = vand.u32 %v465, 4294901760
        %v7949 = vsub.f32 %v465, %v7948
        %7950 = vmatprep.subr.mxu0 %v7949
        %v7951 = vand.u32 %v464, 4294901760
        %v7952 = vsub.f32 %v464, %v7951
        %7953 = vmatpush2.msra.mxu0 %v7952
        %v7954 = vand.u32 %v265, 4294901760
        %v7955 = vsub.f32 %v265, %v7954
        %7956 = vmatprep.mubr.f32.mxu0 %v7955
        %v7957 = vand.u32 %v264, 4294901760
        %v7958 = vsub.f32 %v264, %v7957
        %7959 = vmatmul.mubr.f32.gmra.mxu0 %v7958
        %v7960 = vpop.f32.mrf.mxu0
        %v7961 = vadd.f32 %v7758, %v7960
        %v7962 = vpop.f32.mrf.mxu0
        %v7963 = vadd.f32 %v7760, %v7962
        %7964 = vdwg.mxu0
        %v7965 = vand.u32 %v461, 4294901760
        %7966 = vmatprep.subr.mxu0 %v7965
        %v7967 = vand.u32 %v460, 4294901760
        %7968 = vmatpush1.msra.mxu0 %v7967
        %v7969 = vand.u32 %v457, 4294901760
        %7970 = vmatprep.subr.mxu0 %v7969
        %v7971 = vand.u32 %v456, 4294901760
        %7972 = vmatpush1.msra.mxu0 %v7971
        %v7973 = vand.u32 %v453, 4294901760
        %7974 = vmatprep.subr.mxu0 %v7973
        %v7975 = vand.u32 %v452, 4294901760
        %7976 = vmatpush1.msra.mxu0 %v7975
        %v7977 = vand.u32 %v449, 4294901760
        %7978 = vmatprep.subr.mxu0 %v7977
        %v7979 = vand.u32 %v448, 4294901760
        %7980 = vmatpush1.msra.mxu0 %v7979
        %v7981 = vand.u32 %v445, 4294901760
        %7982 = vmatprep.subr.mxu0 %v7981
        %v7983 = vand.u32 %v444, 4294901760
        %7984 = vmatpush1.msra.mxu0 %v7983
        %v7985 = vand.u32 %v441, 4294901760
        %7986 = vmatprep.subr.mxu0 %v7985
        %v7987 = vand.u32 %v440, 4294901760
        %7988 = vmatpush1.msra.mxu0 %v7987
        %v7989 = vand.u32 %v437, 4294901760
        %7990 = vmatprep.subr.mxu0 %v7989
        %v7991 = vand.u32 %v436, 4294901760
        %7992 = vmatpush1.msra.mxu0 %v7991
        %v7993 = vand.u32 %v433, 4294901760
        %7994 = vmatprep.subr.mxu0 %v7993
        %v7995 = vand.u32 %v432, 4294901760
        %7996 = vmatpush1.msra.mxu0 %v7995
        %v7997 = vand.u32 %v429, 4294901760
        %7998 = vmatprep.subr.mxu0 %v7997
        %v7999 = vand.u32 %v428, 4294901760
        %8000 = vmatpush1.msra.mxu0 %v7999
        %v8001 = vand.u32 %v425, 4294901760
        %8002 = vmatprep.subr.mxu0 %v8001
        %v8003 = vand.u32 %v424, 4294901760
        %8004 = vmatpush1.msra.mxu0 %v8003
        %v8005 = vand.u32 %v421, 4294901760
        %8006 = vmatprep.subr.mxu0 %v8005
        %v8007 = vand.u32 %v420, 4294901760
        %8008 = vmatpush1.msra.mxu0 %v8007
        %v8009 = vand.u32 %v417, 4294901760
        %8010 = vmatprep.subr.mxu0 %v8009
        %v8011 = vand.u32 %v416, 4294901760
        %8012 = vmatpush1.msra.mxu0 %v8011
        %v8013 = vand.u32 %v413, 4294901760
        %8014 = vmatprep.subr.mxu0 %v8013
        %v8015 = vand.u32 %v412, 4294901760
        %8016 = vmatpush1.msra.mxu0 %v8015
        %v8017 = vand.u32 %v409, 4294901760
        %8018 = vmatprep.subr.mxu0 %v8017
        %v8019 = vand.u32 %v408, 4294901760
        %8020 = vmatpush1.msra.mxu0 %v8019
        %v8021 = vand.u32 %v405, 4294901760
        %8022 = vmatprep.subr.mxu0 %v8021
        %v8023 = vand.u32 %v404, 4294901760
        %8024 = vmatpush1.msra.mxu0 %v8023
        %v8025 = vand.u32 %v401, 4294901760
        %8026 = vmatprep.subr.mxu0 %v8025
        %v8027 = vand.u32 %v400, 4294901760
        %8028 = vmatpush1.msra.mxu0 %v8027
        %v8029 = vand.u32 %v525, 4294901760
        %8030 = vmatprep.subr.mxu0 %v8029
        %v8031 = vand.u32 %v524, 4294901760
        %8032 = vmatpush2.msra.mxu0 %v8031
        %v8033 = vand.u32 %v521, 4294901760
        %8034 = vmatprep.subr.mxu0 %v8033
        %v8035 = vand.u32 %v520, 4294901760
        %8036 = vmatpush2.msra.mxu0 %v8035
        %v8037 = vand.u32 %v517, 4294901760
        %8038 = vmatprep.subr.mxu0 %v8037
        %v8039 = vand.u32 %v516, 4294901760
        %8040 = vmatpush2.msra.mxu0 %v8039
        %v8041 = vand.u32 %v513, 4294901760
        %8042 = vmatprep.subr.mxu0 %v8041
        %v8043 = vand.u32 %v512, 4294901760
        %8044 = vmatpush2.msra.mxu0 %v8043
        %v8045 = vand.u32 %v509, 4294901760
        %8046 = vmatprep.subr.mxu0 %v8045
        %v8047 = vand.u32 %v508, 4294901760
        %8048 = vmatpush2.msra.mxu0 %v8047
        %v8049 = vand.u32 %v505, 4294901760
        %8050 = vmatprep.subr.mxu0 %v8049
        %v8051 = vand.u32 %v504, 4294901760
        %8052 = vmatpush2.msra.mxu0 %v8051
        %v8053 = vand.u32 %v501, 4294901760
        %8054 = vmatprep.subr.mxu0 %v8053
        %v8055 = vand.u32 %v500, 4294901760
        %8056 = vmatpush2.msra.mxu0 %v8055
        %v8057 = vand.u32 %v497, 4294901760
        %8058 = vmatprep.subr.mxu0 %v8057
        %v8059 = vand.u32 %v496, 4294901760
        %8060 = vmatpush2.msra.mxu0 %v8059
        %v8061 = vand.u32 %v493, 4294901760
        %8062 = vmatprep.subr.mxu0 %v8061
        %v8063 = vand.u32 %v492, 4294901760
        %8064 = vmatpush2.msra.mxu0 %v8063
        %v8065 = vand.u32 %v489, 4294901760
        %8066 = vmatprep.subr.mxu0 %v8065
        %v8067 = vand.u32 %v488, 4294901760
        %8068 = vmatpush2.msra.mxu0 %v8067
        %v8069 = vand.u32 %v485, 4294901760
        %8070 = vmatprep.subr.mxu0 %v8069
        %v8071 = vand.u32 %v484, 4294901760
        %8072 = vmatpush2.msra.mxu0 %v8071
        %v8073 = vand.u32 %v481, 4294901760
        %8074 = vmatprep.subr.mxu0 %v8073
        %v8075 = vand.u32 %v480, 4294901760
        %8076 = vmatpush2.msra.mxu0 %v8075
        %v8077 = vand.u32 %v477, 4294901760
        %8078 = vmatprep.subr.mxu0 %v8077
        %v8079 = vand.u32 %v476, 4294901760
        %8080 = vmatpush2.msra.mxu0 %v8079
        %v8081 = vand.u32 %v473, 4294901760
        %8082 = vmatprep.subr.mxu0 %v8081
        %v8083 = vand.u32 %v472, 4294901760
        %8084 = vmatpush2.msra.mxu0 %v8083
        %v8085 = vand.u32 %v469, 4294901760
        %8086 = vmatprep.subr.mxu0 %v8085
        %v8087 = vand.u32 %v468, 4294901760
        %8088 = vmatpush2.msra.mxu0 %v8087
        %v8089 = vand.u32 %v465, 4294901760
        %8090 = vmatprep.subr.mxu0 %v8089
        %v8091 = vand.u32 %v464, 4294901760
        %8092 = vmatpush2.msra.mxu0 %v8091
        %v8093 = vand.u32 %v265, 4294901760
        %v8094 = vsub.f32 %v265, %v8093
        %v8095 = vand.u32 %v8094, 4294901760
        %8096 = vmatprep.mubr.f32.mxu0 %v8095
        %v8097 = vand.u32 %v264, 4294901760
        %v8098 = vsub.f32 %v264, %v8097
        %v8099 = vand.u32 %v8098, 4294901760
        %8100 = vmatmul.mubr.f32.gmra.mxu0 %v8099
        %v8101 = vpop.f32.mrf.mxu0
        %v8102 = vadd.f32 %v7961, %v8101
        %v8103 = vpop.f32.mrf.mxu0
        %v8104 = vadd.f32 %v7963, %v8103
        %8105 = vdwg.mxu0
        %v8106 = vand.u32 %v461, 4294901760
        %v8107 = vsub.f32 %v461, %v8106
        %v8108 = vand.u32 %v8107, 4294901760
        %8109 = vmatprep.subr.mxu0 %v8108
        %v8110 = vand.u32 %v460, 4294901760
        %v8111 = vsub.f32 %v460, %v8110
        %v8112 = vand.u32 %v8111, 4294901760
        %8113 = vmatpush1.msra.mxu0 %v8112
        %v8114 = vand.u32 %v457, 4294901760
        %v8115 = vsub.f32 %v457, %v8114
        %v8116 = vand.u32 %v8115, 4294901760
        %8117 = vmatprep.subr.mxu0 %v8116
        %v8118 = vand.u32 %v456, 4294901760
        %v8119 = vsub.f32 %v456, %v8118
        %v8120 = vand.u32 %v8119, 4294901760
        %8121 = vmatpush1.msra.mxu0 %v8120
        %v8122 = vand.u32 %v453, 4294901760
        %v8123 = vsub.f32 %v453, %v8122
        %v8124 = vand.u32 %v8123, 4294901760
        %8125 = vmatprep.subr.mxu0 %v8124
        %v8126 = vand.u32 %v452, 4294901760
        %v8127 = vsub.f32 %v452, %v8126
        %v8128 = vand.u32 %v8127, 4294901760
        %8129 = vmatpush1.msra.mxu0 %v8128
        %v8130 = vand.u32 %v449, 4294901760
        %v8131 = vsub.f32 %v449, %v8130
        %v8132 = vand.u32 %v8131, 4294901760
        %8133 = vmatprep.subr.mxu0 %v8132
        %v8134 = vand.u32 %v448, 4294901760
        %v8135 = vsub.f32 %v448, %v8134
        %v8136 = vand.u32 %v8135, 4294901760
        %8137 = vmatpush1.msra.mxu0 %v8136
        %v8138 = vand.u32 %v445, 4294901760
        %v8139 = vsub.f32 %v445, %v8138
        %v8140 = vand.u32 %v8139, 4294901760
        %8141 = vmatprep.subr.mxu0 %v8140
        %v8142 = vand.u32 %v444, 4294901760
        %v8143 = vsub.f32 %v444, %v8142
        %v8144 = vand.u32 %v8143, 4294901760
        %8145 = vmatpush1.msra.mxu0 %v8144
        %v8146 = vand.u32 %v441, 4294901760
        %v8147 = vsub.f32 %v441, %v8146
        %v8148 = vand.u32 %v8147, 4294901760
        %8149 = vmatprep.subr.mxu0 %v8148
        %v8150 = vand.u32 %v440, 4294901760
        %v8151 = vsub.f32 %v440, %v8150
        %v8152 = vand.u32 %v8151, 4294901760
        %8153 = vmatpush1.msra.mxu0 %v8152
        %v8154 = vand.u32 %v437, 4294901760
        %v8155 = vsub.f32 %v437, %v8154
        %v8156 = vand.u32 %v8155, 4294901760
        %8157 = vmatprep.subr.mxu0 %v8156
        %v8158 = vand.u32 %v436, 4294901760
        %v8159 = vsub.f32 %v436, %v8158
        %v8160 = vand.u32 %v8159, 4294901760
        %8161 = vmatpush1.msra.mxu0 %v8160
        %v8162 = vand.u32 %v433, 4294901760
        %v8163 = vsub.f32 %v433, %v8162
        %v8164 = vand.u32 %v8163, 4294901760
        %8165 = vmatprep.subr.mxu0 %v8164
        %v8166 = vand.u32 %v432, 4294901760
        %v8167 = vsub.f32 %v432, %v8166
        %v8168 = vand.u32 %v8167, 4294901760
        %8169 = vmatpush1.msra.mxu0 %v8168
        %v8170 = vand.u32 %v429, 4294901760
        %v8171 = vsub.f32 %v429, %v8170
        %v8172 = vand.u32 %v8171, 4294901760
        %8173 = vmatprep.subr.mxu0 %v8172
        %v8174 = vand.u32 %v428, 4294901760
        %v8175 = vsub.f32 %v428, %v8174
        %v8176 = vand.u32 %v8175, 4294901760
        %8177 = vmatpush1.msra.mxu0 %v8176
        %v8178 = vand.u32 %v425, 4294901760
        %v8179 = vsub.f32 %v425, %v8178
        %v8180 = vand.u32 %v8179, 4294901760
        %8181 = vmatprep.subr.mxu0 %v8180
        %v8182 = vand.u32 %v424, 4294901760
        %v8183 = vsub.f32 %v424, %v8182
        %v8184 = vand.u32 %v8183, 4294901760
        %8185 = vmatpush1.msra.mxu0 %v8184
        %v8186 = vand.u32 %v421, 4294901760
        %v8187 = vsub.f32 %v421, %v8186
        %v8188 = vand.u32 %v8187, 4294901760
        %8189 = vmatprep.subr.mxu0 %v8188
        %v8190 = vand.u32 %v420, 4294901760
        %v8191 = vsub.f32 %v420, %v8190
        %v8192 = vand.u32 %v8191, 4294901760
        %8193 = vmatpush1.msra.mxu0 %v8192
        %v8194 = vand.u32 %v417, 4294901760
        %v8195 = vsub.f32 %v417, %v8194
        %v8196 = vand.u32 %v8195, 4294901760
        %8197 = vmatprep.subr.mxu0 %v8196
        %v8198 = vand.u32 %v416, 4294901760
        %v8199 = vsub.f32 %v416, %v8198
        %v8200 = vand.u32 %v8199, 4294901760
        %8201 = vmatpush1.msra.mxu0 %v8200
        %v8202 = vand.u32 %v413, 4294901760
        %v8203 = vsub.f32 %v413, %v8202
        %v8204 = vand.u32 %v8203, 4294901760
        %8205 = vmatprep.subr.mxu0 %v8204
        %v8206 = vand.u32 %v412, 4294901760
        %v8207 = vsub.f32 %v412, %v8206
        %v8208 = vand.u32 %v8207, 4294901760
        %8209 = vmatpush1.msra.mxu0 %v8208
        %v8210 = vand.u32 %v409, 4294901760
        %v8211 = vsub.f32 %v409, %v8210
        %v8212 = vand.u32 %v8211, 4294901760
        %8213 = vmatprep.subr.mxu0 %v8212
        %v8214 = vand.u32 %v408, 4294901760
        %v8215 = vsub.f32 %v408, %v8214
        %v8216 = vand.u32 %v8215, 4294901760
        %8217 = vmatpush1.msra.mxu0 %v8216
        %v8218 = vand.u32 %v405, 4294901760
        %v8219 = vsub.f32 %v405, %v8218
        %v8220 = vand.u32 %v8219, 4294901760
        %8221 = vmatprep.subr.mxu0 %v8220
        %v8222 = vand.u32 %v404, 4294901760
        %v8223 = vsub.f32 %v404, %v8222
        %v8224 = vand.u32 %v8223, 4294901760
        %8225 = vmatpush1.msra.mxu0 %v8224
        %v8226 = vand.u32 %v401, 4294901760
        %v8227 = vsub.f32 %v401, %v8226
        %v8228 = vand.u32 %v8227, 4294901760
        %8229 = vmatprep.subr.mxu0 %v8228
        %v8230 = vand.u32 %v400, 4294901760
        %v8231 = vsub.f32 %v400, %v8230
        %v8232 = vand.u32 %v8231, 4294901760
        %8233 = vmatpush1.msra.mxu0 %v8232
        %v8234 = vand.u32 %v525, 4294901760
        %v8235 = vsub.f32 %v525, %v8234
        %v8236 = vand.u32 %v8235, 4294901760
        %8237 = vmatprep.subr.mxu0 %v8236
        %v8238 = vand.u32 %v524, 4294901760
        %v8239 = vsub.f32 %v524, %v8238
        %v8240 = vand.u32 %v8239, 4294901760
        %8241 = vmatpush2.msra.mxu0 %v8240
        %v8242 = vand.u32 %v521, 4294901760
        %v8243 = vsub.f32 %v521, %v8242
        %v8244 = vand.u32 %v8243, 4294901760
        %8245 = vmatprep.subr.mxu0 %v8244
        %v8246 = vand.u32 %v520, 4294901760
        %v8247 = vsub.f32 %v520, %v8246
        %v8248 = vand.u32 %v8247, 4294901760
        %8249 = vmatpush2.msra.mxu0 %v8248
        %v8250 = vand.u32 %v517, 4294901760
        %v8251 = vsub.f32 %v517, %v8250
        %v8252 = vand.u32 %v8251, 4294901760
        %8253 = vmatprep.subr.mxu0 %v8252
        %v8254 = vand.u32 %v516, 4294901760
        %v8255 = vsub.f32 %v516, %v8254
        %v8256 = vand.u32 %v8255, 4294901760
        %8257 = vmatpush2.msra.mxu0 %v8256
        %v8258 = vand.u32 %v513, 4294901760
        %v8259 = vsub.f32 %v513, %v8258
        %v8260 = vand.u32 %v8259, 4294901760
        %8261 = vmatprep.subr.mxu0 %v8260
        %v8262 = vand.u32 %v512, 4294901760
        %v8263 = vsub.f32 %v512, %v8262
        %v8264 = vand.u32 %v8263, 4294901760
        %8265 = vmatpush2.msra.mxu0 %v8264
        %v8266 = vand.u32 %v509, 4294901760
        %v8267 = vsub.f32 %v509, %v8266
        %v8268 = vand.u32 %v8267, 4294901760
        %8269 = vmatprep.subr.mxu0 %v8268
        %v8270 = vand.u32 %v508, 4294901760
        %v8271 = vsub.f32 %v508, %v8270
        %v8272 = vand.u32 %v8271, 4294901760
        %8273 = vmatpush2.msra.mxu0 %v8272
        %v8274 = vand.u32 %v505, 4294901760
        %v8275 = vsub.f32 %v505, %v8274
        %v8276 = vand.u32 %v8275, 4294901760
        %8277 = vmatprep.subr.mxu0 %v8276
        %v8278 = vand.u32 %v504, 4294901760
        %v8279 = vsub.f32 %v504, %v8278
        %v8280 = vand.u32 %v8279, 4294901760
        %8281 = vmatpush2.msra.mxu0 %v8280
        %v8282 = vand.u32 %v501, 4294901760
        %v8283 = vsub.f32 %v501, %v8282
        %v8284 = vand.u32 %v8283, 4294901760
        %8285 = vmatprep.subr.mxu0 %v8284
        %v8286 = vand.u32 %v500, 4294901760
        %v8287 = vsub.f32 %v500, %v8286
        %v8288 = vand.u32 %v8287, 4294901760
        %8289 = vmatpush2.msra.mxu0 %v8288
        %v8290 = vand.u32 %v497, 4294901760
        %v8291 = vsub.f32 %v497, %v8290
        %v8292 = vand.u32 %v8291, 4294901760
        %8293 = vmatprep.subr.mxu0 %v8292
        %v8294 = vand.u32 %v496, 4294901760
        %v8295 = vsub.f32 %v496, %v8294
        %v8296 = vand.u32 %v8295, 4294901760
        %8297 = vmatpush2.msra.mxu0 %v8296
        %v8298 = vand.u32 %v493, 4294901760
        %v8299 = vsub.f32 %v493, %v8298
        %v8300 = vand.u32 %v8299, 4294901760
        %8301 = vmatprep.subr.mxu0 %v8300
        %v8302 = vand.u32 %v492, 4294901760
        %v8303 = vsub.f32 %v492, %v8302
        %v8304 = vand.u32 %v8303, 4294901760
        %8305 = vmatpush2.msra.mxu0 %v8304
        %v8306 = vand.u32 %v489, 4294901760
        %v8307 = vsub.f32 %v489, %v8306
        %v8308 = vand.u32 %v8307, 4294901760
        %8309 = vmatprep.subr.mxu0 %v8308
        %v8310 = vand.u32 %v488, 4294901760
        %v8311 = vsub.f32 %v488, %v8310
        %v8312 = vand.u32 %v8311, 4294901760
        %8313 = vmatpush2.msra.mxu0 %v8312
        %v8314 = vand.u32 %v485, 4294901760
        %v8315 = vsub.f32 %v485, %v8314
        %v8316 = vand.u32 %v8315, 4294901760
        %8317 = vmatprep.subr.mxu0 %v8316
        %v8318 = vand.u32 %v484, 4294901760
        %v8319 = vsub.f32 %v484, %v8318
        %v8320 = vand.u32 %v8319, 4294901760
        %8321 = vmatpush2.msra.mxu0 %v8320
        %v8322 = vand.u32 %v481, 4294901760
        %v8323 = vsub.f32 %v481, %v8322
        %v8324 = vand.u32 %v8323, 4294901760
        %8325 = vmatprep.subr.mxu0 %v8324
        %v8326 = vand.u32 %v480, 4294901760
        %v8327 = vsub.f32 %v480, %v8326
        %v8328 = vand.u32 %v8327, 4294901760
        %8329 = vmatpush2.msra.mxu0 %v8328
        %v8330 = vand.u32 %v477, 4294901760
        %v8331 = vsub.f32 %v477, %v8330
        %v8332 = vand.u32 %v8331, 4294901760
        %8333 = vmatprep.subr.mxu0 %v8332
        %v8334 = vand.u32 %v476, 4294901760
        %v8335 = vsub.f32 %v476, %v8334
        %v8336 = vand.u32 %v8335, 4294901760
        %8337 = vmatpush2.msra.mxu0 %v8336
        %v8338 = vand.u32 %v473, 4294901760
        %v8339 = vsub.f32 %v473, %v8338
        %v8340 = vand.u32 %v8339, 4294901760
        %8341 = vmatprep.subr.mxu0 %v8340
        %v8342 = vand.u32 %v472, 4294901760
        %v8343 = vsub.f32 %v472, %v8342
        %v8344 = vand.u32 %v8343, 4294901760
        %8345 = vmatpush2.msra.mxu0 %v8344
        %v8346 = vand.u32 %v469, 4294901760
        %v8347 = vsub.f32 %v469, %v8346
        %v8348 = vand.u32 %v8347, 4294901760
        %8349 = vmatprep.subr.mxu0 %v8348
        %v8350 = vand.u32 %v468, 4294901760
        %v8351 = vsub.f32 %v468, %v8350
        %v8352 = vand.u32 %v8351, 4294901760
        %8353 = vmatpush2.msra.mxu0 %v8352
        %v8354 = vand.u32 %v465, 4294901760
        %v8355 = vsub.f32 %v465, %v8354
        %v8356 = vand.u32 %v8355, 4294901760
        %8357 = vmatprep.subr.mxu0 %v8356
        %v8358 = vand.u32 %v464, 4294901760
        %v8359 = vsub.f32 %v464, %v8358
        %v8360 = vand.u32 %v8359, 4294901760
        %8361 = vmatpush2.msra.mxu0 %v8360
        %v8362 = vand.u32 %v265, 4294901760
        %8363 = vmatprep.mubr.f32.mxu0 %v8362
        %v8364 = vand.u32 %v264, 4294901760
        %8365 = vmatmul.mubr.f32.gmra.mxu0 %v8364
        %v8366 = vpop.f32.mrf.mxu0
        %v8367 = vadd.f32 %v8102, %v8366
        %v8368 = vpop.f32.mrf.mxu0
        %v8369 = vadd.f32 %v8104, %v8368
        %8370 = vdwg.mxu0
        %v8371 = vand.u32 %v461, 4294901760
        %8372 = vmatprep.subr.mxu0 %v8371
        %v8373 = vand.u32 %v460, 4294901760
        %8374 = vmatpush1.msra.mxu0 %v8373
        %v8375 = vand.u32 %v457, 4294901760
        %8376 = vmatprep.subr.mxu0 %v8375
        %v8377 = vand.u32 %v456, 4294901760
        %8378 = vmatpush1.msra.mxu0 %v8377
        %v8379 = vand.u32 %v453, 4294901760
        %8380 = vmatprep.subr.mxu0 %v8379
        %v8381 = vand.u32 %v452, 4294901760
        %8382 = vmatpush1.msra.mxu0 %v8381
        %v8383 = vand.u32 %v449, 4294901760
        %8384 = vmatprep.subr.mxu0 %v8383
        %v8385 = vand.u32 %v448, 4294901760
        %8386 = vmatpush1.msra.mxu0 %v8385
        %v8387 = vand.u32 %v445, 4294901760
        %8388 = vmatprep.subr.mxu0 %v8387
        %v8389 = vand.u32 %v444, 4294901760
        %8390 = vmatpush1.msra.mxu0 %v8389
        %v8391 = vand.u32 %v441, 4294901760
        %8392 = vmatprep.subr.mxu0 %v8391
        %v8393 = vand.u32 %v440, 4294901760
        %8394 = vmatpush1.msra.mxu0 %v8393
        %v8395 = vand.u32 %v437, 4294901760
        %8396 = vmatprep.subr.mxu0 %v8395
        %v8397 = vand.u32 %v436, 4294901760
        %8398 = vmatpush1.msra.mxu0 %v8397
        %v8399 = vand.u32 %v433, 4294901760
        %8400 = vmatprep.subr.mxu0 %v8399
        %v8401 = vand.u32 %v432, 4294901760
        %8402 = vmatpush1.msra.mxu0 %v8401
        %v8403 = vand.u32 %v429, 4294901760
        %8404 = vmatprep.subr.mxu0 %v8403
        %v8405 = vand.u32 %v428, 4294901760
        %8406 = vmatpush1.msra.mxu0 %v8405
        %v8407 = vand.u32 %v425, 4294901760
        %8408 = vmatprep.subr.mxu0 %v8407
        %v8409 = vand.u32 %v424, 4294901760
        %8410 = vmatpush1.msra.mxu0 %v8409
        %v8411 = vand.u32 %v421, 4294901760
        %8412 = vmatprep.subr.mxu0 %v8411
        %v8413 = vand.u32 %v420, 4294901760
        %8414 = vmatpush1.msra.mxu0 %v8413
        %v8415 = vand.u32 %v417, 4294901760
        %8416 = vmatprep.subr.mxu0 %v8415
        %v8417 = vand.u32 %v416, 4294901760
        %8418 = vmatpush1.msra.mxu0 %v8417
        %v8419 = vand.u32 %v413, 4294901760
        %8420 = vmatprep.subr.mxu0 %v8419
        %v8421 = vand.u32 %v412, 4294901760
        %8422 = vmatpush1.msra.mxu0 %v8421
        %v8423 = vand.u32 %v409, 4294901760
        %8424 = vmatprep.subr.mxu0 %v8423
        %v8425 = vand.u32 %v408, 4294901760
        %8426 = vmatpush1.msra.mxu0 %v8425
        %v8427 = vand.u32 %v405, 4294901760
        %8428 = vmatprep.subr.mxu0 %v8427
        %v8429 = vand.u32 %v404, 4294901760
        %8430 = vmatpush1.msra.mxu0 %v8429
        %v8431 = vand.u32 %v401, 4294901760
        %8432 = vmatprep.subr.mxu0 %v8431
        %v8433 = vand.u32 %v400, 4294901760
        %8434 = vmatpush1.msra.mxu0 %v8433
        %v8435 = vand.u32 %v525, 4294901760
        %8436 = vmatprep.subr.mxu0 %v8435
        %v8437 = vand.u32 %v524, 4294901760
        %8438 = vmatpush2.msra.mxu0 %v8437
        %v8439 = vand.u32 %v521, 4294901760
        %8440 = vmatprep.subr.mxu0 %v8439
        %v8441 = vand.u32 %v520, 4294901760
        %8442 = vmatpush2.msra.mxu0 %v8441
        %v8443 = vand.u32 %v517, 4294901760
        %8444 = vmatprep.subr.mxu0 %v8443
        %v8445 = vand.u32 %v516, 4294901760
        %8446 = vmatpush2.msra.mxu0 %v8445
        %v8447 = vand.u32 %v513, 4294901760
        %8448 = vmatprep.subr.mxu0 %v8447
        %v8449 = vand.u32 %v512, 4294901760
        %8450 = vmatpush2.msra.mxu0 %v8449
        %v8451 = vand.u32 %v509, 4294901760
        %8452 = vmatprep.subr.mxu0 %v8451
        %v8453 = vand.u32 %v508, 4294901760
        %8454 = vmatpush2.msra.mxu0 %v8453
        %v8455 = vand.u32 %v505, 4294901760
        %8456 = vmatprep.subr.mxu0 %v8455
        %v8457 = vand.u32 %v504, 4294901760
        %8458 = vmatpush2.msra.mxu0 %v8457
        %v8459 = vand.u32 %v501, 4294901760
        %8460 = vmatprep.subr.mxu0 %v8459
        %v8461 = vand.u32 %v500, 4294901760
        %8462 = vmatpush2.msra.mxu0 %v8461
        %v8463 = vand.u32 %v497, 4294901760
        %8464 = vmatprep.subr.mxu0 %v8463
        %v8465 = vand.u32 %v496, 4294901760
        %8466 = vmatpush2.msra.mxu0 %v8465
        %v8467 = vand.u32 %v493, 4294901760
        %8468 = vmatprep.subr.mxu0 %v8467
        %v8469 = vand.u32 %v492, 4294901760
        %8470 = vmatpush2.msra.mxu0 %v8469
        %v8471 = vand.u32 %v489, 4294901760
        %8472 = vmatprep.subr.mxu0 %v8471
        %v8473 = vand.u32 %v488, 4294901760
        %8474 = vmatpush2.msra.mxu0 %v8473
        %v8475 = vand.u32 %v485, 4294901760
        %8476 = vmatprep.subr.mxu0 %v8475
        %v8477 = vand.u32 %v484, 4294901760
        %8478 = vmatpush2.msra.mxu0 %v8477
        %v8479 = vand.u32 %v481, 4294901760
        %8480 = vmatprep.subr.mxu0 %v8479
        %v8481 = vand.u32 %v480, 4294901760
        %8482 = vmatpush2.msra.mxu0 %v8481
        %v8483 = vand.u32 %v477, 4294901760
        %8484 = vmatprep.subr.mxu0 %v8483
        %v8485 = vand.u32 %v476, 4294901760
        %8486 = vmatpush2.msra.mxu0 %v8485
        %v8487 = vand.u32 %v473, 4294901760
        %8488 = vmatprep.subr.mxu0 %v8487
        %v8489 = vand.u32 %v472, 4294901760
        %8490 = vmatpush2.msra.mxu0 %v8489
        %v8491 = vand.u32 %v469, 4294901760
        %8492 = vmatprep.subr.mxu0 %v8491
        %v8493 = vand.u32 %v468, 4294901760
        %8494 = vmatpush2.msra.mxu0 %v8493
        %v8495 = vand.u32 %v465, 4294901760
        %8496 = vmatprep.subr.mxu0 %v8495
        %v8497 = vand.u32 %v464, 4294901760
        %8498 = vmatpush2.msra.mxu0 %v8497
        %v8499 = vand.u32 %v265, 4294901760
        %8500 = vmatprep.mubr.f32.mxu0 %v8499
        %v8501 = vand.u32 %v264, 4294901760
        %8502 = vmatmul.mubr.f32.gmra.mxu0 %v8501
        %v8503 = vpop.f32.mrf.mxu0
        %v8504 = vadd.f32 %v8367, %v8503
        %v8505 = vpop.f32.mrf.mxu0
        %v8506 = vadd.f32 %v8369, %v8505
        %8507 = vdwg.mxu0
        %v8508 = vand.u32 %v589, 4294901760
        %8509 = vmatprep.subr.mxu0 %v8508
        %v8510 = vand.u32 %v588, 4294901760
        %8511 = vmatpush1.msra.mxu0 %v8510
        %v8512 = vand.u32 %v585, 4294901760
        %8513 = vmatprep.subr.mxu0 %v8512
        %v8514 = vand.u32 %v584, 4294901760
        %8515 = vmatpush1.msra.mxu0 %v8514
        %v8516 = vand.u32 %v581, 4294901760
        %8517 = vmatprep.subr.mxu0 %v8516
        %v8518 = vand.u32 %v580, 4294901760
        %8519 = vmatpush1.msra.mxu0 %v8518
        %v8520 = vand.u32 %v577, 4294901760
        %8521 = vmatprep.subr.mxu0 %v8520
        %v8522 = vand.u32 %v576, 4294901760
        %8523 = vmatpush1.msra.mxu0 %v8522
        %v8524 = vand.u32 %v573, 4294901760
        %8525 = vmatprep.subr.mxu0 %v8524
        %v8526 = vand.u32 %v572, 4294901760
        %8527 = vmatpush1.msra.mxu0 %v8526
        %v8528 = vand.u32 %v569, 4294901760
        %8529 = vmatprep.subr.mxu0 %v8528
        %v8530 = vand.u32 %v568, 4294901760
        %8531 = vmatpush1.msra.mxu0 %v8530
        %v8532 = vand.u32 %v565, 4294901760
        %8533 = vmatprep.subr.mxu0 %v8532
        %v8534 = vand.u32 %v564, 4294901760
        %8535 = vmatpush1.msra.mxu0 %v8534
        %v8536 = vand.u32 %v561, 4294901760
        %8537 = vmatprep.subr.mxu0 %v8536
        %v8538 = vand.u32 %v560, 4294901760
        %8539 = vmatpush1.msra.mxu0 %v8538
        %v8540 = vand.u32 %v557, 4294901760
        %8541 = vmatprep.subr.mxu0 %v8540
        %v8542 = vand.u32 %v556, 4294901760
        %8543 = vmatpush1.msra.mxu0 %v8542
        %v8544 = vand.u32 %v553, 4294901760
        %8545 = vmatprep.subr.mxu0 %v8544
        %v8546 = vand.u32 %v552, 4294901760
        %8547 = vmatpush1.msra.mxu0 %v8546
        %v8548 = vand.u32 %v549, 4294901760
        %8549 = vmatprep.subr.mxu0 %v8548
        %v8550 = vand.u32 %v548, 4294901760
        %8551 = vmatpush1.msra.mxu0 %v8550
        %v8552 = vand.u32 %v545, 4294901760
        %8553 = vmatprep.subr.mxu0 %v8552
        %v8554 = vand.u32 %v544, 4294901760
        %8555 = vmatpush1.msra.mxu0 %v8554
        %v8556 = vand.u32 %v541, 4294901760
        %8557 = vmatprep.subr.mxu0 %v8556
        %v8558 = vand.u32 %v540, 4294901760
        %8559 = vmatpush1.msra.mxu0 %v8558
        %v8560 = vand.u32 %v537, 4294901760
        %8561 = vmatprep.subr.mxu0 %v8560
        %v8562 = vand.u32 %v536, 4294901760
        %8563 = vmatpush1.msra.mxu0 %v8562
        %v8564 = vand.u32 %v533, 4294901760
        %8565 = vmatprep.subr.mxu0 %v8564
        %v8566 = vand.u32 %v532, 4294901760
        %8567 = vmatpush1.msra.mxu0 %v8566
        %v8568 = vand.u32 %v529, 4294901760
        %8569 = vmatprep.subr.mxu0 %v8568
        %v8570 = vand.u32 %v528, 4294901760
        %8571 = vmatpush1.msra.mxu0 %v8570
        %v8572 = vand.u32 %v653, 4294901760
        %8573 = vmatprep.subr.mxu0 %v8572
        %v8574 = vand.u32 %v652, 4294901760
        %8575 = vmatpush2.msra.mxu0 %v8574
        %v8576 = vand.u32 %v649, 4294901760
        %8577 = vmatprep.subr.mxu0 %v8576
        %v8578 = vand.u32 %v648, 4294901760
        %8579 = vmatpush2.msra.mxu0 %v8578
        %v8580 = vand.u32 %v645, 4294901760
        %8581 = vmatprep.subr.mxu0 %v8580
        %v8582 = vand.u32 %v644, 4294901760
        %8583 = vmatpush2.msra.mxu0 %v8582
        %v8584 = vand.u32 %v641, 4294901760
        %8585 = vmatprep.subr.mxu0 %v8584
        %v8586 = vand.u32 %v640, 4294901760
        %8587 = vmatpush2.msra.mxu0 %v8586
        %v8588 = vand.u32 %v637, 4294901760
        %8589 = vmatprep.subr.mxu0 %v8588
        %v8590 = vand.u32 %v636, 4294901760
        %8591 = vmatpush2.msra.mxu0 %v8590
        %v8592 = vand.u32 %v633, 4294901760
        %8593 = vmatprep.subr.mxu0 %v8592
        %v8594 = vand.u32 %v632, 4294901760
        %8595 = vmatpush2.msra.mxu0 %v8594
        %v8596 = vand.u32 %v629, 4294901760
        %8597 = vmatprep.subr.mxu0 %v8596
        %v8598 = vand.u32 %v628, 4294901760
        %8599 = vmatpush2.msra.mxu0 %v8598
        %v8600 = vand.u32 %v625, 4294901760
        %8601 = vmatprep.subr.mxu0 %v8600
        %v8602 = vand.u32 %v624, 4294901760
        %8603 = vmatpush2.msra.mxu0 %v8602
        %v8604 = vand.u32 %v621, 4294901760
        %8605 = vmatprep.subr.mxu0 %v8604
        %v8606 = vand.u32 %v620, 4294901760
        %8607 = vmatpush2.msra.mxu0 %v8606
        %v8608 = vand.u32 %v617, 4294901760
        %8609 = vmatprep.subr.mxu0 %v8608
        %v8610 = vand.u32 %v616, 4294901760
        %8611 = vmatpush2.msra.mxu0 %v8610
        %v8612 = vand.u32 %v613, 4294901760
        %8613 = vmatprep.subr.mxu0 %v8612
        %v8614 = vand.u32 %v612, 4294901760
        %8615 = vmatpush2.msra.mxu0 %v8614
        %v8616 = vand.u32 %v609, 4294901760
        %8617 = vmatprep.subr.mxu0 %v8616
        %v8618 = vand.u32 %v608, 4294901760
        %8619 = vmatpush2.msra.mxu0 %v8618
        %v8620 = vand.u32 %v605, 4294901760
        %8621 = vmatprep.subr.mxu0 %v8620
        %v8622 = vand.u32 %v604, 4294901760
        %8623 = vmatpush2.msra.mxu0 %v8622
        %v8624 = vand.u32 %v601, 4294901760
        %8625 = vmatprep.subr.mxu0 %v8624
        %v8626 = vand.u32 %v600, 4294901760
        %8627 = vmatpush2.msra.mxu0 %v8626
        %v8628 = vand.u32 %v597, 4294901760
        %8629 = vmatprep.subr.mxu0 %v8628
        %v8630 = vand.u32 %v596, 4294901760
        %8631 = vmatpush2.msra.mxu0 %v8630
        %v8632 = vand.u32 %v593, 4294901760
        %8633 = vmatprep.subr.mxu0 %v8632
        %v8634 = vand.u32 %v592, 4294901760
        %8635 = vmatpush2.msra.mxu0 %v8634
        %v8636 = vand.u32 %v267, 4294901760
        %v8637 = vsub.f32 %v267, %v8636
        %v8638 = vand.u32 %v8637, 4294901760
        %v8639 = vsub.f32 %v8637, %v8638
        %v8640 = vand.u32 %v8639, 4294901760
        %8641 = vmatprep.mubr.f32.mxu0 %v8640
        %v8642 = vand.u32 %v266, 4294901760
        %v8643 = vsub.f32 %v266, %v8642
        %v8644 = vand.u32 %v8643, 4294901760
        %v8645 = vsub.f32 %v8643, %v8644
        %v8646 = vand.u32 %v8645, 4294901760
        %8647 = vmatmul.mubr.f32.gmra.mxu0 %v8646
        %v8648 = vpop.f32.mrf.mxu0
        %v8649 = vadd.f32 %v8504, %v8648
        %v8650 = vpop.f32.mrf.mxu0
        %v8651 = vadd.f32 %v8506, %v8650
        %8652 = vdwg.mxu0
        %v8653 = vand.u32 %v589, 4294901760
        %v8654 = vsub.f32 %v589, %v8653
        %v8655 = vand.u32 %v8654, 4294901760
        %v8656 = vsub.f32 %v8654, %v8655
        %v8657 = vand.u32 %v8656, 4294901760
        %8658 = vmatprep.subr.mxu0 %v8657
        %v8659 = vand.u32 %v588, 4294901760
        %v8660 = vsub.f32 %v588, %v8659
        %v8661 = vand.u32 %v8660, 4294901760
        %v8662 = vsub.f32 %v8660, %v8661
        %v8663 = vand.u32 %v8662, 4294901760
        %8664 = vmatpush1.msra.mxu0 %v8663
        %v8665 = vand.u32 %v585, 4294901760
        %v8666 = vsub.f32 %v585, %v8665
        %v8667 = vand.u32 %v8666, 4294901760
        %v8668 = vsub.f32 %v8666, %v8667
        %v8669 = vand.u32 %v8668, 4294901760
        %8670 = vmatprep.subr.mxu0 %v8669
        %v8671 = vand.u32 %v584, 4294901760
        %v8672 = vsub.f32 %v584, %v8671
        %v8673 = vand.u32 %v8672, 4294901760
        %v8674 = vsub.f32 %v8672, %v8673
        %v8675 = vand.u32 %v8674, 4294901760
        %8676 = vmatpush1.msra.mxu0 %v8675
        %v8677 = vand.u32 %v581, 4294901760
        %v8678 = vsub.f32 %v581, %v8677
        %v8679 = vand.u32 %v8678, 4294901760
        %v8680 = vsub.f32 %v8678, %v8679
        %v8681 = vand.u32 %v8680, 4294901760
        %8682 = vmatprep.subr.mxu0 %v8681
        %v8683 = vand.u32 %v580, 4294901760
        %v8684 = vsub.f32 %v580, %v8683
        %v8685 = vand.u32 %v8684, 4294901760
        %v8686 = vsub.f32 %v8684, %v8685
        %v8687 = vand.u32 %v8686, 4294901760
        %8688 = vmatpush1.msra.mxu0 %v8687
        %v8689 = vand.u32 %v577, 4294901760
        %v8690 = vsub.f32 %v577, %v8689
        %v8691 = vand.u32 %v8690, 4294901760
        %v8692 = vsub.f32 %v8690, %v8691
        %v8693 = vand.u32 %v8692, 4294901760
        %8694 = vmatprep.subr.mxu0 %v8693
        %v8695 = vand.u32 %v576, 4294901760
        %v8696 = vsub.f32 %v576, %v8695
        %v8697 = vand.u32 %v8696, 4294901760
        %v8698 = vsub.f32 %v8696, %v8697
        %v8699 = vand.u32 %v8698, 4294901760
        %8700 = vmatpush1.msra.mxu0 %v8699
        %v8701 = vand.u32 %v573, 4294901760
        %v8702 = vsub.f32 %v573, %v8701
        %v8703 = vand.u32 %v8702, 4294901760
        %v8704 = vsub.f32 %v8702, %v8703
        %v8705 = vand.u32 %v8704, 4294901760
        %8706 = vmatprep.subr.mxu0 %v8705
        %v8707 = vand.u32 %v572, 4294901760
        %v8708 = vsub.f32 %v572, %v8707
        %v8709 = vand.u32 %v8708, 4294901760
        %v8710 = vsub.f32 %v8708, %v8709
        %v8711 = vand.u32 %v8710, 4294901760
        %8712 = vmatpush1.msra.mxu0 %v8711
        %v8713 = vand.u32 %v569, 4294901760
        %v8714 = vsub.f32 %v569, %v8713
        %v8715 = vand.u32 %v8714, 4294901760
        %v8716 = vsub.f32 %v8714, %v8715
        %v8717 = vand.u32 %v8716, 4294901760
        %8718 = vmatprep.subr.mxu0 %v8717
        %v8719 = vand.u32 %v568, 4294901760
        %v8720 = vsub.f32 %v568, %v8719
        %v8721 = vand.u32 %v8720, 4294901760
        %v8722 = vsub.f32 %v8720, %v8721
        %v8723 = vand.u32 %v8722, 4294901760
        %8724 = vmatpush1.msra.mxu0 %v8723
        %v8725 = vand.u32 %v565, 4294901760
        %v8726 = vsub.f32 %v565, %v8725
        %v8727 = vand.u32 %v8726, 4294901760
        %v8728 = vsub.f32 %v8726, %v8727
        %v8729 = vand.u32 %v8728, 4294901760
        %8730 = vmatprep.subr.mxu0 %v8729
        %v8731 = vand.u32 %v564, 4294901760
        %v8732 = vsub.f32 %v564, %v8731
        %v8733 = vand.u32 %v8732, 4294901760
        %v8734 = vsub.f32 %v8732, %v8733
        %v8735 = vand.u32 %v8734, 4294901760
        %8736 = vmatpush1.msra.mxu0 %v8735
        %v8737 = vand.u32 %v561, 4294901760
        %v8738 = vsub.f32 %v561, %v8737
        %v8739 = vand.u32 %v8738, 4294901760
        %v8740 = vsub.f32 %v8738, %v8739
        %v8741 = vand.u32 %v8740, 4294901760
        %8742 = vmatprep.subr.mxu0 %v8741
        %v8743 = vand.u32 %v560, 4294901760
        %v8744 = vsub.f32 %v560, %v8743
        %v8745 = vand.u32 %v8744, 4294901760
        %v8746 = vsub.f32 %v8744, %v8745
        %v8747 = vand.u32 %v8746, 4294901760
        %8748 = vmatpush1.msra.mxu0 %v8747
        %v8749 = vand.u32 %v557, 4294901760
        %v8750 = vsub.f32 %v557, %v8749
        %v8751 = vand.u32 %v8750, 4294901760
        %v8752 = vsub.f32 %v8750, %v8751
        %v8753 = vand.u32 %v8752, 4294901760
        %8754 = vmatprep.subr.mxu0 %v8753
        %v8755 = vand.u32 %v556, 4294901760
        %v8756 = vsub.f32 %v556, %v8755
        %v8757 = vand.u32 %v8756, 4294901760
        %v8758 = vsub.f32 %v8756, %v8757
        %v8759 = vand.u32 %v8758, 4294901760
        %8760 = vmatpush1.msra.mxu0 %v8759
        %v8761 = vand.u32 %v553, 4294901760
        %v8762 = vsub.f32 %v553, %v8761
        %v8763 = vand.u32 %v8762, 4294901760
        %v8764 = vsub.f32 %v8762, %v8763
        %v8765 = vand.u32 %v8764, 4294901760
        %8766 = vmatprep.subr.mxu0 %v8765
        %v8767 = vand.u32 %v552, 4294901760
        %v8768 = vsub.f32 %v552, %v8767
        %v8769 = vand.u32 %v8768, 4294901760
        %v8770 = vsub.f32 %v8768, %v8769
        %v8771 = vand.u32 %v8770, 4294901760
        %8772 = vmatpush1.msra.mxu0 %v8771
        %v8773 = vand.u32 %v549, 4294901760
        %v8774 = vsub.f32 %v549, %v8773
        %v8775 = vand.u32 %v8774, 4294901760
        %v8776 = vsub.f32 %v8774, %v8775
        %v8777 = vand.u32 %v8776, 4294901760
        %8778 = vmatprep.subr.mxu0 %v8777
        %v8779 = vand.u32 %v548, 4294901760
        %v8780 = vsub.f32 %v548, %v8779
        %v8781 = vand.u32 %v8780, 4294901760
        %v8782 = vsub.f32 %v8780, %v8781
        %v8783 = vand.u32 %v8782, 4294901760
        %8784 = vmatpush1.msra.mxu0 %v8783
        %v8785 = vand.u32 %v545, 4294901760
        %v8786 = vsub.f32 %v545, %v8785
        %v8787 = vand.u32 %v8786, 4294901760
        %v8788 = vsub.f32 %v8786, %v8787
        %v8789 = vand.u32 %v8788, 4294901760
        %8790 = vmatprep.subr.mxu0 %v8789
        %v8791 = vand.u32 %v544, 4294901760
        %v8792 = vsub.f32 %v544, %v8791
        %v8793 = vand.u32 %v8792, 4294901760
        %v8794 = vsub.f32 %v8792, %v8793
        %v8795 = vand.u32 %v8794, 4294901760
        %8796 = vmatpush1.msra.mxu0 %v8795
        %v8797 = vand.u32 %v541, 4294901760
        %v8798 = vsub.f32 %v541, %v8797
        %v8799 = vand.u32 %v8798, 4294901760
        %v8800 = vsub.f32 %v8798, %v8799
        %v8801 = vand.u32 %v8800, 4294901760
        %8802 = vmatprep.subr.mxu0 %v8801
        %v8803 = vand.u32 %v540, 4294901760
        %v8804 = vsub.f32 %v540, %v8803
        %v8805 = vand.u32 %v8804, 4294901760
        %v8806 = vsub.f32 %v8804, %v8805
        %v8807 = vand.u32 %v8806, 4294901760
        %8808 = vmatpush1.msra.mxu0 %v8807
        %v8809 = vand.u32 %v537, 4294901760
        %v8810 = vsub.f32 %v537, %v8809
        %v8811 = vand.u32 %v8810, 4294901760
        %v8812 = vsub.f32 %v8810, %v8811
        %v8813 = vand.u32 %v8812, 4294901760
        %8814 = vmatprep.subr.mxu0 %v8813
        %v8815 = vand.u32 %v536, 4294901760
        %v8816 = vsub.f32 %v536, %v8815
        %v8817 = vand.u32 %v8816, 4294901760
        %v8818 = vsub.f32 %v8816, %v8817
        %v8819 = vand.u32 %v8818, 4294901760
        %8820 = vmatpush1.msra.mxu0 %v8819
        %v8821 = vand.u32 %v533, 4294901760
        %v8822 = vsub.f32 %v533, %v8821
        %v8823 = vand.u32 %v8822, 4294901760
        %v8824 = vsub.f32 %v8822, %v8823
        %v8825 = vand.u32 %v8824, 4294901760
        %8826 = vmatprep.subr.mxu0 %v8825
        %v8827 = vand.u32 %v532, 4294901760
        %v8828 = vsub.f32 %v532, %v8827
        %v8829 = vand.u32 %v8828, 4294901760
        %v8830 = vsub.f32 %v8828, %v8829
        %v8831 = vand.u32 %v8830, 4294901760
        %8832 = vmatpush1.msra.mxu0 %v8831
        %v8833 = vand.u32 %v529, 4294901760
        %v8834 = vsub.f32 %v529, %v8833
        %v8835 = vand.u32 %v8834, 4294901760
        %v8836 = vsub.f32 %v8834, %v8835
        %v8837 = vand.u32 %v8836, 4294901760
        %8838 = vmatprep.subr.mxu0 %v8837
        %v8839 = vand.u32 %v528, 4294901760
        %v8840 = vsub.f32 %v528, %v8839
        %v8841 = vand.u32 %v8840, 4294901760
        %v8842 = vsub.f32 %v8840, %v8841
        %v8843 = vand.u32 %v8842, 4294901760
        %8844 = vmatpush1.msra.mxu0 %v8843
        %v8845 = vand.u32 %v653, 4294901760
        %v8846 = vsub.f32 %v653, %v8845
        %v8847 = vand.u32 %v8846, 4294901760
        %v8848 = vsub.f32 %v8846, %v8847
        %v8849 = vand.u32 %v8848, 4294901760
        %8850 = vmatprep.subr.mxu0 %v8849
        %v8851 = vand.u32 %v652, 4294901760
        %v8852 = vsub.f32 %v652, %v8851
        %v8853 = vand.u32 %v8852, 4294901760
        %v8854 = vsub.f32 %v8852, %v8853
        %v8855 = vand.u32 %v8854, 4294901760
        %8856 = vmatpush2.msra.mxu0 %v8855
        %v8857 = vand.u32 %v649, 4294901760
        %v8858 = vsub.f32 %v649, %v8857
        %v8859 = vand.u32 %v8858, 4294901760
        %v8860 = vsub.f32 %v8858, %v8859
        %v8861 = vand.u32 %v8860, 4294901760
        %8862 = vmatprep.subr.mxu0 %v8861
        %v8863 = vand.u32 %v648, 4294901760
        %v8864 = vsub.f32 %v648, %v8863
        %v8865 = vand.u32 %v8864, 4294901760
        %v8866 = vsub.f32 %v8864, %v8865
        %v8867 = vand.u32 %v8866, 4294901760
        %8868 = vmatpush2.msra.mxu0 %v8867
        %v8869 = vand.u32 %v645, 4294901760
        %v8870 = vsub.f32 %v645, %v8869
        %v8871 = vand.u32 %v8870, 4294901760
        %v8872 = vsub.f32 %v8870, %v8871
        %v8873 = vand.u32 %v8872, 4294901760
        %8874 = vmatprep.subr.mxu0 %v8873
        %v8875 = vand.u32 %v644, 4294901760
        %v8876 = vsub.f32 %v644, %v8875
        %v8877 = vand.u32 %v8876, 4294901760
        %v8878 = vsub.f32 %v8876, %v8877
        %v8879 = vand.u32 %v8878, 4294901760
        %8880 = vmatpush2.msra.mxu0 %v8879
        %v8881 = vand.u32 %v641, 4294901760
        %v8882 = vsub.f32 %v641, %v8881
        %v8883 = vand.u32 %v8882, 4294901760
        %v8884 = vsub.f32 %v8882, %v8883
        %v8885 = vand.u32 %v8884, 4294901760
        %8886 = vmatprep.subr.mxu0 %v8885
        %v8887 = vand.u32 %v640, 4294901760
        %v8888 = vsub.f32 %v640, %v8887
        %v8889 = vand.u32 %v8888, 4294901760
        %v8890 = vsub.f32 %v8888, %v8889
        %v8891 = vand.u32 %v8890, 4294901760
        %8892 = vmatpush2.msra.mxu0 %v8891
        %v8893 = vand.u32 %v637, 4294901760
        %v8894 = vsub.f32 %v637, %v8893
        %v8895 = vand.u32 %v8894, 4294901760
        %v8896 = vsub.f32 %v8894, %v8895
        %v8897 = vand.u32 %v8896, 4294901760
        %8898 = vmatprep.subr.mxu0 %v8897
        %v8899 = vand.u32 %v636, 4294901760
        %v8900 = vsub.f32 %v636, %v8899
        %v8901 = vand.u32 %v8900, 4294901760
        %v8902 = vsub.f32 %v8900, %v8901
        %v8903 = vand.u32 %v8902, 4294901760
        %8904 = vmatpush2.msra.mxu0 %v8903
        %v8905 = vand.u32 %v633, 4294901760
        %v8906 = vsub.f32 %v633, %v8905
        %v8907 = vand.u32 %v8906, 4294901760
        %v8908 = vsub.f32 %v8906, %v8907
        %v8909 = vand.u32 %v8908, 4294901760
        %8910 = vmatprep.subr.mxu0 %v8909
        %v8911 = vand.u32 %v632, 4294901760
        %v8912 = vsub.f32 %v632, %v8911
        %v8913 = vand.u32 %v8912, 4294901760
        %v8914 = vsub.f32 %v8912, %v8913
        %v8915 = vand.u32 %v8914, 4294901760
        %8916 = vmatpush2.msra.mxu0 %v8915
        %v8917 = vand.u32 %v629, 4294901760
        %v8918 = vsub.f32 %v629, %v8917
        %v8919 = vand.u32 %v8918, 4294901760
        %v8920 = vsub.f32 %v8918, %v8919
        %v8921 = vand.u32 %v8920, 4294901760
        %8922 = vmatprep.subr.mxu0 %v8921
        %v8923 = vand.u32 %v628, 4294901760
        %v8924 = vsub.f32 %v628, %v8923
        %v8925 = vand.u32 %v8924, 4294901760
        %v8926 = vsub.f32 %v8924, %v8925
        %v8927 = vand.u32 %v8926, 4294901760
        %8928 = vmatpush2.msra.mxu0 %v8927
        %v8929 = vand.u32 %v625, 4294901760
        %v8930 = vsub.f32 %v625, %v8929
        %v8931 = vand.u32 %v8930, 4294901760
        %v8932 = vsub.f32 %v8930, %v8931
        %v8933 = vand.u32 %v8932, 4294901760
        %8934 = vmatprep.subr.mxu0 %v8933
        %v8935 = vand.u32 %v624, 4294901760
        %v8936 = vsub.f32 %v624, %v8935
        %v8937 = vand.u32 %v8936, 4294901760
        %v8938 = vsub.f32 %v8936, %v8937
        %v8939 = vand.u32 %v8938, 4294901760
        %8940 = vmatpush2.msra.mxu0 %v8939
        %v8941 = vand.u32 %v621, 4294901760
        %v8942 = vsub.f32 %v621, %v8941
        %v8943 = vand.u32 %v8942, 4294901760
        %v8944 = vsub.f32 %v8942, %v8943
        %v8945 = vand.u32 %v8944, 4294901760
        %8946 = vmatprep.subr.mxu0 %v8945
        %v8947 = vand.u32 %v620, 4294901760
        %v8948 = vsub.f32 %v620, %v8947
        %v8949 = vand.u32 %v8948, 4294901760
        %v8950 = vsub.f32 %v8948, %v8949
        %v8951 = vand.u32 %v8950, 4294901760
        %8952 = vmatpush2.msra.mxu0 %v8951
        %v8953 = vand.u32 %v617, 4294901760
        %v8954 = vsub.f32 %v617, %v8953
        %v8955 = vand.u32 %v8954, 4294901760
        %v8956 = vsub.f32 %v8954, %v8955
        %v8957 = vand.u32 %v8956, 4294901760
        %8958 = vmatprep.subr.mxu0 %v8957
        %v8959 = vand.u32 %v616, 4294901760
        %v8960 = vsub.f32 %v616, %v8959
        %v8961 = vand.u32 %v8960, 4294901760
        %v8962 = vsub.f32 %v8960, %v8961
        %v8963 = vand.u32 %v8962, 4294901760
        %8964 = vmatpush2.msra.mxu0 %v8963
        %v8965 = vand.u32 %v613, 4294901760
        %v8966 = vsub.f32 %v613, %v8965
        %v8967 = vand.u32 %v8966, 4294901760
        %v8968 = vsub.f32 %v8966, %v8967
        %v8969 = vand.u32 %v8968, 4294901760
        %8970 = vmatprep.subr.mxu0 %v8969
        %v8971 = vand.u32 %v612, 4294901760
        %v8972 = vsub.f32 %v612, %v8971
        %v8973 = vand.u32 %v8972, 4294901760
        %v8974 = vsub.f32 %v8972, %v8973
        %v8975 = vand.u32 %v8974, 4294901760
        %8976 = vmatpush2.msra.mxu0 %v8975
        %v8977 = vand.u32 %v609, 4294901760
        %v8978 = vsub.f32 %v609, %v8977
        %v8979 = vand.u32 %v8978, 4294901760
        %v8980 = vsub.f32 %v8978, %v8979
        %v8981 = vand.u32 %v8980, 4294901760
        %8982 = vmatprep.subr.mxu0 %v8981
        %v8983 = vand.u32 %v608, 4294901760
        %v8984 = vsub.f32 %v608, %v8983
        %v8985 = vand.u32 %v8984, 4294901760
        %v8986 = vsub.f32 %v8984, %v8985
        %v8987 = vand.u32 %v8986, 4294901760
        %8988 = vmatpush2.msra.mxu0 %v8987
        %v8989 = vand.u32 %v605, 4294901760
        %v8990 = vsub.f32 %v605, %v8989
        %v8991 = vand.u32 %v8990, 4294901760
        %v8992 = vsub.f32 %v8990, %v8991
        %v8993 = vand.u32 %v8992, 4294901760
        %8994 = vmatprep.subr.mxu0 %v8993
        %v8995 = vand.u32 %v604, 4294901760
        %v8996 = vsub.f32 %v604, %v8995
        %v8997 = vand.u32 %v8996, 4294901760
        %v8998 = vsub.f32 %v8996, %v8997
        %v8999 = vand.u32 %v8998, 4294901760
        %9000 = vmatpush2.msra.mxu0 %v8999
        %v9001 = vand.u32 %v601, 4294901760
        %v9002 = vsub.f32 %v601, %v9001
        %v9003 = vand.u32 %v9002, 4294901760
        %v9004 = vsub.f32 %v9002, %v9003
        %v9005 = vand.u32 %v9004, 4294901760
        %9006 = vmatprep.subr.mxu0 %v9005
        %v9007 = vand.u32 %v600, 4294901760
        %v9008 = vsub.f32 %v600, %v9007
        %v9009 = vand.u32 %v9008, 4294901760
        %v9010 = vsub.f32 %v9008, %v9009
        %v9011 = vand.u32 %v9010, 4294901760
        %9012 = vmatpush2.msra.mxu0 %v9011
        %v9013 = vand.u32 %v597, 4294901760
        %v9014 = vsub.f32 %v597, %v9013
        %v9015 = vand.u32 %v9014, 4294901760
        %v9016 = vsub.f32 %v9014, %v9015
        %v9017 = vand.u32 %v9016, 4294901760
        %9018 = vmatprep.subr.mxu0 %v9017
        %v9019 = vand.u32 %v596, 4294901760
        %v9020 = vsub.f32 %v596, %v9019
        %v9021 = vand.u32 %v9020, 4294901760
        %v9022 = vsub.f32 %v9020, %v9021
        %v9023 = vand.u32 %v9022, 4294901760
        %9024 = vmatpush2.msra.mxu0 %v9023
        %v9025 = vand.u32 %v593, 4294901760
        %v9026 = vsub.f32 %v593, %v9025
        %v9027 = vand.u32 %v9026, 4294901760
        %v9028 = vsub.f32 %v9026, %v9027
        %v9029 = vand.u32 %v9028, 4294901760
        %9030 = vmatprep.subr.mxu0 %v9029
        %v9031 = vand.u32 %v592, 4294901760
        %v9032 = vsub.f32 %v592, %v9031
        %v9033 = vand.u32 %v9032, 4294901760
        %v9034 = vsub.f32 %v9032, %v9033
        %v9035 = vand.u32 %v9034, 4294901760
        %9036 = vmatpush2.msra.mxu0 %v9035
        %v9037 = vand.u32 %v267, 4294901760
        %9038 = vmatprep.mubr.f32.mxu0 %v9037
        %v9039 = vand.u32 %v266, 4294901760
        %9040 = vmatmul.mubr.f32.gmra.mxu0 %v9039
        %v9041 = vpop.f32.mrf.mxu0
        %v9042 = vadd.f32 %v8649, %v9041
        %v9043 = vpop.f32.mrf.mxu0
        %v9044 = vadd.f32 %v8651, %v9043
        %9045 = vdwg.mxu0
        %v9046 = vand.u32 %v589, 4294901760
        %v9047 = vsub.f32 %v589, %v9046
        %9048 = vmatprep.subr.mxu0 %v9047
        %v9049 = vand.u32 %v588, 4294901760
        %v9050 = vsub.f32 %v588, %v9049
        %9051 = vmatpush1.msra.mxu0 %v9050
        %v9052 = vand.u32 %v585, 4294901760
        %v9053 = vsub.f32 %v585, %v9052
        %9054 = vmatprep.subr.mxu0 %v9053
        %v9055 = vand.u32 %v584, 4294901760
        %v9056 = vsub.f32 %v584, %v9055
        %9057 = vmatpush1.msra.mxu0 %v9056
        %v9058 = vand.u32 %v581, 4294901760
        %v9059 = vsub.f32 %v581, %v9058
        %9060 = vmatprep.subr.mxu0 %v9059
        %v9061 = vand.u32 %v580, 4294901760
        %v9062 = vsub.f32 %v580, %v9061
        %9063 = vmatpush1.msra.mxu0 %v9062
        %v9064 = vand.u32 %v577, 4294901760
        %v9065 = vsub.f32 %v577, %v9064
        %9066 = vmatprep.subr.mxu0 %v9065
        %v9067 = vand.u32 %v576, 4294901760
        %v9068 = vsub.f32 %v576, %v9067
        %9069 = vmatpush1.msra.mxu0 %v9068
        %v9070 = vand.u32 %v573, 4294901760
        %v9071 = vsub.f32 %v573, %v9070
        %9072 = vmatprep.subr.mxu0 %v9071
        %v9073 = vand.u32 %v572, 4294901760
        %v9074 = vsub.f32 %v572, %v9073
        %9075 = vmatpush1.msra.mxu0 %v9074
        %v9076 = vand.u32 %v569, 4294901760
        %v9077 = vsub.f32 %v569, %v9076
        %9078 = vmatprep.subr.mxu0 %v9077
        %v9079 = vand.u32 %v568, 4294901760
        %v9080 = vsub.f32 %v568, %v9079
        %9081 = vmatpush1.msra.mxu0 %v9080
        %v9082 = vand.u32 %v565, 4294901760
        %v9083 = vsub.f32 %v565, %v9082
        %9084 = vmatprep.subr.mxu0 %v9083
        %v9085 = vand.u32 %v564, 4294901760
        %v9086 = vsub.f32 %v564, %v9085
        %9087 = vmatpush1.msra.mxu0 %v9086
        %v9088 = vand.u32 %v561, 4294901760
        %v9089 = vsub.f32 %v561, %v9088
        %9090 = vmatprep.subr.mxu0 %v9089
        %v9091 = vand.u32 %v560, 4294901760
        %v9092 = vsub.f32 %v560, %v9091
        %9093 = vmatpush1.msra.mxu0 %v9092
        %v9094 = vand.u32 %v557, 4294901760
        %v9095 = vsub.f32 %v557, %v9094
        %9096 = vmatprep.subr.mxu0 %v9095
        %v9097 = vand.u32 %v556, 4294901760
        %v9098 = vsub.f32 %v556, %v9097
        %9099 = vmatpush1.msra.mxu0 %v9098
        %v9100 = vand.u32 %v553, 4294901760
        %v9101 = vsub.f32 %v553, %v9100
        %9102 = vmatprep.subr.mxu0 %v9101
        %v9103 = vand.u32 %v552, 4294901760
        %v9104 = vsub.f32 %v552, %v9103
        %9105 = vmatpush1.msra.mxu0 %v9104
        %v9106 = vand.u32 %v549, 4294901760
        %v9107 = vsub.f32 %v549, %v9106
        %9108 = vmatprep.subr.mxu0 %v9107
        %v9109 = vand.u32 %v548, 4294901760
        %v9110 = vsub.f32 %v548, %v9109
        %9111 = vmatpush1.msra.mxu0 %v9110
        %v9112 = vand.u32 %v545, 4294901760
        %v9113 = vsub.f32 %v545, %v9112
        %9114 = vmatprep.subr.mxu0 %v9113
        %v9115 = vand.u32 %v544, 4294901760
        %v9116 = vsub.f32 %v544, %v9115
        %9117 = vmatpush1.msra.mxu0 %v9116
        %v9118 = vand.u32 %v541, 4294901760
        %v9119 = vsub.f32 %v541, %v9118
        %9120 = vmatprep.subr.mxu0 %v9119
        %v9121 = vand.u32 %v540, 4294901760
        %v9122 = vsub.f32 %v540, %v9121
        %9123 = vmatpush1.msra.mxu0 %v9122
        %v9124 = vand.u32 %v537, 4294901760
        %v9125 = vsub.f32 %v537, %v9124
        %9126 = vmatprep.subr.mxu0 %v9125
        %v9127 = vand.u32 %v536, 4294901760
        %v9128 = vsub.f32 %v536, %v9127
        %9129 = vmatpush1.msra.mxu0 %v9128
        %v9130 = vand.u32 %v533, 4294901760
        %v9131 = vsub.f32 %v533, %v9130
        %9132 = vmatprep.subr.mxu0 %v9131
        %v9133 = vand.u32 %v532, 4294901760
        %v9134 = vsub.f32 %v532, %v9133
        %9135 = vmatpush1.msra.mxu0 %v9134
        %v9136 = vand.u32 %v529, 4294901760
        %v9137 = vsub.f32 %v529, %v9136
        %9138 = vmatprep.subr.mxu0 %v9137
        %v9139 = vand.u32 %v528, 4294901760
        %v9140 = vsub.f32 %v528, %v9139
        %9141 = vmatpush1.msra.mxu0 %v9140
        %v9142 = vand.u32 %v653, 4294901760
        %v9143 = vsub.f32 %v653, %v9142
        %9144 = vmatprep.subr.mxu0 %v9143
        %v9145 = vand.u32 %v652, 4294901760
        %v9146 = vsub.f32 %v652, %v9145
        %9147 = vmatpush2.msra.mxu0 %v9146
        %v9148 = vand.u32 %v649, 4294901760
        %v9149 = vsub.f32 %v649, %v9148
        %9150 = vmatprep.subr.mxu0 %v9149
        %v9151 = vand.u32 %v648, 4294901760
        %v9152 = vsub.f32 %v648, %v9151
        %9153 = vmatpush2.msra.mxu0 %v9152
        %v9154 = vand.u32 %v645, 4294901760
        %v9155 = vsub.f32 %v645, %v9154
        %9156 = vmatprep.subr.mxu0 %v9155
        %v9157 = vand.u32 %v644, 4294901760
        %v9158 = vsub.f32 %v644, %v9157
        %9159 = vmatpush2.msra.mxu0 %v9158
        %v9160 = vand.u32 %v641, 4294901760
        %v9161 = vsub.f32 %v641, %v9160
        %9162 = vmatprep.subr.mxu0 %v9161
        %v9163 = vand.u32 %v640, 4294901760
        %v9164 = vsub.f32 %v640, %v9163
        %9165 = vmatpush2.msra.mxu0 %v9164
        %v9166 = vand.u32 %v637, 4294901760
        %v9167 = vsub.f32 %v637, %v9166
        %9168 = vmatprep.subr.mxu0 %v9167
        %v9169 = vand.u32 %v636, 4294901760
        %v9170 = vsub.f32 %v636, %v9169
        %9171 = vmatpush2.msra.mxu0 %v9170
        %v9172 = vand.u32 %v633, 4294901760
        %v9173 = vsub.f32 %v633, %v9172
        %9174 = vmatprep.subr.mxu0 %v9173
        %v9175 = vand.u32 %v632, 4294901760
        %v9176 = vsub.f32 %v632, %v9175
        %9177 = vmatpush2.msra.mxu0 %v9176
        %v9178 = vand.u32 %v629, 4294901760
        %v9179 = vsub.f32 %v629, %v9178
        %9180 = vmatprep.subr.mxu0 %v9179
        %v9181 = vand.u32 %v628, 4294901760
        %v9182 = vsub.f32 %v628, %v9181
        %9183 = vmatpush2.msra.mxu0 %v9182
        %v9184 = vand.u32 %v625, 4294901760
        %v9185 = vsub.f32 %v625, %v9184
        %9186 = vmatprep.subr.mxu0 %v9185
        %v9187 = vand.u32 %v624, 4294901760
        %v9188 = vsub.f32 %v624, %v9187
        %9189 = vmatpush2.msra.mxu0 %v9188
        %v9190 = vand.u32 %v621, 4294901760
        %v9191 = vsub.f32 %v621, %v9190
        %9192 = vmatprep.subr.mxu0 %v9191
        %v9193 = vand.u32 %v620, 4294901760
        %v9194 = vsub.f32 %v620, %v9193
        %9195 = vmatpush2.msra.mxu0 %v9194
        %v9196 = vand.u32 %v617, 4294901760
        %v9197 = vsub.f32 %v617, %v9196
        %9198 = vmatprep.subr.mxu0 %v9197
        %v9199 = vand.u32 %v616, 4294901760
        %v9200 = vsub.f32 %v616, %v9199
        %9201 = vmatpush2.msra.mxu0 %v9200
        %v9202 = vand.u32 %v613, 4294901760
        %v9203 = vsub.f32 %v613, %v9202
        %9204 = vmatprep.subr.mxu0 %v9203
        %v9205 = vand.u32 %v612, 4294901760
        %v9206 = vsub.f32 %v612, %v9205
        %9207 = vmatpush2.msra.mxu0 %v9206
        %v9208 = vand.u32 %v609, 4294901760
        %v9209 = vsub.f32 %v609, %v9208
        %9210 = vmatprep.subr.mxu0 %v9209
        %v9211 = vand.u32 %v608, 4294901760
        %v9212 = vsub.f32 %v608, %v9211
        %9213 = vmatpush2.msra.mxu0 %v9212
        %v9214 = vand.u32 %v605, 4294901760
        %v9215 = vsub.f32 %v605, %v9214
        %9216 = vmatprep.subr.mxu0 %v9215
        %v9217 = vand.u32 %v604, 4294901760
        %v9218 = vsub.f32 %v604, %v9217
        %9219 = vmatpush2.msra.mxu0 %v9218
        %v9220 = vand.u32 %v601, 4294901760
        %v9221 = vsub.f32 %v601, %v9220
        %9222 = vmatprep.subr.mxu0 %v9221
        %v9223 = vand.u32 %v600, 4294901760
        %v9224 = vsub.f32 %v600, %v9223
        %9225 = vmatpush2.msra.mxu0 %v9224
        %v9226 = vand.u32 %v597, 4294901760
        %v9227 = vsub.f32 %v597, %v9226
        %9228 = vmatprep.subr.mxu0 %v9227
        %v9229 = vand.u32 %v596, 4294901760
        %v9230 = vsub.f32 %v596, %v9229
        %9231 = vmatpush2.msra.mxu0 %v9230
        %v9232 = vand.u32 %v593, 4294901760
        %v9233 = vsub.f32 %v593, %v9232
        %9234 = vmatprep.subr.mxu0 %v9233
        %v9235 = vand.u32 %v592, 4294901760
        %v9236 = vsub.f32 %v592, %v9235
        %9237 = vmatpush2.msra.mxu0 %v9236
        %v9238 = vand.u32 %v267, 4294901760
        %v9239 = vsub.f32 %v267, %v9238
        %9240 = vmatprep.mubr.f32.mxu0 %v9239
        %v9241 = vand.u32 %v266, 4294901760
        %v9242 = vsub.f32 %v266, %v9241
        %9243 = vmatmul.mubr.f32.gmra.mxu0 %v9242
        %v9244 = vpop.f32.mrf.mxu0
        %v9245 = vadd.f32 %v9042, %v9244
        %v9246 = vpop.f32.mrf.mxu0
        %v9247 = vadd.f32 %v9044, %v9246
        %9248 = vdwg.mxu0
        %v9249 = vand.u32 %v589, 4294901760
        %9250 = vmatprep.subr.mxu0 %v9249
        %v9251 = vand.u32 %v588, 4294901760
        %9252 = vmatpush1.msra.mxu0 %v9251
        %v9253 = vand.u32 %v585, 4294901760
        %9254 = vmatprep.subr.mxu0 %v9253
        %v9255 = vand.u32 %v584, 4294901760
        %9256 = vmatpush1.msra.mxu0 %v9255
        %v9257 = vand.u32 %v581, 4294901760
        %9258 = vmatprep.subr.mxu0 %v9257
        %v9259 = vand.u32 %v580, 4294901760
        %9260 = vmatpush1.msra.mxu0 %v9259
        %v9261 = vand.u32 %v577, 4294901760
        %9262 = vmatprep.subr.mxu0 %v9261
        %v9263 = vand.u32 %v576, 4294901760
        %9264 = vmatpush1.msra.mxu0 %v9263
        %v9265 = vand.u32 %v573, 4294901760
        %9266 = vmatprep.subr.mxu0 %v9265
        %v9267 = vand.u32 %v572, 4294901760
        %9268 = vmatpush1.msra.mxu0 %v9267
        %v9269 = vand.u32 %v569, 4294901760
        %9270 = vmatprep.subr.mxu0 %v9269
        %v9271 = vand.u32 %v568, 4294901760
        %9272 = vmatpush1.msra.mxu0 %v9271
        %v9273 = vand.u32 %v565, 4294901760
        %9274 = vmatprep.subr.mxu0 %v9273
        %v9275 = vand.u32 %v564, 4294901760
        %9276 = vmatpush1.msra.mxu0 %v9275
        %v9277 = vand.u32 %v561, 4294901760
        %9278 = vmatprep.subr.mxu0 %v9277
        %v9279 = vand.u32 %v560, 4294901760
        %9280 = vmatpush1.msra.mxu0 %v9279
        %v9281 = vand.u32 %v557, 4294901760
        %9282 = vmatprep.subr.mxu0 %v9281
        %v9283 = vand.u32 %v556, 4294901760
        %9284 = vmatpush1.msra.mxu0 %v9283
        %v9285 = vand.u32 %v553, 4294901760
        %9286 = vmatprep.subr.mxu0 %v9285
        %v9287 = vand.u32 %v552, 4294901760
        %9288 = vmatpush1.msra.mxu0 %v9287
        %v9289 = vand.u32 %v549, 4294901760
        %9290 = vmatprep.subr.mxu0 %v9289
        %v9291 = vand.u32 %v548, 4294901760
        %9292 = vmatpush1.msra.mxu0 %v9291
        %v9293 = vand.u32 %v545, 4294901760
        %9294 = vmatprep.subr.mxu0 %v9293
        %v9295 = vand.u32 %v544, 4294901760
        %9296 = vmatpush1.msra.mxu0 %v9295
        %v9297 = vand.u32 %v541, 4294901760
        %9298 = vmatprep.subr.mxu0 %v9297
        %v9299 = vand.u32 %v540, 4294901760
        %9300 = vmatpush1.msra.mxu0 %v9299
        %v9301 = vand.u32 %v537, 4294901760
        %9302 = vmatprep.subr.mxu0 %v9301
        %v9303 = vand.u32 %v536, 4294901760
        %9304 = vmatpush1.msra.mxu0 %v9303
        %v9305 = vand.u32 %v533, 4294901760
        %9306 = vmatprep.subr.mxu0 %v9305
        %v9307 = vand.u32 %v532, 4294901760
        %9308 = vmatpush1.msra.mxu0 %v9307
        %v9309 = vand.u32 %v529, 4294901760
        %9310 = vmatprep.subr.mxu0 %v9309
        %v9311 = vand.u32 %v528, 4294901760
        %9312 = vmatpush1.msra.mxu0 %v9311
        %v9313 = vand.u32 %v653, 4294901760
        %9314 = vmatprep.subr.mxu0 %v9313
        %v9315 = vand.u32 %v652, 4294901760
        %9316 = vmatpush2.msra.mxu0 %v9315
        %v9317 = vand.u32 %v649, 4294901760
        %9318 = vmatprep.subr.mxu0 %v9317
        %v9319 = vand.u32 %v648, 4294901760
        %9320 = vmatpush2.msra.mxu0 %v9319
        %v9321 = vand.u32 %v645, 4294901760
        %9322 = vmatprep.subr.mxu0 %v9321
        %v9323 = vand.u32 %v644, 4294901760
        %9324 = vmatpush2.msra.mxu0 %v9323
        %v9325 = vand.u32 %v641, 4294901760
        %9326 = vmatprep.subr.mxu0 %v9325
        %v9327 = vand.u32 %v640, 4294901760
        %9328 = vmatpush2.msra.mxu0 %v9327
        %v9329 = vand.u32 %v637, 4294901760
        %9330 = vmatprep.subr.mxu0 %v9329
        %v9331 = vand.u32 %v636, 4294901760
        %9332 = vmatpush2.msra.mxu0 %v9331
        %v9333 = vand.u32 %v633, 4294901760
        %9334 = vmatprep.subr.mxu0 %v9333
        %v9335 = vand.u32 %v632, 4294901760
        %9336 = vmatpush2.msra.mxu0 %v9335
        %v9337 = vand.u32 %v629, 4294901760
        %9338 = vmatprep.subr.mxu0 %v9337
        %v9339 = vand.u32 %v628, 4294901760
        %9340 = vmatpush2.msra.mxu0 %v9339
        %v9341 = vand.u32 %v625, 4294901760
        %9342 = vmatprep.subr.mxu0 %v9341
        %v9343 = vand.u32 %v624, 4294901760
        %9344 = vmatpush2.msra.mxu0 %v9343
        %v9345 = vand.u32 %v621, 4294901760
        %9346 = vmatprep.subr.mxu0 %v9345
        %v9347 = vand.u32 %v620, 4294901760
        %9348 = vmatpush2.msra.mxu0 %v9347
        %v9349 = vand.u32 %v617, 4294901760
        %9350 = vmatprep.subr.mxu0 %v9349
        %v9351 = vand.u32 %v616, 4294901760
        %9352 = vmatpush2.msra.mxu0 %v9351
        %v9353 = vand.u32 %v613, 4294901760
        %9354 = vmatprep.subr.mxu0 %v9353
        %v9355 = vand.u32 %v612, 4294901760
        %9356 = vmatpush2.msra.mxu0 %v9355
        %v9357 = vand.u32 %v609, 4294901760
        %9358 = vmatprep.subr.mxu0 %v9357
        %v9359 = vand.u32 %v608, 4294901760
        %9360 = vmatpush2.msra.mxu0 %v9359
        %v9361 = vand.u32 %v605, 4294901760
        %9362 = vmatprep.subr.mxu0 %v9361
        %v9363 = vand.u32 %v604, 4294901760
        %9364 = vmatpush2.msra.mxu0 %v9363
        %v9365 = vand.u32 %v601, 4294901760
        %9366 = vmatprep.subr.mxu0 %v9365
        %v9367 = vand.u32 %v600, 4294901760
        %9368 = vmatpush2.msra.mxu0 %v9367
        %v9369 = vand.u32 %v597, 4294901760
        %9370 = vmatprep.subr.mxu0 %v9369
        %v9371 = vand.u32 %v596, 4294901760
        %9372 = vmatpush2.msra.mxu0 %v9371
        %v9373 = vand.u32 %v593, 4294901760
        %9374 = vmatprep.subr.mxu0 %v9373
        %v9375 = vand.u32 %v592, 4294901760
        %9376 = vmatpush2.msra.mxu0 %v9375
        %v9377 = vand.u32 %v267, 4294901760
        %v9378 = vsub.f32 %v267, %v9377
        %v9379 = vand.u32 %v9378, 4294901760
        %9380 = vmatprep.mubr.f32.mxu0 %v9379
        %v9381 = vand.u32 %v266, 4294901760
        %v9382 = vsub.f32 %v266, %v9381
        %v9383 = vand.u32 %v9382, 4294901760
        %9384 = vmatmul.mubr.f32.gmra.mxu0 %v9383
        %v9385 = vpop.f32.mrf.mxu0
        %v9386 = vadd.f32 %v9245, %v9385
        %v9387 = vpop.f32.mrf.mxu0
        %v9388 = vadd.f32 %v9247, %v9387
        %9389 = vdwg.mxu0
        %v9390 = vand.u32 %v589, 4294901760
        %v9391 = vsub.f32 %v589, %v9390
        %v9392 = vand.u32 %v9391, 4294901760
        %9393 = vmatprep.subr.mxu0 %v9392
        %v9394 = vand.u32 %v588, 4294901760
        %v9395 = vsub.f32 %v588, %v9394
        %v9396 = vand.u32 %v9395, 4294901760
        %9397 = vmatpush1.msra.mxu0 %v9396
        %v9398 = vand.u32 %v585, 4294901760
        %v9399 = vsub.f32 %v585, %v9398
        %v9400 = vand.u32 %v9399, 4294901760
        %9401 = vmatprep.subr.mxu0 %v9400
        %v9402 = vand.u32 %v584, 4294901760
        %v9403 = vsub.f32 %v584, %v9402
        %v9404 = vand.u32 %v9403, 4294901760
        %9405 = vmatpush1.msra.mxu0 %v9404
        %v9406 = vand.u32 %v581, 4294901760
        %v9407 = vsub.f32 %v581, %v9406
        %v9408 = vand.u32 %v9407, 4294901760
        %9409 = vmatprep.subr.mxu0 %v9408
        %v9410 = vand.u32 %v580, 4294901760
        %v9411 = vsub.f32 %v580, %v9410
        %v9412 = vand.u32 %v9411, 4294901760
        %9413 = vmatpush1.msra.mxu0 %v9412
        %v9414 = vand.u32 %v577, 4294901760
        %v9415 = vsub.f32 %v577, %v9414
        %v9416 = vand.u32 %v9415, 4294901760
        %9417 = vmatprep.subr.mxu0 %v9416
        %v9418 = vand.u32 %v576, 4294901760
        %v9419 = vsub.f32 %v576, %v9418
        %v9420 = vand.u32 %v9419, 4294901760
        %9421 = vmatpush1.msra.mxu0 %v9420
        %v9422 = vand.u32 %v573, 4294901760
        %v9423 = vsub.f32 %v573, %v9422
        %v9424 = vand.u32 %v9423, 4294901760
        %9425 = vmatprep.subr.mxu0 %v9424
        %v9426 = vand.u32 %v572, 4294901760
        %v9427 = vsub.f32 %v572, %v9426
        %v9428 = vand.u32 %v9427, 4294901760
        %9429 = vmatpush1.msra.mxu0 %v9428
        %v9430 = vand.u32 %v569, 4294901760
        %v9431 = vsub.f32 %v569, %v9430
        %v9432 = vand.u32 %v9431, 4294901760
        %9433 = vmatprep.subr.mxu0 %v9432
        %v9434 = vand.u32 %v568, 4294901760
        %v9435 = vsub.f32 %v568, %v9434
        %v9436 = vand.u32 %v9435, 4294901760
        %9437 = vmatpush1.msra.mxu0 %v9436
        %v9438 = vand.u32 %v565, 4294901760
        %v9439 = vsub.f32 %v565, %v9438
        %v9440 = vand.u32 %v9439, 4294901760
        %9441 = vmatprep.subr.mxu0 %v9440
        %v9442 = vand.u32 %v564, 4294901760
        %v9443 = vsub.f32 %v564, %v9442
        %v9444 = vand.u32 %v9443, 4294901760
        %9445 = vmatpush1.msra.mxu0 %v9444
        %v9446 = vand.u32 %v561, 4294901760
        %v9447 = vsub.f32 %v561, %v9446
        %v9448 = vand.u32 %v9447, 4294901760
        %9449 = vmatprep.subr.mxu0 %v9448
        %v9450 = vand.u32 %v560, 4294901760
        %v9451 = vsub.f32 %v560, %v9450
        %v9452 = vand.u32 %v9451, 4294901760
        %9453 = vmatpush1.msra.mxu0 %v9452
        %v9454 = vand.u32 %v557, 4294901760
        %v9455 = vsub.f32 %v557, %v9454
        %v9456 = vand.u32 %v9455, 4294901760
        %9457 = vmatprep.subr.mxu0 %v9456
        %v9458 = vand.u32 %v556, 4294901760
        %v9459 = vsub.f32 %v556, %v9458
        %v9460 = vand.u32 %v9459, 4294901760
        %9461 = vmatpush1.msra.mxu0 %v9460
        %v9462 = vand.u32 %v553, 4294901760
        %v9463 = vsub.f32 %v553, %v9462
        %v9464 = vand.u32 %v9463, 4294901760
        %9465 = vmatprep.subr.mxu0 %v9464
        %v9466 = vand.u32 %v552, 4294901760
        %v9467 = vsub.f32 %v552, %v9466
        %v9468 = vand.u32 %v9467, 4294901760
        %9469 = vmatpush1.msra.mxu0 %v9468
        %v9470 = vand.u32 %v549, 4294901760
        %v9471 = vsub.f32 %v549, %v9470
        %v9472 = vand.u32 %v9471, 4294901760
        %9473 = vmatprep.subr.mxu0 %v9472
        %v9474 = vand.u32 %v548, 4294901760
        %v9475 = vsub.f32 %v548, %v9474
        %v9476 = vand.u32 %v9475, 4294901760
        %9477 = vmatpush1.msra.mxu0 %v9476
        %v9478 = vand.u32 %v545, 4294901760
        %v9479 = vsub.f32 %v545, %v9478
        %v9480 = vand.u32 %v9479, 4294901760
        %9481 = vmatprep.subr.mxu0 %v9480
        %v9482 = vand.u32 %v544, 4294901760
        %v9483 = vsub.f32 %v544, %v9482
        %v9484 = vand.u32 %v9483, 4294901760
        %9485 = vmatpush1.msra.mxu0 %v9484
        %v9486 = vand.u32 %v541, 4294901760
        %v9487 = vsub.f32 %v541, %v9486
        %v9488 = vand.u32 %v9487, 4294901760
        %9489 = vmatprep.subr.mxu0 %v9488
        %v9490 = vand.u32 %v540, 4294901760
        %v9491 = vsub.f32 %v540, %v9490
        %v9492 = vand.u32 %v9491, 4294901760
        %9493 = vmatpush1.msra.mxu0 %v9492
        %v9494 = vand.u32 %v537, 4294901760
        %v9495 = vsub.f32 %v537, %v9494
        %v9496 = vand.u32 %v9495, 4294901760
        %9497 = vmatprep.subr.mxu0 %v9496
        %v9498 = vand.u32 %v536, 4294901760
        %v9499 = vsub.f32 %v536, %v9498
        %v9500 = vand.u32 %v9499, 4294901760
        %9501 = vmatpush1.msra.mxu0 %v9500
        %v9502 = vand.u32 %v533, 4294901760
        %v9503 = vsub.f32 %v533, %v9502
        %v9504 = vand.u32 %v9503, 4294901760
        %9505 = vmatprep.subr.mxu0 %v9504
        %v9506 = vand.u32 %v532, 4294901760
        %v9507 = vsub.f32 %v532, %v9506
        %v9508 = vand.u32 %v9507, 4294901760
        %9509 = vmatpush1.msra.mxu0 %v9508
        %v9510 = vand.u32 %v529, 4294901760
        %v9511 = vsub.f32 %v529, %v9510
        %v9512 = vand.u32 %v9511, 4294901760
        %9513 = vmatprep.subr.mxu0 %v9512
        %v9514 = vand.u32 %v528, 4294901760
        %v9515 = vsub.f32 %v528, %v9514
        %v9516 = vand.u32 %v9515, 4294901760
        %9517 = vmatpush1.msra.mxu0 %v9516
        %v9518 = vand.u32 %v653, 4294901760
        %v9519 = vsub.f32 %v653, %v9518
        %v9520 = vand.u32 %v9519, 4294901760
        %9521 = vmatprep.subr.mxu0 %v9520
        %v9522 = vand.u32 %v652, 4294901760
        %v9523 = vsub.f32 %v652, %v9522
        %v9524 = vand.u32 %v9523, 4294901760
        %9525 = vmatpush2.msra.mxu0 %v9524
        %v9526 = vand.u32 %v649, 4294901760
        %v9527 = vsub.f32 %v649, %v9526
        %v9528 = vand.u32 %v9527, 4294901760
        %9529 = vmatprep.subr.mxu0 %v9528
        %v9530 = vand.u32 %v648, 4294901760
        %v9531 = vsub.f32 %v648, %v9530
        %v9532 = vand.u32 %v9531, 4294901760
        %9533 = vmatpush2.msra.mxu0 %v9532
        %v9534 = vand.u32 %v645, 4294901760
        %v9535 = vsub.f32 %v645, %v9534
        %v9536 = vand.u32 %v9535, 4294901760
        %9537 = vmatprep.subr.mxu0 %v9536
        %v9538 = vand.u32 %v644, 4294901760
        %v9539 = vsub.f32 %v644, %v9538
        %v9540 = vand.u32 %v9539, 4294901760
        %9541 = vmatpush2.msra.mxu0 %v9540
        %v9542 = vand.u32 %v641, 4294901760
        %v9543 = vsub.f32 %v641, %v9542
        %v9544 = vand.u32 %v9543, 4294901760
        %9545 = vmatprep.subr.mxu0 %v9544
        %v9546 = vand.u32 %v640, 4294901760
        %v9547 = vsub.f32 %v640, %v9546
        %v9548 = vand.u32 %v9547, 4294901760
        %9549 = vmatpush2.msra.mxu0 %v9548
        %v9550 = vand.u32 %v637, 4294901760
        %v9551 = vsub.f32 %v637, %v9550
        %v9552 = vand.u32 %v9551, 4294901760
        %9553 = vmatprep.subr.mxu0 %v9552
        %v9554 = vand.u32 %v636, 4294901760
        %v9555 = vsub.f32 %v636, %v9554
        %v9556 = vand.u32 %v9555, 4294901760
        %9557 = vmatpush2.msra.mxu0 %v9556
        %v9558 = vand.u32 %v633, 4294901760
        %v9559 = vsub.f32 %v633, %v9558
        %v9560 = vand.u32 %v9559, 4294901760
        %9561 = vmatprep.subr.mxu0 %v9560
        %v9562 = vand.u32 %v632, 4294901760
        %v9563 = vsub.f32 %v632, %v9562
        %v9564 = vand.u32 %v9563, 4294901760
        %9565 = vmatpush2.msra.mxu0 %v9564
        %v9566 = vand.u32 %v629, 4294901760
        %v9567 = vsub.f32 %v629, %v9566
        %v9568 = vand.u32 %v9567, 4294901760
        %9569 = vmatprep.subr.mxu0 %v9568
        %v9570 = vand.u32 %v628, 4294901760
        %v9571 = vsub.f32 %v628, %v9570
        %v9572 = vand.u32 %v9571, 4294901760
        %9573 = vmatpush2.msra.mxu0 %v9572
        %v9574 = vand.u32 %v625, 4294901760
        %v9575 = vsub.f32 %v625, %v9574
        %v9576 = vand.u32 %v9575, 4294901760
        %9577 = vmatprep.subr.mxu0 %v9576
        %v9578 = vand.u32 %v624, 4294901760
        %v9579 = vsub.f32 %v624, %v9578
        %v9580 = vand.u32 %v9579, 4294901760
        %9581 = vmatpush2.msra.mxu0 %v9580
        %v9582 = vand.u32 %v621, 4294901760
        %v9583 = vsub.f32 %v621, %v9582
        %v9584 = vand.u32 %v9583, 4294901760
        %9585 = vmatprep.subr.mxu0 %v9584
        %v9586 = vand.u32 %v620, 4294901760
        %v9587 = vsub.f32 %v620, %v9586
        %v9588 = vand.u32 %v9587, 4294901760
        %9589 = vmatpush2.msra.mxu0 %v9588
        %v9590 = vand.u32 %v617, 4294901760
        %v9591 = vsub.f32 %v617, %v9590
        %v9592 = vand.u32 %v9591, 4294901760
        %9593 = vmatprep.subr.mxu0 %v9592
        %v9594 = vand.u32 %v616, 4294901760
        %v9595 = vsub.f32 %v616, %v9594
        %v9596 = vand.u32 %v9595, 4294901760
        %9597 = vmatpush2.msra.mxu0 %v9596
        %v9598 = vand.u32 %v613, 4294901760
        %v9599 = vsub.f32 %v613, %v9598
        %v9600 = vand.u32 %v9599, 4294901760
        %9601 = vmatprep.subr.mxu0 %v9600
        %v9602 = vand.u32 %v612, 4294901760
        %v9603 = vsub.f32 %v612, %v9602
        %v9604 = vand.u32 %v9603, 4294901760
        %9605 = vmatpush2.msra.mxu0 %v9604
        %v9606 = vand.u32 %v609, 4294901760
        %v9607 = vsub.f32 %v609, %v9606
        %v9608 = vand.u32 %v9607, 4294901760
        %9609 = vmatprep.subr.mxu0 %v9608
        %v9610 = vand.u32 %v608, 4294901760
        %v9611 = vsub.f32 %v608, %v9610
        %v9612 = vand.u32 %v9611, 4294901760
        %9613 = vmatpush2.msra.mxu0 %v9612
        %v9614 = vand.u32 %v605, 4294901760
        %v9615 = vsub.f32 %v605, %v9614
        %v9616 = vand.u32 %v9615, 4294901760
        %9617 = vmatprep.subr.mxu0 %v9616
        %v9618 = vand.u32 %v604, 4294901760
        %v9619 = vsub.f32 %v604, %v9618
        %v9620 = vand.u32 %v9619, 4294901760
        %9621 = vmatpush2.msra.mxu0 %v9620
        %v9622 = vand.u32 %v601, 4294901760
        %v9623 = vsub.f32 %v601, %v9622
        %v9624 = vand.u32 %v9623, 4294901760
        %9625 = vmatprep.subr.mxu0 %v9624
        %v9626 = vand.u32 %v600, 4294901760
        %v9627 = vsub.f32 %v600, %v9626
        %v9628 = vand.u32 %v9627, 4294901760
        %9629 = vmatpush2.msra.mxu0 %v9628
        %v9630 = vand.u32 %v597, 4294901760
        %v9631 = vsub.f32 %v597, %v9630
        %v9632 = vand.u32 %v9631, 4294901760
        %9633 = vmatprep.subr.mxu0 %v9632
        %v9634 = vand.u32 %v596, 4294901760
        %v9635 = vsub.f32 %v596, %v9634
        %v9636 = vand.u32 %v9635, 4294901760
        %9637 = vmatpush2.msra.mxu0 %v9636
        %v9638 = vand.u32 %v593, 4294901760
        %v9639 = vsub.f32 %v593, %v9638
        %v9640 = vand.u32 %v9639, 4294901760
        %9641 = vmatprep.subr.mxu0 %v9640
        %v9642 = vand.u32 %v592, 4294901760
        %v9643 = vsub.f32 %v592, %v9642
        %v9644 = vand.u32 %v9643, 4294901760
        %9645 = vmatpush2.msra.mxu0 %v9644
        %v9646 = vand.u32 %v267, 4294901760
        %9647 = vmatprep.mubr.f32.mxu0 %v9646
        %v9648 = vand.u32 %v266, 4294901760
        %9649 = vmatmul.mubr.f32.gmra.mxu0 %v9648
        %v9650 = vpop.f32.mrf.mxu0
        %v9651 = vadd.f32 %v9386, %v9650
        %v9652 = vpop.f32.mrf.mxu0
        %v9653 = vadd.f32 %v9388, %v9652
        %9654 = vdwg.mxu0
        %v9655 = vand.u32 %v589, 4294901760
        %9656 = vmatprep.subr.mxu0 %v9655
        %v9657 = vand.u32 %v588, 4294901760
        %9658 = vmatpush1.msra.mxu0 %v9657
        %v9659 = vand.u32 %v585, 4294901760
        %9660 = vmatprep.subr.mxu0 %v9659
        %v9661 = vand.u32 %v584, 4294901760
        %9662 = vmatpush1.msra.mxu0 %v9661
        %v9663 = vand.u32 %v581, 4294901760
        %9664 = vmatprep.subr.mxu0 %v9663
        %v9665 = vand.u32 %v580, 4294901760
        %9666 = vmatpush1.msra.mxu0 %v9665
        %v9667 = vand.u32 %v577, 4294901760
        %9668 = vmatprep.subr.mxu0 %v9667
        %v9669 = vand.u32 %v576, 4294901760
        %9670 = vmatpush1.msra.mxu0 %v9669
        %v9671 = vand.u32 %v573, 4294901760
        %9672 = vmatprep.subr.mxu0 %v9671
        %v9673 = vand.u32 %v572, 4294901760
        %9674 = vmatpush1.msra.mxu0 %v9673
        %v9675 = vand.u32 %v569, 4294901760
        %9676 = vmatprep.subr.mxu0 %v9675
        %v9677 = vand.u32 %v568, 4294901760
        %9678 = vmatpush1.msra.mxu0 %v9677
        %v9679 = vand.u32 %v565, 4294901760
        %9680 = vmatprep.subr.mxu0 %v9679
        %v9681 = vand.u32 %v564, 4294901760
        %9682 = vmatpush1.msra.mxu0 %v9681
        %v9683 = vand.u32 %v561, 4294901760
        %9684 = vmatprep.subr.mxu0 %v9683
        %v9685 = vand.u32 %v560, 4294901760
        %9686 = vmatpush1.msra.mxu0 %v9685
        %v9687 = vand.u32 %v557, 4294901760
        %9688 = vmatprep.subr.mxu0 %v9687
        %v9689 = vand.u32 %v556, 4294901760
        %9690 = vmatpush1.msra.mxu0 %v9689
        %v9691 = vand.u32 %v553, 4294901760
        %9692 = vmatprep.subr.mxu0 %v9691
        %v9693 = vand.u32 %v552, 4294901760
        %9694 = vmatpush1.msra.mxu0 %v9693
        %v9695 = vand.u32 %v549, 4294901760
        %9696 = vmatprep.subr.mxu0 %v9695
        %v9697 = vand.u32 %v548, 4294901760
        %9698 = vmatpush1.msra.mxu0 %v9697
        %v9699 = vand.u32 %v545, 4294901760
        %9700 = vmatprep.subr.mxu0 %v9699
        %v9701 = vand.u32 %v544, 4294901760
        %9702 = vmatpush1.msra.mxu0 %v9701
        %v9703 = vand.u32 %v541, 4294901760
        %9704 = vmatprep.subr.mxu0 %v9703
        %v9705 = vand.u32 %v540, 4294901760
        %9706 = vmatpush1.msra.mxu0 %v9705
        %v9707 = vand.u32 %v537, 4294901760
        %9708 = vmatprep.subr.mxu0 %v9707
        %v9709 = vand.u32 %v536, 4294901760
        %9710 = vmatpush1.msra.mxu0 %v9709
        %v9711 = vand.u32 %v533, 4294901760
        %9712 = vmatprep.subr.mxu0 %v9711
        %v9713 = vand.u32 %v532, 4294901760
        %9714 = vmatpush1.msra.mxu0 %v9713
        %v9715 = vand.u32 %v529, 4294901760
        %9716 = vmatprep.subr.mxu0 %v9715
        %v9717 = vand.u32 %v528, 4294901760
        %9718 = vmatpush1.msra.mxu0 %v9717
        %v9719 = vand.u32 %v653, 4294901760
        %9720 = vmatprep.subr.mxu0 %v9719
        %v9721 = vand.u32 %v652, 4294901760
        %9722 = vmatpush2.msra.mxu0 %v9721
        %v9723 = vand.u32 %v649, 4294901760
        %9724 = vmatprep.subr.mxu0 %v9723
        %v9725 = vand.u32 %v648, 4294901760
        %9726 = vmatpush2.msra.mxu0 %v9725
        %v9727 = vand.u32 %v645, 4294901760
        %9728 = vmatprep.subr.mxu0 %v9727
        %v9729 = vand.u32 %v644, 4294901760
        %9730 = vmatpush2.msra.mxu0 %v9729
        %v9731 = vand.u32 %v641, 4294901760
        %9732 = vmatprep.subr.mxu0 %v9731
        %v9733 = vand.u32 %v640, 4294901760
        %9734 = vmatpush2.msra.mxu0 %v9733
        %v9735 = vand.u32 %v637, 4294901760
        %9736 = vmatprep.subr.mxu0 %v9735
        %v9737 = vand.u32 %v636, 4294901760
        %9738 = vmatpush2.msra.mxu0 %v9737
        %v9739 = vand.u32 %v633, 4294901760
        %9740 = vmatprep.subr.mxu0 %v9739
        %v9741 = vand.u32 %v632, 4294901760
        %9742 = vmatpush2.msra.mxu0 %v9741
        %v9743 = vand.u32 %v629, 4294901760
        %9744 = vmatprep.subr.mxu0 %v9743
        %v9745 = vand.u32 %v628, 4294901760
        %9746 = vmatpush2.msra.mxu0 %v9745
        %v9747 = vand.u32 %v625, 4294901760
        %9748 = vmatprep.subr.mxu0 %v9747
        %v9749 = vand.u32 %v624, 4294901760
        %9750 = vmatpush2.msra.mxu0 %v9749
        %v9751 = vand.u32 %v621, 4294901760
        %9752 = vmatprep.subr.mxu0 %v9751
        %v9753 = vand.u32 %v620, 4294901760
        %9754 = vmatpush2.msra.mxu0 %v9753
        %v9755 = vand.u32 %v617, 4294901760
        %9756 = vmatprep.subr.mxu0 %v9755
        %v9757 = vand.u32 %v616, 4294901760
        %9758 = vmatpush2.msra.mxu0 %v9757
        %v9759 = vand.u32 %v613, 4294901760
        %9760 = vmatprep.subr.mxu0 %v9759
        %v9761 = vand.u32 %v612, 4294901760
        %9762 = vmatpush2.msra.mxu0 %v9761
        %v9763 = vand.u32 %v609, 4294901760
        %9764 = vmatprep.subr.mxu0 %v9763
        %v9765 = vand.u32 %v608, 4294901760
        %9766 = vmatpush2.msra.mxu0 %v9765
        %v9767 = vand.u32 %v605, 4294901760
        %9768 = vmatprep.subr.mxu0 %v9767
        %v9769 = vand.u32 %v604, 4294901760
        %9770 = vmatpush2.msra.mxu0 %v9769
        %v9771 = vand.u32 %v601, 4294901760
        %9772 = vmatprep.subr.mxu0 %v9771
        %v9773 = vand.u32 %v600, 4294901760
        %9774 = vmatpush2.msra.mxu0 %v9773
        %v9775 = vand.u32 %v597, 4294901760
        %9776 = vmatprep.subr.mxu0 %v9775
        %v9777 = vand.u32 %v596, 4294901760
        %9778 = vmatpush2.msra.mxu0 %v9777
        %v9779 = vand.u32 %v593, 4294901760
        %9780 = vmatprep.subr.mxu0 %v9779
        %v9781 = vand.u32 %v592, 4294901760
        %9782 = vmatpush2.msra.mxu0 %v9781
        %v9783 = vand.u32 %v267, 4294901760
        %9784 = vmatprep.mubr.f32.mxu0 %v9783
        %v9785 = vand.u32 %v266, 4294901760
        %9786 = vmatmul.mubr.f32.gmra.mxu0 %v9785
        %v9787 = vpop.f32.mrf.mxu0
        %v9788 = vadd.f32 %v9651, %v9787
        %v9789 = vpop.f32.mrf.mxu0
        %v9790 = vadd.f32 %v9653, %v9789
        %9791 = vdwg.mxu0
        %v9792 = vand.u32 %v717, 4294901760
        %9793 = vmatprep.subr.mxu0 %v9792
        %v9794 = vand.u32 %v716, 4294901760
        %9795 = vmatpush1.msra.mxu0 %v9794
        %v9796 = vand.u32 %v713, 4294901760
        %9797 = vmatprep.subr.mxu0 %v9796
        %v9798 = vand.u32 %v712, 4294901760
        %9799 = vmatpush1.msra.mxu0 %v9798
        %v9800 = vand.u32 %v709, 4294901760
        %9801 = vmatprep.subr.mxu0 %v9800
        %v9802 = vand.u32 %v708, 4294901760
        %9803 = vmatpush1.msra.mxu0 %v9802
        %v9804 = vand.u32 %v705, 4294901760
        %9805 = vmatprep.subr.mxu0 %v9804
        %v9806 = vand.u32 %v704, 4294901760
        %9807 = vmatpush1.msra.mxu0 %v9806
        %v9808 = vand.u32 %v701, 4294901760
        %9809 = vmatprep.subr.mxu0 %v9808
        %v9810 = vand.u32 %v700, 4294901760
        %9811 = vmatpush1.msra.mxu0 %v9810
        %v9812 = vand.u32 %v697, 4294901760
        %9813 = vmatprep.subr.mxu0 %v9812
        %v9814 = vand.u32 %v696, 4294901760
        %9815 = vmatpush1.msra.mxu0 %v9814
        %v9816 = vand.u32 %v693, 4294901760
        %9817 = vmatprep.subr.mxu0 %v9816
        %v9818 = vand.u32 %v692, 4294901760
        %9819 = vmatpush1.msra.mxu0 %v9818
        %v9820 = vand.u32 %v689, 4294901760
        %9821 = vmatprep.subr.mxu0 %v9820
        %v9822 = vand.u32 %v688, 4294901760
        %9823 = vmatpush1.msra.mxu0 %v9822
        %v9824 = vand.u32 %v685, 4294901760
        %9825 = vmatprep.subr.mxu0 %v9824
        %v9826 = vand.u32 %v684, 4294901760
        %9827 = vmatpush1.msra.mxu0 %v9826
        %v9828 = vand.u32 %v681, 4294901760
        %9829 = vmatprep.subr.mxu0 %v9828
        %v9830 = vand.u32 %v680, 4294901760
        %9831 = vmatpush1.msra.mxu0 %v9830
        %v9832 = vand.u32 %v677, 4294901760
        %9833 = vmatprep.subr.mxu0 %v9832
        %v9834 = vand.u32 %v676, 4294901760
        %9835 = vmatpush1.msra.mxu0 %v9834
        %v9836 = vand.u32 %v673, 4294901760
        %9837 = vmatprep.subr.mxu0 %v9836
        %v9838 = vand.u32 %v672, 4294901760
        %9839 = vmatpush1.msra.mxu0 %v9838
        %v9840 = vand.u32 %v669, 4294901760
        %9841 = vmatprep.subr.mxu0 %v9840
        %v9842 = vand.u32 %v668, 4294901760
        %9843 = vmatpush1.msra.mxu0 %v9842
        %v9844 = vand.u32 %v665, 4294901760
        %9845 = vmatprep.subr.mxu0 %v9844
        %v9846 = vand.u32 %v664, 4294901760
        %9847 = vmatpush1.msra.mxu0 %v9846
        %v9848 = vand.u32 %v661, 4294901760
        %9849 = vmatprep.subr.mxu0 %v9848
        %v9850 = vand.u32 %v660, 4294901760
        %9851 = vmatpush1.msra.mxu0 %v9850
        %v9852 = vand.u32 %v657, 4294901760
        %9853 = vmatprep.subr.mxu0 %v9852
        %v9854 = vand.u32 %v656, 4294901760
        %9855 = vmatpush1.msra.mxu0 %v9854
        %v9856 = vand.u32 %v781, 4294901760
        %9857 = vmatprep.subr.mxu0 %v9856
        %v9858 = vand.u32 %v780, 4294901760
        %9859 = vmatpush2.msra.mxu0 %v9858
        %v9860 = vand.u32 %v777, 4294901760
        %9861 = vmatprep.subr.mxu0 %v9860
        %v9862 = vand.u32 %v776, 4294901760
        %9863 = vmatpush2.msra.mxu0 %v9862
        %v9864 = vand.u32 %v773, 4294901760
        %9865 = vmatprep.subr.mxu0 %v9864
        %v9866 = vand.u32 %v772, 4294901760
        %9867 = vmatpush2.msra.mxu0 %v9866
        %v9868 = vand.u32 %v769, 4294901760
        %9869 = vmatprep.subr.mxu0 %v9868
        %v9870 = vand.u32 %v768, 4294901760
        %9871 = vmatpush2.msra.mxu0 %v9870
        %v9872 = vand.u32 %v765, 4294901760
        %9873 = vmatprep.subr.mxu0 %v9872
        %v9874 = vand.u32 %v764, 4294901760
        %9875 = vmatpush2.msra.mxu0 %v9874
        %v9876 = vand.u32 %v761, 4294901760
        %9877 = vmatprep.subr.mxu0 %v9876
        %v9878 = vand.u32 %v760, 4294901760
        %9879 = vmatpush2.msra.mxu0 %v9878
        %v9880 = vand.u32 %v757, 4294901760
        %9881 = vmatprep.subr.mxu0 %v9880
        %v9882 = vand.u32 %v756, 4294901760
        %9883 = vmatpush2.msra.mxu0 %v9882
        %v9884 = vand.u32 %v753, 4294901760
        %9885 = vmatprep.subr.mxu0 %v9884
        %v9886 = vand.u32 %v752, 4294901760
        %9887 = vmatpush2.msra.mxu0 %v9886
        %v9888 = vand.u32 %v749, 4294901760
        %9889 = vmatprep.subr.mxu0 %v9888
        %v9890 = vand.u32 %v748, 4294901760
        %9891 = vmatpush2.msra.mxu0 %v9890
        %v9892 = vand.u32 %v745, 4294901760
        %9893 = vmatprep.subr.mxu0 %v9892
        %v9894 = vand.u32 %v744, 4294901760
        %9895 = vmatpush2.msra.mxu0 %v9894
        %v9896 = vand.u32 %v741, 4294901760
        %9897 = vmatprep.subr.mxu0 %v9896
        %v9898 = vand.u32 %v740, 4294901760
        %9899 = vmatpush2.msra.mxu0 %v9898
        %v9900 = vand.u32 %v737, 4294901760
        %9901 = vmatprep.subr.mxu0 %v9900
        %v9902 = vand.u32 %v736, 4294901760
        %9903 = vmatpush2.msra.mxu0 %v9902
        %v9904 = vand.u32 %v733, 4294901760
        %9905 = vmatprep.subr.mxu0 %v9904
        %v9906 = vand.u32 %v732, 4294901760
        %9907 = vmatpush2.msra.mxu0 %v9906
        %v9908 = vand.u32 %v729, 4294901760
        %9909 = vmatprep.subr.mxu0 %v9908
        %v9910 = vand.u32 %v728, 4294901760
        %9911 = vmatpush2.msra.mxu0 %v9910
        %v9912 = vand.u32 %v725, 4294901760
        %9913 = vmatprep.subr.mxu0 %v9912
        %v9914 = vand.u32 %v724, 4294901760
        %9915 = vmatpush2.msra.mxu0 %v9914
        %v9916 = vand.u32 %v721, 4294901760
        %9917 = vmatprep.subr.mxu0 %v9916
        %v9918 = vand.u32 %v720, 4294901760
        %9919 = vmatpush2.msra.mxu0 %v9918
        %v9920 = vand.u32 %v269, 4294901760
        %v9921 = vsub.f32 %v269, %v9920
        %v9922 = vand.u32 %v9921, 4294901760
        %v9923 = vsub.f32 %v9921, %v9922
        %v9924 = vand.u32 %v9923, 4294901760
        %9925 = vmatprep.mubr.f32.mxu0 %v9924
        %v9926 = vand.u32 %v268, 4294901760
        %v9927 = vsub.f32 %v268, %v9926
        %v9928 = vand.u32 %v9927, 4294901760
        %v9929 = vsub.f32 %v9927, %v9928
        %v9930 = vand.u32 %v9929, 4294901760
        %9931 = vmatmul.mubr.f32.gmra.mxu0 %v9930
        %v9932 = vpop.f32.mrf.mxu0
        %v9933 = vadd.f32 %v9788, %v9932
        %v9934 = vpop.f32.mrf.mxu0
        %v9935 = vadd.f32 %v9790, %v9934
        %9936 = vdwg.mxu0
        %v9937 = vand.u32 %v717, 4294901760
        %v9938 = vsub.f32 %v717, %v9937
        %v9939 = vand.u32 %v9938, 4294901760
        %v9940 = vsub.f32 %v9938, %v9939
        %v9941 = vand.u32 %v9940, 4294901760
        %9942 = vmatprep.subr.mxu0 %v9941
        %v9943 = vand.u32 %v716, 4294901760
        %v9944 = vsub.f32 %v716, %v9943
        %v9945 = vand.u32 %v9944, 4294901760
        %v9946 = vsub.f32 %v9944, %v9945
        %v9947 = vand.u32 %v9946, 4294901760
        %9948 = vmatpush1.msra.mxu0 %v9947
        %v9949 = vand.u32 %v713, 4294901760
        %v9950 = vsub.f32 %v713, %v9949
        %v9951 = vand.u32 %v9950, 4294901760
        %v9952 = vsub.f32 %v9950, %v9951
        %v9953 = vand.u32 %v9952, 4294901760
        %9954 = vmatprep.subr.mxu0 %v9953
        %v9955 = vand.u32 %v712, 4294901760
        %v9956 = vsub.f32 %v712, %v9955
        %v9957 = vand.u32 %v9956, 4294901760
        %v9958 = vsub.f32 %v9956, %v9957
        %v9959 = vand.u32 %v9958, 4294901760
        %9960 = vmatpush1.msra.mxu0 %v9959
        %v9961 = vand.u32 %v709, 4294901760
        %v9962 = vsub.f32 %v709, %v9961
        %v9963 = vand.u32 %v9962, 4294901760
        %v9964 = vsub.f32 %v9962, %v9963
        %v9965 = vand.u32 %v9964, 4294901760
        %9966 = vmatprep.subr.mxu0 %v9965
        %v9967 = vand.u32 %v708, 4294901760
        %v9968 = vsub.f32 %v708, %v9967
        %v9969 = vand.u32 %v9968, 4294901760
        %v9970 = vsub.f32 %v9968, %v9969
        %v9971 = vand.u32 %v9970, 4294901760
        %9972 = vmatpush1.msra.mxu0 %v9971
        %v9973 = vand.u32 %v705, 4294901760
        %v9974 = vsub.f32 %v705, %v9973
        %v9975 = vand.u32 %v9974, 4294901760
        %v9976 = vsub.f32 %v9974, %v9975
        %v9977 = vand.u32 %v9976, 4294901760
        %9978 = vmatprep.subr.mxu0 %v9977
        %v9979 = vand.u32 %v704, 4294901760
        %v9980 = vsub.f32 %v704, %v9979
        %v9981 = vand.u32 %v9980, 4294901760
        %v9982 = vsub.f32 %v9980, %v9981
        %v9983 = vand.u32 %v9982, 4294901760
        %9984 = vmatpush1.msra.mxu0 %v9983
        %v9985 = vand.u32 %v701, 4294901760
        %v9986 = vsub.f32 %v701, %v9985
        %v9987 = vand.u32 %v9986, 4294901760
        %v9988 = vsub.f32 %v9986, %v9987
        %v9989 = vand.u32 %v9988, 4294901760
        %9990 = vmatprep.subr.mxu0 %v9989
        %v9991 = vand.u32 %v700, 4294901760
        %v9992 = vsub.f32 %v700, %v9991
        %v9993 = vand.u32 %v9992, 4294901760
        %v9994 = vsub.f32 %v9992, %v9993
        %v9995 = vand.u32 %v9994, 4294901760
        %9996 = vmatpush1.msra.mxu0 %v9995
        %v9997 = vand.u32 %v697, 4294901760
        %v9998 = vsub.f32 %v697, %v9997
        %v9999 = vand.u32 %v9998, 4294901760
        %v10000 = vsub.f32 %v9998, %v9999
        %v10001 = vand.u32 %v10000, 4294901760
        %10002 = vmatprep.subr.mxu0 %v10001
        %v10003 = vand.u32 %v696, 4294901760
        %v10004 = vsub.f32 %v696, %v10003
        %v10005 = vand.u32 %v10004, 4294901760
        %v10006 = vsub.f32 %v10004, %v10005
        %v10007 = vand.u32 %v10006, 4294901760
        %10008 = vmatpush1.msra.mxu0 %v10007
        %v10009 = vand.u32 %v693, 4294901760
        %v10010 = vsub.f32 %v693, %v10009
        %v10011 = vand.u32 %v10010, 4294901760
        %v10012 = vsub.f32 %v10010, %v10011
        %v10013 = vand.u32 %v10012, 4294901760
        %10014 = vmatprep.subr.mxu0 %v10013
        %v10015 = vand.u32 %v692, 4294901760
        %v10016 = vsub.f32 %v692, %v10015
        %v10017 = vand.u32 %v10016, 4294901760
        %v10018 = vsub.f32 %v10016, %v10017
        %v10019 = vand.u32 %v10018, 4294901760
        %10020 = vmatpush1.msra.mxu0 %v10019
        %v10021 = vand.u32 %v689, 4294901760
        %v10022 = vsub.f32 %v689, %v10021
        %v10023 = vand.u32 %v10022, 4294901760
        %v10024 = vsub.f32 %v10022, %v10023
        %v10025 = vand.u32 %v10024, 4294901760
        %10026 = vmatprep.subr.mxu0 %v10025
        %v10027 = vand.u32 %v688, 4294901760
        %v10028 = vsub.f32 %v688, %v10027
        %v10029 = vand.u32 %v10028, 4294901760
        %v10030 = vsub.f32 %v10028, %v10029
        %v10031 = vand.u32 %v10030, 4294901760
        %10032 = vmatpush1.msra.mxu0 %v10031
        %v10033 = vand.u32 %v685, 4294901760
        %v10034 = vsub.f32 %v685, %v10033
        %v10035 = vand.u32 %v10034, 4294901760
        %v10036 = vsub.f32 %v10034, %v10035
        %v10037 = vand.u32 %v10036, 4294901760
        %10038 = vmatprep.subr.mxu0 %v10037
        %v10039 = vand.u32 %v684, 4294901760
        %v10040 = vsub.f32 %v684, %v10039
        %v10041 = vand.u32 %v10040, 4294901760
        %v10042 = vsub.f32 %v10040, %v10041
        %v10043 = vand.u32 %v10042, 4294901760
        %10044 = vmatpush1.msra.mxu0 %v10043
        %v10045 = vand.u32 %v681, 4294901760
        %v10046 = vsub.f32 %v681, %v10045
        %v10047 = vand.u32 %v10046, 4294901760
        %v10048 = vsub.f32 %v10046, %v10047
        %v10049 = vand.u32 %v10048, 4294901760
        %10050 = vmatprep.subr.mxu0 %v10049
        %v10051 = vand.u32 %v680, 4294901760
        %v10052 = vsub.f32 %v680, %v10051
        %v10053 = vand.u32 %v10052, 4294901760
        %v10054 = vsub.f32 %v10052, %v10053
        %v10055 = vand.u32 %v10054, 4294901760
        %10056 = vmatpush1.msra.mxu0 %v10055
        %v10057 = vand.u32 %v677, 4294901760
        %v10058 = vsub.f32 %v677, %v10057
        %v10059 = vand.u32 %v10058, 4294901760
        %v10060 = vsub.f32 %v10058, %v10059
        %v10061 = vand.u32 %v10060, 4294901760
        %10062 = vmatprep.subr.mxu0 %v10061
        %v10063 = vand.u32 %v676, 4294901760
        %v10064 = vsub.f32 %v676, %v10063
        %v10065 = vand.u32 %v10064, 4294901760
        %v10066 = vsub.f32 %v10064, %v10065
        %v10067 = vand.u32 %v10066, 4294901760
        %10068 = vmatpush1.msra.mxu0 %v10067
        %v10069 = vand.u32 %v673, 4294901760
        %v10070 = vsub.f32 %v673, %v10069
        %v10071 = vand.u32 %v10070, 4294901760
        %v10072 = vsub.f32 %v10070, %v10071
        %v10073 = vand.u32 %v10072, 4294901760
        %10074 = vmatprep.subr.mxu0 %v10073
        %v10075 = vand.u32 %v672, 4294901760
        %v10076 = vsub.f32 %v672, %v10075
        %v10077 = vand.u32 %v10076, 4294901760
        %v10078 = vsub.f32 %v10076, %v10077
        %v10079 = vand.u32 %v10078, 4294901760
        %10080 = vmatpush1.msra.mxu0 %v10079
        %v10081 = vand.u32 %v669, 4294901760
        %v10082 = vsub.f32 %v669, %v10081
        %v10083 = vand.u32 %v10082, 4294901760
        %v10084 = vsub.f32 %v10082, %v10083
        %v10085 = vand.u32 %v10084, 4294901760
        %10086 = vmatprep.subr.mxu0 %v10085
        %v10087 = vand.u32 %v668, 4294901760
        %v10088 = vsub.f32 %v668, %v10087
        %v10089 = vand.u32 %v10088, 4294901760
        %v10090 = vsub.f32 %v10088, %v10089
        %v10091 = vand.u32 %v10090, 4294901760
        %10092 = vmatpush1.msra.mxu0 %v10091
        %v10093 = vand.u32 %v665, 4294901760
        %v10094 = vsub.f32 %v665, %v10093
        %v10095 = vand.u32 %v10094, 4294901760
        %v10096 = vsub.f32 %v10094, %v10095
        %v10097 = vand.u32 %v10096, 4294901760
        %10098 = vmatprep.subr.mxu0 %v10097
        %v10099 = vand.u32 %v664, 4294901760
        %v10100 = vsub.f32 %v664, %v10099
        %v10101 = vand.u32 %v10100, 4294901760
        %v10102 = vsub.f32 %v10100, %v10101
        %v10103 = vand.u32 %v10102, 4294901760
        %10104 = vmatpush1.msra.mxu0 %v10103
        %v10105 = vand.u32 %v661, 4294901760
        %v10106 = vsub.f32 %v661, %v10105
        %v10107 = vand.u32 %v10106, 4294901760
        %v10108 = vsub.f32 %v10106, %v10107
        %v10109 = vand.u32 %v10108, 4294901760
        %10110 = vmatprep.subr.mxu0 %v10109
        %v10111 = vand.u32 %v660, 4294901760
        %v10112 = vsub.f32 %v660, %v10111
        %v10113 = vand.u32 %v10112, 4294901760
        %v10114 = vsub.f32 %v10112, %v10113
        %v10115 = vand.u32 %v10114, 4294901760
        %10116 = vmatpush1.msra.mxu0 %v10115
        %v10117 = vand.u32 %v657, 4294901760
        %v10118 = vsub.f32 %v657, %v10117
        %v10119 = vand.u32 %v10118, 4294901760
        %v10120 = vsub.f32 %v10118, %v10119
        %v10121 = vand.u32 %v10120, 4294901760
        %10122 = vmatprep.subr.mxu0 %v10121
        %v10123 = vand.u32 %v656, 4294901760
        %v10124 = vsub.f32 %v656, %v10123
        %v10125 = vand.u32 %v10124, 4294901760
        %v10126 = vsub.f32 %v10124, %v10125
        %v10127 = vand.u32 %v10126, 4294901760
        %10128 = vmatpush1.msra.mxu0 %v10127
        %v10129 = vand.u32 %v781, 4294901760
        %v10130 = vsub.f32 %v781, %v10129
        %v10131 = vand.u32 %v10130, 4294901760
        %v10132 = vsub.f32 %v10130, %v10131
        %v10133 = vand.u32 %v10132, 4294901760
        %10134 = vmatprep.subr.mxu0 %v10133
        %v10135 = vand.u32 %v780, 4294901760
        %v10136 = vsub.f32 %v780, %v10135
        %v10137 = vand.u32 %v10136, 4294901760
        %v10138 = vsub.f32 %v10136, %v10137
        %v10139 = vand.u32 %v10138, 4294901760
        %10140 = vmatpush2.msra.mxu0 %v10139
        %v10141 = vand.u32 %v777, 4294901760
        %v10142 = vsub.f32 %v777, %v10141
        %v10143 = vand.u32 %v10142, 4294901760
        %v10144 = vsub.f32 %v10142, %v10143
        %v10145 = vand.u32 %v10144, 4294901760
        %10146 = vmatprep.subr.mxu0 %v10145
        %v10147 = vand.u32 %v776, 4294901760
        %v10148 = vsub.f32 %v776, %v10147
        %v10149 = vand.u32 %v10148, 4294901760
        %v10150 = vsub.f32 %v10148, %v10149
        %v10151 = vand.u32 %v10150, 4294901760
        %10152 = vmatpush2.msra.mxu0 %v10151
        %v10153 = vand.u32 %v773, 4294901760
        %v10154 = vsub.f32 %v773, %v10153
        %v10155 = vand.u32 %v10154, 4294901760
        %v10156 = vsub.f32 %v10154, %v10155
        %v10157 = vand.u32 %v10156, 4294901760
        %10158 = vmatprep.subr.mxu0 %v10157
        %v10159 = vand.u32 %v772, 4294901760
        %v10160 = vsub.f32 %v772, %v10159
        %v10161 = vand.u32 %v10160, 4294901760
        %v10162 = vsub.f32 %v10160, %v10161
        %v10163 = vand.u32 %v10162, 4294901760
        %10164 = vmatpush2.msra.mxu0 %v10163
        %v10165 = vand.u32 %v769, 4294901760
        %v10166 = vsub.f32 %v769, %v10165
        %v10167 = vand.u32 %v10166, 4294901760
        %v10168 = vsub.f32 %v10166, %v10167
        %v10169 = vand.u32 %v10168, 4294901760
        %10170 = vmatprep.subr.mxu0 %v10169
        %v10171 = vand.u32 %v768, 4294901760
        %v10172 = vsub.f32 %v768, %v10171
        %v10173 = vand.u32 %v10172, 4294901760
        %v10174 = vsub.f32 %v10172, %v10173
        %v10175 = vand.u32 %v10174, 4294901760
        %10176 = vmatpush2.msra.mxu0 %v10175
        %v10177 = vand.u32 %v765, 4294901760
        %v10178 = vsub.f32 %v765, %v10177
        %v10179 = vand.u32 %v10178, 4294901760
        %v10180 = vsub.f32 %v10178, %v10179
        %v10181 = vand.u32 %v10180, 4294901760
        %10182 = vmatprep.subr.mxu0 %v10181
        %v10183 = vand.u32 %v764, 4294901760
        %v10184 = vsub.f32 %v764, %v10183
        %v10185 = vand.u32 %v10184, 4294901760
        %v10186 = vsub.f32 %v10184, %v10185
        %v10187 = vand.u32 %v10186, 4294901760
        %10188 = vmatpush2.msra.mxu0 %v10187
        %v10189 = vand.u32 %v761, 4294901760
        %v10190 = vsub.f32 %v761, %v10189
        %v10191 = vand.u32 %v10190, 4294901760
        %v10192 = vsub.f32 %v10190, %v10191
        %v10193 = vand.u32 %v10192, 4294901760
        %10194 = vmatprep.subr.mxu0 %v10193
        %v10195 = vand.u32 %v760, 4294901760
        %v10196 = vsub.f32 %v760, %v10195
        %v10197 = vand.u32 %v10196, 4294901760
        %v10198 = vsub.f32 %v10196, %v10197
        %v10199 = vand.u32 %v10198, 4294901760
        %10200 = vmatpush2.msra.mxu0 %v10199
        %v10201 = vand.u32 %v757, 4294901760
        %v10202 = vsub.f32 %v757, %v10201
        %v10203 = vand.u32 %v10202, 4294901760
        %v10204 = vsub.f32 %v10202, %v10203
        %v10205 = vand.u32 %v10204, 4294901760
        %10206 = vmatprep.subr.mxu0 %v10205
        %v10207 = vand.u32 %v756, 4294901760
        %v10208 = vsub.f32 %v756, %v10207
        %v10209 = vand.u32 %v10208, 4294901760
        %v10210 = vsub.f32 %v10208, %v10209
        %v10211 = vand.u32 %v10210, 4294901760
        %10212 = vmatpush2.msra.mxu0 %v10211
        %v10213 = vand.u32 %v753, 4294901760
        %v10214 = vsub.f32 %v753, %v10213
        %v10215 = vand.u32 %v10214, 4294901760
        %v10216 = vsub.f32 %v10214, %v10215
        %v10217 = vand.u32 %v10216, 4294901760
        %10218 = vmatprep.subr.mxu0 %v10217
        %v10219 = vand.u32 %v752, 4294901760
        %v10220 = vsub.f32 %v752, %v10219
        %v10221 = vand.u32 %v10220, 4294901760
        %v10222 = vsub.f32 %v10220, %v10221
        %v10223 = vand.u32 %v10222, 4294901760
        %10224 = vmatpush2.msra.mxu0 %v10223
        %v10225 = vand.u32 %v749, 4294901760
        %v10226 = vsub.f32 %v749, %v10225
        %v10227 = vand.u32 %v10226, 4294901760
        %v10228 = vsub.f32 %v10226, %v10227
        %v10229 = vand.u32 %v10228, 4294901760
        %10230 = vmatprep.subr.mxu0 %v10229
        %v10231 = vand.u32 %v748, 4294901760
        %v10232 = vsub.f32 %v748, %v10231
        %v10233 = vand.u32 %v10232, 4294901760
        %v10234 = vsub.f32 %v10232, %v10233
        %v10235 = vand.u32 %v10234, 4294901760
        %10236 = vmatpush2.msra.mxu0 %v10235
        %v10237 = vand.u32 %v745, 4294901760
        %v10238 = vsub.f32 %v745, %v10237
        %v10239 = vand.u32 %v10238, 4294901760
        %v10240 = vsub.f32 %v10238, %v10239
        %v10241 = vand.u32 %v10240, 4294901760
        %10242 = vmatprep.subr.mxu0 %v10241
        %v10243 = vand.u32 %v744, 4294901760
        %v10244 = vsub.f32 %v744, %v10243
        %v10245 = vand.u32 %v10244, 4294901760
        %v10246 = vsub.f32 %v10244, %v10245
        %v10247 = vand.u32 %v10246, 4294901760
        %10248 = vmatpush2.msra.mxu0 %v10247
        %v10249 = vand.u32 %v741, 4294901760
        %v10250 = vsub.f32 %v741, %v10249
        %v10251 = vand.u32 %v10250, 4294901760
        %v10252 = vsub.f32 %v10250, %v10251
        %v10253 = vand.u32 %v10252, 4294901760
        %10254 = vmatprep.subr.mxu0 %v10253
        %v10255 = vand.u32 %v740, 4294901760
        %v10256 = vsub.f32 %v740, %v10255
        %v10257 = vand.u32 %v10256, 4294901760
        %v10258 = vsub.f32 %v10256, %v10257
        %v10259 = vand.u32 %v10258, 4294901760
        %10260 = vmatpush2.msra.mxu0 %v10259
        %v10261 = vand.u32 %v737, 4294901760
        %v10262 = vsub.f32 %v737, %v10261
        %v10263 = vand.u32 %v10262, 4294901760
        %v10264 = vsub.f32 %v10262, %v10263
        %v10265 = vand.u32 %v10264, 4294901760
        %10266 = vmatprep.subr.mxu0 %v10265
        %v10267 = vand.u32 %v736, 4294901760
        %v10268 = vsub.f32 %v736, %v10267
        %v10269 = vand.u32 %v10268, 4294901760
        %v10270 = vsub.f32 %v10268, %v10269
        %v10271 = vand.u32 %v10270, 4294901760
        %10272 = vmatpush2.msra.mxu0 %v10271
        %v10273 = vand.u32 %v733, 4294901760
        %v10274 = vsub.f32 %v733, %v10273
        %v10275 = vand.u32 %v10274, 4294901760
        %v10276 = vsub.f32 %v10274, %v10275
        %v10277 = vand.u32 %v10276, 4294901760
        %10278 = vmatprep.subr.mxu0 %v10277
        %v10279 = vand.u32 %v732, 4294901760
        %v10280 = vsub.f32 %v732, %v10279
        %v10281 = vand.u32 %v10280, 4294901760
        %v10282 = vsub.f32 %v10280, %v10281
        %v10283 = vand.u32 %v10282, 4294901760
        %10284 = vmatpush2.msra.mxu0 %v10283
        %v10285 = vand.u32 %v729, 4294901760
        %v10286 = vsub.f32 %v729, %v10285
        %v10287 = vand.u32 %v10286, 4294901760
        %v10288 = vsub.f32 %v10286, %v10287
        %v10289 = vand.u32 %v10288, 4294901760
        %10290 = vmatprep.subr.mxu0 %v10289
        %v10291 = vand.u32 %v728, 4294901760
        %v10292 = vsub.f32 %v728, %v10291
        %v10293 = vand.u32 %v10292, 4294901760
        %v10294 = vsub.f32 %v10292, %v10293
        %v10295 = vand.u32 %v10294, 4294901760
        %10296 = vmatpush2.msra.mxu0 %v10295
        %v10297 = vand.u32 %v725, 4294901760
        %v10298 = vsub.f32 %v725, %v10297
        %v10299 = vand.u32 %v10298, 4294901760
        %v10300 = vsub.f32 %v10298, %v10299
        %v10301 = vand.u32 %v10300, 4294901760
        %10302 = vmatprep.subr.mxu0 %v10301
        %v10303 = vand.u32 %v724, 4294901760
        %v10304 = vsub.f32 %v724, %v10303
        %v10305 = vand.u32 %v10304, 4294901760
        %v10306 = vsub.f32 %v10304, %v10305
        %v10307 = vand.u32 %v10306, 4294901760
        %10308 = vmatpush2.msra.mxu0 %v10307
        %v10309 = vand.u32 %v721, 4294901760
        %v10310 = vsub.f32 %v721, %v10309
        %v10311 = vand.u32 %v10310, 4294901760
        %v10312 = vsub.f32 %v10310, %v10311
        %v10313 = vand.u32 %v10312, 4294901760
        %10314 = vmatprep.subr.mxu0 %v10313
        %v10315 = vand.u32 %v720, 4294901760
        %v10316 = vsub.f32 %v720, %v10315
        %v10317 = vand.u32 %v10316, 4294901760
        %v10318 = vsub.f32 %v10316, %v10317
        %v10319 = vand.u32 %v10318, 4294901760
        %10320 = vmatpush2.msra.mxu0 %v10319
        %v10321 = vand.u32 %v269, 4294901760
        %10322 = vmatprep.mubr.f32.mxu0 %v10321
        %v10323 = vand.u32 %v268, 4294901760
        %10324 = vmatmul.mubr.f32.gmra.mxu0 %v10323
        %v10325 = vpop.f32.mrf.mxu0
        %v10326 = vadd.f32 %v9933, %v10325
        %v10327 = vpop.f32.mrf.mxu0
        %v10328 = vadd.f32 %v9935, %v10327
        %10329 = vdwg.mxu0
        %v10330 = vand.u32 %v717, 4294901760
        %v10331 = vsub.f32 %v717, %v10330
        %10332 = vmatprep.subr.mxu0 %v10331
        %v10333 = vand.u32 %v716, 4294901760
        %v10334 = vsub.f32 %v716, %v10333
        %10335 = vmatpush1.msra.mxu0 %v10334
        %v10336 = vand.u32 %v713, 4294901760
        %v10337 = vsub.f32 %v713, %v10336
        %10338 = vmatprep.subr.mxu0 %v10337
        %v10339 = vand.u32 %v712, 4294901760
        %v10340 = vsub.f32 %v712, %v10339
        %10341 = vmatpush1.msra.mxu0 %v10340
        %v10342 = vand.u32 %v709, 4294901760
        %v10343 = vsub.f32 %v709, %v10342
        %10344 = vmatprep.subr.mxu0 %v10343
        %v10345 = vand.u32 %v708, 4294901760
        %v10346 = vsub.f32 %v708, %v10345
        %10347 = vmatpush1.msra.mxu0 %v10346
        %v10348 = vand.u32 %v705, 4294901760
        %v10349 = vsub.f32 %v705, %v10348
        %10350 = vmatprep.subr.mxu0 %v10349
        %v10351 = vand.u32 %v704, 4294901760
        %v10352 = vsub.f32 %v704, %v10351
        %10353 = vmatpush1.msra.mxu0 %v10352
        %v10354 = vand.u32 %v701, 4294901760
        %v10355 = vsub.f32 %v701, %v10354
        %10356 = vmatprep.subr.mxu0 %v10355
        %v10357 = vand.u32 %v700, 4294901760
        %v10358 = vsub.f32 %v700, %v10357
        %10359 = vmatpush1.msra.mxu0 %v10358
        %v10360 = vand.u32 %v697, 4294901760
        %v10361 = vsub.f32 %v697, %v10360
        %10362 = vmatprep.subr.mxu0 %v10361
        %v10363 = vand.u32 %v696, 4294901760
        %v10364 = vsub.f32 %v696, %v10363
        %10365 = vmatpush1.msra.mxu0 %v10364
        %v10366 = vand.u32 %v693, 4294901760
        %v10367 = vsub.f32 %v693, %v10366
        %10368 = vmatprep.subr.mxu0 %v10367
        %v10369 = vand.u32 %v692, 4294901760
        %v10370 = vsub.f32 %v692, %v10369
        %10371 = vmatpush1.msra.mxu0 %v10370
        %v10372 = vand.u32 %v689, 4294901760
        %v10373 = vsub.f32 %v689, %v10372
        %10374 = vmatprep.subr.mxu0 %v10373
        %v10375 = vand.u32 %v688, 4294901760
        %v10376 = vsub.f32 %v688, %v10375
        %10377 = vmatpush1.msra.mxu0 %v10376
        %v10378 = vand.u32 %v685, 4294901760
        %v10379 = vsub.f32 %v685, %v10378
        %10380 = vmatprep.subr.mxu0 %v10379
        %v10381 = vand.u32 %v684, 4294901760
        %v10382 = vsub.f32 %v684, %v10381
        %10383 = vmatpush1.msra.mxu0 %v10382
        %v10384 = vand.u32 %v681, 4294901760
        %v10385 = vsub.f32 %v681, %v10384
        %10386 = vmatprep.subr.mxu0 %v10385
        %v10387 = vand.u32 %v680, 4294901760
        %v10388 = vsub.f32 %v680, %v10387
        %10389 = vmatpush1.msra.mxu0 %v10388
        %v10390 = vand.u32 %v677, 4294901760
        %v10391 = vsub.f32 %v677, %v10390
        %10392 = vmatprep.subr.mxu0 %v10391
        %v10393 = vand.u32 %v676, 4294901760
        %v10394 = vsub.f32 %v676, %v10393
        %10395 = vmatpush1.msra.mxu0 %v10394
        %v10396 = vand.u32 %v673, 4294901760
        %v10397 = vsub.f32 %v673, %v10396
        %10398 = vmatprep.subr.mxu0 %v10397
        %v10399 = vand.u32 %v672, 4294901760
        %v10400 = vsub.f32 %v672, %v10399
        %10401 = vmatpush1.msra.mxu0 %v10400
        %v10402 = vand.u32 %v669, 4294901760
        %v10403 = vsub.f32 %v669, %v10402
        %10404 = vmatprep.subr.mxu0 %v10403
        %v10405 = vand.u32 %v668, 4294901760
        %v10406 = vsub.f32 %v668, %v10405
        %10407 = vmatpush1.msra.mxu0 %v10406
        %v10408 = vand.u32 %v665, 4294901760
        %v10409 = vsub.f32 %v665, %v10408
        %10410 = vmatprep.subr.mxu0 %v10409
        %v10411 = vand.u32 %v664, 4294901760
        %v10412 = vsub.f32 %v664, %v10411
        %10413 = vmatpush1.msra.mxu0 %v10412
        %v10414 = vand.u32 %v661, 4294901760
        %v10415 = vsub.f32 %v661, %v10414
        %10416 = vmatprep.subr.mxu0 %v10415
        %v10417 = vand.u32 %v660, 4294901760
        %v10418 = vsub.f32 %v660, %v10417
        %10419 = vmatpush1.msra.mxu0 %v10418
        %v10420 = vand.u32 %v657, 4294901760
        %v10421 = vsub.f32 %v657, %v10420
        %10422 = vmatprep.subr.mxu0 %v10421
        %v10423 = vand.u32 %v656, 4294901760
        %v10424 = vsub.f32 %v656, %v10423
        %10425 = vmatpush1.msra.mxu0 %v10424
        %v10426 = vand.u32 %v781, 4294901760
        %v10427 = vsub.f32 %v781, %v10426
        %10428 = vmatprep.subr.mxu0 %v10427
        %v10429 = vand.u32 %v780, 4294901760
        %v10430 = vsub.f32 %v780, %v10429
        %10431 = vmatpush2.msra.mxu0 %v10430
        %v10432 = vand.u32 %v777, 4294901760
        %v10433 = vsub.f32 %v777, %v10432
        %10434 = vmatprep.subr.mxu0 %v10433
        %v10435 = vand.u32 %v776, 4294901760
        %v10436 = vsub.f32 %v776, %v10435
        %10437 = vmatpush2.msra.mxu0 %v10436
        %v10438 = vand.u32 %v773, 4294901760
        %v10439 = vsub.f32 %v773, %v10438
        %10440 = vmatprep.subr.mxu0 %v10439
        %v10441 = vand.u32 %v772, 4294901760
        %v10442 = vsub.f32 %v772, %v10441
        %10443 = vmatpush2.msra.mxu0 %v10442
        %v10444 = vand.u32 %v769, 4294901760
        %v10445 = vsub.f32 %v769, %v10444
        %10446 = vmatprep.subr.mxu0 %v10445
        %v10447 = vand.u32 %v768, 4294901760
        %v10448 = vsub.f32 %v768, %v10447
        %10449 = vmatpush2.msra.mxu0 %v10448
        %v10450 = vand.u32 %v765, 4294901760
        %v10451 = vsub.f32 %v765, %v10450
        %10452 = vmatprep.subr.mxu0 %v10451
        %v10453 = vand.u32 %v764, 4294901760
        %v10454 = vsub.f32 %v764, %v10453
        %10455 = vmatpush2.msra.mxu0 %v10454
        %v10456 = vand.u32 %v761, 4294901760
        %v10457 = vsub.f32 %v761, %v10456
        %10458 = vmatprep.subr.mxu0 %v10457
        %v10459 = vand.u32 %v760, 4294901760
        %v10460 = vsub.f32 %v760, %v10459
        %10461 = vmatpush2.msra.mxu0 %v10460
        %v10462 = vand.u32 %v757, 4294901760
        %v10463 = vsub.f32 %v757, %v10462
        %10464 = vmatprep.subr.mxu0 %v10463
        %v10465 = vand.u32 %v756, 4294901760
        %v10466 = vsub.f32 %v756, %v10465
        %10467 = vmatpush2.msra.mxu0 %v10466
        %v10468 = vand.u32 %v753, 4294901760
        %v10469 = vsub.f32 %v753, %v10468
        %10470 = vmatprep.subr.mxu0 %v10469
        %v10471 = vand.u32 %v752, 4294901760
        %v10472 = vsub.f32 %v752, %v10471
        %10473 = vmatpush2.msra.mxu0 %v10472
        %v10474 = vand.u32 %v749, 4294901760
        %v10475 = vsub.f32 %v749, %v10474
        %10476 = vmatprep.subr.mxu0 %v10475
        %v10477 = vand.u32 %v748, 4294901760
        %v10478 = vsub.f32 %v748, %v10477
        %10479 = vmatpush2.msra.mxu0 %v10478
        %v10480 = vand.u32 %v745, 4294901760
        %v10481 = vsub.f32 %v745, %v10480
        %10482 = vmatprep.subr.mxu0 %v10481
        %v10483 = vand.u32 %v744, 4294901760
        %v10484 = vsub.f32 %v744, %v10483
        %10485 = vmatpush2.msra.mxu0 %v10484
        %v10486 = vand.u32 %v741, 4294901760
        %v10487 = vsub.f32 %v741, %v10486
        %10488 = vmatprep.subr.mxu0 %v10487
        %v10489 = vand.u32 %v740, 4294901760
        %v10490 = vsub.f32 %v740, %v10489
        %10491 = vmatpush2.msra.mxu0 %v10490
        %v10492 = vand.u32 %v737, 4294901760
        %v10493 = vsub.f32 %v737, %v10492
        %10494 = vmatprep.subr.mxu0 %v10493
        %v10495 = vand.u32 %v736, 4294901760
        %v10496 = vsub.f32 %v736, %v10495
        %10497 = vmatpush2.msra.mxu0 %v10496
        %v10498 = vand.u32 %v733, 4294901760
        %v10499 = vsub.f32 %v733, %v10498
        %10500 = vmatprep.subr.mxu0 %v10499
        %v10501 = vand.u32 %v732, 4294901760
        %v10502 = vsub.f32 %v732, %v10501
        %10503 = vmatpush2.msra.mxu0 %v10502
        %v10504 = vand.u32 %v729, 4294901760
        %v10505 = vsub.f32 %v729, %v10504
        %10506 = vmatprep.subr.mxu0 %v10505
        %v10507 = vand.u32 %v728, 4294901760
        %v10508 = vsub.f32 %v728, %v10507
        %10509 = vmatpush2.msra.mxu0 %v10508
        %v10510 = vand.u32 %v725, 4294901760
        %v10511 = vsub.f32 %v725, %v10510
        %10512 = vmatprep.subr.mxu0 %v10511
        %v10513 = vand.u32 %v724, 4294901760
        %v10514 = vsub.f32 %v724, %v10513
        %10515 = vmatpush2.msra.mxu0 %v10514
        %v10516 = vand.u32 %v721, 4294901760
        %v10517 = vsub.f32 %v721, %v10516
        %10518 = vmatprep.subr.mxu0 %v10517
        %v10519 = vand.u32 %v720, 4294901760
        %v10520 = vsub.f32 %v720, %v10519
        %10521 = vmatpush2.msra.mxu0 %v10520
        %v10522 = vand.u32 %v269, 4294901760
        %v10523 = vsub.f32 %v269, %v10522
        %10524 = vmatprep.mubr.f32.mxu0 %v10523
        %v10525 = vand.u32 %v268, 4294901760
        %v10526 = vsub.f32 %v268, %v10525
        %10527 = vmatmul.mubr.f32.gmra.mxu0 %v10526
        %v10528 = vpop.f32.mrf.mxu0
        %v10529 = vadd.f32 %v10326, %v10528
        %v10530 = vpop.f32.mrf.mxu0
        %v10531 = vadd.f32 %v10328, %v10530
        %10532 = vdwg.mxu0
        %v10533 = vand.u32 %v717, 4294901760
        %10534 = vmatprep.subr.mxu0 %v10533
        %v10535 = vand.u32 %v716, 4294901760
        %10536 = vmatpush1.msra.mxu0 %v10535
        %v10537 = vand.u32 %v713, 4294901760
        %10538 = vmatprep.subr.mxu0 %v10537
        %v10539 = vand.u32 %v712, 4294901760
        %10540 = vmatpush1.msra.mxu0 %v10539
        %v10541 = vand.u32 %v709, 4294901760
        %10542 = vmatprep.subr.mxu0 %v10541
        %v10543 = vand.u32 %v708, 4294901760
        %10544 = vmatpush1.msra.mxu0 %v10543
        %v10545 = vand.u32 %v705, 4294901760
        %10546 = vmatprep.subr.mxu0 %v10545
        %v10547 = vand.u32 %v704, 4294901760
        %10548 = vmatpush1.msra.mxu0 %v10547
        %v10549 = vand.u32 %v701, 4294901760
        %10550 = vmatprep.subr.mxu0 %v10549
        %v10551 = vand.u32 %v700, 4294901760
        %10552 = vmatpush1.msra.mxu0 %v10551
        %v10553 = vand.u32 %v697, 4294901760
        %10554 = vmatprep.subr.mxu0 %v10553
        %v10555 = vand.u32 %v696, 4294901760
        %10556 = vmatpush1.msra.mxu0 %v10555
        %v10557 = vand.u32 %v693, 4294901760
        %10558 = vmatprep.subr.mxu0 %v10557
        %v10559 = vand.u32 %v692, 4294901760
        %10560 = vmatpush1.msra.mxu0 %v10559
        %v10561 = vand.u32 %v689, 4294901760
        %10562 = vmatprep.subr.mxu0 %v10561
        %v10563 = vand.u32 %v688, 4294901760
        %10564 = vmatpush1.msra.mxu0 %v10563
        %v10565 = vand.u32 %v685, 4294901760
        %10566 = vmatprep.subr.mxu0 %v10565
        %v10567 = vand.u32 %v684, 4294901760
        %10568 = vmatpush1.msra.mxu0 %v10567
        %v10569 = vand.u32 %v681, 4294901760
        %10570 = vmatprep.subr.mxu0 %v10569
        %v10571 = vand.u32 %v680, 4294901760
        %10572 = vmatpush1.msra.mxu0 %v10571
        %v10573 = vand.u32 %v677, 4294901760
        %10574 = vmatprep.subr.mxu0 %v10573
        %v10575 = vand.u32 %v676, 4294901760
        %10576 = vmatpush1.msra.mxu0 %v10575
        %v10577 = vand.u32 %v673, 4294901760
        %10578 = vmatprep.subr.mxu0 %v10577
        %v10579 = vand.u32 %v672, 4294901760
        %10580 = vmatpush1.msra.mxu0 %v10579
        %v10581 = vand.u32 %v669, 4294901760
        %10582 = vmatprep.subr.mxu0 %v10581
        %v10583 = vand.u32 %v668, 4294901760
        %10584 = vmatpush1.msra.mxu0 %v10583
        %v10585 = vand.u32 %v665, 4294901760
        %10586 = vmatprep.subr.mxu0 %v10585
        %v10587 = vand.u32 %v664, 4294901760
        %10588 = vmatpush1.msra.mxu0 %v10587
        %v10589 = vand.u32 %v661, 4294901760
        %10590 = vmatprep.subr.mxu0 %v10589
        %v10591 = vand.u32 %v660, 4294901760
        %10592 = vmatpush1.msra.mxu0 %v10591
        %v10593 = vand.u32 %v657, 4294901760
        %10594 = vmatprep.subr.mxu0 %v10593
        %v10595 = vand.u32 %v656, 4294901760
        %10596 = vmatpush1.msra.mxu0 %v10595
        %v10597 = vand.u32 %v781, 4294901760
        %10598 = vmatprep.subr.mxu0 %v10597
        %v10599 = vand.u32 %v780, 4294901760
        %10600 = vmatpush2.msra.mxu0 %v10599
        %v10601 = vand.u32 %v777, 4294901760
        %10602 = vmatprep.subr.mxu0 %v10601
        %v10603 = vand.u32 %v776, 4294901760
        %10604 = vmatpush2.msra.mxu0 %v10603
        %v10605 = vand.u32 %v773, 4294901760
        %10606 = vmatprep.subr.mxu0 %v10605
        %v10607 = vand.u32 %v772, 4294901760
        %10608 = vmatpush2.msra.mxu0 %v10607
        %v10609 = vand.u32 %v769, 4294901760
        %10610 = vmatprep.subr.mxu0 %v10609
        %v10611 = vand.u32 %v768, 4294901760
        %10612 = vmatpush2.msra.mxu0 %v10611
        %v10613 = vand.u32 %v765, 4294901760
        %10614 = vmatprep.subr.mxu0 %v10613
        %v10615 = vand.u32 %v764, 4294901760
        %10616 = vmatpush2.msra.mxu0 %v10615
        %v10617 = vand.u32 %v761, 4294901760
        %10618 = vmatprep.subr.mxu0 %v10617
        %v10619 = vand.u32 %v760, 4294901760
        %10620 = vmatpush2.msra.mxu0 %v10619
        %v10621 = vand.u32 %v757, 4294901760
        %10622 = vmatprep.subr.mxu0 %v10621
        %v10623 = vand.u32 %v756, 4294901760
        %10624 = vmatpush2.msra.mxu0 %v10623
        %v10625 = vand.u32 %v753, 4294901760
        %10626 = vmatprep.subr.mxu0 %v10625
        %v10627 = vand.u32 %v752, 4294901760
        %10628 = vmatpush2.msra.mxu0 %v10627
        %v10629 = vand.u32 %v749, 4294901760
        %10630 = vmatprep.subr.mxu0 %v10629
        %v10631 = vand.u32 %v748, 4294901760
        %10632 = vmatpush2.msra.mxu0 %v10631
        %v10633 = vand.u32 %v745, 4294901760
        %10634 = vmatprep.subr.mxu0 %v10633
        %v10635 = vand.u32 %v744, 4294901760
        %10636 = vmatpush2.msra.mxu0 %v10635
        %v10637 = vand.u32 %v741, 4294901760
        %10638 = vmatprep.subr.mxu0 %v10637
        %v10639 = vand.u32 %v740, 4294901760
        %10640 = vmatpush2.msra.mxu0 %v10639
        %v10641 = vand.u32 %v737, 4294901760
        %10642 = vmatprep.subr.mxu0 %v10641
        %v10643 = vand.u32 %v736, 4294901760
        %10644 = vmatpush2.msra.mxu0 %v10643
        %v10645 = vand.u32 %v733, 4294901760
        %10646 = vmatprep.subr.mxu0 %v10645
        %v10647 = vand.u32 %v732, 4294901760
        %10648 = vmatpush2.msra.mxu0 %v10647
        %v10649 = vand.u32 %v729, 4294901760
        %10650 = vmatprep.subr.mxu0 %v10649
        %v10651 = vand.u32 %v728, 4294901760
        %10652 = vmatpush2.msra.mxu0 %v10651
        %v10653 = vand.u32 %v725, 4294901760
        %10654 = vmatprep.subr.mxu0 %v10653
        %v10655 = vand.u32 %v724, 4294901760
        %10656 = vmatpush2.msra.mxu0 %v10655
        %v10657 = vand.u32 %v721, 4294901760
        %10658 = vmatprep.subr.mxu0 %v10657
        %v10659 = vand.u32 %v720, 4294901760
        %10660 = vmatpush2.msra.mxu0 %v10659
        %v10661 = vand.u32 %v269, 4294901760
        %v10662 = vsub.f32 %v269, %v10661
        %v10663 = vand.u32 %v10662, 4294901760
        %10664 = vmatprep.mubr.f32.mxu0 %v10663
        %v10665 = vand.u32 %v268, 4294901760
        %v10666 = vsub.f32 %v268, %v10665
        %v10667 = vand.u32 %v10666, 4294901760
        %10668 = vmatmul.mubr.f32.gmra.mxu0 %v10667
        %v10669 = vpop.f32.mrf.mxu0
        %v10670 = vadd.f32 %v10529, %v10669
        %v10671 = vpop.f32.mrf.mxu0
        %v10672 = vadd.f32 %v10531, %v10671
        %10673 = vdwg.mxu0
        %v10674 = vand.u32 %v717, 4294901760
        %v10675 = vsub.f32 %v717, %v10674
        %v10676 = vand.u32 %v10675, 4294901760
        %10677 = vmatprep.subr.mxu0 %v10676
        %v10678 = vand.u32 %v716, 4294901760
        %v10679 = vsub.f32 %v716, %v10678
        %v10680 = vand.u32 %v10679, 4294901760
        %10681 = vmatpush1.msra.mxu0 %v10680
        %v10682 = vand.u32 %v713, 4294901760
        %v10683 = vsub.f32 %v713, %v10682
        %v10684 = vand.u32 %v10683, 4294901760
        %10685 = vmatprep.subr.mxu0 %v10684
        %v10686 = vand.u32 %v712, 4294901760
        %v10687 = vsub.f32 %v712, %v10686
        %v10688 = vand.u32 %v10687, 4294901760
        %10689 = vmatpush1.msra.mxu0 %v10688
        %v10690 = vand.u32 %v709, 4294901760
        %v10691 = vsub.f32 %v709, %v10690
        %v10692 = vand.u32 %v10691, 4294901760
        %10693 = vmatprep.subr.mxu0 %v10692
        %v10694 = vand.u32 %v708, 4294901760
        %v10695 = vsub.f32 %v708, %v10694
        %v10696 = vand.u32 %v10695, 4294901760
        %10697 = vmatpush1.msra.mxu0 %v10696
        %v10698 = vand.u32 %v705, 4294901760
        %v10699 = vsub.f32 %v705, %v10698
        %v10700 = vand.u32 %v10699, 4294901760
        %10701 = vmatprep.subr.mxu0 %v10700
        %v10702 = vand.u32 %v704, 4294901760
        %v10703 = vsub.f32 %v704, %v10702
        %v10704 = vand.u32 %v10703, 4294901760
        %10705 = vmatpush1.msra.mxu0 %v10704
        %v10706 = vand.u32 %v701, 4294901760
        %v10707 = vsub.f32 %v701, %v10706
        %v10708 = vand.u32 %v10707, 4294901760
        %10709 = vmatprep.subr.mxu0 %v10708
        %v10710 = vand.u32 %v700, 4294901760
        %v10711 = vsub.f32 %v700, %v10710
        %v10712 = vand.u32 %v10711, 4294901760
        %10713 = vmatpush1.msra.mxu0 %v10712
        %v10714 = vand.u32 %v697, 4294901760
        %v10715 = vsub.f32 %v697, %v10714
        %v10716 = vand.u32 %v10715, 4294901760
        %10717 = vmatprep.subr.mxu0 %v10716
        %v10718 = vand.u32 %v696, 4294901760
        %v10719 = vsub.f32 %v696, %v10718
        %v10720 = vand.u32 %v10719, 4294901760
        %10721 = vmatpush1.msra.mxu0 %v10720
        %v10722 = vand.u32 %v693, 4294901760
        %v10723 = vsub.f32 %v693, %v10722
        %v10724 = vand.u32 %v10723, 4294901760
        %10725 = vmatprep.subr.mxu0 %v10724
        %v10726 = vand.u32 %v692, 4294901760
        %v10727 = vsub.f32 %v692, %v10726
        %v10728 = vand.u32 %v10727, 4294901760
        %10729 = vmatpush1.msra.mxu0 %v10728
        %v10730 = vand.u32 %v689, 4294901760
        %v10731 = vsub.f32 %v689, %v10730
        %v10732 = vand.u32 %v10731, 4294901760
        %10733 = vmatprep.subr.mxu0 %v10732
        %v10734 = vand.u32 %v688, 4294901760
        %v10735 = vsub.f32 %v688, %v10734
        %v10736 = vand.u32 %v10735, 4294901760
        %10737 = vmatpush1.msra.mxu0 %v10736
        %v10738 = vand.u32 %v685, 4294901760
        %v10739 = vsub.f32 %v685, %v10738
        %v10740 = vand.u32 %v10739, 4294901760
        %10741 = vmatprep.subr.mxu0 %v10740
        %v10742 = vand.u32 %v684, 4294901760
        %v10743 = vsub.f32 %v684, %v10742
        %v10744 = vand.u32 %v10743, 4294901760
        %10745 = vmatpush1.msra.mxu0 %v10744
        %v10746 = vand.u32 %v681, 4294901760
        %v10747 = vsub.f32 %v681, %v10746
        %v10748 = vand.u32 %v10747, 4294901760
        %10749 = vmatprep.subr.mxu0 %v10748
        %v10750 = vand.u32 %v680, 4294901760
        %v10751 = vsub.f32 %v680, %v10750
        %v10752 = vand.u32 %v10751, 4294901760
        %10753 = vmatpush1.msra.mxu0 %v10752
        %v10754 = vand.u32 %v677, 4294901760
        %v10755 = vsub.f32 %v677, %v10754
        %v10756 = vand.u32 %v10755, 4294901760
        %10757 = vmatprep.subr.mxu0 %v10756
        %v10758 = vand.u32 %v676, 4294901760
        %v10759 = vsub.f32 %v676, %v10758
        %v10760 = vand.u32 %v10759, 4294901760
        %10761 = vmatpush1.msra.mxu0 %v10760
        %v10762 = vand.u32 %v673, 4294901760
        %v10763 = vsub.f32 %v673, %v10762
        %v10764 = vand.u32 %v10763, 4294901760
        %10765 = vmatprep.subr.mxu0 %v10764
        %v10766 = vand.u32 %v672, 4294901760
        %v10767 = vsub.f32 %v672, %v10766
        %v10768 = vand.u32 %v10767, 4294901760
        %10769 = vmatpush1.msra.mxu0 %v10768
        %v10770 = vand.u32 %v669, 4294901760
        %v10771 = vsub.f32 %v669, %v10770
        %v10772 = vand.u32 %v10771, 4294901760
        %10773 = vmatprep.subr.mxu0 %v10772
        %v10774 = vand.u32 %v668, 4294901760
        %v10775 = vsub.f32 %v668, %v10774
        %v10776 = vand.u32 %v10775, 4294901760
        %10777 = vmatpush1.msra.mxu0 %v10776
        %v10778 = vand.u32 %v665, 4294901760
        %v10779 = vsub.f32 %v665, %v10778
        %v10780 = vand.u32 %v10779, 4294901760
        %10781 = vmatprep.subr.mxu0 %v10780
        %v10782 = vand.u32 %v664, 4294901760
        %v10783 = vsub.f32 %v664, %v10782
        %v10784 = vand.u32 %v10783, 4294901760
        %10785 = vmatpush1.msra.mxu0 %v10784
        %v10786 = vand.u32 %v661, 4294901760
        %v10787 = vsub.f32 %v661, %v10786
        %v10788 = vand.u32 %v10787, 4294901760
        %10789 = vmatprep.subr.mxu0 %v10788
        %v10790 = vand.u32 %v660, 4294901760
        %v10791 = vsub.f32 %v660, %v10790
        %v10792 = vand.u32 %v10791, 4294901760
        %10793 = vmatpush1.msra.mxu0 %v10792
        %v10794 = vand.u32 %v657, 4294901760
        %v10795 = vsub.f32 %v657, %v10794
        %v10796 = vand.u32 %v10795, 4294901760
        %10797 = vmatprep.subr.mxu0 %v10796
        %v10798 = vand.u32 %v656, 4294901760
        %v10799 = vsub.f32 %v656, %v10798
        %v10800 = vand.u32 %v10799, 4294901760
        %10801 = vmatpush1.msra.mxu0 %v10800
        %v10802 = vand.u32 %v781, 4294901760
        %v10803 = vsub.f32 %v781, %v10802
        %v10804 = vand.u32 %v10803, 4294901760
        %10805 = vmatprep.subr.mxu0 %v10804
        %v10806 = vand.u32 %v780, 4294901760
        %v10807 = vsub.f32 %v780, %v10806
        %v10808 = vand.u32 %v10807, 4294901760
        %10809 = vmatpush2.msra.mxu0 %v10808
        %v10810 = vand.u32 %v777, 4294901760
        %v10811 = vsub.f32 %v777, %v10810
        %v10812 = vand.u32 %v10811, 4294901760
        %10813 = vmatprep.subr.mxu0 %v10812
        %v10814 = vand.u32 %v776, 4294901760
        %v10815 = vsub.f32 %v776, %v10814
        %v10816 = vand.u32 %v10815, 4294901760
        %10817 = vmatpush2.msra.mxu0 %v10816
        %v10818 = vand.u32 %v773, 4294901760
        %v10819 = vsub.f32 %v773, %v10818
        %v10820 = vand.u32 %v10819, 4294901760
        %10821 = vmatprep.subr.mxu0 %v10820
        %v10822 = vand.u32 %v772, 4294901760
        %v10823 = vsub.f32 %v772, %v10822
        %v10824 = vand.u32 %v10823, 4294901760
        %10825 = vmatpush2.msra.mxu0 %v10824
        %v10826 = vand.u32 %v769, 4294901760
        %v10827 = vsub.f32 %v769, %v10826
        %v10828 = vand.u32 %v10827, 4294901760
        %10829 = vmatprep.subr.mxu0 %v10828
        %v10830 = vand.u32 %v768, 4294901760
        %v10831 = vsub.f32 %v768, %v10830
        %v10832 = vand.u32 %v10831, 4294901760
        %10833 = vmatpush2.msra.mxu0 %v10832
        %v10834 = vand.u32 %v765, 4294901760
        %v10835 = vsub.f32 %v765, %v10834
        %v10836 = vand.u32 %v10835, 4294901760
        %10837 = vmatprep.subr.mxu0 %v10836
        %v10838 = vand.u32 %v764, 4294901760
        %v10839 = vsub.f32 %v764, %v10838
        %v10840 = vand.u32 %v10839, 4294901760
        %10841 = vmatpush2.msra.mxu0 %v10840
        %v10842 = vand.u32 %v761, 4294901760
        %v10843 = vsub.f32 %v761, %v10842
        %v10844 = vand.u32 %v10843, 4294901760
        %10845 = vmatprep.subr.mxu0 %v10844
        %v10846 = vand.u32 %v760, 4294901760
        %v10847 = vsub.f32 %v760, %v10846
        %v10848 = vand.u32 %v10847, 4294901760
        %10849 = vmatpush2.msra.mxu0 %v10848
        %v10850 = vand.u32 %v757, 4294901760
        %v10851 = vsub.f32 %v757, %v10850
        %v10852 = vand.u32 %v10851, 4294901760
        %10853 = vmatprep.subr.mxu0 %v10852
        %v10854 = vand.u32 %v756, 4294901760
        %v10855 = vsub.f32 %v756, %v10854
        %v10856 = vand.u32 %v10855, 4294901760
        %10857 = vmatpush2.msra.mxu0 %v10856
        %v10858 = vand.u32 %v753, 4294901760
        %v10859 = vsub.f32 %v753, %v10858
        %v10860 = vand.u32 %v10859, 4294901760
        %10861 = vmatprep.subr.mxu0 %v10860
        %v10862 = vand.u32 %v752, 4294901760
        %v10863 = vsub.f32 %v752, %v10862
        %v10864 = vand.u32 %v10863, 4294901760
        %10865 = vmatpush2.msra.mxu0 %v10864
        %v10866 = vand.u32 %v749, 4294901760
        %v10867 = vsub.f32 %v749, %v10866
        %v10868 = vand.u32 %v10867, 4294901760
        %10869 = vmatprep.subr.mxu0 %v10868
        %v10870 = vand.u32 %v748, 4294901760
        %v10871 = vsub.f32 %v748, %v10870
        %v10872 = vand.u32 %v10871, 4294901760
        %10873 = vmatpush2.msra.mxu0 %v10872
        %v10874 = vand.u32 %v745, 4294901760
        %v10875 = vsub.f32 %v745, %v10874
        %v10876 = vand.u32 %v10875, 4294901760
        %10877 = vmatprep.subr.mxu0 %v10876
        %v10878 = vand.u32 %v744, 4294901760
        %v10879 = vsub.f32 %v744, %v10878
        %v10880 = vand.u32 %v10879, 4294901760
        %10881 = vmatpush2.msra.mxu0 %v10880
        %v10882 = vand.u32 %v741, 4294901760
        %v10883 = vsub.f32 %v741, %v10882
        %v10884 = vand.u32 %v10883, 4294901760
        %10885 = vmatprep.subr.mxu0 %v10884
        %v10886 = vand.u32 %v740, 4294901760
        %v10887 = vsub.f32 %v740, %v10886
        %v10888 = vand.u32 %v10887, 4294901760
        %10889 = vmatpush2.msra.mxu0 %v10888
        %v10890 = vand.u32 %v737, 4294901760
        %v10891 = vsub.f32 %v737, %v10890
        %v10892 = vand.u32 %v10891, 4294901760
        %10893 = vmatprep.subr.mxu0 %v10892
        %v10894 = vand.u32 %v736, 4294901760
        %v10895 = vsub.f32 %v736, %v10894
        %v10896 = vand.u32 %v10895, 4294901760
        %10897 = vmatpush2.msra.mxu0 %v10896
        %v10898 = vand.u32 %v733, 4294901760
        %v10899 = vsub.f32 %v733, %v10898
        %v10900 = vand.u32 %v10899, 4294901760
        %10901 = vmatprep.subr.mxu0 %v10900
        %v10902 = vand.u32 %v732, 4294901760
        %v10903 = vsub.f32 %v732, %v10902
        %v10904 = vand.u32 %v10903, 4294901760
        %10905 = vmatpush2.msra.mxu0 %v10904
        %v10906 = vand.u32 %v729, 4294901760
        %v10907 = vsub.f32 %v729, %v10906
        %v10908 = vand.u32 %v10907, 4294901760
        %10909 = vmatprep.subr.mxu0 %v10908
        %v10910 = vand.u32 %v728, 4294901760
        %v10911 = vsub.f32 %v728, %v10910
        %v10912 = vand.u32 %v10911, 4294901760
        %10913 = vmatpush2.msra.mxu0 %v10912
        %v10914 = vand.u32 %v725, 4294901760
        %v10915 = vsub.f32 %v725, %v10914
        %v10916 = vand.u32 %v10915, 4294901760
        %10917 = vmatprep.subr.mxu0 %v10916
        %v10918 = vand.u32 %v724, 4294901760
        %v10919 = vsub.f32 %v724, %v10918
        %v10920 = vand.u32 %v10919, 4294901760
        %10921 = vmatpush2.msra.mxu0 %v10920
        %v10922 = vand.u32 %v721, 4294901760
        %v10923 = vsub.f32 %v721, %v10922
        %v10924 = vand.u32 %v10923, 4294901760
        %10925 = vmatprep.subr.mxu0 %v10924
        %v10926 = vand.u32 %v720, 4294901760
        %v10927 = vsub.f32 %v720, %v10926
        %v10928 = vand.u32 %v10927, 4294901760
        %10929 = vmatpush2.msra.mxu0 %v10928
        %v10930 = vand.u32 %v269, 4294901760
        %10931 = vmatprep.mubr.f32.mxu0 %v10930
        %v10932 = vand.u32 %v268, 4294901760
        %10933 = vmatmul.mubr.f32.gmra.mxu0 %v10932
        %v10934 = vpop.f32.mrf.mxu0
        %v10935 = vadd.f32 %v10670, %v10934
        %v10936 = vpop.f32.mrf.mxu0
        %v10937 = vadd.f32 %v10672, %v10936
        %10938 = vdwg.mxu0
        %v10939 = vand.u32 %v717, 4294901760
        %10940 = vmatprep.subr.mxu0 %v10939
        %v10941 = vand.u32 %v716, 4294901760
        %10942 = vmatpush1.msra.mxu0 %v10941
        %v10943 = vand.u32 %v713, 4294901760
        %10944 = vmatprep.subr.mxu0 %v10943
        %v10945 = vand.u32 %v712, 4294901760
        %10946 = vmatpush1.msra.mxu0 %v10945
        %v10947 = vand.u32 %v709, 4294901760
        %10948 = vmatprep.subr.mxu0 %v10947
        %v10949 = vand.u32 %v708, 4294901760
        %10950 = vmatpush1.msra.mxu0 %v10949
        %v10951 = vand.u32 %v705, 4294901760
        %10952 = vmatprep.subr.mxu0 %v10951
        %v10953 = vand.u32 %v704, 4294901760
        %10954 = vmatpush1.msra.mxu0 %v10953
        %v10955 = vand.u32 %v701, 4294901760
        %10956 = vmatprep.subr.mxu0 %v10955
        %v10957 = vand.u32 %v700, 4294901760
        %10958 = vmatpush1.msra.mxu0 %v10957
        %v10959 = vand.u32 %v697, 4294901760
        %10960 = vmatprep.subr.mxu0 %v10959
        %v10961 = vand.u32 %v696, 4294901760
        %10962 = vmatpush1.msra.mxu0 %v10961
        %v10963 = vand.u32 %v693, 4294901760
        %10964 = vmatprep.subr.mxu0 %v10963
        %v10965 = vand.u32 %v692, 4294901760
        %10966 = vmatpush1.msra.mxu0 %v10965
        %v10967 = vand.u32 %v689, 4294901760
        %10968 = vmatprep.subr.mxu0 %v10967
        %v10969 = vand.u32 %v688, 4294901760
        %10970 = vmatpush1.msra.mxu0 %v10969
        %v10971 = vand.u32 %v685, 4294901760
        %10972 = vmatprep.subr.mxu0 %v10971
        %v10973 = vand.u32 %v684, 4294901760
        %10974 = vmatpush1.msra.mxu0 %v10973
        %v10975 = vand.u32 %v681, 4294901760
        %10976 = vmatprep.subr.mxu0 %v10975
        %v10977 = vand.u32 %v680, 4294901760
        %10978 = vmatpush1.msra.mxu0 %v10977
        %v10979 = vand.u32 %v677, 4294901760
        %10980 = vmatprep.subr.mxu0 %v10979
        %v10981 = vand.u32 %v676, 4294901760
        %10982 = vmatpush1.msra.mxu0 %v10981
        %v10983 = vand.u32 %v673, 4294901760
        %10984 = vmatprep.subr.mxu0 %v10983
        %v10985 = vand.u32 %v672, 4294901760
        %10986 = vmatpush1.msra.mxu0 %v10985
        %v10987 = vand.u32 %v669, 4294901760
        %10988 = vmatprep.subr.mxu0 %v10987
        %v10989 = vand.u32 %v668, 4294901760
        %10990 = vmatpush1.msra.mxu0 %v10989
        %v10991 = vand.u32 %v665, 4294901760
        %10992 = vmatprep.subr.mxu0 %v10991
        %v10993 = vand.u32 %v664, 4294901760
        %10994 = vmatpush1.msra.mxu0 %v10993
        %v10995 = vand.u32 %v661, 4294901760
        %10996 = vmatprep.subr.mxu0 %v10995
        %v10997 = vand.u32 %v660, 4294901760
        %10998 = vmatpush1.msra.mxu0 %v10997
        %v10999 = vand.u32 %v657, 4294901760
        %11000 = vmatprep.subr.mxu0 %v10999
        %v11001 = vand.u32 %v656, 4294901760
        %11002 = vmatpush1.msra.mxu0 %v11001
        %v11003 = vand.u32 %v781, 4294901760
        %11004 = vmatprep.subr.mxu0 %v11003
        %v11005 = vand.u32 %v780, 4294901760
        %11006 = vmatpush2.msra.mxu0 %v11005
        %v11007 = vand.u32 %v777, 4294901760
        %11008 = vmatprep.subr.mxu0 %v11007
        %v11009 = vand.u32 %v776, 4294901760
        %11010 = vmatpush2.msra.mxu0 %v11009
        %v11011 = vand.u32 %v773, 4294901760
        %11012 = vmatprep.subr.mxu0 %v11011
        %v11013 = vand.u32 %v772, 4294901760
        %11014 = vmatpush2.msra.mxu0 %v11013
        %v11015 = vand.u32 %v769, 4294901760
        %11016 = vmatprep.subr.mxu0 %v11015
        %v11017 = vand.u32 %v768, 4294901760
        %11018 = vmatpush2.msra.mxu0 %v11017
        %v11019 = vand.u32 %v765, 4294901760
        %11020 = vmatprep.subr.mxu0 %v11019
        %v11021 = vand.u32 %v764, 4294901760
        %11022 = vmatpush2.msra.mxu0 %v11021
        %v11023 = vand.u32 %v761, 4294901760
        %11024 = vmatprep.subr.mxu0 %v11023
        %v11025 = vand.u32 %v760, 4294901760
        %11026 = vmatpush2.msra.mxu0 %v11025
        %v11027 = vand.u32 %v757, 4294901760
        %11028 = vmatprep.subr.mxu0 %v11027
        %v11029 = vand.u32 %v756, 4294901760
        %11030 = vmatpush2.msra.mxu0 %v11029
        %v11031 = vand.u32 %v753, 4294901760
        %11032 = vmatprep.subr.mxu0 %v11031
        %v11033 = vand.u32 %v752, 4294901760
        %11034 = vmatpush2.msra.mxu0 %v11033
        %v11035 = vand.u32 %v749, 4294901760
        %11036 = vmatprep.subr.mxu0 %v11035
        %v11037 = vand.u32 %v748, 4294901760
        %11038 = vmatpush2.msra.mxu0 %v11037
        %v11039 = vand.u32 %v745, 4294901760
        %11040 = vmatprep.subr.mxu0 %v11039
        %v11041 = vand.u32 %v744, 4294901760
        %11042 = vmatpush2.msra.mxu0 %v11041
        %v11043 = vand.u32 %v741, 4294901760
        %11044 = vmatprep.subr.mxu0 %v11043
        %v11045 = vand.u32 %v740, 4294901760
        %11046 = vmatpush2.msra.mxu0 %v11045
        %v11047 = vand.u32 %v737, 4294901760
        %11048 = vmatprep.subr.mxu0 %v11047
        %v11049 = vand.u32 %v736, 4294901760
        %11050 = vmatpush2.msra.mxu0 %v11049
        %v11051 = vand.u32 %v733, 4294901760
        %11052 = vmatprep.subr.mxu0 %v11051
        %v11053 = vand.u32 %v732, 4294901760
        %11054 = vmatpush2.msra.mxu0 %v11053
        %v11055 = vand.u32 %v729, 4294901760
        %11056 = vmatprep.subr.mxu0 %v11055
        %v11057 = vand.u32 %v728, 4294901760
        %11058 = vmatpush2.msra.mxu0 %v11057
        %v11059 = vand.u32 %v725, 4294901760
        %11060 = vmatprep.subr.mxu0 %v11059
        %v11061 = vand.u32 %v724, 4294901760
        %11062 = vmatpush2.msra.mxu0 %v11061
        %v11063 = vand.u32 %v721, 4294901760
        %11064 = vmatprep.subr.mxu0 %v11063
        %v11065 = vand.u32 %v720, 4294901760
        %11066 = vmatpush2.msra.mxu0 %v11065
        %v11067 = vand.u32 %v269, 4294901760
        %11068 = vmatprep.mubr.f32.mxu0 %v11067
        %v11069 = vand.u32 %v268, 4294901760
        %11070 = vmatmul.mubr.f32.gmra.mxu0 %v11069
        %v11071 = vpop.f32.mrf.mxu0
        %v11072 = vadd.f32 %v10935, %v11071
        %v11073 = vpop.f32.mrf.mxu0
        %v11074 = vadd.f32 %v10937, %v11073
        %11075 = vdwg.mxu0
        %11076 = vst [vmem:[%s258] sm:$0xff] %v5936
        %11077 = vst [vmem:[%s258 + $0x8] sm:$0xff] %v5938
        %11078 = vst [vmem:[%s258 + $0x10] sm:$0xff] %v11072
        %11079 = vst [vmem:[%s258 + $0x18] sm:$0xff] %v11074
        %s11080 = sand.u32 %s121, 1
        %s11081 = scalar_lea.sflag [#allocation4], %s11080
        %s11082 = sand.u32 %s121, 1
        %s11083 = smul.addr %s11082, 32
        %s11084 = scalar_lea.vmem [#allocation8], %s11083
        // Predicated region
        $region45: #{tpu_custom_call.1} parent=31 // pred_check
          %p11085 = pneg %p131
        $region46: #{tpu_custom_call.1} parent=31 // pred_check_branch
          %11087 = sbr.rel (%p11085) target = $region48
        $region47: #{tpu_custom_call.1} parent=31 // pred_region
          %s11088 = smul.u32 4, %s25
          %s11090 = ssub.s32 512, 512
          %11091 = vsyncadd %s11081, %s11090
          %s11092 = smul.addr %s26, 8
          %s11093 = sadd.s32 %s11088, %s11092
          %s11094 = smul.addr %s11093, 128
          %s11095 = scalar_lea.hbm %s3, %s11094
          %s11097 = sshll.u32 %s11084, 4
          %s11098 = int_to_ptr.vmem [resolvable:$true] %s11097
          %11100 = dma.vmem_to_hbm [thread:$0]  %s11098, 512, %s11095, %s11081
        $region48: #{tpu_custom_call.1} parent=31 // pred_fallthru
          _
      $region32: #{tpu_custom_call.1} parent=5 // pred_fallthru
        _
      %p11101 = scmp.le.s32.totalorder 2, %s16
      // Predicated region
      $region49: #{tpu_custom_call.1} parent=5 // pred_check
        %p11102 = pneg %p11101
      $region50: #{tpu_custom_call.1} parent=5 // pred_check_branch
        %11104 = sbr.rel (%p11102) target = $region52
      $region51: #{tpu_custom_call.1} parent=5 // pred_region
        %s11105 = ssub.s32 %s16, 2
        // Predicated region
        $region53: #{tpu_custom_call.1} parent=51 // pred_check
          %p11106 = pneg %p137
        $region54: #{tpu_custom_call.1} parent=51 // pred_check_branch
          %11108 = sbr.rel (%p11106) target = $region56
        $region55: #{tpu_custom_call.1} parent=51 // pred_region
          %s11109 = sand.u32 %s122, 1
          %s11110 = scalar_lea.sflag [#allocation4], %s11109
          %s11111 = sand.u32 %s122, 1
          %s11112 = smul.addr %s11111, 32
          %s11113 = scalar_lea.vmem [#allocation8], %s11112
          %11114 = dma.done %s11110, 512
        $region56: #{tpu_custom_call.1} parent=51 // pred_fallthru
          _
      $region52: #{tpu_custom_call.1} parent=5 // pred_fallthru
        _
    $region6: #{tpu_custom_call.1} parent=1 // loop_footer
      %s20 = sadd.s32 1, %s16
    $region7: #{tpu_custom_call.1} parent=1 // loop_footer_branch
      %15 = sbr.rel target = $region3
    $region8: #{tpu_custom_call.1} parent=1 // loop_exit
      _
    %11115 = vsyncpa [#allocation3], 1
    %s11116 = scalar_lea.sflag [#allocation3], 1
    %11117 = vsyncpa %s11116, 1
    %11118 = vsyncpa [#allocation6], 1
    %s11119 = scalar_lea.sflag [#allocation6], 1
    %11120 = vsyncpa %s11119, 1
    %11121 = vsyncpa [#allocation4], 1
    %s11122 = scalar_lea.sflag [#allocation4], 1
    %11123 = vsyncpa %s11122, 1

</llo_original>
